<compile_context>
chip_gen: v6e
topology: v6e:2x2x1
jax: 0.10.0
libtpu: 0.0.40
codegen_flags: <defaults>
</compile_context>

<pallas_src>
import jax
import jax.numpy as jnp
from jax.experimental import pallas as pl
from jax.experimental.pallas import tpu as pltpu


# ----------------------------------------------------------------------------
# Static geometry of the module (input occupancy grids are [B, 6, 10, 70]).
# ----------------------------------------------------------------------------
_IN_C, _IN_H, _IN_W = 6, 10, 70
_C1, _H1, _W1 = 32, _IN_H - 2, _IN_W - 2        # conv1 output: (8, 68, 32)
_PH1, _PW1 = _H1 // 2, _W1 // 2                 # pool1 output: (4, 34, 32)
_C2, _H2, _W2 = 64, _PH1 - 2, _PW1 - 2          # conv2 output: (2, 32, 64)
_PH2, _PW2 = _H2 // 2, _W2 // 2                 # pool2 output: (1, 16, 64)
_FLAT = _PH2 * _PW2 * _C2                       # 1024
_K1 = 3 * 3 * _IN_C                             # 54  (conv1 full-im2col depth)
_K2 = 3 * _C1                                   # 96  (conv2 dy-tap depth)
_ROW_BLK = 40                                   # padded row block in a1c scratch


def _full_spec(shape):
    """BlockSpec covering the whole array (single grid step)."""
    zeros = (0,) * len(shape)
    return pl.BlockSpec(shape, lambda i: zeros)


# ----------------------------------------------------------------------------
# The fused forward kernel
# ----------------------------------------------------------------------------
def _fused_forward_kernel(xim_ref, feat_ref, w1_ref, b1_ref, w2_ref, b2_ref,
                          wf1_hbm, bf1_ref, wf2_ref, bf2_ref,
                          wf3a_ref, wf3b_ref, bf3_ref,
                          o_ref,
                          wf1_vmem, wf1_sem, pool1, a1c, pool2, flat):
    bf16 = jnp.bfloat16
    B = xim_ref.shape[0]

    # Kick off the 1 MiB fc1-weight DMA now; it overlaps all the conv work.
    wf1_copy = pltpu.make_async_copy(wf1_hbm, wf1_vmem, wf1_sem)
    wf1_copy.start()

    w1 = w1_ref[...]                             # (54, 32)  bf16, row = dy*18+dx*6+ci
    b1 = b1_ref[...]                             # (1, 32)   f32
    w2 = w2_ref[...]                             # (96, 192) bf16, row = dy*32+ci, col = dx*64+co
    b2 = b2_ref[...]                             # (1, 64)   f32

    # Zero the conv2 tap-concat scratch once: its padding rows (34..39 and
    # 74..79) are never written and only feed discarded outputs, but keep
    # them finite/deterministic.
    a1c[...] = jnp.zeros_like(a1c)

    for b in range(B):
        # ---- conv1 (im2col) + ReLU + 2x2 max-pool: 1 matmul per pool-row pair
        for p in range(_PH1):
            xt = xim_ref[b, p]                                        # (140, 54) bf16
            m = jnp.dot(xt, w1, preferred_element_type=jnp.float32)   # (140, 32)
            y = jnp.maximum(m + b1, 0.0)                              # ReLU
            # pool over the conv-row pair (rows 0..69 vs 70..139)
            rp = jnp.maximum(y[0:_IN_W], y[_IN_W:2 * _IN_W])          # (70, 32)
            # pair-max over width; pooled values live at the even rows of cm
            cm = jnp.maximum(rp[0:_W1], rp[1:_W1 + 1])                # (68, 32)
            pool1[...] = cm
            a1_p = pool1[pl.ds(0, _PW1, stride=2), :]                 # (34, 32)
            # Scatter this pooled row into the dy-tap-concatenated conv2
            # input: it is tap `dy` of conv2 output row i = p - dy.
            for dy in range(3):
                i = p - dy
                if 0 <= i < _H2:
                    a1c[i * _ROW_BLK:i * _ROW_BLK + _PW1,
                        dy * _C1:(dy + 1) * _C1] = a1_p

        # ---- conv2 + ReLU + 2x2 max-pool: ONE matmul per image ----
        m2 = jnp.dot(a1c[...].astype(bf16), w2,
                     preferred_element_type=jnp.float32)              # (80, 192)
        t2 = (m2[0:2 * _ROW_BLK - 2, 0:_C2]
              + m2[1:2 * _ROW_BLK - 1, _C2:2 * _C2]
              + m2[2:2 * _ROW_BLK, 2 * _C2:3 * _C2])                  # (78, 64)
        y2 = jnp.maximum(t2 + b2, 0.0)
        rp2 = jnp.maximum(y2[0:_W2], y2[_ROW_BLK:_ROW_BLK + _W2])     # (32, 64)
        cm2 = jnp.maximum(rp2[0:_W2 - 1], rp2[1:_W2])                 # (31, 64)
        pool2[0:_W2 - 1, :] = cm2
        p2 = pool2[pl.ds(0, _PW2, stride=2), :]                       # (16, 64)

        # NHWC flatten into the (B, 1024) slab; fc1's weight rows were
        # permuted at prep time to this (w*64 + c) order, so no transpose.
        for q in range(_PW2):
            flat[b:b + 1, q * _C2:(q + 1) * _C2] = p2[q:q + 1, :]

    # ---- fused fc head: relu(fc1) -> relu(fc2) -> fc3 (+ scalar features) ----
    wf1_copy.wait()                                # fc1 weight landed in VMEM
    xf = flat[...].astype(bf16)                    # (B, 1024)
    h1 = jnp.maximum(
        jnp.dot(xf, wf1_vmem[...], preferred_element_type=jnp.float32)
        + bf1_ref[...], 0.0)                       # (B, 512)
    h2 = jnp.maximum(
        jnp.dot(h1.astype(bf16), wf2_ref[...], preferred_element_type=jnp.float32)
        + bf2_ref[...], 0.0)                       # (B, 128)
    out = (jnp.dot(h2.astype(bf16), wf3a_ref[...],
                   preferred_element_type=jnp.float32)
           + bf3_ref[...])                         # (B, num_outputs)
    # K=2 feature path of fc3 as VPU broadcast-FMAs (concat folded into split).
    feats = feat_ref[...]                          # (B, 2) f32
    for j in range(wf3b_ref.shape[0]):
        out = out + feats[:, j:j + 1] * wf3b_ref[j:j + 1, :]
    o_ref[...] = out


# ----------------------------------------------------------------------------
# One-time weight preparation (scale / layout folding, bf16 cast)
# ----------------------------------------------------------------------------
def prepare_params(params):
    f32, bf16 = jnp.float32, jnp.bfloat16

    # conv1: full 3x3 im2col weight, rows = dy*18 + dx*6 + ci, cols = co,
    # with the 1/255 input scale folded in.
    w1 = (jnp.transpose(params['conv1_w'], (2, 3, 1, 0)).reshape(_K1, _C1)
          * (1.0 / 255.0)).astype(bf16)
    # conv2: dy-tap-concatenated weight, rows = dy*32 + ci, cols = dx*64 + co.
    w2 = jnp.transpose(params['conv2_w'], (2, 1, 3, 0)).reshape(_K2, 3 * _C2).astype(bf16)

    fc1 = params['fc1_w']                          # (1024, 512), rows in NCHW order
    # Permute rows from the torch NCHW flatten order (c*16 + w) to the NHWC
    # order produced in-kernel (w*64 + c).
    fc1_nhwc = (fc1.reshape(_C2, _PH2, _PW2, fc1.shape[1])
                .transpose(1, 2, 0, 3).reshape(fc1.shape))
    n_fc2 = params['fc2_w'].shape[1]               # fc3 split point (from fc2 width)

    return {
        'w1': w1,
        'b1': params['conv1_b'].reshape(1, -1).astype(f32),
        'w2': w2,
        'b2': params['conv2_b'].reshape(1, -1).astype(f32),
        'wf1': fc1_nhwc.astype(bf16),
        'bf1': params['fc1_b'].reshape(1, -1).astype(f32),
        'wf2': params['fc2_w'].astype(bf16),
        'bf2': params['fc2_b'].reshape(1, -1).astype(f32),
        'wf3a': params['fc3_w'][:n_fc2, :].astype(bf16),
        'wf3b': params['fc3_w'][n_fc2:, :].astype(f32),
        'bf3': params['fc3_b'].reshape(1, -1).astype(f32),
    }


# ----------------------------------------------------------------------------
# Public forward: tiny XLA prep (transpose + bf16 cast + im2col) + 1 pallas_call
# ----------------------------------------------------------------------------
@jax.jit
def lowres_cnn3d_forward(prepped, img_nchw, features):
    B = img_nchw.shape[0]
    assert img_nchw.shape[1:] == (_IN_C, _IN_H, _IN_W), img_nchw.shape
    num_out = prepped['wf3a'].shape[1]

    # Raw 0..255 pixel values are exact in bf16; the 1/255 scale already lives
    # in conv1's weights.  Build the full conv1 im2col here (~120 KB bf16) so
    # the kernel's conv1 is a single clean matmul per pool-row pair.
    x = jnp.transpose(img_nchw, (0, 2, 3, 1)).astype(jnp.bfloat16)    # (B,10,70,6)
    xp = jnp.pad(x, ((0, 0), (0, 0), (0, 2), (0, 0)))                 # (B,10,72,6)
    taps = [xp[:, dy:dy + _H1, dx:dx + _IN_W, :]
            for dy in range(3) for dx in range(3)]
    xim = jnp.concatenate(taps, axis=-1)                              # (B,8,70,54)
    xim = xim.reshape(B, _PH1, 2 * _IN_W, _K1)                        # (B,4,140,54)
    feats = features.astype(jnp.float32)

    args = (xim, feats,
            prepped['w1'], prepped['b1'], prepped['w2'], prepped['b2'],
            prepped['wf1'], prepped['bf1'], prepped['wf2'], prepped['bf2'],
            prepped['wf3a'], prepped['wf3b'], prepped['bf3'])

    in_specs = [
        _full_spec(xim.shape), _full_spec(feats.shape),
        _full_spec(prepped['w1'].shape), _full_spec(prepped['b1'].shape),
        _full_spec(prepped['w2'].shape), _full_spec(prepped['b2'].shape),
        pl.BlockSpec(memory_space=pl.ANY),         # fc1 weight: manual in-kernel DMA
        _full_spec(prepped['bf1'].shape),
        _full_spec(prepped['wf2'].shape), _full_spec(prepped['bf2'].shape),
        _full_spec(prepped['wf3a'].shape), _full_spec(prepped['wf3b'].shape),
        _full_spec(prepped['bf3'].shape),
    ]

    return pl.pallas_call(
        _fused_forward_kernel,
        out_shape=jax.ShapeDtypeStruct((B, num_out), jnp.float32),
        grid=(1,),
        in_specs=in_specs,
        out_specs=_full_spec((B, num_out)),
        scratch_shapes=[
            pltpu.VMEM(prepped['wf1'].shape, jnp.bfloat16),      # fc1 weight buffer
            pltpu.SemaphoreType.DMA(()),                         # its DMA semaphore
            pltpu.VMEM((_W1, _C1), jnp.float32),                 # conv1 width-pool staging
            pltpu.VMEM((_H2 * _ROW_BLK, _K2), jnp.float32),      # conv2 tap-concat input
            pltpu.VMEM((_W2, _C2), jnp.float32),                 # conv2 width-pool staging
            pltpu.VMEM((B, _FLAT), jnp.float32),                 # flattened conv output
        ],
        compiler_params=pltpu.CompilerParams(
            dimension_semantics=("arbitrary",)),
    )(*args)


# ----------------------------------------------------------------------------
# Plain-JAX reference (f32) of the PyTorch module, for a sanity check
# ----------------------------------------------------------------------------
def _reference_forward(params, img_nchw, features):
    x = img_nchw.astype(jnp.float32) / 255.0
    dn = ('NCHW', 'OIHW', 'NCHW')
    y = jax.lax.conv_general_dilated(x, params['conv1_w'], (1, 1), 'VALID',
                                     dimension_numbers=dn)
    y = jax.nn.relu(y + params['conv1_b'][None, :, None, None])
    y = jax.lax.reduce_window(y, -jnp.inf, jax.lax.max,
                              (1, 1, 2, 2), (1, 1, 2, 2), 'VALID')
    y = jax.lax.conv_general_dilated(y, params['conv2_w'], (1, 1), 'VALID',
                                     dimension_numbers=dn)
    y = jax.nn.relu(y + params['conv2_b'][None, :, None, None])
    y = jax.lax.reduce_window(y, -jnp.inf, jax.lax.max,
                              (1, 1, 2, 2), (1, 1, 2, 2), 'VALID')
    h = y.reshape(y.shape[0], -1)                 # torch.flatten(x, 1) on NCHW
    h = jax.nn.relu(h @ params['fc1_w'] + params['fc1_b'])
    h = jax.nn.relu(h @ params['fc2_w'] + params['fc2_b'])
    h = jnp.concatenate([h, features.astype(jnp.float32)], axis=1)
    return h @ params['fc3_w'] + params['fc3_b']


# ----------------------------------------------------------------------------
# Deterministic parameter initialization (kaiming-normal weights, zero biases)
# ----------------------------------------------------------------------------
def init_params(key, num_outputs):
    ks = jax.random.split(key, 5)

    def kaiming(k, shape, fan_in):
        return jax.random.normal(k, shape, jnp.float32) * jnp.sqrt(2.0 / fan_in)

    return {
        'conv1_w': kaiming(ks[0], (32, 6, 3, 3), 6 * 9),
        'conv1_b': jnp.zeros((32,), jnp.float32),
        'conv2_w': kaiming(ks[1], (64, 32, 3, 3), 32 * 9),
        'conv2_b': jnp.zeros((64,), jnp.float32),
        'fc1_w': kaiming(ks[2], (1024, 512), 1024),
        'fc1_b': jnp.zeros((512,), jnp.float32),
        'fc2_w': kaiming(ks[3], (512, 128), 512),
        'fc2_b': jnp.zeros((128,), jnp.float32),
        'fc3_w': kaiming(ks[4], (130, num_outputs), 130),
        'fc3_b': jnp.zeros((num_outputs,), jnp.float32),
    }


if __name__ == "__main__":
    key = jax.random.PRNGKey(0)
    k_img, k_feat, k_param = jax.random.split(key, 3)

    B, num_outputs = 2, 8
    # occupancy grid sequence: (B, 6, 10, 70) uint8-style values in [0, 255]
    img = jax.random.randint(k_img, (B, _IN_C, _IN_H, _IN_W), 0, 256).astype(jnp.float32)
    features = jax.random.normal(k_feat, (B, 2), jnp.float32)

    params = init_params(k_param, num_outputs)
    prepped = prepare_params(params)

    out = lowres_cnn3d_forward(prepped, img, features)
    out = jax.block_until_ready(out)
    assert out.shape == (B, num_outputs), out.shape
    assert out.dtype == jnp.float32

    # Loose-tolerance check vs. the f32 reference (weights run in bf16 on MXU).
    ref = _reference_forward(params, img, features)
    assert jnp.allclose(out, ref, rtol=0.1, atol=0.5), \
        float(jnp.max(jnp.abs(out - ref)))

    print("KERNEL_OK")
</pallas_src>

<mosaic_0001>
module attributes {stable_mosaic.version = 11 : i64} {
  func.func @_fused_forward_kernel(%arg0: i32, %arg1: memref<2x4x140x54xbf16, #tpu.memory_space<vmem>>, %arg2: memref<2x2xf32, #tpu.memory_space<vmem>>, %arg3: memref<54x32xbf16, #tpu.memory_space<vmem>>, %arg4: memref<1x32xf32, #tpu.memory_space<vmem>>, %arg5: memref<96x192xbf16, #tpu.memory_space<vmem>>, %arg6: memref<1x64xf32, #tpu.memory_space<vmem>>, %arg7: memref<1024x512xbf16, #tpu.memory_space<any>>, %arg8: memref<1x512xf32, #tpu.memory_space<vmem>>, %arg9: memref<512x128xbf16, #tpu.memory_space<vmem>>, %arg10: memref<1x128xf32, #tpu.memory_space<vmem>>, %arg11: memref<128x8xbf16, #tpu.memory_space<vmem>>, %arg12: memref<2x8xf32, #tpu.memory_space<vmem>>, %arg13: memref<1x8xf32, #tpu.memory_space<vmem>>, %arg14: memref<2x8xf32, #tpu.memory_space<vmem>>, %arg15: memref<1024x512xbf16, #tpu.memory_space<vmem>>, %arg16: memref<!tpu.dma_semaphore, #tpu.memory_space<semaphore_mem>>, %arg17: memref<68x32xf32, #tpu.memory_space<vmem>>, %arg18: memref<80x96xf32, #tpu.memory_space<vmem>>, %arg19: memref<32x64xf32, #tpu.memory_space<vmem>>, %arg20: memref<2x1024xf32, #tpu.memory_space<vmem>>) attributes {dimension_semantics = [#tpu.dimension_semantics<arbitrary>], iteration_bounds = array<i64: 1>, scalar_prefetch = 0 : i64, scratch_operands = 6 : i64, tpu.core_type = #tpu.core_type<tc>, window_params = [{pipeline_mode = #tpu.pipeline_mode<synchronous>, transform_indices = @transform_0, window_bounds = array<i64: 2, 4, 140, 54>}, {pipeline_mode = #tpu.pipeline_mode<synchronous>, transform_indices = @transform_1, window_bounds = array<i64: 2, 2>}, {pipeline_mode = #tpu.pipeline_mode<synchronous>, transform_indices = @transform_2, window_bounds = array<i64: 54, 32>}, {pipeline_mode = #tpu.pipeline_mode<synchronous>, transform_indices = @transform_3, window_bounds = array<i64: 1, 32>}, {pipeline_mode = #tpu.pipeline_mode<synchronous>, transform_indices = @transform_4, window_bounds = array<i64: 96, 192>}, {pipeline_mode = #tpu.pipeline_mode<synchronous>, transform_indices = @transform_5, window_bounds = array<i64: 1, 64>}, {}, {pipeline_mode = #tpu.pipeline_mode<synchronous>, transform_indices = @transform_7, window_bounds = array<i64: 1, 512>}, {pipeline_mode = #tpu.pipeline_mode<synchronous>, transform_indices = @transform_8, window_bounds = array<i64: 512, 128>}, {pipeline_mode = #tpu.pipeline_mode<synchronous>, transform_indices = @transform_9, window_bounds = array<i64: 1, 128>}, {pipeline_mode = #tpu.pipeline_mode<synchronous>, transform_indices = @transform_10, window_bounds = array<i64: 128, 8>}, {pipeline_mode = #tpu.pipeline_mode<synchronous>, transform_indices = @transform_11, window_bounds = array<i64: 2, 8>}, {pipeline_mode = #tpu.pipeline_mode<synchronous>, transform_indices = @transform_12, window_bounds = array<i64: 1, 8>}, {pipeline_mode = #tpu.pipeline_mode<synchronous>, transform_indices = @transform_13, window_bounds = array<i64: 2, 8>}]} {
    tpu.enqueue_dma source(%arg7 : memref<1024x512xbf16, #tpu.memory_space<any>>) target(%arg15 : memref<1024x512xbf16, #tpu.memory_space<vmem>>) target_semaphore(%arg16 : memref<!tpu.dma_semaphore, #tpu.memory_space<semaphore_mem>>)
    %c0 = arith.constant 0 : index
    %c0_0 = arith.constant 0 : index
    %0 = vector.load %arg3[%c0, %c0_0] : memref<54x32xbf16, #tpu.memory_space<vmem>>, vector<54x32xbf16>
    %c0_1 = arith.constant 0 : index
    %c0_2 = arith.constant 0 : index
    %1 = vector.load %arg4[%c0_1, %c0_2] : memref<1x32xf32, #tpu.memory_space<vmem>>, vector<1x32xf32>
    %c0_3 = arith.constant 0 : index
    %c0_4 = arith.constant 0 : index
    %2 = vector.load %arg5[%c0_3, %c0_4] : memref<96x192xbf16, #tpu.memory_space<vmem>>, vector<96x192xbf16>
    %c0_5 = arith.constant 0 : index
    %c0_6 = arith.constant 0 : index
    %3 = vector.load %arg6[%c0_5, %c0_6] : memref<1x64xf32, #tpu.memory_space<vmem>>, vector<1x64xf32>
    %cst = arith.constant 0.000000e+00 : f32
    %4 = vector.broadcast %cst : f32 to vector<80x96xf32>
    %c0_7 = arith.constant 0 : index
    %c0_8 = arith.constant 0 : index
    %5 = vector.load %arg18[%c0_7, %c0_8] : memref<80x96xf32, #tpu.memory_space<vmem>>, vector<80x96xf32>
    tpu.vector_store %arg18[%c0_7, %c0_8], %4 {strides = array<i32>} : memref<80x96xf32, #tpu.memory_space<vmem>>, vector<80x96xf32>,
    %c0_9 = arith.constant 0 : index
    %c0_10 = arith.constant 0 : index
    %c0_11 = arith.constant 0 : index
    %c0_12 = arith.constant 0 : index
    %6 = vector.load %arg1[%c0_9, %c0_10, %c0_11, %c0_12] : memref<2x4x140x54xbf16, #tpu.memory_space<vmem>>, vector<1x1x140x54xbf16>
    %7 = vector.shape_cast %6 : vector<1x1x140x54xbf16> to vector<140x54xbf16>
    %cst_13 = arith.constant dense<0.000000e+00> : vector<140x32xf32>
    %8 = tpu.matmul %7, %0, %cst_13 {dimension_numbers = #tpu.dot_dimension_numbers<[1], [0], [0], [1], [0, 0, 1, 1], [], []>} : vector<140x54xbf16>, vector<54x32xbf16>, vector<140x32xf32> -> vector<140x32xf32>
    %9 = vector.broadcast %1 : vector<1x32xf32> to vector<140x32xf32>
    %10 = arith.addf %8, %9 : vector<140x32xf32>
    %cst_14 = arith.constant 0.000000e+00 : f32
    %11 = vector.broadcast %cst_14 : f32 to vector<140x32xf32>
    %12 = arith.maximumf %10, %11 : vector<140x32xf32>
    %13 = vector.extract_strided_slice %12 {offsets = [0, 0], sizes = [70, 32], strides = [1, 1]} : vector<140x32xf32> to vector<70x32xf32>
    %14 = vector.extract_strided_slice %12 {offsets = [70, 0], sizes = [70, 32], strides = [1, 1]} : vector<140x32xf32> to vector<70x32xf32>
    %15 = arith.maximumf %13, %14 : vector<70x32xf32>
    %16 = vector.extract_strided_slice %15 {offsets = [0, 0], sizes = [68, 32], strides = [1, 1]} : vector<70x32xf32> to vector<68x32xf32>
    %17 = vector.extract_strided_slice %15 {offsets = [1, 0], sizes = [68, 32], strides = [1, 1]} : vector<70x32xf32> to vector<68x32xf32>
    %18 = arith.maximumf %16, %17 : vector<68x32xf32>
    %c0_15 = arith.constant 0 : index
    %c0_16 = arith.constant 0 : index
    %19 = vector.load %arg17[%c0_15, %c0_16] : memref<68x32xf32, #tpu.memory_space<vmem>>, vector<68x32xf32>
    tpu.vector_store %arg17[%c0_15, %c0_16], %18 {strides = array<i32>} : memref<68x32xf32, #tpu.memory_space<vmem>>, vector<68x32xf32>,
    %c0_17 = arith.constant 0 : index
    %c0_18 = arith.constant 0 : index
    %20 = tpu.strided_load %arg17[%c0_17, %c0_18] {strides = array<i32: 2, 1>} : memref<68x32xf32, #tpu.memory_space<vmem>>, vector<34x32xf32>
    %c0_19 = arith.constant 0 : index
    %c0_20 = arith.constant 0 : index
    %21 = vector.load %arg18[%c0_19, %c0_20] : memref<80x96xf32, #tpu.memory_space<vmem>>, vector<34x32xf32>
    tpu.vector_store %arg18[%c0_19, %c0_20], %20 {strides = array<i32>} : memref<80x96xf32, #tpu.memory_space<vmem>>, vector<34x32xf32>,
    %c0_21 = arith.constant 0 : index
    %c1 = arith.constant 1 : index
    %c0_22 = arith.constant 0 : index
    %c0_23 = arith.constant 0 : index
    %22 = vector.load %arg1[%c0_21, %c1, %c0_22, %c0_23] : memref<2x4x140x54xbf16, #tpu.memory_space<vmem>>, vector<1x1x140x54xbf16>
    %23 = vector.shape_cast %22 : vector<1x1x140x54xbf16> to vector<140x54xbf16>
    %cst_24 = arith.constant dense<0.000000e+00> : vector<140x32xf32>
    %24 = tpu.matmul %23, %0, %cst_24 {dimension_numbers = #tpu.dot_dimension_numbers<[1], [0], [0], [1], [0, 0, 1, 1], [], []>} : vector<140x54xbf16>, vector<54x32xbf16>, vector<140x32xf32> -> vector<140x32xf32>
    %25 = vector.broadcast %1 : vector<1x32xf32> to vector<140x32xf32>
    %26 = arith.addf %24, %25 : vector<140x32xf32>
    %cst_25 = arith.constant 0.000000e+00 : f32
    %27 = vector.broadcast %cst_25 : f32 to vector<140x32xf32>
    %28 = arith.maximumf %26, %27 : vector<140x32xf32>
    %29 = vector.extract_strided_slice %28 {offsets = [0, 0], sizes = [70, 32], strides = [1, 1]} : vector<140x32xf32> to vector<70x32xf32>
    %30 = vector.extract_strided_slice %28 {offsets = [70, 0], sizes = [70, 32], strides = [1, 1]} : vector<140x32xf32> to vector<70x32xf32>
    %31 = arith.maximumf %29, %30 : vector<70x32xf32>
    %32 = vector.extract_strided_slice %31 {offsets = [0, 0], sizes = [68, 32], strides = [1, 1]} : vector<70x32xf32> to vector<68x32xf32>
    %33 = vector.extract_strided_slice %31 {offsets = [1, 0], sizes = [68, 32], strides = [1, 1]} : vector<70x32xf32> to vector<68x32xf32>
    %34 = arith.maximumf %32, %33 : vector<68x32xf32>
    %c0_26 = arith.constant 0 : index
    %c0_27 = arith.constant 0 : index
    %35 = vector.load %arg17[%c0_26, %c0_27] : memref<68x32xf32, #tpu.memory_space<vmem>>, vector<68x32xf32>
    tpu.vector_store %arg17[%c0_26, %c0_27], %34 {strides = array<i32>} : memref<68x32xf32, #tpu.memory_space<vmem>>, vector<68x32xf32>,
    %c0_28 = arith.constant 0 : index
    %c0_29 = arith.constant 0 : index
    %36 = tpu.strided_load %arg17[%c0_28, %c0_29] {strides = array<i32: 2, 1>} : memref<68x32xf32, #tpu.memory_space<vmem>>, vector<34x32xf32>
    %c40 = arith.constant 40 : index
    %c0_30 = arith.constant 0 : index
    %37 = vector.load %arg18[%c40, %c0_30] : memref<80x96xf32, #tpu.memory_space<vmem>>, vector<34x32xf32>
    tpu.vector_store %arg18[%c40, %c0_30], %36 {strides = array<i32>} : memref<80x96xf32, #tpu.memory_space<vmem>>, vector<34x32xf32>,
    %c0_31 = arith.constant 0 : index
    %c32 = arith.constant 32 : index
    %38 = vector.load %arg18[%c0_31, %c32] : memref<80x96xf32, #tpu.memory_space<vmem>>, vector<34x32xf32>
    tpu.vector_store %arg18[%c0_31, %c32], %36 {strides = array<i32>} : memref<80x96xf32, #tpu.memory_space<vmem>>, vector<34x32xf32>,
    %c0_32 = arith.constant 0 : index
    %c2 = arith.constant 2 : index
    %c0_33 = arith.constant 0 : index
    %c0_34 = arith.constant 0 : index
    %39 = vector.load %arg1[%c0_32, %c2, %c0_33, %c0_34] : memref<2x4x140x54xbf16, #tpu.memory_space<vmem>>, vector<1x1x140x54xbf16>
    %40 = vector.shape_cast %39 : vector<1x1x140x54xbf16> to vector<140x54xbf16>
    %cst_35 = arith.constant dense<0.000000e+00> : vector<140x32xf32>
    %41 = tpu.matmul %40, %0, %cst_35 {dimension_numbers = #tpu.dot_dimension_numbers<[1], [0], [0], [1], [0, 0, 1, 1], [], []>} : vector<140x54xbf16>, vector<54x32xbf16>, vector<140x32xf32> -> vector<140x32xf32>
    %42 = vector.broadcast %1 : vector<1x32xf32> to vector<140x32xf32>
    %43 = arith.addf %41, %42 : vector<140x32xf32>
    %cst_36 = arith.constant 0.000000e+00 : f32
    %44 = vector.broadcast %cst_36 : f32 to vector<140x32xf32>
    %45 = arith.maximumf %43, %44 : vector<140x32xf32>
    %46 = vector.extract_strided_slice %45 {offsets = [0, 0], sizes = [70, 32], strides = [1, 1]} : vector<140x32xf32> to vector<70x32xf32>
    %47 = vector.extract_strided_slice %45 {offsets = [70, 0], sizes = [70, 32], strides = [1, 1]} : vector<140x32xf32> to vector<70x32xf32>
    %48 = arith.maximumf %46, %47 : vector<70x32xf32>
    %49 = vector.extract_strided_slice %48 {offsets = [0, 0], sizes = [68, 32], strides = [1, 1]} : vector<70x32xf32> to vector<68x32xf32>
    %50 = vector.extract_strided_slice %48 {offsets = [1, 0], sizes = [68, 32], strides = [1, 1]} : vector<70x32xf32> to vector<68x32xf32>
    %51 = arith.maximumf %49, %50 : vector<68x32xf32>
    %c0_37 = arith.constant 0 : index
    %c0_38 = arith.constant 0 : index
    %52 = vector.load %arg17[%c0_37, %c0_38] : memref<68x32xf32, #tpu.memory_space<vmem>>, vector<68x32xf32>
    tpu.vector_store %arg17[%c0_37, %c0_38], %51 {strides = array<i32>} : memref<68x32xf32, #tpu.memory_space<vmem>>, vector<68x32xf32>,
    %c0_39 = arith.constant 0 : index
    %c0_40 = arith.constant 0 : index
    %53 = tpu.strided_load %arg17[%c0_39, %c0_40] {strides = array<i32: 2, 1>} : memref<68x32xf32, #tpu.memory_space<vmem>>, vector<34x32xf32>
    %c40_41 = arith.constant 40 : index
    %c32_42 = arith.constant 32 : index
    %54 = vector.load %arg18[%c40_41, %c32_42] : memref<80x96xf32, #tpu.memory_space<vmem>>, vector<34x32xf32>
    tpu.vector_store %arg18[%c40_41, %c32_42], %53 {strides = array<i32>} : memref<80x96xf32, #tpu.memory_space<vmem>>, vector<34x32xf32>,
    %c0_43 = arith.constant 0 : index
    %c64 = arith.constant 64 : index
    %55 = vector.load %arg18[%c0_43, %c64] : memref<80x96xf32, #tpu.memory_space<vmem>>, vector<34x32xf32>
    tpu.vector_store %arg18[%c0_43, %c64], %53 {strides = array<i32>} : memref<80x96xf32, #tpu.memory_space<vmem>>, vector<34x32xf32>,
    %c0_44 = arith.constant 0 : index
    %c3 = arith.constant 3 : index
    %c0_45 = arith.constant 0 : index
    %c0_46 = arith.constant 0 : index
    %56 = vector.load %arg1[%c0_44, %c3, %c0_45, %c0_46] : memref<2x4x140x54xbf16, #tpu.memory_space<vmem>>, vector<1x1x140x54xbf16>
    %57 = vector.shape_cast %56 : vector<1x1x140x54xbf16> to vector<140x54xbf16>
    %cst_47 = arith.constant dense<0.000000e+00> : vector<140x32xf32>
    %58 = tpu.matmul %57, %0, %cst_47 {dimension_numbers = #tpu.dot_dimension_numbers<[1], [0], [0], [1], [0, 0, 1, 1], [], []>} : vector<140x54xbf16>, vector<54x32xbf16>, vector<140x32xf32> -> vector<140x32xf32>
    %59 = vector.broadcast %1 : vector<1x32xf32> to vector<140x32xf32>
    %60 = arith.addf %58, %59 : vector<140x32xf32>
    %cst_48 = arith.constant 0.000000e+00 : f32
    %61 = vector.broadcast %cst_48 : f32 to vector<140x32xf32>
    %62 = arith.maximumf %60, %61 : vector<140x32xf32>
    %63 = vector.extract_strided_slice %62 {offsets = [0, 0], sizes = [70, 32], strides = [1, 1]} : vector<140x32xf32> to vector<70x32xf32>
    %64 = vector.extract_strided_slice %62 {offsets = [70, 0], sizes = [70, 32], strides = [1, 1]} : vector<140x32xf32> to vector<70x32xf32>
    %65 = arith.maximumf %63, %64 : vector<70x32xf32>
    %66 = vector.extract_strided_slice %65 {offsets = [0, 0], sizes = [68, 32], strides = [1, 1]} : vector<70x32xf32> to vector<68x32xf32>
    %67 = vector.extract_strided_slice %65 {offsets = [1, 0], sizes = [68, 32], strides = [1, 1]} : vector<70x32xf32> to vector<68x32xf32>
    %68 = arith.maximumf %66, %67 : vector<68x32xf32>
    %c0_49 = arith.constant 0 : index
    %c0_50 = arith.constant 0 : index
    %69 = vector.load %arg17[%c0_49, %c0_50] : memref<68x32xf32, #tpu.memory_space<vmem>>, vector<68x32xf32>
    tpu.vector_store %arg17[%c0_49, %c0_50], %68 {strides = array<i32>} : memref<68x32xf32, #tpu.memory_space<vmem>>, vector<68x32xf32>,
    %c0_51 = arith.constant 0 : index
    %c0_52 = arith.constant 0 : index
    %70 = tpu.strided_load %arg17[%c0_51, %c0_52] {strides = array<i32: 2, 1>} : memref<68x32xf32, #tpu.memory_space<vmem>>, vector<34x32xf32>
    %c40_53 = arith.constant 40 : index
    %c64_54 = arith.constant 64 : index
    %71 = vector.load %arg18[%c40_53, %c64_54] : memref<80x96xf32, #tpu.memory_space<vmem>>, vector<34x32xf32>
    tpu.vector_store %arg18[%c40_53, %c64_54], %70 {strides = array<i32>} : memref<80x96xf32, #tpu.memory_space<vmem>>, vector<34x32xf32>,
    %c0_55 = arith.constant 0 : index
    %c0_56 = arith.constant 0 : index
    %72 = vector.load %arg18[%c0_55, %c0_56] : memref<80x96xf32, #tpu.memory_space<vmem>>, vector<80x96xf32>
    %73 = arith.truncf %72 : vector<80x96xf32> to vector<80x96xbf16>
    %cst_57 = arith.constant dense<0.000000e+00> : vector<80x192xf32>
    %74 = tpu.matmul %73, %2, %cst_57 {dimension_numbers = #tpu.dot_dimension_numbers<[1], [0], [0], [1], [0, 0, 1, 1], [], []>} : vector<80x96xbf16>, vector<96x192xbf16>, vector<80x192xf32> -> vector<80x192xf32>
    %75 = vector.extract_strided_slice %74 {offsets = [0, 0], sizes = [78, 64], strides = [1, 1]} : vector<80x192xf32> to vector<78x64xf32>
    %76 = vector.extract_strided_slice %74 {offsets = [1, 64], sizes = [78, 64], strides = [1, 1]} : vector<80x192xf32> to vector<78x64xf32>
    %77 = arith.addf %75, %76 : vector<78x64xf32>
    %78 = vector.extract_strided_slice %74 {offsets = [2, 128], sizes = [78, 64], strides = [1, 1]} : vector<80x192xf32> to vector<78x64xf32>
    %79 = arith.addf %77, %78 : vector<78x64xf32>
    %80 = vector.broadcast %3 : vector<1x64xf32> to vector<78x64xf32>
    %81 = arith.addf %79, %80 : vector<78x64xf32>
    %cst_58 = arith.constant 0.000000e+00 : f32
    %82 = vector.broadcast %cst_58 : f32 to vector<78x64xf32>
    %83 = arith.maximumf %81, %82 : vector<78x64xf32>
    %84 = vector.extract_strided_slice %83 {offsets = [0, 0], sizes = [32, 64], strides = [1, 1]} : vector<78x64xf32> to vector<32x64xf32>
    %85 = vector.extract_strided_slice %83 {offsets = [40, 0], sizes = [32, 64], strides = [1, 1]} : vector<78x64xf32> to vector<32x64xf32>
    %86 = arith.maximumf %84, %85 : vector<32x64xf32>
    %87 = vector.extract_strided_slice %86 {offsets = [0, 0], sizes = [31, 64], strides = [1, 1]} : vector<32x64xf32> to vector<31x64xf32>
    %88 = vector.extract_strided_slice %86 {offsets = [1, 0], sizes = [31, 64], strides = [1, 1]} : vector<32x64xf32> to vector<31x64xf32>
    %89 = arith.maximumf %87, %88 : vector<31x64xf32>
    %c0_59 = arith.constant 0 : index
    %c0_60 = arith.constant 0 : index
    %90 = vector.load %arg19[%c0_59, %c0_60] : memref<32x64xf32, #tpu.memory_space<vmem>>, vector<31x64xf32>
    tpu.vector_store %arg19[%c0_59, %c0_60], %89 {strides = array<i32>} : memref<32x64xf32, #tpu.memory_space<vmem>>, vector<31x64xf32>,
    %c0_61 = arith.constant 0 : index
    %c0_62 = arith.constant 0 : index
    %91 = tpu.strided_load %arg19[%c0_61, %c0_62] {strides = array<i32: 2, 1>} : memref<32x64xf32, #tpu.memory_space<vmem>>, vector<16x64xf32>
    %92 = vector.extract_strided_slice %91 {offsets = [0, 0], sizes = [1, 64], strides = [1, 1]} : vector<16x64xf32> to vector<1x64xf32>
    %c0_63 = arith.constant 0 : index
    %c0_64 = arith.constant 0 : index
    %93 = vector.load %arg20[%c0_63, %c0_64] : memref<2x1024xf32, #tpu.memory_space<vmem>>, vector<1x64xf32>
    tpu.vector_store %arg20[%c0_63, %c0_64], %92 {strides = array<i32>} : memref<2x1024xf32, #tpu.memory_space<vmem>>, vector<1x64xf32>,
    %94 = vector.extract_strided_slice %91 {offsets = [1, 0], sizes = [1, 64], strides = [1, 1]} : vector<16x64xf32> to vector<1x64xf32>
    %c0_65 = arith.constant 0 : index
    %c64_66 = arith.constant 64 : index
    %95 = vector.load %arg20[%c0_65, %c64_66] : memref<2x1024xf32, #tpu.memory_space<vmem>>, vector<1x64xf32>
    tpu.vector_store %arg20[%c0_65, %c64_66], %94 {strides = array<i32>} : memref<2x1024xf32, #tpu.memory_space<vmem>>, vector<1x64xf32>,
    %96 = vector.extract_strided_slice %91 {offsets = [2, 0], sizes = [1, 64], strides = [1, 1]} : vector<16x64xf32> to vector<1x64xf32>
    %c0_67 = arith.constant 0 : index
    %c128 = arith.constant 128 : index
    %97 = vector.load %arg20[%c0_67, %c128] : memref<2x1024xf32, #tpu.memory_space<vmem>>, vector<1x64xf32>
    tpu.vector_store %arg20[%c0_67, %c128], %96 {strides = array<i32>} : memref<2x1024xf32, #tpu.memory_space<vmem>>, vector<1x64xf32>,
    %98 = vector.extract_strided_slice %91 {offsets = [3, 0], sizes = [1, 64], strides = [1, 1]} : vector<16x64xf32> to vector<1x64xf32>
    %c0_68 = arith.constant 0 : index
    %c192 = arith.constant 192 : index
    %99 = vector.load %arg20[%c0_68, %c192] : memref<2x1024xf32, #tpu.memory_space<vmem>>, vector<1x64xf32>
    tpu.vector_store %arg20[%c0_68, %c192], %98 {strides = array<i32>} : memref<2x1024xf32, #tpu.memory_space<vmem>>, vector<1x64xf32>,
    %100 = vector.extract_strided_slice %91 {offsets = [4, 0], sizes = [1, 64], strides = [1, 1]} : vector<16x64xf32> to vector<1x64xf32>
    %c0_69 = arith.constant 0 : index
    %c256 = arith.constant 256 : index
    %101 = vector.load %arg20[%c0_69, %c256] : memref<2x1024xf32, #tpu.memory_space<vmem>>, vector<1x64xf32>
    tpu.vector_store %arg20[%c0_69, %c256], %100 {strides = array<i32>} : memref<2x1024xf32, #tpu.memory_space<vmem>>, vector<1x64xf32>,
    %102 = vector.extract_strided_slice %91 {offsets = [5, 0], sizes = [1, 64], strides = [1, 1]} : vector<16x64xf32> to vector<1x64xf32>
    %c0_70 = arith.constant 0 : index
    %c320 = arith.constant 320 : index
    %103 = vector.load %arg20[%c0_70, %c320] : memref<2x1024xf32, #tpu.memory_space<vmem>>, vector<1x64xf32>
    tpu.vector_store %arg20[%c0_70, %c320], %102 {strides = array<i32>} : memref<2x1024xf32, #tpu.memory_space<vmem>>, vector<1x64xf32>,
    %104 = vector.extract_strided_slice %91 {offsets = [6, 0], sizes = [1, 64], strides = [1, 1]} : vector<16x64xf32> to vector<1x64xf32>
    %c0_71 = arith.constant 0 : index
    %c384 = arith.constant 384 : index
    %105 = vector.load %arg20[%c0_71, %c384] : memref<2x1024xf32, #tpu.memory_space<vmem>>, vector<1x64xf32>
    tpu.vector_store %arg20[%c0_71, %c384], %104 {strides = array<i32>} : memref<2x1024xf32, #tpu.memory_space<vmem>>, vector<1x64xf32>,
    %106 = vector.extract_strided_slice %91 {offsets = [7, 0], sizes = [1, 64], strides = [1, 1]} : vector<16x64xf32> to vector<1x64xf32>
    %c0_72 = arith.constant 0 : index
    %c448 = arith.constant 448 : index
    %107 = vector.load %arg20[%c0_72, %c448] : memref<2x1024xf32, #tpu.memory_space<vmem>>, vector<1x64xf32>
    tpu.vector_store %arg20[%c0_72, %c448], %106 {strides = array<i32>} : memref<2x1024xf32, #tpu.memory_space<vmem>>, vector<1x64xf32>,
    %108 = vector.extract_strided_slice %91 {offsets = [8, 0], sizes = [1, 64], strides = [1, 1]} : vector<16x64xf32> to vector<1x64xf32>
    %c0_73 = arith.constant 0 : index
    %c512 = arith.constant 512 : index
    %109 = vector.load %arg20[%c0_73, %c512] : memref<2x1024xf32, #tpu.memory_space<vmem>>, vector<1x64xf32>
    tpu.vector_store %arg20[%c0_73, %c512], %108 {strides = array<i32>} : memref<2x1024xf32, #tpu.memory_space<vmem>>, vector<1x64xf32>,
    %110 = vector.extract_strided_slice %91 {offsets = [9, 0], sizes = [1, 64], strides = [1, 1]} : vector<16x64xf32> to vector<1x64xf32>
    %c0_74 = arith.constant 0 : index
    %c576 = arith.constant 576 : index
    %111 = vector.load %arg20[%c0_74, %c576] : memref<2x1024xf32, #tpu.memory_space<vmem>>, vector<1x64xf32>
    tpu.vector_store %arg20[%c0_74, %c576], %110 {strides = array<i32>} : memref<2x1024xf32, #tpu.memory_space<vmem>>, vector<1x64xf32>,
    %112 = vector.extract_strided_slice %91 {offsets = [10, 0], sizes = [1, 64], strides = [1, 1]} : vector<16x64xf32> to vector<1x64xf32>
    %c0_75 = arith.constant 0 : index
    %c640 = arith.constant 640 : index
    %113 = vector.load %arg20[%c0_75, %c640] : memref<2x1024xf32, #tpu.memory_space<vmem>>, vector<1x64xf32>
    tpu.vector_store %arg20[%c0_75, %c640], %112 {strides = array<i32>} : memref<2x1024xf32, #tpu.memory_space<vmem>>, vector<1x64xf32>,
    %114 = vector.extract_strided_slice %91 {offsets = [11, 0], sizes = [1, 64], strides = [1, 1]} : vector<16x64xf32> to vector<1x64xf32>
    %c0_76 = arith.constant 0 : index
    %c704 = arith.constant 704 : index
    %115 = vector.load %arg20[%c0_76, %c704] : memref<2x1024xf32, #tpu.memory_space<vmem>>, vector<1x64xf32>
    tpu.vector_store %arg20[%c0_76, %c704], %114 {strides = array<i32>} : memref<2x1024xf32, #tpu.memory_space<vmem>>, vector<1x64xf32>,
    %116 = vector.extract_strided_slice %91 {offsets = [12, 0], sizes = [1, 64], strides = [1, 1]} : vector<16x64xf32> to vector<1x64xf32>
    %c0_77 = arith.constant 0 : index
    %c768 = arith.constant 768 : index
    %117 = vector.load %arg20[%c0_77, %c768] : memref<2x1024xf32, #tpu.memory_space<vmem>>, vector<1x64xf32>
    tpu.vector_store %arg20[%c0_77, %c768], %116 {strides = array<i32>} : memref<2x1024xf32, #tpu.memory_space<vmem>>, vector<1x64xf32>,
    %118 = vector.extract_strided_slice %91 {offsets = [13, 0], sizes = [1, 64], strides = [1, 1]} : vector<16x64xf32> to vector<1x64xf32>
    %c0_78 = arith.constant 0 : index
    %c832 = arith.constant 832 : index
    %119 = vector.load %arg20[%c0_78, %c832] : memref<2x1024xf32, #tpu.memory_space<vmem>>, vector<1x64xf32>
    tpu.vector_store %arg20[%c0_78, %c832], %118 {strides = array<i32>} : memref<2x1024xf32, #tpu.memory_space<vmem>>, vector<1x64xf32>,
    %120 = vector.extract_strided_slice %91 {offsets = [14, 0], sizes = [1, 64], strides = [1, 1]} : vector<16x64xf32> to vector<1x64xf32>
    %c0_79 = arith.constant 0 : index
    %c896 = arith.constant 896 : index
    %121 = vector.load %arg20[%c0_79, %c896] : memref<2x1024xf32, #tpu.memory_space<vmem>>, vector<1x64xf32>
    tpu.vector_store %arg20[%c0_79, %c896], %120 {strides = array<i32>} : memref<2x1024xf32, #tpu.memory_space<vmem>>, vector<1x64xf32>,
    %122 = vector.extract_strided_slice %91 {offsets = [15, 0], sizes = [1, 64], strides = [1, 1]} : vector<16x64xf32> to vector<1x64xf32>
    %c0_80 = arith.constant 0 : index
    %c960 = arith.constant 960 : index
    %123 = vector.load %arg20[%c0_80, %c960] : memref<2x1024xf32, #tpu.memory_space<vmem>>, vector<1x64xf32>
    tpu.vector_store %arg20[%c0_80, %c960], %122 {strides = array<i32>} : memref<2x1024xf32, #tpu.memory_space<vmem>>, vector<1x64xf32>,
    %c1_81 = arith.constant 1 : index
    %c0_82 = arith.constant 0 : index
    %c0_83 = arith.constant 0 : index
    %c0_84 = arith.constant 0 : index
    %124 = vector.load %arg1[%c1_81, %c0_82, %c0_83, %c0_84] : memref<2x4x140x54xbf16, #tpu.memory_space<vmem>>, vector<1x1x140x54xbf16>
    %125 = vector.shape_cast %124 : vector<1x1x140x54xbf16> to vector<140x54xbf16>
    %cst_85 = arith.constant dense<0.000000e+00> : vector<140x32xf32>
    %126 = tpu.matmul %125, %0, %cst_85 {dimension_numbers = #tpu.dot_dimension_numbers<[1], [0], [0], [1], [0, 0, 1, 1], [], []>} : vector<140x54xbf16>, vector<54x32xbf16>, vector<140x32xf32> -> vector<140x32xf32>
    %127 = vector.broadcast %1 : vector<1x32xf32> to vector<140x32xf32>
    %128 = arith.addf %126, %127 : vector<140x32xf32>
    %cst_86 = arith.constant 0.000000e+00 : f32
    %129 = vector.broadcast %cst_86 : f32 to vector<140x32xf32>
    %130 = arith.maximumf %128, %129 : vector<140x32xf32>
    %131 = vector.extract_strided_slice %130 {offsets = [0, 0], sizes = [70, 32], strides = [1, 1]} : vector<140x32xf32> to vector<70x32xf32>
    %132 = vector.extract_strided_slice %130 {offsets = [70, 0], sizes = [70, 32], strides = [1, 1]} : vector<140x32xf32> to vector<70x32xf32>
    %133 = arith.maximumf %131, %132 : vector<70x32xf32>
    %134 = vector.extract_strided_slice %133 {offsets = [0, 0], sizes = [68, 32], strides = [1, 1]} : vector<70x32xf32> to vector<68x32xf32>
    %135 = vector.extract_strided_slice %133 {offsets = [1, 0], sizes = [68, 32], strides = [1, 1]} : vector<70x32xf32> to vector<68x32xf32>
    %136 = arith.maximumf %134, %135 : vector<68x32xf32>
    %c0_87 = arith.constant 0 : index
    %c0_88 = arith.constant 0 : index
    %137 = vector.load %arg17[%c0_87, %c0_88] : memref<68x32xf32, #tpu.memory_space<vmem>>, vector<68x32xf32>
    tpu.vector_store %arg17[%c0_87, %c0_88], %136 {strides = array<i32>} : memref<68x32xf32, #tpu.memory_space<vmem>>, vector<68x32xf32>,
    %c0_89 = arith.constant 0 : index
    %c0_90 = arith.constant 0 : index
    %138 = tpu.strided_load %arg17[%c0_89, %c0_90] {strides = array<i32: 2, 1>} : memref<68x32xf32, #tpu.memory_space<vmem>>, vector<34x32xf32>
    %c0_91 = arith.constant 0 : index
    %c0_92 = arith.constant 0 : index
    %139 = vector.load %arg18[%c0_91, %c0_92] : memref<80x96xf32, #tpu.memory_space<vmem>>, vector<34x32xf32>
    tpu.vector_store %arg18[%c0_91, %c0_92], %138 {strides = array<i32>} : memref<80x96xf32, #tpu.memory_space<vmem>>, vector<34x32xf32>,
    %c1_93 = arith.constant 1 : index
    %c1_94 = arith.constant 1 : index
    %c0_95 = arith.constant 0 : index
    %c0_96 = arith.constant 0 : index
    %140 = vector.load %arg1[%c1_93, %c1_94, %c0_95, %c0_96] : memref<2x4x140x54xbf16, #tpu.memory_space<vmem>>, vector<1x1x140x54xbf16>
    %141 = vector.shape_cast %140 : vector<1x1x140x54xbf16> to vector<140x54xbf16>
    %cst_97 = arith.constant dense<0.000000e+00> : vector<140x32xf32>
    %142 = tpu.matmul %141, %0, %cst_97 {dimension_numbers = #tpu.dot_dimension_numbers<[1], [0], [0], [1], [0, 0, 1, 1], [], []>} : vector<140x54xbf16>, vector<54x32xbf16>, vector<140x32xf32> -> vector<140x32xf32>
    %143 = vector.broadcast %1 : vector<1x32xf32> to vector<140x32xf32>
    %144 = arith.addf %142, %143 : vector<140x32xf32>
    %cst_98 = arith.constant 0.000000e+00 : f32
    %145 = vector.broadcast %cst_98 : f32 to vector<140x32xf32>
    %146 = arith.maximumf %144, %145 : vector<140x32xf32>
    %147 = vector.extract_strided_slice %146 {offsets = [0, 0], sizes = [70, 32], strides = [1, 1]} : vector<140x32xf32> to vector<70x32xf32>
    %148 = vector.extract_strided_slice %146 {offsets = [70, 0], sizes = [70, 32], strides = [1, 1]} : vector<140x32xf32> to vector<70x32xf32>
    %149 = arith.maximumf %147, %148 : vector<70x32xf32>
    %150 = vector.extract_strided_slice %149 {offsets = [0, 0], sizes = [68, 32], strides = [1, 1]} : vector<70x32xf32> to vector<68x32xf32>
    %151 = vector.extract_strided_slice %149 {offsets = [1, 0], sizes = [68, 32], strides = [1, 1]} : vector<70x32xf32> to vector<68x32xf32>
    %152 = arith.maximumf %150, %151 : vector<68x32xf32>
    %c0_99 = arith.constant 0 : index
    %c0_100 = arith.constant 0 : index
    %153 = vector.load %arg17[%c0_99, %c0_100] : memref<68x32xf32, #tpu.memory_space<vmem>>, vector<68x32xf32>
    tpu.vector_store %arg17[%c0_99, %c0_100], %152 {strides = array<i32>} : memref<68x32xf32, #tpu.memory_space<vmem>>, vector<68x32xf32>,
    %c0_101 = arith.constant 0 : index
    %c0_102 = arith.constant 0 : index
    %154 = tpu.strided_load %arg17[%c0_101, %c0_102] {strides = array<i32: 2, 1>} : memref<68x32xf32, #tpu.memory_space<vmem>>, vector<34x32xf32>
    %c40_103 = arith.constant 40 : index
    %c0_104 = arith.constant 0 : index
    %155 = vector.load %arg18[%c40_103, %c0_104] : memref<80x96xf32, #tpu.memory_space<vmem>>, vector<34x32xf32>
    tpu.vector_store %arg18[%c40_103, %c0_104], %154 {strides = array<i32>} : memref<80x96xf32, #tpu.memory_space<vmem>>, vector<34x32xf32>,
    %c0_105 = arith.constant 0 : index
    %c32_106 = arith.constant 32 : index
    %156 = vector.load %arg18[%c0_105, %c32_106] : memref<80x96xf32, #tpu.memory_space<vmem>>, vector<34x32xf32>
    tpu.vector_store %arg18[%c0_105, %c32_106], %154 {strides = array<i32>} : memref<80x96xf32, #tpu.memory_space<vmem>>, vector<34x32xf32>,
    %c1_107 = arith.constant 1 : index
    %c2_108 = arith.constant 2 : index
    %c0_109 = arith.constant 0 : index
    %c0_110 = arith.constant 0 : index
    %157 = vector.load %arg1[%c1_107, %c2_108, %c0_109, %c0_110] : memref<2x4x140x54xbf16, #tpu.memory_space<vmem>>, vector<1x1x140x54xbf16>
    %158 = vector.shape_cast %157 : vector<1x1x140x54xbf16> to vector<140x54xbf16>
    %cst_111 = arith.constant dense<0.000000e+00> : vector<140x32xf32>
    %159 = tpu.matmul %158, %0, %cst_111 {dimension_numbers = #tpu.dot_dimension_numbers<[1], [0], [0], [1], [0, 0, 1, 1], [], []>} : vector<140x54xbf16>, vector<54x32xbf16>, vector<140x32xf32> -> vector<140x32xf32>
    %160 = vector.broadcast %1 : vector<1x32xf32> to vector<140x32xf32>
    %161 = arith.addf %159, %160 : vector<140x32xf32>
    %cst_112 = arith.constant 0.000000e+00 : f32
    %162 = vector.broadcast %cst_112 : f32 to vector<140x32xf32>
    %163 = arith.maximumf %161, %162 : vector<140x32xf32>
    %164 = vector.extract_strided_slice %163 {offsets = [0, 0], sizes = [70, 32], strides = [1, 1]} : vector<140x32xf32> to vector<70x32xf32>
    %165 = vector.extract_strided_slice %163 {offsets = [70, 0], sizes = [70, 32], strides = [1, 1]} : vector<140x32xf32> to vector<70x32xf32>
    %166 = arith.maximumf %164, %165 : vector<70x32xf32>
    %167 = vector.extract_strided_slice %166 {offsets = [0, 0], sizes = [68, 32], strides = [1, 1]} : vector<70x32xf32> to vector<68x32xf32>
    %168 = vector.extract_strided_slice %166 {offsets = [1, 0], sizes = [68, 32], strides = [1, 1]} : vector<70x32xf32> to vector<68x32xf32>
    %169 = arith.maximumf %167, %168 : vector<68x32xf32>
    %c0_113 = arith.constant 0 : index
    %c0_114 = arith.constant 0 : index
    %170 = vector.load %arg17[%c0_113, %c0_114] : memref<68x32xf32, #tpu.memory_space<vmem>>, vector<68x32xf32>
    tpu.vector_store %arg17[%c0_113, %c0_114], %169 {strides = array<i32>} : memref<68x32xf32, #tpu.memory_space<vmem>>, vector<68x32xf32>,
    %c0_115 = arith.constant 0 : index
    %c0_116 = arith.constant 0 : index
    %171 = tpu.strided_load %arg17[%c0_115, %c0_116] {strides = array<i32: 2, 1>} : memref<68x32xf32, #tpu.memory_space<vmem>>, vector<34x32xf32>
    %c40_117 = arith.constant 40 : index
    %c32_118 = arith.constant 32 : index
    %172 = vector.load %arg18[%c40_117, %c32_118] : memref<80x96xf32, #tpu.memory_space<vmem>>, vector<34x32xf32>
    tpu.vector_store %arg18[%c40_117, %c32_118], %171 {strides = array<i32>} : memref<80x96xf32, #tpu.memory_space<vmem>>, vector<34x32xf32>,
    %c0_119 = arith.constant 0 : index
    %c64_120 = arith.constant 64 : index
    %173 = vector.load %arg18[%c0_119, %c64_120] : memref<80x96xf32, #tpu.memory_space<vmem>>, vector<34x32xf32>
    tpu.vector_store %arg18[%c0_119, %c64_120], %171 {strides = array<i32>} : memref<80x96xf32, #tpu.memory_space<vmem>>, vector<34x32xf32>,
    %c1_121 = arith.constant 1 : index
    %c3_122 = arith.constant 3 : index
    %c0_123 = arith.constant 0 : index
    %c0_124 = arith.constant 0 : index
    %174 = vector.load %arg1[%c1_121, %c3_122, %c0_123, %c0_124] : memref<2x4x140x54xbf16, #tpu.memory_space<vmem>>, vector<1x1x140x54xbf16>
    %175 = vector.shape_cast %174 : vector<1x1x140x54xbf16> to vector<140x54xbf16>
    %cst_125 = arith.constant dense<0.000000e+00> : vector<140x32xf32>
    %176 = tpu.matmul %175, %0, %cst_125 {dimension_numbers = #tpu.dot_dimension_numbers<[1], [0], [0], [1], [0, 0, 1, 1], [], []>} : vector<140x54xbf16>, vector<54x32xbf16>, vector<140x32xf32> -> vector<140x32xf32>
    %177 = vector.broadcast %1 : vector<1x32xf32> to vector<140x32xf32>
    %178 = arith.addf %176, %177 : vector<140x32xf32>
    %cst_126 = arith.constant 0.000000e+00 : f32
    %179 = vector.broadcast %cst_126 : f32 to vector<140x32xf32>
    %180 = arith.maximumf %178, %179 : vector<140x32xf32>
    %181 = vector.extract_strided_slice %180 {offsets = [0, 0], sizes = [70, 32], strides = [1, 1]} : vector<140x32xf32> to vector<70x32xf32>
    %182 = vector.extract_strided_slice %180 {offsets = [70, 0], sizes = [70, 32], strides = [1, 1]} : vector<140x32xf32> to vector<70x32xf32>
    %183 = arith.maximumf %181, %182 : vector<70x32xf32>
    %184 = vector.extract_strided_slice %183 {offsets = [0, 0], sizes = [68, 32], strides = [1, 1]} : vector<70x32xf32> to vector<68x32xf32>
    %185 = vector.extract_strided_slice %183 {offsets = [1, 0], sizes = [68, 32], strides = [1, 1]} : vector<70x32xf32> to vector<68x32xf32>
    %186 = arith.maximumf %184, %185 : vector<68x32xf32>
    %c0_127 = arith.constant 0 : index
    %c0_128 = arith.constant 0 : index
    %187 = vector.load %arg17[%c0_127, %c0_128] : memref<68x32xf32, #tpu.memory_space<vmem>>, vector<68x32xf32>
    tpu.vector_store %arg17[%c0_127, %c0_128], %186 {strides = array<i32>} : memref<68x32xf32, #tpu.memory_space<vmem>>, vector<68x32xf32>,
    %c0_129 = arith.constant 0 : index
    %c0_130 = arith.constant 0 : index
    %188 = tpu.strided_load %arg17[%c0_129, %c0_130] {strides = array<i32: 2, 1>} : memref<68x32xf32, #tpu.memory_space<vmem>>, vector<34x32xf32>
    %c40_131 = arith.constant 40 : index
    %c64_132 = arith.constant 64 : index
    %189 = vector.load %arg18[%c40_131, %c64_132] : memref<80x96xf32, #tpu.memory_space<vmem>>, vector<34x32xf32>
    tpu.vector_store %arg18[%c40_131, %c64_132], %188 {strides = array<i32>} : memref<80x96xf32, #tpu.memory_space<vmem>>, vector<34x32xf32>,
    %c0_133 = arith.constant 0 : index
    %c0_134 = arith.constant 0 : index
    %190 = vector.load %arg18[%c0_133, %c0_134] : memref<80x96xf32, #tpu.memory_space<vmem>>, vector<80x96xf32>
    %191 = arith.truncf %190 : vector<80x96xf32> to vector<80x96xbf16>
    %cst_135 = arith.constant dense<0.000000e+00> : vector<80x192xf32>
    %192 = tpu.matmul %191, %2, %cst_135 {dimension_numbers = #tpu.dot_dimension_numbers<[1], [0], [0], [1], [0, 0, 1, 1], [], []>} : vector<80x96xbf16>, vector<96x192xbf16>, vector<80x192xf32> -> vector<80x192xf32>
    %193 = vector.extract_strided_slice %192 {offsets = [0, 0], sizes = [78, 64], strides = [1, 1]} : vector<80x192xf32> to vector<78x64xf32>
    %194 = vector.extract_strided_slice %192 {offsets = [1, 64], sizes = [78, 64], strides = [1, 1]} : vector<80x192xf32> to vector<78x64xf32>
    %195 = arith.addf %193, %194 : vector<78x64xf32>
    %196 = vector.extract_strided_slice %192 {offsets = [2, 128], sizes = [78, 64], strides = [1, 1]} : vector<80x192xf32> to vector<78x64xf32>
    %197 = arith.addf %195, %196 : vector<78x64xf32>
    %198 = vector.broadcast %3 : vector<1x64xf32> to vector<78x64xf32>
    %199 = arith.addf %197, %198 : vector<78x64xf32>
    %cst_136 = arith.constant 0.000000e+00 : f32
    %200 = vector.broadcast %cst_136 : f32 to vector<78x64xf32>
    %201 = arith.maximumf %199, %200 : vector<78x64xf32>
    %202 = vector.extract_strided_slice %201 {offsets = [0, 0], sizes = [32, 64], strides = [1, 1]} : vector<78x64xf32> to vector<32x64xf32>
    %203 = vector.extract_strided_slice %201 {offsets = [40, 0], sizes = [32, 64], strides = [1, 1]} : vector<78x64xf32> to vector<32x64xf32>
    %204 = arith.maximumf %202, %203 : vector<32x64xf32>
    %205 = vector.extract_strided_slice %204 {offsets = [0, 0], sizes = [31, 64], strides = [1, 1]} : vector<32x64xf32> to vector<31x64xf32>
    %206 = vector.extract_strided_slice %204 {offsets = [1, 0], sizes = [31, 64], strides = [1, 1]} : vector<32x64xf32> to vector<31x64xf32>
    %207 = arith.maximumf %205, %206 : vector<31x64xf32>
    %c0_137 = arith.constant 0 : index
    %c0_138 = arith.constant 0 : index
    %208 = vector.load %arg19[%c0_137, %c0_138] : memref<32x64xf32, #tpu.memory_space<vmem>>, vector<31x64xf32>
    tpu.vector_store %arg19[%c0_137, %c0_138], %207 {strides = array<i32>} : memref<32x64xf32, #tpu.memory_space<vmem>>, vector<31x64xf32>,
    %c0_139 = arith.constant 0 : index
    %c0_140 = arith.constant 0 : index
    %209 = tpu.strided_load %arg19[%c0_139, %c0_140] {strides = array<i32: 2, 1>} : memref<32x64xf32, #tpu.memory_space<vmem>>, vector<16x64xf32>
    %210 = vector.extract_strided_slice %209 {offsets = [0, 0], sizes = [1, 64], strides = [1, 1]} : vector<16x64xf32> to vector<1x64xf32>
    %c1_141 = arith.constant 1 : index
    %c0_142 = arith.constant 0 : index
    %211 = vector.load %arg20[%c1_141, %c0_142] : memref<2x1024xf32, #tpu.memory_space<vmem>>, vector<1x64xf32>
    tpu.vector_store %arg20[%c1_141, %c0_142], %210 {strides = array<i32>} : memref<2x1024xf32, #tpu.memory_space<vmem>>, vector<1x64xf32>,
    %212 = vector.extract_strided_slice %209 {offsets = [1, 0], sizes = [1, 64], strides = [1, 1]} : vector<16x64xf32> to vector<1x64xf32>
    %c1_143 = arith.constant 1 : index
    %c64_144 = arith.constant 64 : index
    %213 = vector.load %arg20[%c1_143, %c64_144] : memref<2x1024xf32, #tpu.memory_space<vmem>>, vector<1x64xf32>
    tpu.vector_store %arg20[%c1_143, %c64_144], %212 {strides = array<i32>} : memref<2x1024xf32, #tpu.memory_space<vmem>>, vector<1x64xf32>,
    %214 = vector.extract_strided_slice %209 {offsets = [2, 0], sizes = [1, 64], strides = [1, 1]} : vector<16x64xf32> to vector<1x64xf32>
    %c1_145 = arith.constant 1 : index
    %c128_146 = arith.constant 128 : index
    %215 = vector.load %arg20[%c1_145, %c128_146] : memref<2x1024xf32, #tpu.memory_space<vmem>>, vector<1x64xf32>
    tpu.vector_store %arg20[%c1_145, %c128_146], %214 {strides = array<i32>} : memref<2x1024xf32, #tpu.memory_space<vmem>>, vector<1x64xf32>,
    %216 = vector.extract_strided_slice %209 {offsets = [3, 0], sizes = [1, 64], strides = [1, 1]} : vector<16x64xf32> to vector<1x64xf32>
    %c1_147 = arith.constant 1 : index
    %c192_148 = arith.constant 192 : index
    %217 = vector.load %arg20[%c1_147, %c192_148] : memref<2x1024xf32, #tpu.memory_space<vmem>>, vector<1x64xf32>
    tpu.vector_store %arg20[%c1_147, %c192_148], %216 {strides = array<i32>} : memref<2x1024xf32, #tpu.memory_space<vmem>>, vector<1x64xf32>,
    %218 = vector.extract_strided_slice %209 {offsets = [4, 0], sizes = [1, 64], strides = [1, 1]} : vector<16x64xf32> to vector<1x64xf32>
    %c1_149 = arith.constant 1 : index
    %c256_150 = arith.constant 256 : index
    %219 = vector.load %arg20[%c1_149, %c256_150] : memref<2x1024xf32, #tpu.memory_space<vmem>>, vector<1x64xf32>
    tpu.vector_store %arg20[%c1_149, %c256_150], %218 {strides = array<i32>} : memref<2x1024xf32, #tpu.memory_space<vmem>>, vector<1x64xf32>,
    %220 = vector.extract_strided_slice %209 {offsets = [5, 0], sizes = [1, 64], strides = [1, 1]} : vector<16x64xf32> to vector<1x64xf32>
    %c1_151 = arith.constant 1 : index
    %c320_152 = arith.constant 320 : index
    %221 = vector.load %arg20[%c1_151, %c320_152] : memref<2x1024xf32, #tpu.memory_space<vmem>>, vector<1x64xf32>
    tpu.vector_store %arg20[%c1_151, %c320_152], %220 {strides = array<i32>} : memref<2x1024xf32, #tpu.memory_space<vmem>>, vector<1x64xf32>,
    %222 = vector.extract_strided_slice %209 {offsets = [6, 0], sizes = [1, 64], strides = [1, 1]} : vector<16x64xf32> to vector<1x64xf32>
    %c1_153 = arith.constant 1 : index
    %c384_154 = arith.constant 384 : index
    %223 = vector.load %arg20[%c1_153, %c384_154] : memref<2x1024xf32, #tpu.memory_space<vmem>>, vector<1x64xf32>
    tpu.vector_store %arg20[%c1_153, %c384_154], %222 {strides = array<i32>} : memref<2x1024xf32, #tpu.memory_space<vmem>>, vector<1x64xf32>,
    %224 = vector.extract_strided_slice %209 {offsets = [7, 0], sizes = [1, 64], strides = [1, 1]} : vector<16x64xf32> to vector<1x64xf32>
    %c1_155 = arith.constant 1 : index
    %c448_156 = arith.constant 448 : index
    %225 = vector.load %arg20[%c1_155, %c448_156] : memref<2x1024xf32, #tpu.memory_space<vmem>>, vector<1x64xf32>
    tpu.vector_store %arg20[%c1_155, %c448_156], %224 {strides = array<i32>} : memref<2x1024xf32, #tpu.memory_space<vmem>>, vector<1x64xf32>,
    %226 = vector.extract_strided_slice %209 {offsets = [8, 0], sizes = [1, 64], strides = [1, 1]} : vector<16x64xf32> to vector<1x64xf32>
    %c1_157 = arith.constant 1 : index
    %c512_158 = arith.constant 512 : index
    %227 = vector.load %arg20[%c1_157, %c512_158] : memref<2x1024xf32, #tpu.memory_space<vmem>>, vector<1x64xf32>
    tpu.vector_store %arg20[%c1_157, %c512_158], %226 {strides = array<i32>} : memref<2x1024xf32, #tpu.memory_space<vmem>>, vector<1x64xf32>,
    %228 = vector.extract_strided_slice %209 {offsets = [9, 0], sizes = [1, 64], strides = [1, 1]} : vector<16x64xf32> to vector<1x64xf32>
    %c1_159 = arith.constant 1 : index
    %c576_160 = arith.constant 576 : index
    %229 = vector.load %arg20[%c1_159, %c576_160] : memref<2x1024xf32, #tpu.memory_space<vmem>>, vector<1x64xf32>
    tpu.vector_store %arg20[%c1_159, %c576_160], %228 {strides = array<i32>} : memref<2x1024xf32, #tpu.memory_space<vmem>>, vector<1x64xf32>,
    %230 = vector.extract_strided_slice %209 {offsets = [10, 0], sizes = [1, 64], strides = [1, 1]} : vector<16x64xf32> to vector<1x64xf32>
    %c1_161 = arith.constant 1 : index
    %c640_162 = arith.constant 640 : index
    %231 = vector.load %arg20[%c1_161, %c640_162] : memref<2x1024xf32, #tpu.memory_space<vmem>>, vector<1x64xf32>
    tpu.vector_store %arg20[%c1_161, %c640_162], %230 {strides = array<i32>} : memref<2x1024xf32, #tpu.memory_space<vmem>>, vector<1x64xf32>,
    %232 = vector.extract_strided_slice %209 {offsets = [11, 0], sizes = [1, 64], strides = [1, 1]} : vector<16x64xf32> to vector<1x64xf32>
    %c1_163 = arith.constant 1 : index
    %c704_164 = arith.constant 704 : index
    %233 = vector.load %arg20[%c1_163, %c704_164] : memref<2x1024xf32, #tpu.memory_space<vmem>>, vector<1x64xf32>
    tpu.vector_store %arg20[%c1_163, %c704_164], %232 {strides = array<i32>} : memref<2x1024xf32, #tpu.memory_space<vmem>>, vector<1x64xf32>,
    %234 = vector.extract_strided_slice %209 {offsets = [12, 0], sizes = [1, 64], strides = [1, 1]} : vector<16x64xf32> to vector<1x64xf32>
    %c1_165 = arith.constant 1 : index
    %c768_166 = arith.constant 768 : index
    %235 = vector.load %arg20[%c1_165, %c768_166] : memref<2x1024xf32, #tpu.memory_space<vmem>>, vector<1x64xf32>
    tpu.vector_store %arg20[%c1_165, %c768_166], %234 {strides = array<i32>} : memref<2x1024xf32, #tpu.memory_space<vmem>>, vector<1x64xf32>,
    %236 = vector.extract_strided_slice %209 {offsets = [13, 0], sizes = [1, 64], strides = [1, 1]} : vector<16x64xf32> to vector<1x64xf32>
    %c1_167 = arith.constant 1 : index
    %c832_168 = arith.constant 832 : index
    %237 = vector.load %arg20[%c1_167, %c832_168] : memref<2x1024xf32, #tpu.memory_space<vmem>>, vector<1x64xf32>
    tpu.vector_store %arg20[%c1_167, %c832_168], %236 {strides = array<i32>} : memref<2x1024xf32, #tpu.memory_space<vmem>>, vector<1x64xf32>,
    %238 = vector.extract_strided_slice %209 {offsets = [14, 0], sizes = [1, 64], strides = [1, 1]} : vector<16x64xf32> to vector<1x64xf32>
    %c1_169 = arith.constant 1 : index
    %c896_170 = arith.constant 896 : index
    %239 = vector.load %arg20[%c1_169, %c896_170] : memref<2x1024xf32, #tpu.memory_space<vmem>>, vector<1x64xf32>
    tpu.vector_store %arg20[%c1_169, %c896_170], %238 {strides = array<i32>} : memref<2x1024xf32, #tpu.memory_space<vmem>>, vector<1x64xf32>,
    %240 = vector.extract_strided_slice %209 {offsets = [15, 0], sizes = [1, 64], strides = [1, 1]} : vector<16x64xf32> to vector<1x64xf32>
    %c1_171 = arith.constant 1 : index
    %c960_172 = arith.constant 960 : index
    %241 = vector.load %arg20[%c1_171, %c960_172] : memref<2x1024xf32, #tpu.memory_space<vmem>>, vector<1x64xf32>
    tpu.vector_store %arg20[%c1_171, %c960_172], %240 {strides = array<i32>} : memref<2x1024xf32, #tpu.memory_space<vmem>>, vector<1x64xf32>,
    tpu.wait_dma2 semaphore(%arg16 : memref<!tpu.dma_semaphore, #tpu.memory_space<semaphore_mem>>) src(%arg7 : memref<1024x512xbf16, #tpu.memory_space<any>>) dst(%arg15 : memref<1024x512xbf16, #tpu.memory_space<vmem>>)
    %c0_173 = arith.constant 0 : index
    %c0_174 = arith.constant 0 : index
    %242 = vector.load %arg20[%c0_173, %c0_174] : memref<2x1024xf32, #tpu.memory_space<vmem>>, vector<2x1024xf32>
    %243 = arith.truncf %242 : vector<2x1024xf32> to vector<2x1024xbf16>
    %c0_175 = arith.constant 0 : index
    %c0_176 = arith.constant 0 : index
    %244 = vector.load %arg15[%c0_175, %c0_176] : memref<1024x512xbf16, #tpu.memory_space<vmem>>, vector<1024x512xbf16>
    %cst_177 = arith.constant dense<0.000000e+00> : vector<2x512xf32>
    %245 = tpu.matmul %243, %244, %cst_177 {dimension_numbers = #tpu.dot_dimension_numbers<[1], [0], [0], [1], [0, 0, 1, 1], [], []>} : vector<2x1024xbf16>, vector<1024x512xbf16>, vector<2x512xf32> -> vector<2x512xf32>
    %c0_178 = arith.constant 0 : index
    %c0_179 = arith.constant 0 : index
    %246 = vector.load %arg8[%c0_178, %c0_179] : memref<1x512xf32, #tpu.memory_space<vmem>>, vector<1x512xf32>
    %247 = vector.broadcast %246 : vector<1x512xf32> to vector<2x512xf32>
    %248 = arith.addf %245, %247 : vector<2x512xf32>
    %cst_180 = arith.constant 0.000000e+00 : f32
    %249 = vector.broadcast %cst_180 : f32 to vector<2x512xf32>
    %250 = arith.maximumf %248, %249 : vector<2x512xf32>
    %251 = arith.truncf %250 : vector<2x512xf32> to vector<2x512xbf16>
    %c0_181 = arith.constant 0 : index
    %c0_182 = arith.constant 0 : index
    %252 = vector.load %arg9[%c0_181, %c0_182] : memref<512x128xbf16, #tpu.memory_space<vmem>>, vector<512x128xbf16>
    %cst_183 = arith.constant dense<0.000000e+00> : vector<2x128xf32>
    %253 = tpu.matmul %251, %252, %cst_183 {dimension_numbers = #tpu.dot_dimension_numbers<[1], [0], [0], [1], [0, 0, 1, 1], [], []>} : vector<2x512xbf16>, vector<512x128xbf16>, vector<2x128xf32> -> vector<2x128xf32>
    %c0_184 = arith.constant 0 : index
    %c0_185 = arith.constant 0 : index
    %254 = vector.load %arg10[%c0_184, %c0_185] : memref<1x128xf32, #tpu.memory_space<vmem>>, vector<1x128xf32>
    %255 = vector.broadcast %254 : vector<1x128xf32> to vector<2x128xf32>
    %256 = arith.addf %253, %255 : vector<2x128xf32>
    %cst_186 = arith.constant 0.000000e+00 : f32
    %257 = vector.broadcast %cst_186 : f32 to vector<2x128xf32>
    %258 = arith.maximumf %256, %257 : vector<2x128xf32>
    %259 = arith.truncf %258 : vector<2x128xf32> to vector<2x128xbf16>
    %c0_187 = arith.constant 0 : index
    %c0_188 = arith.constant 0 : index
    %260 = vector.load %arg11[%c0_187, %c0_188] : memref<128x8xbf16, #tpu.memory_space<vmem>>, vector<128x8xbf16>
    %cst_189 = arith.constant dense<0.000000e+00> : vector<2x8xf32>
    %261 = tpu.matmul %259, %260, %cst_189 {dimension_numbers = #tpu.dot_dimension_numbers<[1], [0], [0], [1], [0, 0, 1, 1], [], []>} : vector<2x128xbf16>, vector<128x8xbf16>, vector<2x8xf32> -> vector<2x8xf32>
    %c0_190 = arith.constant 0 : index
    %c0_191 = arith.constant 0 : index
    %262 = vector.load %arg13[%c0_190, %c0_191] : memref<1x8xf32, #tpu.memory_space<vmem>>, vector<1x8xf32>
    %263 = vector.broadcast %262 : vector<1x8xf32> to vector<2x8xf32>
    %264 = arith.addf %261, %263 : vector<2x8xf32>
    %c0_192 = arith.constant 0 : index
    %c0_193 = arith.constant 0 : index
    %265 = vector.load %arg2[%c0_192, %c0_193] : memref<2x2xf32, #tpu.memory_space<vmem>>, vector<2x2xf32>
    %266 = vector.extract_strided_slice %265 {offsets = [0, 0], sizes = [2, 1], strides = [1, 1]} : vector<2x2xf32> to vector<2x1xf32>
    %c0_194 = arith.constant 0 : index
    %c0_195 = arith.constant 0 : index
    %267 = vector.load %arg12[%c0_194, %c0_195] : memref<2x8xf32, #tpu.memory_space<vmem>>, vector<1x8xf32>
    %268 = vector.broadcast %266 : vector<2x1xf32> to vector<2x8xf32>
    %269 = vector.broadcast %267 : vector<1x8xf32> to vector<2x8xf32>
    %270 = arith.mulf %268, %269 : vector<2x8xf32>
    %271 = arith.addf %264, %270 : vector<2x8xf32>
    %272 = vector.extract_strided_slice %265 {offsets = [0, 1], sizes = [2, 1], strides = [1, 1]} : vector<2x2xf32> to vector<2x1xf32>
    %c1_196 = arith.constant 1 : index
    %c0_197 = arith.constant 0 : index
    %273 = vector.load %arg12[%c1_196, %c0_197] : memref<2x8xf32, #tpu.memory_space<vmem>>, vector<1x8xf32>
    %274 = vector.broadcast %272 : vector<2x1xf32> to vector<2x8xf32>
    %275 = vector.broadcast %273 : vector<1x8xf32> to vector<2x8xf32>
    %276 = arith.mulf %274, %275 : vector<2x8xf32>
    %277 = arith.addf %271, %276 : vector<2x8xf32>
    %c0_198 = arith.constant 0 : index
    %c0_199 = arith.constant 0 : index
    %278 = vector.load %arg14[%c0_198, %c0_199] : memref<2x8xf32, #tpu.memory_space<vmem>>, vector<2x8xf32>
    tpu.vector_store %arg14[%c0_198, %c0_199], %277 {strides = array<i32>} : memref<2x8xf32, #tpu.memory_space<vmem>>, vector<2x8xf32>,
    return
  }
  func.func @transform_0(%arg0: i32) -> (i32, i32, i32, i32) {
    %c0_i32 = arith.constant 0 : i32
    %c0_i32_0 = arith.constant 0 : i32
    %c0_i32_1 = arith.constant 0 : i32
    %c0_i32_2 = arith.constant 0 : i32
    %c0_i32_3 = arith.constant 0 : i32
    return %c0_i32, %c0_i32_0, %c0_i32_1, %c0_i32_2 : i32, i32, i32, i32
  }
  func.func @transform_1(%arg0: i32) -> (i32, i32) {
    %c0_i32 = arith.constant 0 : i32
    %c0_i32_0 = arith.constant 0 : i32
    %c0_i32_1 = arith.constant 0 : i32
    return %c0_i32, %c0_i32_0 : i32, i32
  }
  func.func @transform_2(%arg0: i32) -> (i32, i32) {
    %c0_i32 = arith.constant 0 : i32
    %c0_i32_0 = arith.constant 0 : i32
    %c0_i32_1 = arith.constant 0 : i32
    return %c0_i32, %c0_i32_0 : i32, i32
  }
  func.func @transform_3(%arg0: i32) -> (i32, i32) {
    %c0_i32 = arith.constant 0 : i32
    %c0_i32_0 = arith.constant 0 : i32
    %c0_i32_1 = arith.constant 0 : i32
    return %c0_i32, %c0_i32_0 : i32, i32
  }
  func.func @transform_4(%arg0: i32) -> (i32, i32) {
    %c0_i32 = arith.constant 0 : i32
    %c0_i32_0 = arith.constant 0 : i32
    %c0_i32_1 = arith.constant 0 : i32
    return %c0_i32, %c0_i32_0 : i32, i32
  }
  func.func @transform_5(%arg0: i32) -> (i32, i32) {
    %c0_i32 = arith.constant 0 : i32
    %c0_i32_0 = arith.constant 0 : i32
    %c0_i32_1 = arith.constant 0 : i32
    return %c0_i32, %c0_i32_0 : i32, i32
  }
  func.func @transform_7(%arg0: i32) -> (i32, i32) {
    %c0_i32 = arith.constant 0 : i32
    %c0_i32_0 = arith.constant 0 : i32
    %c0_i32_1 = arith.constant 0 : i32
    return %c0_i32, %c0_i32_0 : i32, i32
  }
  func.func @transform_8(%arg0: i32) -> (i32, i32) {
    %c0_i32 = arith.constant 0 : i32
    %c0_i32_0 = arith.constant 0 : i32
    %c0_i32_1 = arith.constant 0 : i32
    return %c0_i32, %c0_i32_0 : i32, i32
  }
  func.func @transform_9(%arg0: i32) -> (i32, i32) {
    %c0_i32 = arith.constant 0 : i32
    %c0_i32_0 = arith.constant 0 : i32
    %c0_i32_1 = arith.constant 0 : i32
    return %c0_i32, %c0_i32_0 : i32, i32
  }
  func.func @transform_10(%arg0: i32) -> (i32, i32) {
    %c0_i32 = arith.constant 0 : i32
    %c0_i32_0 = arith.constant 0 : i32
    %c0_i32_1 = arith.constant 0 : i32
    return %c0_i32, %c0_i32_0 : i32, i32
  }
  func.func @transform_11(%arg0: i32) -> (i32, i32) {
    %c0_i32 = arith.constant 0 : i32
    %c0_i32_0 = arith.constant 0 : i32
    %c0_i32_1 = arith.constant 0 : i32
    return %c0_i32, %c0_i32_0 : i32, i32
  }
  func.func @transform_12(%arg0: i32) -> (i32, i32) {
    %c0_i32 = arith.constant 0 : i32
    %c0_i32_0 = arith.constant 0 : i32
    %c0_i32_1 = arith.constant 0 : i32
    return %c0_i32, %c0_i32_0 : i32, i32
  }
  func.func @transform_13(%arg0: i32) -> (i32, i32) {
    %c0_i32 = arith.constant 0 : i32
    %c0_i32_0 = arith.constant 0 : i32
    %c0_i32_1 = arith.constant 0 : i32
    return %c0_i32, %c0_i32_0 : i32, i32
  }
}

</mosaic_0001>

<llo_original>
// kernel: lowres_cnn3d_forward.1
$region0: #{lowres_cnn3d_forward.1}
  #allocation0 [shape = 'u32[]', space=smem, size = 0x4, offset = 0x4, fixed_abs, tag = 'smem constant byte address 0x4 - core index']
  #allocation1 [shape = 'u32[144,128]{1,0:T(1,128)}', space=vmem, size = 0x12000, scoped, tag = 'internal scratch']
  #allocation2 [shape = 'bf16[1024,512]{1,0:T(8,128)(2,1)}', space=vmem, size = 0x100000, scoped, tag = 'scratch operand']
  #allocation3 [shape = 's32[1]{0}', space=sflag, size = 0x4, scoped, tag = 'scratch operand']
  #allocation4 [shape = 'f32[68,32]{1,0:T(8,128)}', space=vmem, size = 0x9000, scoped, tag = 'scratch operand']
  #allocation5 [shape = 'f32[80,96]{1,0:T(8,128)}', space=vmem, size = 0xa000, scoped, tag = 'scratch operand']
  #allocation6 [shape = 'f32[32,64]{1,0:T(8,128)}', space=vmem, size = 0x4000, scoped, tag = 'scratch operand']
  #allocation7 [shape = 'f32[2,1024]{1,0:T(2,128)}', space=vmem, size = 0x2000, scoped, tag = 'scratch operand']
  #allocation10 [shape = 's32[]', space=sflag, size = 0x4, offset = 0, fixed_abs, tag = 'sflag constant byte address 0x0 - dummy sync flag']
  %s0 = inlined_call_operand.vmem [shape: bf16[2,4,140,54], index: 0, kind: input, shape index: {}]
  %s1 = inlined_call_operand.vmem [shape: f32[2,2], index: 1, kind: input, shape index: {}]
  %s2 = inlined_call_operand.vmem [shape: bf16[54,32], index: 2, kind: input, shape index: {}]
  %s3 = inlined_call_operand.vmem [shape: f32[1,32], index: 3, kind: input, shape index: {}]
  %s4 = inlined_call_operand.vmem [shape: bf16[96,192], index: 4, kind: input, shape index: {}]
  %s5 = inlined_call_operand.vmem [shape: f32[1,64], index: 5, kind: input, shape index: {}]
  %s6 = inlined_call_operand.vmem [shape: bf16[1024,512], index: 6, kind: input, shape index: {}]
  %s7 = inlined_call_operand.vmem [shape: f32[1,512], index: 7, kind: input, shape index: {}]
  %s8 = inlined_call_operand.vmem [shape: bf16[512,128], index: 8, kind: input, shape index: {}]
  %s9 = inlined_call_operand.vmem [shape: f32[1,128], index: 9, kind: input, shape index: {}]
  %s10 = inlined_call_operand.vmem [shape: bf16[128,8], index: 10, kind: input, shape index: {}]
  %s11 = inlined_call_operand.vmem [shape: f32[2,8], index: 11, kind: input, shape index: {}]
  %s12 = inlined_call_operand.vmem [shape: f32[1,8], index: 12, kind: input, shape index: {}]
  %s13 = inlined_call_operand.hbm [shape: f32[2,8], index: 13, kind: output, shape index: {}]
  %s14 = sld [smem:[#allocation0]]
  $region92: #{lowres_cnn3d_forward.1} parent=0
    _
  %s16 = ssub.s32 1, %s14
  %s17 = scalar_select 0, %s16, %s14
  $region1: #{lowres_cnn3d_forward.1} parent=0
    #allocation8 [shape = 'u8[1024]{0}', space=vmem, size = 0x400, scoped, tag = 'output window, operand 0, single buffered']
    #allocation9 [shape = 's32[1]{0}', space=sflag, size = 0x4, scoped, tag = 'scoped memory for lowres_cnn3d_forward.1']
    %18 = vsyncpa [#allocation9], 0
    // Predicated region
    $region2: #{lowres_cnn3d_forward.1} parent=1 // pred_check
      _
    $region3: #{lowres_cnn3d_forward.1} parent=1 // pred_check_branch
      %20 = sbr.rel (0) target = $region5
    $region4: #{lowres_cnn3d_forward.1} parent=1 // pred_region
      _
    $region5: #{lowres_cnn3d_forward.1} parent=1 // pred_fallthru
      _
    // Predicated region
    $region6: #{lowres_cnn3d_forward.1} parent=1 // pred_check
      _
    $region7: #{lowres_cnn3d_forward.1} parent=1 // pred_check_branch
      %22 = sbr.rel (0) target = $region9
    $region8: #{lowres_cnn3d_forward.1} parent=1 // pred_region
      _
    $region9: #{lowres_cnn3d_forward.1} parent=1 // pred_fallthru
      _
    // Predicated region
    $region10: #{lowres_cnn3d_forward.1} parent=1 // pred_check
      _
    $region11: #{lowres_cnn3d_forward.1} parent=1 // pred_check_branch
      %24 = sbr.rel (0) target = $region13
    $region12: #{lowres_cnn3d_forward.1} parent=1 // pred_region
      _
    $region13: #{lowres_cnn3d_forward.1} parent=1 // pred_fallthru
      _
    // Predicated region
    $region14: #{lowres_cnn3d_forward.1} parent=1 // pred_check
      _
    $region15: #{lowres_cnn3d_forward.1} parent=1 // pred_check_branch
      %26 = sbr.rel (0) target = $region17
    $region16: #{lowres_cnn3d_forward.1} parent=1 // pred_region
      _
    $region17: #{lowres_cnn3d_forward.1} parent=1 // pred_fallthru
      _
    // Predicated region
    $region18: #{lowres_cnn3d_forward.1} parent=1 // pred_check
      _
    $region19: #{lowres_cnn3d_forward.1} parent=1 // pred_check_branch
      %28 = sbr.rel (0) target = $region21
    $region20: #{lowres_cnn3d_forward.1} parent=1 // pred_region
      _
    $region21: #{lowres_cnn3d_forward.1} parent=1 // pred_fallthru
      _
    // Predicated region
    $region22: #{lowres_cnn3d_forward.1} parent=1 // pred_check
      _
    $region23: #{lowres_cnn3d_forward.1} parent=1 // pred_check_branch
      %30 = sbr.rel (0) target = $region25
    $region24: #{lowres_cnn3d_forward.1} parent=1 // pred_region
      _
    $region25: #{lowres_cnn3d_forward.1} parent=1 // pred_fallthru
      _
    // Predicated region
    $region26: #{lowres_cnn3d_forward.1} parent=1 // pred_check
      _
    $region27: #{lowres_cnn3d_forward.1} parent=1 // pred_check_branch
      %32 = sbr.rel (0) target = $region29
    $region28: #{lowres_cnn3d_forward.1} parent=1 // pred_region
      _
    $region29: #{lowres_cnn3d_forward.1} parent=1 // pred_fallthru
      _
    // Predicated region
    $region30: #{lowres_cnn3d_forward.1} parent=1 // pred_check
      _
    $region31: #{lowres_cnn3d_forward.1} parent=1 // pred_check_branch
      %34 = sbr.rel (0) target = $region33
    $region32: #{lowres_cnn3d_forward.1} parent=1 // pred_region
      _
    $region33: #{lowres_cnn3d_forward.1} parent=1 // pred_fallthru
      _
    // Predicated region
    $region34: #{lowres_cnn3d_forward.1} parent=1 // pred_check
      _
    $region35: #{lowres_cnn3d_forward.1} parent=1 // pred_check_branch
      %36 = sbr.rel (0) target = $region37
    $region36: #{lowres_cnn3d_forward.1} parent=1 // pred_region
      _
    $region37: #{lowres_cnn3d_forward.1} parent=1 // pred_fallthru
      _
    // Predicated region
    $region38: #{lowres_cnn3d_forward.1} parent=1 // pred_check
      _
    $region39: #{lowres_cnn3d_forward.1} parent=1 // pred_check_branch
      %38 = sbr.rel (0) target = $region41
    $region40: #{lowres_cnn3d_forward.1} parent=1 // pred_region
      _
    $region41: #{lowres_cnn3d_forward.1} parent=1 // pred_fallthru
      _
    // Predicated region
    $region42: #{lowres_cnn3d_forward.1} parent=1 // pred_check
      _
    $region43: #{lowres_cnn3d_forward.1} parent=1 // pred_check_branch
      %40 = sbr.rel (0) target = $region45
    $region44: #{lowres_cnn3d_forward.1} parent=1 // pred_region
      _
    $region45: #{lowres_cnn3d_forward.1} parent=1 // pred_fallthru
      _
    // Predicated region
    $region46: #{lowres_cnn3d_forward.1} parent=1 // pred_check
      _
    $region47: #{lowres_cnn3d_forward.1} parent=1 // pred_check_branch
      %42 = sbr.rel (0) target = $region49
    $region48: #{lowres_cnn3d_forward.1} parent=1 // pred_region
      _
    $region49: #{lowres_cnn3d_forward.1} parent=1 // pred_fallthru
      _
    %p45 = scmp.lt.u32.totalorder 2048, 8
    %p46 = pneg %p45
    // Predicated region
    $region50: #{lowres_cnn3d_forward.1} parent=1 // pred_check
      _
    $region51: #{lowres_cnn3d_forward.1} parent=1 // pred_check_branch
      %48 = sbr.rel (%p45) target = $region53
    $region52: #{lowres_cnn3d_forward.1} parent=1 // pred_region
      %s64 = sand.u32 2048, 7
      %p65 = scmp.eq.s32.totalorder %s64, 0
      // Predicated region
      $region65: #{lowres_cnn3d_forward.1} parent=52 // pred_check
        %p66 = pneg %p65
      $region66: #{lowres_cnn3d_forward.1} parent=52 // pred_check_branch
        %68 = sbr.rel (%p66) target = $region68
      $region67: #{lowres_cnn3d_forward.1} parent=52 // pred_region
        loop: start=0, step=1, limit=1
        $region69: #{lowres_cnn3d_forward.1} parent=67 // loop_pre_header
          _
        $region70: #{lowres_cnn3d_forward.1} parent=67 // loop_header
          %s70 = sphi 0, %s74
          %p71 = scmp.ge.s32.totalorder %s70, 1
          %s75 = sphi %s6, %s6
          %s76 = sphi [#allocation2], [#allocation2]
        $region71: #{lowres_cnn3d_forward.1} parent=67 // loop_header_branch
          %73 = sbr.rel (%p71) target = $region75
        $region72: #{lowres_cnn3d_forward.1} parent=67 // loop_body
          %v77 = vld [vmem:[%s75] sm:$0xff]
          %78 = vst [vmem:[%s76] sm:$0xff] %v77
          %v79 = vld [vmem:[%s75 + $0x8] sm:$0xff]
          %80 = vst [vmem:[%s76 + $0x8] sm:$0xff] %v79
          %v81 = vld [vmem:[%s75 + $0x10] sm:$0xff]
          %82 = vst [vmem:[%s76 + $0x10] sm:$0xff] %v81
          %v83 = vld [vmem:[%s75 + $0x18] sm:$0xff]
          %84 = vst [vmem:[%s76 + $0x18] sm:$0xff] %v83
          %v85 = vld [vmem:[%s75 + $0x20] sm:$0xff]
          %86 = vst [vmem:[%s76 + $0x20] sm:$0xff] %v85
          %v87 = vld [vmem:[%s75 + $0x28] sm:$0xff]
          %88 = vst [vmem:[%s76 + $0x28] sm:$0xff] %v87
          %v89 = vld [vmem:[%s75 + $0x30] sm:$0xff]
          %90 = vst [vmem:[%s76 + $0x30] sm:$0xff] %v89
          %v91 = vld [vmem:[%s75 + $0x38] sm:$0xff]
          %92 = vst [vmem:[%s76 + $0x38] sm:$0xff] %v91
          %v93 = vld [vmem:[%s75 + $0x40] sm:$0xff]
          %94 = vst [vmem:[%s76 + $0x40] sm:$0xff] %v93
          %v95 = vld [vmem:[%s75 + $0x48] sm:$0xff]
          %96 = vst [vmem:[%s76 + $0x48] sm:$0xff] %v95
          %v97 = vld [vmem:[%s75 + $0x50] sm:$0xff]
          %98 = vst [vmem:[%s76 + $0x50] sm:$0xff] %v97
          %v99 = vld [vmem:[%s75 + $0x58] sm:$0xff]
          %100 = vst [vmem:[%s76 + $0x58] sm:$0xff] %v99
          %v101 = vld [vmem:[%s75 + $0x60] sm:$0xff]
          %102 = vst [vmem:[%s76 + $0x60] sm:$0xff] %v101
          %v103 = vld [vmem:[%s75 + $0x68] sm:$0xff]
          %104 = vst [vmem:[%s76 + $0x68] sm:$0xff] %v103
          %v105 = vld [vmem:[%s75 + $0x70] sm:$0xff]
          %106 = vst [vmem:[%s76 + $0x70] sm:$0xff] %v105
          %v107 = vld [vmem:[%s75 + $0x78] sm:$0xff]
          %108 = vst [vmem:[%s76 + $0x78] sm:$0xff] %v107
          %v109 = vld [vmem:[%s75 + $0x80] sm:$0xff]
          %110 = vst [vmem:[%s76 + $0x80] sm:$0xff] %v109
          %v111 = vld [vmem:[%s75 + $0x88] sm:$0xff]
          %112 = vst [vmem:[%s76 + $0x88] sm:$0xff] %v111
          %v113 = vld [vmem:[%s75 + $0x90] sm:$0xff]
          %114 = vst [vmem:[%s76 + $0x90] sm:$0xff] %v113
          %v115 = vld [vmem:[%s75 + $0x98] sm:$0xff]
          %116 = vst [vmem:[%s76 + $0x98] sm:$0xff] %v115
          %v117 = vld [vmem:[%s75 + $0xa0] sm:$0xff]
          %118 = vst [vmem:[%s76 + $0xa0] sm:$0xff] %v117
          %v119 = vld [vmem:[%s75 + $0xa8] sm:$0xff]
          %120 = vst [vmem:[%s76 + $0xa8] sm:$0xff] %v119
          %v121 = vld [vmem:[%s75 + $0xb0] sm:$0xff]
          %122 = vst [vmem:[%s76 + $0xb0] sm:$0xff] %v121
          %v123 = vld [vmem:[%s75 + $0xb8] sm:$0xff]
          %124 = vst [vmem:[%s76 + $0xb8] sm:$0xff] %v123
          %v125 = vld [vmem:[%s75 + $0xc0] sm:$0xff]
          %126 = vst [vmem:[%s76 + $0xc0] sm:$0xff] %v125
          %v127 = vld [vmem:[%s75 + $0xc8] sm:$0xff]
          %128 = vst [vmem:[%s76 + $0xc8] sm:$0xff] %v127
          %v129 = vld [vmem:[%s75 + $0xd0] sm:$0xff]
          %130 = vst [vmem:[%s76 + $0xd0] sm:$0xff] %v129
          %v131 = vld [vmem:[%s75 + $0xd8] sm:$0xff]
          %132 = vst [vmem:[%s76 + $0xd8] sm:$0xff] %v131
          %v133 = vld [vmem:[%s75 + $0xe0] sm:$0xff]
          %134 = vst [vmem:[%s76 + $0xe0] sm:$0xff] %v133
          %v135 = vld [vmem:[%s75 + $0xe8] sm:$0xff]
          %136 = vst [vmem:[%s76 + $0xe8] sm:$0xff] %v135
          %v137 = vld [vmem:[%s75 + $0xf0] sm:$0xff]
          %138 = vst [vmem:[%s76 + $0xf0] sm:$0xff] %v137
          %v139 = vld [vmem:[%s75 + $0xf8] sm:$0xff]
          %140 = vst [vmem:[%s76 + $0xf8] sm:$0xff] %v139
          %v141 = vld [vmem:[%s75 + $0x100] sm:$0xff]
          %142 = vst [vmem:[%s76 + $0x100] sm:$0xff] %v141
          %v143 = vld [vmem:[%s75 + $0x108] sm:$0xff]
          %144 = vst [vmem:[%s76 + $0x108] sm:$0xff] %v143
          %v145 = vld [vmem:[%s75 + $0x110] sm:$0xff]
          %146 = vst [vmem:[%s76 + $0x110] sm:$0xff] %v145
          %v147 = vld [vmem:[%s75 + $0x118] sm:$0xff]
          %148 = vst [vmem:[%s76 + $0x118] sm:$0xff] %v147
          %v149 = vld [vmem:[%s75 + $0x120] sm:$0xff]
          %150 = vst [vmem:[%s76 + $0x120] sm:$0xff] %v149
          %v151 = vld [vmem:[%s75 + $0x128] sm:$0xff]
          %152 = vst [vmem:[%s76 + $0x128] sm:$0xff] %v151
          %v153 = vld [vmem:[%s75 + $0x130] sm:$0xff]
          %154 = vst [vmem:[%s76 + $0x130] sm:$0xff] %v153
          %v155 = vld [vmem:[%s75 + $0x138] sm:$0xff]
          %156 = vst [vmem:[%s76 + $0x138] sm:$0xff] %v155
          %v157 = vld [vmem:[%s75 + $0x140] sm:$0xff]
          %158 = vst [vmem:[%s76 + $0x140] sm:$0xff] %v157
          %v159 = vld [vmem:[%s75 + $0x148] sm:$0xff]
          %160 = vst [vmem:[%s76 + $0x148] sm:$0xff] %v159
          %v161 = vld [vmem:[%s75 + $0x150] sm:$0xff]
          %162 = vst [vmem:[%s76 + $0x150] sm:$0xff] %v161
          %v163 = vld [vmem:[%s75 + $0x158] sm:$0xff]
          %164 = vst [vmem:[%s76 + $0x158] sm:$0xff] %v163
          %v165 = vld [vmem:[%s75 + $0x160] sm:$0xff]
          %166 = vst [vmem:[%s76 + $0x160] sm:$0xff] %v165
          %v167 = vld [vmem:[%s75 + $0x168] sm:$0xff]
          %168 = vst [vmem:[%s76 + $0x168] sm:$0xff] %v167
          %v169 = vld [vmem:[%s75 + $0x170] sm:$0xff]
          %170 = vst [vmem:[%s76 + $0x170] sm:$0xff] %v169
          %v171 = vld [vmem:[%s75 + $0x178] sm:$0xff]
          %172 = vst [vmem:[%s76 + $0x178] sm:$0xff] %v171
          %v173 = vld [vmem:[%s75 + $0x180] sm:$0xff]
          %174 = vst [vmem:[%s76 + $0x180] sm:$0xff] %v173
          %v175 = vld [vmem:[%s75 + $0x188] sm:$0xff]
          %176 = vst [vmem:[%s76 + $0x188] sm:$0xff] %v175
          %v177 = vld [vmem:[%s75 + $0x190] sm:$0xff]
          %178 = vst [vmem:[%s76 + $0x190] sm:$0xff] %v177
          %v179 = vld [vmem:[%s75 + $0x198] sm:$0xff]
          %180 = vst [vmem:[%s76 + $0x198] sm:$0xff] %v179
          %v181 = vld [vmem:[%s75 + $0x1a0] sm:$0xff]
          %182 = vst [vmem:[%s76 + $0x1a0] sm:$0xff] %v181
          %v183 = vld [vmem:[%s75 + $0x1a8] sm:$0xff]
          %184 = vst [vmem:[%s76 + $0x1a8] sm:$0xff] %v183
          %v185 = vld [vmem:[%s75 + $0x1b0] sm:$0xff]
          %186 = vst [vmem:[%s76 + $0x1b0] sm:$0xff] %v185
          %v187 = vld [vmem:[%s75 + $0x1b8] sm:$0xff]
          %188 = vst [vmem:[%s76 + $0x1b8] sm:$0xff] %v187
          %v189 = vld [vmem:[%s75 + $0x1c0] sm:$0xff]
          %190 = vst [vmem:[%s76 + $0x1c0] sm:$0xff] %v189
          %v191 = vld [vmem:[%s75 + $0x1c8] sm:$0xff]
          %192 = vst [vmem:[%s76 + $0x1c8] sm:$0xff] %v191
          %v193 = vld [vmem:[%s75 + $0x1d0] sm:$0xff]
          %194 = vst [vmem:[%s76 + $0x1d0] sm:$0xff] %v193
          %v195 = vld [vmem:[%s75 + $0x1d8] sm:$0xff]
          %196 = vst [vmem:[%s76 + $0x1d8] sm:$0xff] %v195
          %v197 = vld [vmem:[%s75 + $0x1e0] sm:$0xff]
          %198 = vst [vmem:[%s76 + $0x1e0] sm:$0xff] %v197
          %v199 = vld [vmem:[%s75 + $0x1e8] sm:$0xff]
          %200 = vst [vmem:[%s76 + $0x1e8] sm:$0xff] %v199
          %v201 = vld [vmem:[%s75 + $0x1f0] sm:$0xff]
          %202 = vst [vmem:[%s76 + $0x1f0] sm:$0xff] %v201
          %v203 = vld [vmem:[%s75 + $0x1f8] sm:$0xff]
          %204 = vst [vmem:[%s76 + $0x1f8] sm:$0xff] %v203
          %v205 = vld [vmem:[%s75 + $0x200] sm:$0xff]
          %206 = vst [vmem:[%s76 + $0x200] sm:$0xff] %v205
          %v207 = vld [vmem:[%s75 + $0x208] sm:$0xff]
          %208 = vst [vmem:[%s76 + $0x208] sm:$0xff] %v207
          %v209 = vld [vmem:[%s75 + $0x210] sm:$0xff]
          %210 = vst [vmem:[%s76 + $0x210] sm:$0xff] %v209
          %v211 = vld [vmem:[%s75 + $0x218] sm:$0xff]
          %212 = vst [vmem:[%s76 + $0x218] sm:$0xff] %v211
          %v213 = vld [vmem:[%s75 + $0x220] sm:$0xff]
          %214 = vst [vmem:[%s76 + $0x220] sm:$0xff] %v213
          %v215 = vld [vmem:[%s75 + $0x228] sm:$0xff]
          %216 = vst [vmem:[%s76 + $0x228] sm:$0xff] %v215
          %v217 = vld [vmem:[%s75 + $0x230] sm:$0xff]
          %218 = vst [vmem:[%s76 + $0x230] sm:$0xff] %v217
          %v219 = vld [vmem:[%s75 + $0x238] sm:$0xff]
          %220 = vst [vmem:[%s76 + $0x238] sm:$0xff] %v219
          %v221 = vld [vmem:[%s75 + $0x240] sm:$0xff]
          %222 = vst [vmem:[%s76 + $0x240] sm:$0xff] %v221
          %v223 = vld [vmem:[%s75 + $0x248] sm:$0xff]
          %224 = vst [vmem:[%s76 + $0x248] sm:$0xff] %v223
          %v225 = vld [vmem:[%s75 + $0x250] sm:$0xff]
          %226 = vst [vmem:[%s76 + $0x250] sm:$0xff] %v225
          %v227 = vld [vmem:[%s75 + $0x258] sm:$0xff]
          %228 = vst [vmem:[%s76 + $0x258] sm:$0xff] %v227
          %v229 = vld [vmem:[%s75 + $0x260] sm:$0xff]
          %230 = vst [vmem:[%s76 + $0x260] sm:$0xff] %v229
          %v231 = vld [vmem:[%s75 + $0x268] sm:$0xff]
          %232 = vst [vmem:[%s76 + $0x268] sm:$0xff] %v231
          %v233 = vld [vmem:[%s75 + $0x270] sm:$0xff]
          %234 = vst [vmem:[%s76 + $0x270] sm:$0xff] %v233
          %v235 = vld [vmem:[%s75 + $0x278] sm:$0xff]
          %236 = vst [vmem:[%s76 + $0x278] sm:$0xff] %v235
          %v237 = vld [vmem:[%s75 + $0x280] sm:$0xff]
          %238 = vst [vmem:[%s76 + $0x280] sm:$0xff] %v237
          %v239 = vld [vmem:[%s75 + $0x288] sm:$0xff]
          %240 = vst [vmem:[%s76 + $0x288] sm:$0xff] %v239
          %v241 = vld [vmem:[%s75 + $0x290] sm:$0xff]
          %242 = vst [vmem:[%s76 + $0x290] sm:$0xff] %v241
          %v243 = vld [vmem:[%s75 + $0x298] sm:$0xff]
          %244 = vst [vmem:[%s76 + $0x298] sm:$0xff] %v243
          %v245 = vld [vmem:[%s75 + $0x2a0] sm:$0xff]
          %246 = vst [vmem:[%s76 + $0x2a0] sm:$0xff] %v245
          %v247 = vld [vmem:[%s75 + $0x2a8] sm:$0xff]
          %248 = vst [vmem:[%s76 + $0x2a8] sm:$0xff] %v247
          %v249 = vld [vmem:[%s75 + $0x2b0] sm:$0xff]
          %250 = vst [vmem:[%s76 + $0x2b0] sm:$0xff] %v249
          %v251 = vld [vmem:[%s75 + $0x2b8] sm:$0xff]
          %252 = vst [vmem:[%s76 + $0x2b8] sm:$0xff] %v251
          %v253 = vld [vmem:[%s75 + $0x2c0] sm:$0xff]
          %254 = vst [vmem:[%s76 + $0x2c0] sm:$0xff] %v253
          %v255 = vld [vmem:[%s75 + $0x2c8] sm:$0xff]
          %256 = vst [vmem:[%s76 + $0x2c8] sm:$0xff] %v255
          %v257 = vld [vmem:[%s75 + $0x2d0] sm:$0xff]
          %258 = vst [vmem:[%s76 + $0x2d0] sm:$0xff] %v257
          %v259 = vld [vmem:[%s75 + $0x2d8] sm:$0xff]
          %260 = vst [vmem:[%s76 + $0x2d8] sm:$0xff] %v259
          %v261 = vld [vmem:[%s75 + $0x2e0] sm:$0xff]
          %262 = vst [vmem:[%s76 + $0x2e0] sm:$0xff] %v261
          %v263 = vld [vmem:[%s75 + $0x2e8] sm:$0xff]
          %264 = vst [vmem:[%s76 + $0x2e8] sm:$0xff] %v263
          %v265 = vld [vmem:[%s75 + $0x2f0] sm:$0xff]
          %266 = vst [vmem:[%s76 + $0x2f0] sm:$0xff] %v265
          %v267 = vld [vmem:[%s75 + $0x2f8] sm:$0xff]
          %268 = vst [vmem:[%s76 + $0x2f8] sm:$0xff] %v267
          %v269 = vld [vmem:[%s75 + $0x300] sm:$0xff]
          %270 = vst [vmem:[%s76 + $0x300] sm:$0xff] %v269
          %v271 = vld [vmem:[%s75 + $0x308] sm:$0xff]
          %272 = vst [vmem:[%s76 + $0x308] sm:$0xff] %v271
          %v273 = vld [vmem:[%s75 + $0x310] sm:$0xff]
          %274 = vst [vmem:[%s76 + $0x310] sm:$0xff] %v273
          %v275 = vld [vmem:[%s75 + $0x318] sm:$0xff]
          %276 = vst [vmem:[%s76 + $0x318] sm:$0xff] %v275
          %v277 = vld [vmem:[%s75 + $0x320] sm:$0xff]
          %278 = vst [vmem:[%s76 + $0x320] sm:$0xff] %v277
          %v279 = vld [vmem:[%s75 + $0x328] sm:$0xff]
          %280 = vst [vmem:[%s76 + $0x328] sm:$0xff] %v279
          %v281 = vld [vmem:[%s75 + $0x330] sm:$0xff]
          %282 = vst [vmem:[%s76 + $0x330] sm:$0xff] %v281
          %v283 = vld [vmem:[%s75 + $0x338] sm:$0xff]
          %284 = vst [vmem:[%s76 + $0x338] sm:$0xff] %v283
          %v285 = vld [vmem:[%s75 + $0x340] sm:$0xff]
          %286 = vst [vmem:[%s76 + $0x340] sm:$0xff] %v285
          %v287 = vld [vmem:[%s75 + $0x348] sm:$0xff]
          %288 = vst [vmem:[%s76 + $0x348] sm:$0xff] %v287
          %v289 = vld [vmem:[%s75 + $0x350] sm:$0xff]
          %290 = vst [vmem:[%s76 + $0x350] sm:$0xff] %v289
          %v291 = vld [vmem:[%s75 + $0x358] sm:$0xff]
          %292 = vst [vmem:[%s76 + $0x358] sm:$0xff] %v291
          %v293 = vld [vmem:[%s75 + $0x360] sm:$0xff]
          %294 = vst [vmem:[%s76 + $0x360] sm:$0xff] %v293
          %v295 = vld [vmem:[%s75 + $0x368] sm:$0xff]
          %296 = vst [vmem:[%s76 + $0x368] sm:$0xff] %v295
          %v297 = vld [vmem:[%s75 + $0x370] sm:$0xff]
          %298 = vst [vmem:[%s76 + $0x370] sm:$0xff] %v297
          %v299 = vld [vmem:[%s75 + $0x378] sm:$0xff]
          %300 = vst [vmem:[%s76 + $0x378] sm:$0xff] %v299
          %v301 = vld [vmem:[%s75 + $0x380] sm:$0xff]
          %302 = vst [vmem:[%s76 + $0x380] sm:$0xff] %v301
          %v303 = vld [vmem:[%s75 + $0x388] sm:$0xff]
          %304 = vst [vmem:[%s76 + $0x388] sm:$0xff] %v303
          %v305 = vld [vmem:[%s75 + $0x390] sm:$0xff]
          %306 = vst [vmem:[%s76 + $0x390] sm:$0xff] %v305
          %v307 = vld [vmem:[%s75 + $0x398] sm:$0xff]
          %308 = vst [vmem:[%s76 + $0x398] sm:$0xff] %v307
          %v309 = vld [vmem:[%s75 + $0x3a0] sm:$0xff]
          %310 = vst [vmem:[%s76 + $0x3a0] sm:$0xff] %v309
          %v311 = vld [vmem:[%s75 + $0x3a8] sm:$0xff]
          %312 = vst [vmem:[%s76 + $0x3a8] sm:$0xff] %v311
          %v313 = vld [vmem:[%s75 + $0x3b0] sm:$0xff]
          %314 = vst [vmem:[%s76 + $0x3b0] sm:$0xff] %v313
          %v315 = vld [vmem:[%s75 + $0x3b8] sm:$0xff]
          %316 = vst [vmem:[%s76 + $0x3b8] sm:$0xff] %v315
          %v317 = vld [vmem:[%s75 + $0x3c0] sm:$0xff]
          %318 = vst [vmem:[%s76 + $0x3c0] sm:$0xff] %v317
          %v319 = vld [vmem:[%s75 + $0x3c8] sm:$0xff]
          %320 = vst [vmem:[%s76 + $0x3c8] sm:$0xff] %v319
          %v321 = vld [vmem:[%s75 + $0x3d0] sm:$0xff]
          %322 = vst [vmem:[%s76 + $0x3d0] sm:$0xff] %v321
          %v323 = vld [vmem:[%s75 + $0x3d8] sm:$0xff]
          %324 = vst [vmem:[%s76 + $0x3d8] sm:$0xff] %v323
          %v325 = vld [vmem:[%s75 + $0x3e0] sm:$0xff]
          %326 = vst [vmem:[%s76 + $0x3e0] sm:$0xff] %v325
          %v327 = vld [vmem:[%s75 + $0x3e8] sm:$0xff]
          %328 = vst [vmem:[%s76 + $0x3e8] sm:$0xff] %v327
          %v329 = vld [vmem:[%s75 + $0x3f0] sm:$0xff]
          %330 = vst [vmem:[%s76 + $0x3f0] sm:$0xff] %v329
          %v331 = vld [vmem:[%s75 + $0x3f8] sm:$0xff]
          %332 = vst [vmem:[%s76 + $0x3f8] sm:$0xff] %v331
          %v333 = vld [vmem:[%s75 + $0x400] sm:$0xff]
          %334 = vst [vmem:[%s76 + $0x400] sm:$0xff] %v333
          %v335 = vld [vmem:[%s75 + $0x408] sm:$0xff]
          %336 = vst [vmem:[%s76 + $0x408] sm:$0xff] %v335
          %v337 = vld [vmem:[%s75 + $0x410] sm:$0xff]
          %338 = vst [vmem:[%s76 + $0x410] sm:$0xff] %v337
          %v339 = vld [vmem:[%s75 + $0x418] sm:$0xff]
          %340 = vst [vmem:[%s76 + $0x418] sm:$0xff] %v339
          %v341 = vld [vmem:[%s75 + $0x420] sm:$0xff]
          %342 = vst [vmem:[%s76 + $0x420] sm:$0xff] %v341
          %v343 = vld [vmem:[%s75 + $0x428] sm:$0xff]
          %344 = vst [vmem:[%s76 + $0x428] sm:$0xff] %v343
          %v345 = vld [vmem:[%s75 + $0x430] sm:$0xff]
          %346 = vst [vmem:[%s76 + $0x430] sm:$0xff] %v345
          %v347 = vld [vmem:[%s75 + $0x438] sm:$0xff]
          %348 = vst [vmem:[%s76 + $0x438] sm:$0xff] %v347
          %v349 = vld [vmem:[%s75 + $0x440] sm:$0xff]
          %350 = vst [vmem:[%s76 + $0x440] sm:$0xff] %v349
          %v351 = vld [vmem:[%s75 + $0x448] sm:$0xff]
          %352 = vst [vmem:[%s76 + $0x448] sm:$0xff] %v351
          %v353 = vld [vmem:[%s75 + $0x450] sm:$0xff]
          %354 = vst [vmem:[%s76 + $0x450] sm:$0xff] %v353
          %v355 = vld [vmem:[%s75 + $0x458] sm:$0xff]
          %356 = vst [vmem:[%s76 + $0x458] sm:$0xff] %v355
          %v357 = vld [vmem:[%s75 + $0x460] sm:$0xff]
          %358 = vst [vmem:[%s76 + $0x460] sm:$0xff] %v357
          %v359 = vld [vmem:[%s75 + $0x468] sm:$0xff]
          %360 = vst [vmem:[%s76 + $0x468] sm:$0xff] %v359
          %v361 = vld [vmem:[%s75 + $0x470] sm:$0xff]
          %362 = vst [vmem:[%s76 + $0x470] sm:$0xff] %v361
          %v363 = vld [vmem:[%s75 + $0x478] sm:$0xff]
          %364 = vst [vmem:[%s76 + $0x478] sm:$0xff] %v363
          %v365 = vld [vmem:[%s75 + $0x480] sm:$0xff]
          %366 = vst [vmem:[%s76 + $0x480] sm:$0xff] %v365
          %v367 = vld [vmem:[%s75 + $0x488] sm:$0xff]
          %368 = vst [vmem:[%s76 + $0x488] sm:$0xff] %v367
          %v369 = vld [vmem:[%s75 + $0x490] sm:$0xff]
          %370 = vst [vmem:[%s76 + $0x490] sm:$0xff] %v369
          %v371 = vld [vmem:[%s75 + $0x498] sm:$0xff]
          %372 = vst [vmem:[%s76 + $0x498] sm:$0xff] %v371
          %v373 = vld [vmem:[%s75 + $0x4a0] sm:$0xff]
          %374 = vst [vmem:[%s76 + $0x4a0] sm:$0xff] %v373
          %v375 = vld [vmem:[%s75 + $0x4a8] sm:$0xff]
          %376 = vst [vmem:[%s76 + $0x4a8] sm:$0xff] %v375
          %v377 = vld [vmem:[%s75 + $0x4b0] sm:$0xff]
          %378 = vst [vmem:[%s76 + $0x4b0] sm:$0xff] %v377
          %v379 = vld [vmem:[%s75 + $0x4b8] sm:$0xff]
          %380 = vst [vmem:[%s76 + $0x4b8] sm:$0xff] %v379
          %v381 = vld [vmem:[%s75 + $0x4c0] sm:$0xff]
          %382 = vst [vmem:[%s76 + $0x4c0] sm:$0xff] %v381
          %v383 = vld [vmem:[%s75 + $0x4c8] sm:$0xff]
          %384 = vst [vmem:[%s76 + $0x4c8] sm:$0xff] %v383
          %v385 = vld [vmem:[%s75 + $0x4d0] sm:$0xff]
          %386 = vst [vmem:[%s76 + $0x4d0] sm:$0xff] %v385
          %v387 = vld [vmem:[%s75 + $0x4d8] sm:$0xff]
          %388 = vst [vmem:[%s76 + $0x4d8] sm:$0xff] %v387
          %v389 = vld [vmem:[%s75 + $0x4e0] sm:$0xff]
          %390 = vst [vmem:[%s76 + $0x4e0] sm:$0xff] %v389
          %v391 = vld [vmem:[%s75 + $0x4e8] sm:$0xff]
          %392 = vst [vmem:[%s76 + $0x4e8] sm:$0xff] %v391
          %v393 = vld [vmem:[%s75 + $0x4f0] sm:$0xff]
          %394 = vst [vmem:[%s76 + $0x4f0] sm:$0xff] %v393
          %v395 = vld [vmem:[%s75 + $0x4f8] sm:$0xff]
          %396 = vst [vmem:[%s76 + $0x4f8] sm:$0xff] %v395
          %v397 = vld [vmem:[%s75 + $0x500] sm:$0xff]
          %398 = vst [vmem:[%s76 + $0x500] sm:$0xff] %v397
          %v399 = vld [vmem:[%s75 + $0x508] sm:$0xff]
          %400 = vst [vmem:[%s76 + $0x508] sm:$0xff] %v399
          %v401 = vld [vmem:[%s75 + $0x510] sm:$0xff]
          %402 = vst [vmem:[%s76 + $0x510] sm:$0xff] %v401
          %v403 = vld [vmem:[%s75 + $0x518] sm:$0xff]
          %404 = vst [vmem:[%s76 + $0x518] sm:$0xff] %v403
          %v405 = vld [vmem:[%s75 + $0x520] sm:$0xff]
          %406 = vst [vmem:[%s76 + $0x520] sm:$0xff] %v405
          %v407 = vld [vmem:[%s75 + $0x528] sm:$0xff]
          %408 = vst [vmem:[%s76 + $0x528] sm:$0xff] %v407
          %v409 = vld [vmem:[%s75 + $0x530] sm:$0xff]
          %410 = vst [vmem:[%s76 + $0x530] sm:$0xff] %v409
          %v411 = vld [vmem:[%s75 + $0x538] sm:$0xff]
          %412 = vst [vmem:[%s76 + $0x538] sm:$0xff] %v411
          %v413 = vld [vmem:[%s75 + $0x540] sm:$0xff]
          %414 = vst [vmem:[%s76 + $0x540] sm:$0xff] %v413
          %v415 = vld [vmem:[%s75 + $0x548] sm:$0xff]
          %416 = vst [vmem:[%s76 + $0x548] sm:$0xff] %v415
          %v417 = vld [vmem:[%s75 + $0x550] sm:$0xff]
          %418 = vst [vmem:[%s76 + $0x550] sm:$0xff] %v417
          %v419 = vld [vmem:[%s75 + $0x558] sm:$0xff]
          %420 = vst [vmem:[%s76 + $0x558] sm:$0xff] %v419
          %v421 = vld [vmem:[%s75 + $0x560] sm:$0xff]
          %422 = vst [vmem:[%s76 + $0x560] sm:$0xff] %v421
          %v423 = vld [vmem:[%s75 + $0x568] sm:$0xff]
          %424 = vst [vmem:[%s76 + $0x568] sm:$0xff] %v423
          %v425 = vld [vmem:[%s75 + $0x570] sm:$0xff]
          %426 = vst [vmem:[%s76 + $0x570] sm:$0xff] %v425
          %v427 = vld [vmem:[%s75 + $0x578] sm:$0xff]
          %428 = vst [vmem:[%s76 + $0x578] sm:$0xff] %v427
          %v429 = vld [vmem:[%s75 + $0x580] sm:$0xff]
          %430 = vst [vmem:[%s76 + $0x580] sm:$0xff] %v429
          %v431 = vld [vmem:[%s75 + $0x588] sm:$0xff]
          %432 = vst [vmem:[%s76 + $0x588] sm:$0xff] %v431
          %v433 = vld [vmem:[%s75 + $0x590] sm:$0xff]
          %434 = vst [vmem:[%s76 + $0x590] sm:$0xff] %v433
          %v435 = vld [vmem:[%s75 + $0x598] sm:$0xff]
          %436 = vst [vmem:[%s76 + $0x598] sm:$0xff] %v435
          %v437 = vld [vmem:[%s75 + $0x5a0] sm:$0xff]
          %438 = vst [vmem:[%s76 + $0x5a0] sm:$0xff] %v437
          %v439 = vld [vmem:[%s75 + $0x5a8] sm:$0xff]
          %440 = vst [vmem:[%s76 + $0x5a8] sm:$0xff] %v439
          %v441 = vld [vmem:[%s75 + $0x5b0] sm:$0xff]
          %442 = vst [vmem:[%s76 + $0x5b0] sm:$0xff] %v441
          %v443 = vld [vmem:[%s75 + $0x5b8] sm:$0xff]
          %444 = vst [vmem:[%s76 + $0x5b8] sm:$0xff] %v443
          %v445 = vld [vmem:[%s75 + $0x5c0] sm:$0xff]
          %446 = vst [vmem:[%s76 + $0x5c0] sm:$0xff] %v445
          %v447 = vld [vmem:[%s75 + $0x5c8] sm:$0xff]
          %448 = vst [vmem:[%s76 + $0x5c8] sm:$0xff] %v447
          %v449 = vld [vmem:[%s75 + $0x5d0] sm:$0xff]
          %450 = vst [vmem:[%s76 + $0x5d0] sm:$0xff] %v449
          %v451 = vld [vmem:[%s75 + $0x5d8] sm:$0xff]
          %452 = vst [vmem:[%s76 + $0x5d8] sm:$0xff] %v451
          %v453 = vld [vmem:[%s75 + $0x5e0] sm:$0xff]
          %454 = vst [vmem:[%s76 + $0x5e0] sm:$0xff] %v453
          %v455 = vld [vmem:[%s75 + $0x5e8] sm:$0xff]
          %456 = vst [vmem:[%s76 + $0x5e8] sm:$0xff] %v455
          %v457 = vld [vmem:[%s75 + $0x5f0] sm:$0xff]
          %458 = vst [vmem:[%s76 + $0x5f0] sm:$0xff] %v457
          %v459 = vld [vmem:[%s75 + $0x5f8] sm:$0xff]
          %460 = vst [vmem:[%s76 + $0x5f8] sm:$0xff] %v459
          %v461 = vld [vmem:[%s75 + $0x600] sm:$0xff]
          %462 = vst [vmem:[%s76 + $0x600] sm:$0xff] %v461
          %v463 = vld [vmem:[%s75 + $0x608] sm:$0xff]
          %464 = vst [vmem:[%s76 + $0x608] sm:$0xff] %v463
          %v465 = vld [vmem:[%s75 + $0x610] sm:$0xff]
          %466 = vst [vmem:[%s76 + $0x610] sm:$0xff] %v465
          %v467 = vld [vmem:[%s75 + $0x618] sm:$0xff]
          %468 = vst [vmem:[%s76 + $0x618] sm:$0xff] %v467
          %v469 = vld [vmem:[%s75 + $0x620] sm:$0xff]
          %470 = vst [vmem:[%s76 + $0x620] sm:$0xff] %v469
          %v471 = vld [vmem:[%s75 + $0x628] sm:$0xff]
          %472 = vst [vmem:[%s76 + $0x628] sm:$0xff] %v471
          %v473 = vld [vmem:[%s75 + $0x630] sm:$0xff]
          %474 = vst [vmem:[%s76 + $0x630] sm:$0xff] %v473
          %v475 = vld [vmem:[%s75 + $0x638] sm:$0xff]
          %476 = vst [vmem:[%s76 + $0x638] sm:$0xff] %v475
          %v477 = vld [vmem:[%s75 + $0x640] sm:$0xff]
          %478 = vst [vmem:[%s76 + $0x640] sm:$0xff] %v477
          %v479 = vld [vmem:[%s75 + $0x648] sm:$0xff]
          %480 = vst [vmem:[%s76 + $0x648] sm:$0xff] %v479
          %v481 = vld [vmem:[%s75 + $0x650] sm:$0xff]
          %482 = vst [vmem:[%s76 + $0x650] sm:$0xff] %v481
          %v483 = vld [vmem:[%s75 + $0x658] sm:$0xff]
          %484 = vst [vmem:[%s76 + $0x658] sm:$0xff] %v483
          %v485 = vld [vmem:[%s75 + $0x660] sm:$0xff]
          %486 = vst [vmem:[%s76 + $0x660] sm:$0xff] %v485
          %v487 = vld [vmem:[%s75 + $0x668] sm:$0xff]
          %488 = vst [vmem:[%s76 + $0x668] sm:$0xff] %v487
          %v489 = vld [vmem:[%s75 + $0x670] sm:$0xff]
          %490 = vst [vmem:[%s76 + $0x670] sm:$0xff] %v489
          %v491 = vld [vmem:[%s75 + $0x678] sm:$0xff]
          %492 = vst [vmem:[%s76 + $0x678] sm:$0xff] %v491
          %v493 = vld [vmem:[%s75 + $0x680] sm:$0xff]
          %494 = vst [vmem:[%s76 + $0x680] sm:$0xff] %v493
          %v495 = vld [vmem:[%s75 + $0x688] sm:$0xff]
          %496 = vst [vmem:[%s76 + $0x688] sm:$0xff] %v495
          %v497 = vld [vmem:[%s75 + $0x690] sm:$0xff]
          %498 = vst [vmem:[%s76 + $0x690] sm:$0xff] %v497
          %v499 = vld [vmem:[%s75 + $0x698] sm:$0xff]
          %500 = vst [vmem:[%s76 + $0x698] sm:$0xff] %v499
          %v501 = vld [vmem:[%s75 + $0x6a0] sm:$0xff]
          %502 = vst [vmem:[%s76 + $0x6a0] sm:$0xff] %v501
          %v503 = vld [vmem:[%s75 + $0x6a8] sm:$0xff]
          %504 = vst [vmem:[%s76 + $0x6a8] sm:$0xff] %v503
          %v505 = vld [vmem:[%s75 + $0x6b0] sm:$0xff]
          %506 = vst [vmem:[%s76 + $0x6b0] sm:$0xff] %v505
          %v507 = vld [vmem:[%s75 + $0x6b8] sm:$0xff]
          %508 = vst [vmem:[%s76 + $0x6b8] sm:$0xff] %v507
          %v509 = vld [vmem:[%s75 + $0x6c0] sm:$0xff]
          %510 = vst [vmem:[%s76 + $0x6c0] sm:$0xff] %v509
          %v511 = vld [vmem:[%s75 + $0x6c8] sm:$0xff]
          %512 = vst [vmem:[%s76 + $0x6c8] sm:$0xff] %v511
          %v513 = vld [vmem:[%s75 + $0x6d0] sm:$0xff]
          %514 = vst [vmem:[%s76 + $0x6d0] sm:$0xff] %v513
          %v515 = vld [vmem:[%s75 + $0x6d8] sm:$0xff]
          %516 = vst [vmem:[%s76 + $0x6d8] sm:$0xff] %v515
          %v517 = vld [vmem:[%s75 + $0x6e0] sm:$0xff]
          %518 = vst [vmem:[%s76 + $0x6e0] sm:$0xff] %v517
          %v519 = vld [vmem:[%s75 + $0x6e8] sm:$0xff]
          %520 = vst [vmem:[%s76 + $0x6e8] sm:$0xff] %v519
          %v521 = vld [vmem:[%s75 + $0x6f0] sm:$0xff]
          %522 = vst [vmem:[%s76 + $0x6f0] sm:$0xff] %v521
          %v523 = vld [vmem:[%s75 + $0x6f8] sm:$0xff]
          %524 = vst [vmem:[%s76 + $0x6f8] sm:$0xff] %v523
          %v525 = vld [vmem:[%s75 + $0x700] sm:$0xff]
          %526 = vst [vmem:[%s76 + $0x700] sm:$0xff] %v525
          %v527 = vld [vmem:[%s75 + $0x708] sm:$0xff]
          %528 = vst [vmem:[%s76 + $0x708] sm:$0xff] %v527
          %v529 = vld [vmem:[%s75 + $0x710] sm:$0xff]
          %530 = vst [vmem:[%s76 + $0x710] sm:$0xff] %v529
          %v531 = vld [vmem:[%s75 + $0x718] sm:$0xff]
          %532 = vst [vmem:[%s76 + $0x718] sm:$0xff] %v531
          %v533 = vld [vmem:[%s75 + $0x720] sm:$0xff]
          %534 = vst [vmem:[%s76 + $0x720] sm:$0xff] %v533
          %v535 = vld [vmem:[%s75 + $0x728] sm:$0xff]
          %536 = vst [vmem:[%s76 + $0x728] sm:$0xff] %v535
          %v537 = vld [vmem:[%s75 + $0x730] sm:$0xff]
          %538 = vst [vmem:[%s76 + $0x730] sm:$0xff] %v537
          %v539 = vld [vmem:[%s75 + $0x738] sm:$0xff]
          %540 = vst [vmem:[%s76 + $0x738] sm:$0xff] %v539
          %v541 = vld [vmem:[%s75 + $0x740] sm:$0xff]
          %542 = vst [vmem:[%s76 + $0x740] sm:$0xff] %v541
          %v543 = vld [vmem:[%s75 + $0x748] sm:$0xff]
          %544 = vst [vmem:[%s76 + $0x748] sm:$0xff] %v543
          %v545 = vld [vmem:[%s75 + $0x750] sm:$0xff]
          %546 = vst [vmem:[%s76 + $0x750] sm:$0xff] %v545
          %v547 = vld [vmem:[%s75 + $0x758] sm:$0xff]
          %548 = vst [vmem:[%s76 + $0x758] sm:$0xff] %v547
          %v549 = vld [vmem:[%s75 + $0x760] sm:$0xff]
          %550 = vst [vmem:[%s76 + $0x760] sm:$0xff] %v549
          %v551 = vld [vmem:[%s75 + $0x768] sm:$0xff]
          %552 = vst [vmem:[%s76 + $0x768] sm:$0xff] %v551
          %v553 = vld [vmem:[%s75 + $0x770] sm:$0xff]
          %554 = vst [vmem:[%s76 + $0x770] sm:$0xff] %v553
          %v555 = vld [vmem:[%s75 + $0x778] sm:$0xff]
          %556 = vst [vmem:[%s76 + $0x778] sm:$0xff] %v555
          %v557 = vld [vmem:[%s75 + $0x780] sm:$0xff]
          %558 = vst [vmem:[%s76 + $0x780] sm:$0xff] %v557
          %v559 = vld [vmem:[%s75 + $0x788] sm:$0xff]
          %560 = vst [vmem:[%s76 + $0x788] sm:$0xff] %v559
          %v561 = vld [vmem:[%s75 + $0x790] sm:$0xff]
          %562 = vst [vmem:[%s76 + $0x790] sm:$0xff] %v561
          %v563 = vld [vmem:[%s75 + $0x798] sm:$0xff]
          %564 = vst [vmem:[%s76 + $0x798] sm:$0xff] %v563
          %v565 = vld [vmem:[%s75 + $0x7a0] sm:$0xff]
          %566 = vst [vmem:[%s76 + $0x7a0] sm:$0xff] %v565
          %v567 = vld [vmem:[%s75 + $0x7a8] sm:$0xff]
          %568 = vst [vmem:[%s76 + $0x7a8] sm:$0xff] %v567
          %v569 = vld [vmem:[%s75 + $0x7b0] sm:$0xff]
          %570 = vst [vmem:[%s76 + $0x7b0] sm:$0xff] %v569
          %v571 = vld [vmem:[%s75 + $0x7b8] sm:$0xff]
          %572 = vst [vmem:[%s76 + $0x7b8] sm:$0xff] %v571
          %v573 = vld [vmem:[%s75 + $0x7c0] sm:$0xff]
          %574 = vst [vmem:[%s76 + $0x7c0] sm:$0xff] %v573
          %v575 = vld [vmem:[%s75 + $0x7c8] sm:$0xff]
          %576 = vst [vmem:[%s76 + $0x7c8] sm:$0xff] %v575
          %v577 = vld [vmem:[%s75 + $0x7d0] sm:$0xff]
          %578 = vst [vmem:[%s76 + $0x7d0] sm:$0xff] %v577
          %v579 = vld [vmem:[%s75 + $0x7d8] sm:$0xff]
          %580 = vst [vmem:[%s76 + $0x7d8] sm:$0xff] %v579
          %v581 = vld [vmem:[%s75 + $0x7e0] sm:$0xff]
          %582 = vst [vmem:[%s76 + $0x7e0] sm:$0xff] %v581
          %v583 = vld [vmem:[%s75 + $0x7e8] sm:$0xff]
          %584 = vst [vmem:[%s76 + $0x7e8] sm:$0xff] %v583
          %v585 = vld [vmem:[%s75 + $0x7f0] sm:$0xff]
          %586 = vst [vmem:[%s76 + $0x7f0] sm:$0xff] %v585
          %v587 = vld [vmem:[%s75 + $0x7f8] sm:$0xff]
          %588 = vst [vmem:[%s76 + $0x7f8] sm:$0xff] %v587
        $region73: #{lowres_cnn3d_forward.1} parent=67 // loop_footer
          %s74 = sadd.s32 1, %s70
        $region74: #{lowres_cnn3d_forward.1} parent=67 // loop_footer_branch
          %69 = sbr.rel target = $region70
        $region75: #{lowres_cnn3d_forward.1} parent=67 // loop_exit
          _
      $region68: #{lowres_cnn3d_forward.1} parent=52 // pred_fallthru
        _
      %p589 = pneg %p65
      // Predicated region
      $region76: #{lowres_cnn3d_forward.1} parent=52 // pred_check
        _
      $region77: #{lowres_cnn3d_forward.1} parent=52 // pred_check_branch
        %591 = sbr.rel (%p65) target = $region79
      $region78: #{lowres_cnn3d_forward.1} parent=52 // pred_region
        %s592 = sand.u32 2048, 7
      $region79: #{lowres_cnn3d_forward.1} parent=52 // pred_fallthru
        _
    $region53: #{lowres_cnn3d_forward.1} parent=1 // pred_fallthru
      _
    // Predicated region
    $region54: #{lowres_cnn3d_forward.1} parent=1 // pred_check
      %p49 = pneg %p45
    $region55: #{lowres_cnn3d_forward.1} parent=1 // pred_check_branch
      %51 = sbr.rel (%p49) target = $region57
    $region56: #{lowres_cnn3d_forward.1} parent=1 // pred_region
      %s52 = sshll.u32 1, 2048
      %s53 = ssub.s32 %s52, 1
      loop: start=0, step=1, limit=1
      $region58: #{lowres_cnn3d_forward.1} parent=56 // loop_pre_header
        _
      $region59: #{lowres_cnn3d_forward.1} parent=56 // loop_header
        %s55 = sphi 0, %s59
        %p56 = scmp.ge.s32.totalorder %s55, 1
        %s60 = sphi %s6, %s6
        %s61 = sphi [#allocation2], [#allocation2]
      $region60: #{lowres_cnn3d_forward.1} parent=56 // loop_header_branch
        %58 = sbr.rel (%p56) target = $region64
      $region61: #{lowres_cnn3d_forward.1} parent=56 // loop_body
        %v62 = vld [vmem:[%s60] sm:%s53]
        %63 = vst [vmem:[%s61] sm:%s53] %v62
      $region62: #{lowres_cnn3d_forward.1} parent=56 // loop_footer
        %s59 = sadd.s32 1, %s55
      $region63: #{lowres_cnn3d_forward.1} parent=56 // loop_footer_branch
        %54 = sbr.rel target = $region59
      $region64: #{lowres_cnn3d_forward.1} parent=56 // loop_exit
        _
    $region57: #{lowres_cnn3d_forward.1} parent=1 // pred_fallthru
      _
    // Predicated region
    $region80: #{lowres_cnn3d_forward.1} parent=1 // pred_check
      _
    $region81: #{lowres_cnn3d_forward.1} parent=1 // pred_check_branch
      %595 = sbr.rel (0) target = $region83
    $region82: #{lowres_cnn3d_forward.1} parent=1 // pred_region
      %596 = vsyncadd [#allocation3], 32768
    $region83: #{lowres_cnn3d_forward.1} parent=1 // pred_fallthru
      _
    %v597 = vld [vmem:[%s2] sm:$0xf]
    %v598 = vld [vmem:[%s2 + $0x4] sm:$0xf]
    %v599 = vld [vmem:[%s2 + $0x8] sm:$0xf]
    %v600 = vld [vmem:[%s2 + $0xc] sm:$0xf]
    %v601 = vld [vmem:[%s2 + $0x10] sm:$0xf]
    %v602 = vld [vmem:[%s2 + $0x14] sm:$0xf]
    %v603 = vld [vmem:[%s2 + $0x18] sm:$0x7]
    %v604 = vld [vmem:[%s3] sm:$0x1]
    %v605 = vld [vmem:[%s4] sm:$0xff]
    %v606 = vld [vmem:[%s4 + $0x8] sm:$0xff]
    %v607 = vld [vmem:[%s4 + $0x10] sm:$0xff]
    %v608 = vld [vmem:[%s4 + $0x18] sm:$0xff]
    %v609 = vld [vmem:[%s4 + $0x20] sm:$0xff]
    %v610 = vld [vmem:[%s4 + $0x28] sm:$0xff]
    %v611 = vld [vmem:[%s4 + $0x30] sm:$0xff]
    %v612 = vld [vmem:[%s4 + $0x38] sm:$0xff]
    %v613 = vld [vmem:[%s4 + $0x40] sm:$0xff]
    %v614 = vld [vmem:[%s4 + $0x48] sm:$0xff]
    %v615 = vld [vmem:[%s4 + $0x50] sm:$0xff]
    %v616 = vld [vmem:[%s4 + $0x58] sm:$0xff]
    %v617 = vld [vmem:[%s5] sm:$0x1]
    %vm618 = vcmask 785408
    %619 = vst.msk [vmem:[#allocation5] sm:$0xff] %vm618, 0.0
    %620 = vst.msk [vmem:[#allocation5 + $0x8] sm:$0xff] %vm618, 0.0
    %621 = vst.msk [vmem:[#allocation5 + $0x10] sm:$0xff] %vm618, 0.0
    %622 = vst.msk [vmem:[#allocation5 + $0x18] sm:$0xff] %vm618, 0.0
    %623 = vst.msk [vmem:[#allocation5 + $0x20] sm:$0xff] %vm618, 0.0
    %624 = vst.msk [vmem:[#allocation5 + $0x28] sm:$0xff] %vm618, 0.0
    %625 = vst.msk [vmem:[#allocation5 + $0x30] sm:$0xff] %vm618, 0.0
    %626 = vst.msk [vmem:[#allocation5 + $0x38] sm:$0xff] %vm618, 0.0
    %627 = vst.msk [vmem:[#allocation5 + $0x40] sm:$0xff] %vm618, 0.0
    %628 = vst.msk [vmem:[#allocation5 + $0x48] sm:$0xff] %vm618, 0.0
    %v629 = vld [vmem:[%s0] sm:$0xf]
    %v630 = vld [vmem:[%s0 + $0x4] sm:$0xf]
    %v631 = vld [vmem:[%s0 + $0x8] sm:$0xf]
    %v632 = vld [vmem:[%s0 + $0xc] sm:$0xf]
    %v633 = vld [vmem:[%s0 + $0x10] sm:$0xf]
    %v634 = vld [vmem:[%s0 + $0x14] sm:$0xf]
    %v635 = vld [vmem:[%s0 + $0x18] sm:$0xf]
    %v636 = vld [vmem:[%s0 + $0x1c] sm:$0xf]
    %v637 = vld [vmem:[%s0 + $0x20] sm:$0xf]
    %v638 = vld [vmem:[%s0 + $0x24] sm:$0xf]
    %v639 = vld [vmem:[%s0 + $0x28] sm:$0xf]
    %v640 = vld [vmem:[%s0 + $0x2c] sm:$0xf]
    %v641 = vld [vmem:[%s0 + $0x30] sm:$0xf]
    %v642 = vld [vmem:[%s0 + $0x34] sm:$0xf]
    %v643 = vld [vmem:[%s0 + $0x38] sm:$0xf]
    %v644 = vld [vmem:[%s0 + $0x3c] sm:$0xf]
    %v645 = vld [vmem:[%s0 + $0x40] sm:$0xf]
    %v646 = vld [vmem:[%s0 + $0x44] sm:$0x3]
    %v648 = vlaneseq
    %v649 = vshrl.u32 %v648, 7
    %v650 = vsub.s32 0, %v649
    %v651 = vrot.slane %v604, %v650
    %v671 = vunpack.c.l.b16 %v629
    %v672 = vunpack.c.l.b16 %v630
    %v673 = vunpack.c.l.b16 %v631
    %v674 = vunpack.c.l.b16 %v632
    %v675 = vunpack.c.l.b16 %v633
    %v676 = vunpack.c.l.b16 %v634
    %v677 = vunpack.c.l.b16 %v635
    %v678 = vunpack.c.l.b16 %v636
    %v679 = vunpack.c.l.b16 %v637
    %v680 = vunpack.c.l.b16 %v638
    %v681 = vunpack.c.l.b16 %v639
    %v682 = vunpack.c.l.b16 %v640
    %v683 = vunpack.c.l.b16 %v641
    %v684 = vunpack.c.l.b16 %v642
    %v685 = vunpack.c.l.b16 %v643
    %v686 = vunpack.c.l.b16 %v644
    %v687 = vunpack.c.l.b16 %v645
    %v688 = vunpack.c.l.b16 %v646
    %v689 = vpack.c.b16 %v672, %v671
    %v690 = vpack.c.b16 %v674, %v673
    %v691 = vpack.c.b16 %v676, %v675
    %v692 = vpack.c.b16 %v678, %v677
    %v693 = vpack.c.b16 %v680, %v679
    %v694 = vpack.c.b16 %v682, %v681
    %v695 = vpack.c.b16 %v684, %v683
    %v696 = vpack.c.b16 %v686, %v685
    %v697 = vpack.c.b16 %v688, %v687
    %v705 = vunpack.c.l.b16 %v597
    %v706 = vunpack.c.l.b16 %v598
    %v707 = vunpack.c.l.b16 %v599
    %v708 = vunpack.c.l.b16 %v600
    %v709 = vunpack.c.l.b16 %v601
    %v710 = vunpack.c.l.b16 %v602
    %v711 = vunpack.c.l.b16 %v603
    %v712 = vpack.c.b16 %v706, %v705
    %v713 = vpack.c.b16 %v708, %v707
    %v714 = vpack.c.b16 %v710, %v709
    %v715 = vpack.c.b16 %v711, %v711
    %vm719 = vcmask 441344
    %v721 = vsel %vm719, %v689, 0
    %v724 = vsel %vm719, %v690, 0
    %v727 = vsel %vm719, %v691, 0
    %v730 = vsel %vm719, %v692, 0
    %v733 = vsel %vm719, %v693, 0
    %v736 = vsel %vm719, %v694, 0
    %v739 = vsel %vm719, %v695, 0
    %v742 = vsel %vm719, %v696, 0
    %v745 = vsel %vm719, %v697, 0
    %vm747 = vcmask 1042432
    %v749 = vsel %vm747, %v715, 0
    %751 = vmatprep.subr.bf16.mxu0 0
    %752 = vmatpush1.bf16.msra.mxu0 0
    %753 = vmatprep.subr.bf16.mxu0 0
    %754 = vmatpush1.bf16.msra.mxu0 0
    %755 = vmatprep.subr.bf16.mxu0 0
    %756 = vmatpush1.bf16.msra.mxu0 0
    %757 = vmatprep.subr.bf16.mxu0 0
    %758 = vmatpush1.bf16.msra.mxu0 0
    %759 = vmatprep.subr.bf16.mxu0 0
    %760 = vmatpush1.bf16.msra.mxu0 %v749
    %761 = vmatprep.subr.bf16.mxu0 0
    %762 = vmatpush1.bf16.msra.mxu0 %v714
    %763 = vmatprep.subr.bf16.mxu0 0
    %764 = vmatpush1.bf16.msra.mxu0 %v713
    %765 = vmatprep.subr.bf16.mxu0 0
    %766 = vmatpush1.bf16.msra.mxu0 %v712
    %767 = vmatprep.subr.bf16.mxu0 0
    %768 = vmatpush2.bf16.msra.mxu0 0
    %769 = vmatprep.subr.bf16.mxu0 0
    %770 = vmatpush2.bf16.msra.mxu0 0
    %771 = vmatprep.subr.bf16.mxu0 0
    %772 = vmatpush2.bf16.msra.mxu0 0
    %773 = vmatprep.subr.bf16.mxu0 0
    %774 = vmatpush2.bf16.msra.mxu0 0
    %775 = vmatprep.subr.bf16.mxu0 0
    %776 = vmatpush2.bf16.msra.mxu0 0
    %777 = vmatprep.subr.bf16.mxu0 0
    %778 = vmatpush2.bf16.msra.mxu0 0
    %779 = vmatprep.subr.bf16.mxu0 0
    %780 = vmatpush2.bf16.msra.mxu0 0
    %781 = vmatprep.subr.bf16.mxu0 0
    %782 = vmatpush2.bf16.msra.mxu0 0
    %783 = vmatprep.mubr.bf16.mxu0 0
    %784 = vmatmul.mubr.bf16.gmra.mxu0 %v721
    %v785 = vpop.f32.mrf.mxu0
    %v786 = vadd.f32 %v651, %v785
    %v787 = vpop.f32.mrf.mxu0
    %v788 = vpop.f32.mrf.mxu0
    %v789 = vadd.f32 %v651, %v788
    %v790 = vpop.f32.mrf.mxu0
    %791 = vmatprep.mubr.bf16.mxu0 0
    %792 = vmatmul.mubr.bf16.gmra.mxu0 %v724
    %v793 = vpop.f32.mrf.mxu0
    %v794 = vadd.f32 %v651, %v793
    %v795 = vpop.f32.mrf.mxu0
    %v796 = vpop.f32.mrf.mxu0
    %v797 = vadd.f32 %v651, %v796
    %v798 = vpop.f32.mrf.mxu0
    %799 = vmatprep.mubr.bf16.mxu0 0
    %800 = vmatmul.mubr.bf16.gmra.mxu0 %v727
    %v801 = vpop.f32.mrf.mxu0
    %v802 = vadd.f32 %v651, %v801
    %v803 = vpop.f32.mrf.mxu0
    %v804 = vpop.f32.mrf.mxu0
    %v805 = vadd.f32 %v651, %v804
    %v806 = vpop.f32.mrf.mxu0
    %807 = vmatprep.mubr.bf16.mxu0 0
    %808 = vmatmul.mubr.bf16.gmra.mxu0 %v730
    %v809 = vpop.f32.mrf.mxu0
    %v810 = vadd.f32 %v651, %v809
    %v811 = vpop.f32.mrf.mxu0
    %v812 = vpop.f32.mrf.mxu0
    %v813 = vadd.f32 %v651, %v812
    %v814 = vpop.f32.mrf.mxu0
    %815 = vmatprep.mubr.bf16.mxu0 0
    %816 = vmatmul.mubr.bf16.gmra.mxu0 %v733
    %v817 = vpop.f32.mrf.mxu0
    %v818 = vadd.f32 %v651, %v817
    %v819 = vpop.f32.mrf.mxu0
    %v820 = vpop.f32.mrf.mxu0
    %v821 = vadd.f32 %v651, %v820
    %v822 = vpop.f32.mrf.mxu0
    %823 = vmatprep.mubr.bf16.mxu0 0
    %824 = vmatmul.mubr.bf16.gmra.mxu0 %v736
    %v825 = vpop.f32.mrf.mxu0
    %v826 = vadd.f32 %v651, %v825
    %v827 = vpop.f32.mrf.mxu0
    %v828 = vpop.f32.mrf.mxu0
    %v829 = vadd.f32 %v651, %v828
    %v830 = vpop.f32.mrf.mxu0
    %831 = vmatprep.mubr.bf16.mxu0 0
    %832 = vmatmul.mubr.bf16.gmra.mxu0 %v739
    %v833 = vpop.f32.mrf.mxu0
    %v834 = vadd.f32 %v651, %v833
    %v835 = vpop.f32.mrf.mxu0
    %v836 = vpop.f32.mrf.mxu0
    %v837 = vadd.f32 %v651, %v836
    %v838 = vpop.f32.mrf.mxu0
    %839 = vmatprep.mubr.bf16.mxu0 0
    %840 = vmatmul.mubr.bf16.gmra.mxu0 %v742
    %v841 = vpop.f32.mrf.mxu0
    %v842 = vadd.f32 %v651, %v841
    %v843 = vpop.f32.mrf.mxu0
    %v844 = vpop.f32.mrf.mxu0
    %v845 = vadd.f32 %v651, %v844
    %v846 = vpop.f32.mrf.mxu0
    %847 = vmatprep.mubr.bf16.mxu0 0
    %848 = vmatmul.mubr.bf16.gmra.mxu0 %v745
    %v849 = vpop.f32.mrf.mxu0
    %v850 = vadd.f32 %v651, %v849
    %v851 = vpop.f32.mrf.mxu0
    %v852 = vpop.f32.mrf.mxu0
    %v853 = vadd.f32 %v651, %v852
    %v854 = vpop.f32.mrf.mxu0
    %855 = vdwg.mxu0
    %v856 = vmax.f32 %v786, 0.0
    %v857 = vmax.f32 %v789, 0.0
    %v858 = vmax.f32 %v794, 0.0
    %v859 = vmax.f32 %v797, 0.0
    %v860 = vmax.f32 %v802, 0.0
    %v861 = vmax.f32 %v805, 0.0
    %v862 = vmax.f32 %v810, 0.0
    %v863 = vmax.f32 %v813, 0.0
    %v864 = vmax.f32 %v818, 0.0
    %v865 = vmax.f32 %v821, 0.0
    %v866 = vmax.f32 %v826, 0.0
    %v867 = vmax.f32 %v829, 0.0
    %v868 = vmax.f32 %v834, 0.0
    %v869 = vmax.f32 %v837, 0.0
    %v870 = vmax.f32 %v842, 0.0
    %v871 = vmax.f32 %v845, 0.0
    %v872 = vmax.f32 %v850, 0.0
    %v873 = vmax.f32 %v853, 0.0
    %vm884 = vcmask 1041408
    %v885 = vrot.slane %v864, 6
    %v886 = vrot.slane %v865, 6
    %v887 = vsel %vm884, %v885, %v886
    %v888 = vrot.slane %v866, 6
    %v889 = vsel %vm884, %v886, %v888
    %v890 = vrot.slane %v867, 6
    %v891 = vsel %vm884, %v888, %v890
    %v892 = vrot.slane %v868, 6
    %v893 = vsel %vm884, %v890, %v892
    %v894 = vrot.slane %v869, 6
    %v895 = vsel %vm884, %v892, %v894
    %v896 = vrot.slane %v870, 6
    %v897 = vsel %vm884, %v894, %v896
    %v898 = vrot.slane %v871, 6
    %v899 = vsel %vm884, %v896, %v898
    %v900 = vrot.slane %v872, 6
    %v901 = vsel %vm884, %v898, %v900
    %v902 = vrot.slane %v873, 6
    %v903 = vsel %vm884, %v900, %v902
    %v913 = vmax.f32 %v856, %v887
    %v914 = vmax.f32 %v857, %v889
    %v915 = vmax.f32 %v858, %v891
    %v916 = vmax.f32 %v859, %v893
    %v917 = vmax.f32 %v860, %v895
    %v918 = vmax.f32 %v861, %v897
    %v919 = vmax.f32 %v862, %v899
    %v920 = vmax.f32 %v863, %v901
    %v921 = vmax.f32 %v864, %v903
    %vm931 = vcmask 1046528
    %v932 = vrot.slane %v913, 1
    %v933 = vrot.slane %v914, 1
    %v934 = vsel %vm931, %v932, %v933
    %v935 = vrot.slane %v915, 1
    %v936 = vsel %vm931, %v933, %v935
    %v937 = vrot.slane %v916, 1
    %v938 = vsel %vm931, %v935, %v937
    %v939 = vrot.slane %v917, 1
    %v940 = vsel %vm931, %v937, %v939
    %v941 = vrot.slane %v918, 1
    %v942 = vsel %vm931, %v939, %v941
    %v943 = vrot.slane %v919, 1
    %v944 = vsel %vm931, %v941, %v943
    %v945 = vrot.slane %v920, 1
    %v946 = vsel %vm931, %v943, %v945
    %v947 = vrot.slane %v921, 1
    %v948 = vsel %vm931, %v945, %v947
    %v958 = vmax.f32 %v913, %v934
    %v959 = vmax.f32 %v914, %v936
    %v960 = vmax.f32 %v915, %v938
    %v961 = vmax.f32 %v916, %v940
    %v962 = vmax.f32 %v917, %v942
    %v963 = vmax.f32 %v918, %v944
    %v964 = vmax.f32 %v919, %v946
    %v965 = vmax.f32 %v920, %v948
    %v966 = vmax.f32 %v921, %v947
    %vm967 = vcmask 261120
    %968 = vst.msk [vmem:[#allocation4] sm:$0xff] %vm967, %v958
    %969 = vst.msk [vmem:[#allocation4 + $0x8] sm:$0xff] %vm967, %v959
    %970 = vst.msk [vmem:[#allocation4 + $0x10] sm:$0xff] %vm967, %v960
    %971 = vst.msk [vmem:[#allocation4 + $0x18] sm:$0xff] %vm967, %v961
    %972 = vst.msk [vmem:[#allocation4 + $0x20] sm:$0xff] %vm967, %v962
    %973 = vst.msk [vmem:[#allocation4 + $0x28] sm:$0xff] %vm967, %v963
    %974 = vst.msk [vmem:[#allocation4 + $0x30] sm:$0xff] %vm967, %v964
    %975 = vst.msk [vmem:[#allocation4 + $0x38] sm:$0xff] %vm967, %v965
    %vm976 = vcmask 257024
    %977 = vst.msk [vmem:[#allocation4 + $0x40] sm:$0xf] %vm976, %v966
    %v978 = vld [vmem:[#allocation4] ss:$2 sm:$0xff]
    %s979 = scalar_lea.vmem [#allocation4], 16
    %v980 = vld [vmem:[%s979] ss:$2 sm:$0xff]
    %s981 = scalar_lea.vmem [#allocation4], 32
    %v982 = vld [vmem:[%s981] ss:$2 sm:$0xff]
    %s983 = scalar_lea.vmem [#allocation4], 48
    %v984 = vld [vmem:[%s983] ss:$2 sm:$0xff]
    %s985 = scalar_lea.vmem [#allocation4], 64
    %v986 = vld [vmem:[%s985] ss:$2 sm:$0x3]
    %987 = vst.msk [vmem:[#allocation5] sm:$0xff] %vm967, %v978
    %988 = vst.msk [vmem:[#allocation5 + $0x8] sm:$0xff] %vm967, %v980
    %989 = vst.msk [vmem:[#allocation5 + $0x10] sm:$0xff] %vm967, %v982
    %990 = vst.msk [vmem:[#allocation5 + $0x18] sm:$0xff] %vm967, %v984
    %vm991 = vcmask 254976
    %992 = vst.msk [vmem:[#allocation5 + $0x20] sm:$0x3] %vm991, %v986
    %s993 = scalar_lea.vmem %s0, 72
    %v994 = vld [vmem:[%s993] sm:$0xf]
    %v995 = vld [vmem:[%s993 + $0x4] sm:$0xf]
    %v996 = vld [vmem:[%s993 + $0x8] sm:$0xf]
    %v997 = vld [vmem:[%s993 + $0xc] sm:$0xf]
    %v998 = vld [vmem:[%s993 + $0x10] sm:$0xf]
    %v999 = vld [vmem:[%s993 + $0x14] sm:$0xf]
    %v1000 = vld [vmem:[%s993 + $0x18] sm:$0xf]
    %v1001 = vld [vmem:[%s993 + $0x1c] sm:$0xf]
    %v1002 = vld [vmem:[%s993 + $0x20] sm:$0xf]
    %v1003 = vld [vmem:[%s993 + $0x24] sm:$0xf]
    %v1004 = vld [vmem:[%s993 + $0x28] sm:$0xf]
    %v1005 = vld [vmem:[%s993 + $0x2c] sm:$0xf]
    %v1006 = vld [vmem:[%s993 + $0x30] sm:$0xf]
    %v1007 = vld [vmem:[%s993 + $0x34] sm:$0xf]
    %v1008 = vld [vmem:[%s993 + $0x38] sm:$0xf]
    %v1009 = vld [vmem:[%s993 + $0x3c] sm:$0xf]
    %v1010 = vld [vmem:[%s993 + $0x40] sm:$0xf]
    %v1011 = vld [vmem:[%s993 + $0x44] sm:$0x3]
    %v1030 = vunpack.c.l.b16 %v994
    %v1031 = vunpack.c.l.b16 %v995
    %v1032 = vunpack.c.l.b16 %v996
    %v1033 = vunpack.c.l.b16 %v997
    %v1034 = vunpack.c.l.b16 %v998
    %v1035 = vunpack.c.l.b16 %v999
    %v1036 = vunpack.c.l.b16 %v1000
    %v1037 = vunpack.c.l.b16 %v1001
    %v1038 = vunpack.c.l.b16 %v1002
    %v1039 = vunpack.c.l.b16 %v1003
    %v1040 = vunpack.c.l.b16 %v1004
    %v1041 = vunpack.c.l.b16 %v1005
    %v1042 = vunpack.c.l.b16 %v1006
    %v1043 = vunpack.c.l.b16 %v1007
    %v1044 = vunpack.c.l.b16 %v1008
    %v1045 = vunpack.c.l.b16 %v1009
    %v1046 = vunpack.c.l.b16 %v1010
    %v1047 = vunpack.c.l.b16 %v1011
    %v1048 = vpack.c.b16 %v1031, %v1030
    %v1049 = vpack.c.b16 %v1033, %v1032
    %v1050 = vpack.c.b16 %v1035, %v1034
    %v1051 = vpack.c.b16 %v1037, %v1036
    %v1052 = vpack.c.b16 %v1039, %v1038
    %v1053 = vpack.c.b16 %v1041, %v1040
    %v1054 = vpack.c.b16 %v1043, %v1042
    %v1055 = vpack.c.b16 %v1045, %v1044
    %v1056 = vpack.c.b16 %v1047, %v1046
    %v1058 = vsel %vm719, %v1048, 0
    %v1061 = vsel %vm719, %v1049, 0
    %v1064 = vsel %vm719, %v1050, 0
    %v1067 = vsel %vm719, %v1051, 0
    %v1070 = vsel %vm719, %v1052, 0
    %v1073 = vsel %vm719, %v1053, 0
    %v1076 = vsel %vm719, %v1054, 0
    %v1079 = vsel %vm719, %v1055, 0
    %v1082 = vsel %vm719, %v1056, 0
    %1084 = vmatprep.subr.bf16.mxu0 0
    %1085 = vmatpush1.bf16.msra.mxu0 0
    %1086 = vmatprep.subr.bf16.mxu0 0
    %1087 = vmatpush1.bf16.msra.mxu0 0
    %1088 = vmatprep.subr.bf16.mxu0 0
    %1089 = vmatpush1.bf16.msra.mxu0 0
    %1090 = vmatprep.subr.bf16.mxu0 0
    %1091 = vmatpush1.bf16.msra.mxu0 0
    %1092 = vmatprep.subr.bf16.mxu0 0
    %1093 = vmatpush1.bf16.msra.mxu0 %v749
    %1094 = vmatprep.subr.bf16.mxu0 0
    %1095 = vmatpush1.bf16.msra.mxu0 %v714
    %1096 = vmatprep.subr.bf16.mxu0 0
    %1097 = vmatpush1.bf16.msra.mxu0 %v713
    %1098 = vmatprep.subr.bf16.mxu0 0
    %1099 = vmatpush1.bf16.msra.mxu0 %v712
    %1100 = vmatprep.subr.bf16.mxu0 0
    %1101 = vmatpush2.bf16.msra.mxu0 0
    %1102 = vmatprep.subr.bf16.mxu0 0
    %1103 = vmatpush2.bf16.msra.mxu0 0
    %1104 = vmatprep.subr.bf16.mxu0 0
    %1105 = vmatpush2.bf16.msra.mxu0 0
    %1106 = vmatprep.subr.bf16.mxu0 0
    %1107 = vmatpush2.bf16.msra.mxu0 0
    %1108 = vmatprep.subr.bf16.mxu0 0
    %1109 = vmatpush2.bf16.msra.mxu0 0
    %1110 = vmatprep.subr.bf16.mxu0 0
    %1111 = vmatpush2.bf16.msra.mxu0 0
    %1112 = vmatprep.subr.bf16.mxu0 0
    %1113 = vmatpush2.bf16.msra.mxu0 0
    %1114 = vmatprep.subr.bf16.mxu0 0
    %1115 = vmatpush2.bf16.msra.mxu0 0
    %1116 = vmatprep.mubr.bf16.mxu0 0
    %1117 = vmatmul.mubr.bf16.gmra.mxu0 %v1058
    %v1118 = vpop.f32.mrf.mxu0
    %v1119 = vadd.f32 %v651, %v1118
    %v1120 = vpop.f32.mrf.mxu0
    %v1121 = vpop.f32.mrf.mxu0
    %v1122 = vadd.f32 %v651, %v1121
    %v1123 = vpop.f32.mrf.mxu0
    %1124 = vmatprep.mubr.bf16.mxu0 0
    %1125 = vmatmul.mubr.bf16.gmra.mxu0 %v1061
    %v1126 = vpop.f32.mrf.mxu0
    %v1127 = vadd.f32 %v651, %v1126
    %v1128 = vpop.f32.mrf.mxu0
    %v1129 = vpop.f32.mrf.mxu0
    %v1130 = vadd.f32 %v651, %v1129
    %v1131 = vpop.f32.mrf.mxu0
    %1132 = vmatprep.mubr.bf16.mxu0 0
    %1133 = vmatmul.mubr.bf16.gmra.mxu0 %v1064
    %v1134 = vpop.f32.mrf.mxu0
    %v1135 = vadd.f32 %v651, %v1134
    %v1136 = vpop.f32.mrf.mxu0
    %v1137 = vpop.f32.mrf.mxu0
    %v1138 = vadd.f32 %v651, %v1137
    %v1139 = vpop.f32.mrf.mxu0
    %1140 = vmatprep.mubr.bf16.mxu0 0
    %1141 = vmatmul.mubr.bf16.gmra.mxu0 %v1067
    %v1142 = vpop.f32.mrf.mxu0
    %v1143 = vadd.f32 %v651, %v1142
    %v1144 = vpop.f32.mrf.mxu0
    %v1145 = vpop.f32.mrf.mxu0
    %v1146 = vadd.f32 %v651, %v1145
    %v1147 = vpop.f32.mrf.mxu0
    %1148 = vmatprep.mubr.bf16.mxu0 0
    %1149 = vmatmul.mubr.bf16.gmra.mxu0 %v1070
    %v1150 = vpop.f32.mrf.mxu0
    %v1151 = vadd.f32 %v651, %v1150
    %v1152 = vpop.f32.mrf.mxu0
    %v1153 = vpop.f32.mrf.mxu0
    %v1154 = vadd.f32 %v651, %v1153
    %v1155 = vpop.f32.mrf.mxu0
    %1156 = vmatprep.mubr.bf16.mxu0 0
    %1157 = vmatmul.mubr.bf16.gmra.mxu0 %v1073
    %v1158 = vpop.f32.mrf.mxu0
    %v1159 = vadd.f32 %v651, %v1158
    %v1160 = vpop.f32.mrf.mxu0
    %v1161 = vpop.f32.mrf.mxu0
    %v1162 = vadd.f32 %v651, %v1161
    %v1163 = vpop.f32.mrf.mxu0
    %1164 = vmatprep.mubr.bf16.mxu0 0
    %1165 = vmatmul.mubr.bf16.gmra.mxu0 %v1076
    %v1166 = vpop.f32.mrf.mxu0
    %v1167 = vadd.f32 %v651, %v1166
    %v1168 = vpop.f32.mrf.mxu0
    %v1169 = vpop.f32.mrf.mxu0
    %v1170 = vadd.f32 %v651, %v1169
    %v1171 = vpop.f32.mrf.mxu0
    %1172 = vmatprep.mubr.bf16.mxu0 0
    %1173 = vmatmul.mubr.bf16.gmra.mxu0 %v1079
    %v1174 = vpop.f32.mrf.mxu0
    %v1175 = vadd.f32 %v651, %v1174
    %v1176 = vpop.f32.mrf.mxu0
    %v1177 = vpop.f32.mrf.mxu0
    %v1178 = vadd.f32 %v651, %v1177
    %v1179 = vpop.f32.mrf.mxu0
    %1180 = vmatprep.mubr.bf16.mxu0 0
    %1181 = vmatmul.mubr.bf16.gmra.mxu0 %v1082
    %v1182 = vpop.f32.mrf.mxu0
    %v1183 = vadd.f32 %v651, %v1182
    %v1184 = vpop.f32.mrf.mxu0
    %v1185 = vpop.f32.mrf.mxu0
    %v1186 = vadd.f32 %v651, %v1185
    %v1187 = vpop.f32.mrf.mxu0
    %1188 = vdwg.mxu0
    %v1189 = vmax.f32 %v1119, 0.0
    %v1190 = vmax.f32 %v1122, 0.0
    %v1191 = vmax.f32 %v1127, 0.0
    %v1192 = vmax.f32 %v1130, 0.0
    %v1193 = vmax.f32 %v1135, 0.0
    %v1194 = vmax.f32 %v1138, 0.0
    %v1195 = vmax.f32 %v1143, 0.0
    %v1196 = vmax.f32 %v1146, 0.0
    %v1197 = vmax.f32 %v1151, 0.0
    %v1198 = vmax.f32 %v1154, 0.0
    %v1199 = vmax.f32 %v1159, 0.0
    %v1200 = vmax.f32 %v1162, 0.0
    %v1201 = vmax.f32 %v1167, 0.0
    %v1202 = vmax.f32 %v1170, 0.0
    %v1203 = vmax.f32 %v1175, 0.0
    %v1204 = vmax.f32 %v1178, 0.0
    %v1205 = vmax.f32 %v1183, 0.0
    %v1206 = vmax.f32 %v1186, 0.0
    %v1217 = vrot.slane %v1197, 6
    %v1218 = vrot.slane %v1198, 6
    %v1219 = vsel %vm884, %v1217, %v1218
    %v1220 = vrot.slane %v1199, 6
    %v1221 = vsel %vm884, %v1218, %v1220
    %v1222 = vrot.slane %v1200, 6
    %v1223 = vsel %vm884, %v1220, %v1222
    %v1224 = vrot.slane %v1201, 6
    %v1225 = vsel %vm884, %v1222, %v1224
    %v1226 = vrot.slane %v1202, 6
    %v1227 = vsel %vm884, %v1224, %v1226
    %v1228 = vrot.slane %v1203, 6
    %v1229 = vsel %vm884, %v1226, %v1228
    %v1230 = vrot.slane %v1204, 6
    %v1231 = vsel %vm884, %v1228, %v1230
    %v1232 = vrot.slane %v1205, 6
    %v1233 = vsel %vm884, %v1230, %v1232
    %v1234 = vrot.slane %v1206, 6
    %v1235 = vsel %vm884, %v1232, %v1234
    %v1245 = vmax.f32 %v1189, %v1219
    %v1246 = vmax.f32 %v1190, %v1221
    %v1247 = vmax.f32 %v1191, %v1223
    %v1248 = vmax.f32 %v1192, %v1225
    %v1249 = vmax.f32 %v1193, %v1227
    %v1250 = vmax.f32 %v1194, %v1229
    %v1251 = vmax.f32 %v1195, %v1231
    %v1252 = vmax.f32 %v1196, %v1233
    %v1253 = vmax.f32 %v1197, %v1235
    %v1263 = vrot.slane %v1245, 1
    %v1264 = vrot.slane %v1246, 1
    %v1265 = vsel %vm931, %v1263, %v1264
    %v1266 = vrot.slane %v1247, 1
    %v1267 = vsel %vm931, %v1264, %v1266
    %v1268 = vrot.slane %v1248, 1
    %v1269 = vsel %vm931, %v1266, %v1268
    %v1270 = vrot.slane %v1249, 1
    %v1271 = vsel %vm931, %v1268, %v1270
    %v1272 = vrot.slane %v1250, 1
    %v1273 = vsel %vm931, %v1270, %v1272
    %v1274 = vrot.slane %v1251, 1
    %v1275 = vsel %vm931, %v1272, %v1274
    %v1276 = vrot.slane %v1252, 1
    %v1277 = vsel %vm931, %v1274, %v1276
    %v1278 = vrot.slane %v1253, 1
    %v1279 = vsel %vm931, %v1276, %v1278
    %v1289 = vmax.f32 %v1245, %v1265
    %v1290 = vmax.f32 %v1246, %v1267
    %v1291 = vmax.f32 %v1247, %v1269
    %v1292 = vmax.f32 %v1248, %v1271
    %v1293 = vmax.f32 %v1249, %v1273
    %v1294 = vmax.f32 %v1250, %v1275
    %v1295 = vmax.f32 %v1251, %v1277
    %v1296 = vmax.f32 %v1252, %v1279
    %v1297 = vmax.f32 %v1253, %v1278
    %1298 = vst.msk [vmem:[#allocation4] sm:$0xff] %vm967, %v1289
    %1299 = vst.msk [vmem:[#allocation4 + $0x8] sm:$0xff] %vm967, %v1290
    %1300 = vst.msk [vmem:[#allocation4 + $0x10] sm:$0xff] %vm967, %v1291
    %1301 = vst.msk [vmem:[#allocation4 + $0x18] sm:$0xff] %vm967, %v1292
    %1302 = vst.msk [vmem:[#allocation4 + $0x20] sm:$0xff] %vm967, %v1293
    %1303 = vst.msk [vmem:[#allocation4 + $0x28] sm:$0xff] %vm967, %v1294
    %1304 = vst.msk [vmem:[#allocation4 + $0x30] sm:$0xff] %vm967, %v1295
    %1305 = vst.msk [vmem:[#allocation4 + $0x38] sm:$0xff] %vm967, %v1296
    %1306 = vst.msk [vmem:[#allocation4 + $0x40] sm:$0xf] %vm976, %v1297
    %v1307 = vld [vmem:[#allocation4] ss:$2 sm:$0xff]
    %v1308 = vld [vmem:[%s979] ss:$2 sm:$0xff]
    %v1309 = vld [vmem:[%s981] ss:$2 sm:$0xff]
    %v1310 = vld [vmem:[%s983] ss:$2 sm:$0xff]
    %v1311 = vld [vmem:[%s985] ss:$2 sm:$0x3]
    %1312 = vst.msk [vmem:[#allocation5 + $0x28] sm:$0xff] %vm967, %v1307
    %1313 = vst.msk [vmem:[#allocation5 + $0x30] sm:$0xff] %vm967, %v1308
    %1314 = vst.msk [vmem:[#allocation5 + $0x38] sm:$0xff] %vm967, %v1309
    %1315 = vst.msk [vmem:[#allocation5 + $0x40] sm:$0xff] %vm967, %v1310
    %1316 = vst.msk [vmem:[#allocation5 + $0x48] sm:$0x3] %vm991, %v1311
    %1322 = vrot.lane.b32.xlu0 %v1307, 32
    %v1323 = vpop.permute.xlu0 %1322
    %1324 = vrot.lane.b32.xlu0 %v1308, 32
    %v1325 = vpop.permute.xlu0 %1324
    %1326 = vrot.lane.b32.xlu0 %v1309, 32
    %v1327 = vpop.permute.xlu0 %1326
    %1328 = vrot.lane.b32.xlu0 %v1310, 32
    %v1329 = vpop.permute.xlu0 %1328
    %1330 = vrot.lane.b32.xlu0 %v1311, 32
    %v1331 = vpop.permute.xlu0 %1330
    %vm1337 = vcmask 523520
    %1338 = vst.msk [vmem:[#allocation5] sm:$0xff] %vm1337, %v1323
    %1339 = vst.msk [vmem:[#allocation5 + $0x8] sm:$0xff] %vm1337, %v1325
    %1340 = vst.msk [vmem:[#allocation5 + $0x10] sm:$0xff] %vm1337, %v1327
    %1341 = vst.msk [vmem:[#allocation5 + $0x18] sm:$0xff] %vm1337, %v1329
    %vm1342 = vcmask 517376
    %1343 = vst.msk [vmem:[#allocation5 + $0x20] sm:$0x3] %vm1342, %v1331
    %s1344 = scalar_lea.vmem %s0, 144
    %v1345 = vld [vmem:[%s1344] sm:$0xf]
    %v1346 = vld [vmem:[%s1344 + $0x4] sm:$0xf]
    %v1347 = vld [vmem:[%s1344 + $0x8] sm:$0xf]
    %v1348 = vld [vmem:[%s1344 + $0xc] sm:$0xf]
    %v1349 = vld [vmem:[%s1344 + $0x10] sm:$0xf]
    %v1350 = vld [vmem:[%s1344 + $0x14] sm:$0xf]
    %v1351 = vld [vmem:[%s1344 + $0x18] sm:$0xf]
    %v1352 = vld [vmem:[%s1344 + $0x1c] sm:$0xf]
    %v1353 = vld [vmem:[%s1344 + $0x20] sm:$0xf]
    %v1354 = vld [vmem:[%s1344 + $0x24] sm:$0xf]
    %v1355 = vld [vmem:[%s1344 + $0x28] sm:$0xf]
    %v1356 = vld [vmem:[%s1344 + $0x2c] sm:$0xf]
    %v1357 = vld [vmem:[%s1344 + $0x30] sm:$0xf]
    %v1358 = vld [vmem:[%s1344 + $0x34] sm:$0xf]
    %v1359 = vld [vmem:[%s1344 + $0x38] sm:$0xf]
    %v1360 = vld [vmem:[%s1344 + $0x3c] sm:$0xf]
    %v1361 = vld [vmem:[%s1344 + $0x40] sm:$0xf]
    %v1362 = vld [vmem:[%s1344 + $0x44] sm:$0x3]
    %v1381 = vunpack.c.l.b16 %v1345
    %v1382 = vunpack.c.l.b16 %v1346
    %v1383 = vunpack.c.l.b16 %v1347
    %v1384 = vunpack.c.l.b16 %v1348
    %v1385 = vunpack.c.l.b16 %v1349
    %v1386 = vunpack.c.l.b16 %v1350
    %v1387 = vunpack.c.l.b16 %v1351
    %v1388 = vunpack.c.l.b16 %v1352
    %v1389 = vunpack.c.l.b16 %v1353
    %v1390 = vunpack.c.l.b16 %v1354
    %v1391 = vunpack.c.l.b16 %v1355
    %v1392 = vunpack.c.l.b16 %v1356
    %v1393 = vunpack.c.l.b16 %v1357
    %v1394 = vunpack.c.l.b16 %v1358
    %v1395 = vunpack.c.l.b16 %v1359
    %v1396 = vunpack.c.l.b16 %v1360
    %v1397 = vunpack.c.l.b16 %v1361
    %v1398 = vunpack.c.l.b16 %v1362
    %v1399 = vpack.c.b16 %v1382, %v1381
    %v1400 = vpack.c.b16 %v1384, %v1383
    %v1401 = vpack.c.b16 %v1386, %v1385
    %v1402 = vpack.c.b16 %v1388, %v1387
    %v1403 = vpack.c.b16 %v1390, %v1389
    %v1404 = vpack.c.b16 %v1392, %v1391
    %v1405 = vpack.c.b16 %v1394, %v1393
    %v1406 = vpack.c.b16 %v1396, %v1395
    %v1407 = vpack.c.b16 %v1398, %v1397
    %v1409 = vsel %vm719, %v1399, 0
    %v1412 = vsel %vm719, %v1400, 0
    %v1415 = vsel %vm719, %v1401, 0
    %v1418 = vsel %vm719, %v1402, 0
    %v1421 = vsel %vm719, %v1403, 0
    %v1424 = vsel %vm719, %v1404, 0
    %v1427 = vsel %vm719, %v1405, 0
    %v1430 = vsel %vm719, %v1406, 0
    %v1433 = vsel %vm719, %v1407, 0
    %1435 = vmatprep.subr.bf16.mxu0 0
    %1436 = vmatpush1.bf16.msra.mxu0 0
    %1437 = vmatprep.subr.bf16.mxu0 0
    %1438 = vmatpush1.bf16.msra.mxu0 0
    %1439 = vmatprep.subr.bf16.mxu0 0
    %1440 = vmatpush1.bf16.msra.mxu0 0
    %1441 = vmatprep.subr.bf16.mxu0 0
    %1442 = vmatpush1.bf16.msra.mxu0 0
    %1443 = vmatprep.subr.bf16.mxu0 0
    %1444 = vmatpush1.bf16.msra.mxu0 %v749
    %1445 = vmatprep.subr.bf16.mxu0 0
    %1446 = vmatpush1.bf16.msra.mxu0 %v714
    %1447 = vmatprep.subr.bf16.mxu0 0
    %1448 = vmatpush1.bf16.msra.mxu0 %v713
    %1449 = vmatprep.subr.bf16.mxu0 0
    %1450 = vmatpush1.bf16.msra.mxu0 %v712
    %1451 = vmatprep.subr.bf16.mxu0 0
    %1452 = vmatpush2.bf16.msra.mxu0 0
    %1453 = vmatprep.subr.bf16.mxu0 0
    %1454 = vmatpush2.bf16.msra.mxu0 0
    %1455 = vmatprep.subr.bf16.mxu0 0
    %1456 = vmatpush2.bf16.msra.mxu0 0
    %1457 = vmatprep.subr.bf16.mxu0 0
    %1458 = vmatpush2.bf16.msra.mxu0 0
    %1459 = vmatprep.subr.bf16.mxu0 0
    %1460 = vmatpush2.bf16.msra.mxu0 0
    %1461 = vmatprep.subr.bf16.mxu0 0
    %1462 = vmatpush2.bf16.msra.mxu0 0
    %1463 = vmatprep.subr.bf16.mxu0 0
    %1464 = vmatpush2.bf16.msra.mxu0 0
    %1465 = vmatprep.subr.bf16.mxu0 0
    %1466 = vmatpush2.bf16.msra.mxu0 0
    %1467 = vmatprep.mubr.bf16.mxu0 0
    %1468 = vmatmul.mubr.bf16.gmra.mxu0 %v1409
    %v1469 = vpop.f32.mrf.mxu0
    %v1470 = vadd.f32 %v651, %v1469
    %v1471 = vpop.f32.mrf.mxu0
    %v1472 = vpop.f32.mrf.mxu0
    %v1473 = vadd.f32 %v651, %v1472
    %v1474 = vpop.f32.mrf.mxu0
    %1475 = vmatprep.mubr.bf16.mxu0 0
    %1476 = vmatmul.mubr.bf16.gmra.mxu0 %v1412
    %v1477 = vpop.f32.mrf.mxu0
    %v1478 = vadd.f32 %v651, %v1477
    %v1479 = vpop.f32.mrf.mxu0
    %v1480 = vpop.f32.mrf.mxu0
    %v1481 = vadd.f32 %v651, %v1480
    %v1482 = vpop.f32.mrf.mxu0
    %1483 = vmatprep.mubr.bf16.mxu0 0
    %1484 = vmatmul.mubr.bf16.gmra.mxu0 %v1415
    %v1485 = vpop.f32.mrf.mxu0
    %v1486 = vadd.f32 %v651, %v1485
    %v1487 = vpop.f32.mrf.mxu0
    %v1488 = vpop.f32.mrf.mxu0
    %v1489 = vadd.f32 %v651, %v1488
    %v1490 = vpop.f32.mrf.mxu0
    %1491 = vmatprep.mubr.bf16.mxu0 0
    %1492 = vmatmul.mubr.bf16.gmra.mxu0 %v1418
    %v1493 = vpop.f32.mrf.mxu0
    %v1494 = vadd.f32 %v651, %v1493
    %v1495 = vpop.f32.mrf.mxu0
    %v1496 = vpop.f32.mrf.mxu0
    %v1497 = vadd.f32 %v651, %v1496
    %v1498 = vpop.f32.mrf.mxu0
    %1499 = vmatprep.mubr.bf16.mxu0 0
    %1500 = vmatmul.mubr.bf16.gmra.mxu0 %v1421
    %v1501 = vpop.f32.mrf.mxu0
    %v1502 = vadd.f32 %v651, %v1501
    %v1503 = vpop.f32.mrf.mxu0
    %v1504 = vpop.f32.mrf.mxu0
    %v1505 = vadd.f32 %v651, %v1504
    %v1506 = vpop.f32.mrf.mxu0
    %1507 = vmatprep.mubr.bf16.mxu0 0
    %1508 = vmatmul.mubr.bf16.gmra.mxu0 %v1424
    %v1509 = vpop.f32.mrf.mxu0
    %v1510 = vadd.f32 %v651, %v1509
    %v1511 = vpop.f32.mrf.mxu0
    %v1512 = vpop.f32.mrf.mxu0
    %v1513 = vadd.f32 %v651, %v1512
    %v1514 = vpop.f32.mrf.mxu0
    %1515 = vmatprep.mubr.bf16.mxu0 0
    %1516 = vmatmul.mubr.bf16.gmra.mxu0 %v1427
    %v1517 = vpop.f32.mrf.mxu0
    %v1518 = vadd.f32 %v651, %v1517
    %v1519 = vpop.f32.mrf.mxu0
    %v1520 = vpop.f32.mrf.mxu0
    %v1521 = vadd.f32 %v651, %v1520
    %v1522 = vpop.f32.mrf.mxu0
    %1523 = vmatprep.mubr.bf16.mxu0 0
    %1524 = vmatmul.mubr.bf16.gmra.mxu0 %v1430
    %v1525 = vpop.f32.mrf.mxu0
    %v1526 = vadd.f32 %v651, %v1525
    %v1527 = vpop.f32.mrf.mxu0
    %v1528 = vpop.f32.mrf.mxu0
    %v1529 = vadd.f32 %v651, %v1528
    %v1530 = vpop.f32.mrf.mxu0
    %1531 = vmatprep.mubr.bf16.mxu0 0
    %1532 = vmatmul.mubr.bf16.gmra.mxu0 %v1433
    %v1533 = vpop.f32.mrf.mxu0
    %v1534 = vadd.f32 %v651, %v1533
    %v1535 = vpop.f32.mrf.mxu0
    %v1536 = vpop.f32.mrf.mxu0
    %v1537 = vadd.f32 %v651, %v1536
    %v1538 = vpop.f32.mrf.mxu0
    %1539 = vdwg.mxu0
    %v1540 = vmax.f32 %v1470, 0.0
    %v1541 = vmax.f32 %v1473, 0.0
    %v1542 = vmax.f32 %v1478, 0.0
    %v1543 = vmax.f32 %v1481, 0.0
    %v1544 = vmax.f32 %v1486, 0.0
    %v1545 = vmax.f32 %v1489, 0.0
    %v1546 = vmax.f32 %v1494, 0.0
    %v1547 = vmax.f32 %v1497, 0.0
    %v1548 = vmax.f32 %v1502, 0.0
    %v1549 = vmax.f32 %v1505, 0.0
    %v1550 = vmax.f32 %v1510, 0.0
    %v1551 = vmax.f32 %v1513, 0.0
    %v1552 = vmax.f32 %v1518, 0.0
    %v1553 = vmax.f32 %v1521, 0.0
    %v1554 = vmax.f32 %v1526, 0.0
    %v1555 = vmax.f32 %v1529, 0.0
    %v1556 = vmax.f32 %v1534, 0.0
    %v1557 = vmax.f32 %v1537, 0.0
    %v1568 = vrot.slane %v1548, 6
    %v1569 = vrot.slane %v1549, 6
    %v1570 = vsel %vm884, %v1568, %v1569
    %v1571 = vrot.slane %v1550, 6
    %v1572 = vsel %vm884, %v1569, %v1571
    %v1573 = vrot.slane %v1551, 6
    %v1574 = vsel %vm884, %v1571, %v1573
    %v1575 = vrot.slane %v1552, 6
    %v1576 = vsel %vm884, %v1573, %v1575
    %v1577 = vrot.slane %v1553, 6
    %v1578 = vsel %vm884, %v1575, %v1577
    %v1579 = vrot.slane %v1554, 6
    %v1580 = vsel %vm884, %v1577, %v1579
    %v1581 = vrot.slane %v1555, 6
    %v1582 = vsel %vm884, %v1579, %v1581
    %v1583 = vrot.slane %v1556, 6
    %v1584 = vsel %vm884, %v1581, %v1583
    %v1585 = vrot.slane %v1557, 6
    %v1586 = vsel %vm884, %v1583, %v1585
    %v1596 = vmax.f32 %v1540, %v1570
    %v1597 = vmax.f32 %v1541, %v1572
    %v1598 = vmax.f32 %v1542, %v1574
    %v1599 = vmax.f32 %v1543, %v1576
    %v1600 = vmax.f32 %v1544, %v1578
    %v1601 = vmax.f32 %v1545, %v1580
    %v1602 = vmax.f32 %v1546, %v1582
    %v1603 = vmax.f32 %v1547, %v1584
    %v1604 = vmax.f32 %v1548, %v1586
    %v1614 = vrot.slane %v1596, 1
    %v1615 = vrot.slane %v1597, 1
    %v1616 = vsel %vm931, %v1614, %v1615
    %v1617 = vrot.slane %v1598, 1
    %v1618 = vsel %vm931, %v1615, %v1617
    %v1619 = vrot.slane %v1599, 1
    %v1620 = vsel %vm931, %v1617, %v1619
    %v1621 = vrot.slane %v1600, 1
    %v1622 = vsel %vm931, %v1619, %v1621
    %v1623 = vrot.slane %v1601, 1
    %v1624 = vsel %vm931, %v1621, %v1623
    %v1625 = vrot.slane %v1602, 1
    %v1626 = vsel %vm931, %v1623, %v1625
    %v1627 = vrot.slane %v1603, 1
    %v1628 = vsel %vm931, %v1625, %v1627
    %v1629 = vrot.slane %v1604, 1
    %v1630 = vsel %vm931, %v1627, %v1629
    %v1640 = vmax.f32 %v1596, %v1616
    %v1641 = vmax.f32 %v1597, %v1618
    %v1642 = vmax.f32 %v1598, %v1620
    %v1643 = vmax.f32 %v1599, %v1622
    %v1644 = vmax.f32 %v1600, %v1624
    %v1645 = vmax.f32 %v1601, %v1626
    %v1646 = vmax.f32 %v1602, %v1628
    %v1647 = vmax.f32 %v1603, %v1630
    %v1648 = vmax.f32 %v1604, %v1629
    %1649 = vst.msk [vmem:[#allocation4] sm:$0xff] %vm967, %v1640
    %1650 = vst.msk [vmem:[#allocation4 + $0x8] sm:$0xff] %vm967, %v1641
    %1651 = vst.msk [vmem:[#allocation4 + $0x10] sm:$0xff] %vm967, %v1642
    %1652 = vst.msk [vmem:[#allocation4 + $0x18] sm:$0xff] %vm967, %v1643
    %1653 = vst.msk [vmem:[#allocation4 + $0x20] sm:$0xff] %vm967, %v1644
    %1654 = vst.msk [vmem:[#allocation4 + $0x28] sm:$0xff] %vm967, %v1645
    %1655 = vst.msk [vmem:[#allocation4 + $0x30] sm:$0xff] %vm967, %v1646
    %1656 = vst.msk [vmem:[#allocation4 + $0x38] sm:$0xff] %vm967, %v1647
    %1657 = vst.msk [vmem:[#allocation4 + $0x40] sm:$0xf] %vm976, %v1648
    %v1658 = vld [vmem:[#allocation4] ss:$2 sm:$0xff]
    %v1659 = vld [vmem:[%s979] ss:$2 sm:$0xff]
    %v1660 = vld [vmem:[%s981] ss:$2 sm:$0xff]
    %v1661 = vld [vmem:[%s983] ss:$2 sm:$0xff]
    %v1662 = vld [vmem:[%s985] ss:$2 sm:$0x3]
    %1668 = vrot.lane.b32.xlu0 %v1658, 32
    %v1669 = vpop.permute.xlu0 %1668
    %1670 = vrot.lane.b32.xlu0 %v1659, 32
    %v1671 = vpop.permute.xlu0 %1670
    %1672 = vrot.lane.b32.xlu0 %v1660, 32
    %v1673 = vpop.permute.xlu0 %1672
    %1674 = vrot.lane.b32.xlu0 %v1661, 32
    %v1675 = vpop.permute.xlu0 %1674
    %1676 = vrot.lane.b32.xlu0 %v1662, 32
    %v1677 = vpop.permute.xlu0 %1676
    %1683 = vst.msk [vmem:[#allocation5 + $0x28] sm:$0xff] %vm1337, %v1669
    %1684 = vst.msk [vmem:[#allocation5 + $0x30] sm:$0xff] %vm1337, %v1671
    %1685 = vst.msk [vmem:[#allocation5 + $0x38] sm:$0xff] %vm1337, %v1673
    %1686 = vst.msk [vmem:[#allocation5 + $0x40] sm:$0xff] %vm1337, %v1675
    %1687 = vst.msk [vmem:[#allocation5 + $0x48] sm:$0x3] %vm1342, %v1677
    %1688 = vrot.lane.b32.xlu0 %v1658, 64
    %v1689 = vpop.permute.xlu0 %1688
    %1690 = vrot.lane.b32.xlu0 %v1659, 64
    %v1691 = vpop.permute.xlu0 %1690
    %1692 = vrot.lane.b32.xlu0 %v1660, 64
    %v1693 = vpop.permute.xlu0 %1692
    %1694 = vrot.lane.b32.xlu0 %v1661, 64
    %v1695 = vpop.permute.xlu0 %1694
    %1696 = vrot.lane.b32.xlu0 %v1662, 64
    %v1697 = vpop.permute.xlu0 %1696
    %vm1703 = vcmask 785920
    %1704 = vst.msk [vmem:[#allocation5] sm:$0xff] %vm1703, %v1689
    %1705 = vst.msk [vmem:[#allocation5 + $0x8] sm:$0xff] %vm1703, %v1691
    %1706 = vst.msk [vmem:[#allocation5 + $0x10] sm:$0xff] %vm1703, %v1693
    %1707 = vst.msk [vmem:[#allocation5 + $0x18] sm:$0xff] %vm1703, %v1695
    %vm1708 = vcmask 779776
    %1709 = vst.msk [vmem:[#allocation5 + $0x20] sm:$0x3] %vm1708, %v1697
    %s1710 = scalar_lea.vmem %s0, 216
    %v1711 = vld [vmem:[%s1710] sm:$0xf]
    %v1712 = vld [vmem:[%s1710 + $0x4] sm:$0xf]
    %v1713 = vld [vmem:[%s1710 + $0x8] sm:$0xf]
    %v1714 = vld [vmem:[%s1710 + $0xc] sm:$0xf]
    %v1715 = vld [vmem:[%s1710 + $0x10] sm:$0xf]
    %v1716 = vld [vmem:[%s1710 + $0x14] sm:$0xf]
    %v1717 = vld [vmem:[%s1710 + $0x18] sm:$0xf]
    %v1718 = vld [vmem:[%s1710 + $0x1c] sm:$0xf]
    %v1719 = vld [vmem:[%s1710 + $0x20] sm:$0xf]
    %v1720 = vld [vmem:[%s1710 + $0x24] sm:$0xf]
    %v1721 = vld [vmem:[%s1710 + $0x28] sm:$0xf]
    %v1722 = vld [vmem:[%s1710 + $0x2c] sm:$0xf]
    %v1723 = vld [vmem:[%s1710 + $0x30] sm:$0xf]
    %v1724 = vld [vmem:[%s1710 + $0x34] sm:$0xf]
    %v1725 = vld [vmem:[%s1710 + $0x38] sm:$0xf]
    %v1726 = vld [vmem:[%s1710 + $0x3c] sm:$0xf]
    %v1727 = vld [vmem:[%s1710 + $0x40] sm:$0xf]
    %v1728 = vld [vmem:[%s1710 + $0x44] sm:$0x3]
    %v1747 = vunpack.c.l.b16 %v1711
    %v1748 = vunpack.c.l.b16 %v1712
    %v1749 = vunpack.c.l.b16 %v1713
    %v1750 = vunpack.c.l.b16 %v1714
    %v1751 = vunpack.c.l.b16 %v1715
    %v1752 = vunpack.c.l.b16 %v1716
    %v1753 = vunpack.c.l.b16 %v1717
    %v1754 = vunpack.c.l.b16 %v1718
    %v1755 = vunpack.c.l.b16 %v1719
    %v1756 = vunpack.c.l.b16 %v1720
    %v1757 = vunpack.c.l.b16 %v1721
    %v1758 = vunpack.c.l.b16 %v1722
    %v1759 = vunpack.c.l.b16 %v1723
    %v1760 = vunpack.c.l.b16 %v1724
    %v1761 = vunpack.c.l.b16 %v1725
    %v1762 = vunpack.c.l.b16 %v1726
    %v1763 = vunpack.c.l.b16 %v1727
    %v1764 = vunpack.c.l.b16 %v1728
    %v1765 = vpack.c.b16 %v1748, %v1747
    %v1766 = vpack.c.b16 %v1750, %v1749
    %v1767 = vpack.c.b16 %v1752, %v1751
    %v1768 = vpack.c.b16 %v1754, %v1753
    %v1769 = vpack.c.b16 %v1756, %v1755
    %v1770 = vpack.c.b16 %v1758, %v1757
    %v1771 = vpack.c.b16 %v1760, %v1759
    %v1772 = vpack.c.b16 %v1762, %v1761
    %v1773 = vpack.c.b16 %v1764, %v1763
    %v1775 = vsel %vm719, %v1765, 0
    %v1778 = vsel %vm719, %v1766, 0
    %v1781 = vsel %vm719, %v1767, 0
    %v1784 = vsel %vm719, %v1768, 0
    %v1787 = vsel %vm719, %v1769, 0
    %v1790 = vsel %vm719, %v1770, 0
    %v1793 = vsel %vm719, %v1771, 0
    %v1796 = vsel %vm719, %v1772, 0
    %v1799 = vsel %vm719, %v1773, 0
    %1801 = vmatprep.subr.bf16.mxu0 0
    %1802 = vmatpush1.bf16.msra.mxu0 0
    %1803 = vmatprep.subr.bf16.mxu0 0
    %1804 = vmatpush1.bf16.msra.mxu0 0
    %1805 = vmatprep.subr.bf16.mxu0 0
    %1806 = vmatpush1.bf16.msra.mxu0 0
    %1807 = vmatprep.subr.bf16.mxu0 0
    %1808 = vmatpush1.bf16.msra.mxu0 0
    %1809 = vmatprep.subr.bf16.mxu0 0
    %1810 = vmatpush1.bf16.msra.mxu0 %v749
    %1811 = vmatprep.subr.bf16.mxu0 0
    %1812 = vmatpush1.bf16.msra.mxu0 %v714
    %1813 = vmatprep.subr.bf16.mxu0 0
    %1814 = vmatpush1.bf16.msra.mxu0 %v713
    %1815 = vmatprep.subr.bf16.mxu0 0
    %1816 = vmatpush1.bf16.msra.mxu0 %v712
    %1817 = vmatprep.subr.bf16.mxu0 0
    %1818 = vmatpush2.bf16.msra.mxu0 0
    %1819 = vmatprep.subr.bf16.mxu0 0
    %1820 = vmatpush2.bf16.msra.mxu0 0
    %1821 = vmatprep.subr.bf16.mxu0 0
    %1822 = vmatpush2.bf16.msra.mxu0 0
    %1823 = vmatprep.subr.bf16.mxu0 0
    %1824 = vmatpush2.bf16.msra.mxu0 0
    %1825 = vmatprep.subr.bf16.mxu0 0
    %1826 = vmatpush2.bf16.msra.mxu0 0
    %1827 = vmatprep.subr.bf16.mxu0 0
    %1828 = vmatpush2.bf16.msra.mxu0 0
    %1829 = vmatprep.subr.bf16.mxu0 0
    %1830 = vmatpush2.bf16.msra.mxu0 0
    %1831 = vmatprep.subr.bf16.mxu0 0
    %1832 = vmatpush2.bf16.msra.mxu0 0
    %1833 = vmatprep.mubr.bf16.mxu0 0
    %1834 = vmatmul.mubr.bf16.gmra.mxu0 %v1775
    %v1835 = vpop.f32.mrf.mxu0
    %v1836 = vadd.f32 %v651, %v1835
    %v1837 = vpop.f32.mrf.mxu0
    %v1838 = vpop.f32.mrf.mxu0
    %v1839 = vadd.f32 %v651, %v1838
    %v1840 = vpop.f32.mrf.mxu0
    %1841 = vmatprep.mubr.bf16.mxu0 0
    %1842 = vmatmul.mubr.bf16.gmra.mxu0 %v1778
    %v1843 = vpop.f32.mrf.mxu0
    %v1844 = vadd.f32 %v651, %v1843
    %v1845 = vpop.f32.mrf.mxu0
    %v1846 = vpop.f32.mrf.mxu0
    %v1847 = vadd.f32 %v651, %v1846
    %v1848 = vpop.f32.mrf.mxu0
    %1849 = vmatprep.mubr.bf16.mxu0 0
    %1850 = vmatmul.mubr.bf16.gmra.mxu0 %v1781
    %v1851 = vpop.f32.mrf.mxu0
    %v1852 = vadd.f32 %v651, %v1851
    %v1853 = vpop.f32.mrf.mxu0
    %v1854 = vpop.f32.mrf.mxu0
    %v1855 = vadd.f32 %v651, %v1854
    %v1856 = vpop.f32.mrf.mxu0
    %1857 = vmatprep.mubr.bf16.mxu0 0
    %1858 = vmatmul.mubr.bf16.gmra.mxu0 %v1784
    %v1859 = vpop.f32.mrf.mxu0
    %v1860 = vadd.f32 %v651, %v1859
    %v1861 = vpop.f32.mrf.mxu0
    %v1862 = vpop.f32.mrf.mxu0
    %v1863 = vadd.f32 %v651, %v1862
    %v1864 = vpop.f32.mrf.mxu0
    %1865 = vmatprep.mubr.bf16.mxu0 0
    %1866 = vmatmul.mubr.bf16.gmra.mxu0 %v1787
    %v1867 = vpop.f32.mrf.mxu0
    %v1868 = vadd.f32 %v651, %v1867
    %v1869 = vpop.f32.mrf.mxu0
    %v1870 = vpop.f32.mrf.mxu0
    %v1871 = vadd.f32 %v651, %v1870
    %v1872 = vpop.f32.mrf.mxu0
    %1873 = vmatprep.mubr.bf16.mxu0 0
    %1874 = vmatmul.mubr.bf16.gmra.mxu0 %v1790
    %v1875 = vpop.f32.mrf.mxu0
    %v1876 = vadd.f32 %v651, %v1875
    %v1877 = vpop.f32.mrf.mxu0
    %v1878 = vpop.f32.mrf.mxu0
    %v1879 = vadd.f32 %v651, %v1878
    %v1880 = vpop.f32.mrf.mxu0
    %1881 = vmatprep.mubr.bf16.mxu0 0
    %1882 = vmatmul.mubr.bf16.gmra.mxu0 %v1793
    %v1883 = vpop.f32.mrf.mxu0
    %v1884 = vadd.f32 %v651, %v1883
    %v1885 = vpop.f32.mrf.mxu0
    %v1886 = vpop.f32.mrf.mxu0
    %v1887 = vadd.f32 %v651, %v1886
    %v1888 = vpop.f32.mrf.mxu0
    %1889 = vmatprep.mubr.bf16.mxu0 0
    %1890 = vmatmul.mubr.bf16.gmra.mxu0 %v1796
    %v1891 = vpop.f32.mrf.mxu0
    %v1892 = vadd.f32 %v651, %v1891
    %v1893 = vpop.f32.mrf.mxu0
    %v1894 = vpop.f32.mrf.mxu0
    %v1895 = vadd.f32 %v651, %v1894
    %v1896 = vpop.f32.mrf.mxu0
    %1897 = vmatprep.mubr.bf16.mxu0 0
    %1898 = vmatmul.mubr.bf16.gmra.mxu0 %v1799
    %v1899 = vpop.f32.mrf.mxu0
    %v1900 = vadd.f32 %v651, %v1899
    %v1901 = vpop.f32.mrf.mxu0
    %v1902 = vpop.f32.mrf.mxu0
    %v1903 = vadd.f32 %v651, %v1902
    %v1904 = vpop.f32.mrf.mxu0
    %1905 = vdwg.mxu0
    %v1906 = vmax.f32 %v1836, 0.0
    %v1907 = vmax.f32 %v1839, 0.0
    %v1908 = vmax.f32 %v1844, 0.0
    %v1909 = vmax.f32 %v1847, 0.0
    %v1910 = vmax.f32 %v1852, 0.0
    %v1911 = vmax.f32 %v1855, 0.0
    %v1912 = vmax.f32 %v1860, 0.0
    %v1913 = vmax.f32 %v1863, 0.0
    %v1914 = vmax.f32 %v1868, 0.0
    %v1915 = vmax.f32 %v1871, 0.0
    %v1916 = vmax.f32 %v1876, 0.0
    %v1917 = vmax.f32 %v1879, 0.0
    %v1918 = vmax.f32 %v1884, 0.0
    %v1919 = vmax.f32 %v1887, 0.0
    %v1920 = vmax.f32 %v1892, 0.0
    %v1921 = vmax.f32 %v1895, 0.0
    %v1922 = vmax.f32 %v1900, 0.0
    %v1923 = vmax.f32 %v1903, 0.0
    %v1934 = vrot.slane %v1914, 6
    %v1935 = vrot.slane %v1915, 6
    %v1936 = vsel %vm884, %v1934, %v1935
    %v1937 = vrot.slane %v1916, 6
    %v1938 = vsel %vm884, %v1935, %v1937
    %v1939 = vrot.slane %v1917, 6
    %v1940 = vsel %vm884, %v1937, %v1939
    %v1941 = vrot.slane %v1918, 6
    %v1942 = vsel %vm884, %v1939, %v1941
    %v1943 = vrot.slane %v1919, 6
    %v1944 = vsel %vm884, %v1941, %v1943
    %v1945 = vrot.slane %v1920, 6
    %v1946 = vsel %vm884, %v1943, %v1945
    %v1947 = vrot.slane %v1921, 6
    %v1948 = vsel %vm884, %v1945, %v1947
    %v1949 = vrot.slane %v1922, 6
    %v1950 = vsel %vm884, %v1947, %v1949
    %v1951 = vrot.slane %v1923, 6
    %v1952 = vsel %vm884, %v1949, %v1951
    %v1962 = vmax.f32 %v1906, %v1936
    %v1963 = vmax.f32 %v1907, %v1938
    %v1964 = vmax.f32 %v1908, %v1940
    %v1965 = vmax.f32 %v1909, %v1942
    %v1966 = vmax.f32 %v1910, %v1944
    %v1967 = vmax.f32 %v1911, %v1946
    %v1968 = vmax.f32 %v1912, %v1948
    %v1969 = vmax.f32 %v1913, %v1950
    %v1970 = vmax.f32 %v1914, %v1952
    %v1980 = vrot.slane %v1962, 1
    %v1981 = vrot.slane %v1963, 1
    %v1982 = vsel %vm931, %v1980, %v1981
    %v1983 = vrot.slane %v1964, 1
    %v1984 = vsel %vm931, %v1981, %v1983
    %v1985 = vrot.slane %v1965, 1
    %v1986 = vsel %vm931, %v1983, %v1985
    %v1987 = vrot.slane %v1966, 1
    %v1988 = vsel %vm931, %v1985, %v1987
    %v1989 = vrot.slane %v1967, 1
    %v1990 = vsel %vm931, %v1987, %v1989
    %v1991 = vrot.slane %v1968, 1
    %v1992 = vsel %vm931, %v1989, %v1991
    %v1993 = vrot.slane %v1969, 1
    %v1994 = vsel %vm931, %v1991, %v1993
    %v1995 = vrot.slane %v1970, 1
    %v1996 = vsel %vm931, %v1993, %v1995
    %v2006 = vmax.f32 %v1962, %v1982
    %v2007 = vmax.f32 %v1963, %v1984
    %v2008 = vmax.f32 %v1964, %v1986
    %v2009 = vmax.f32 %v1965, %v1988
    %v2010 = vmax.f32 %v1966, %v1990
    %v2011 = vmax.f32 %v1967, %v1992
    %v2012 = vmax.f32 %v1968, %v1994
    %v2013 = vmax.f32 %v1969, %v1996
    %v2014 = vmax.f32 %v1970, %v1995
    %2015 = vst.msk [vmem:[#allocation4] sm:$0xff] %vm967, %v2006
    %2016 = vst.msk [vmem:[#allocation4 + $0x8] sm:$0xff] %vm967, %v2007
    %2017 = vst.msk [vmem:[#allocation4 + $0x10] sm:$0xff] %vm967, %v2008
    %2018 = vst.msk [vmem:[#allocation4 + $0x18] sm:$0xff] %vm967, %v2009
    %2019 = vst.msk [vmem:[#allocation4 + $0x20] sm:$0xff] %vm967, %v2010
    %2020 = vst.msk [vmem:[#allocation4 + $0x28] sm:$0xff] %vm967, %v2011
    %2021 = vst.msk [vmem:[#allocation4 + $0x30] sm:$0xff] %vm967, %v2012
    %2022 = vst.msk [vmem:[#allocation4 + $0x38] sm:$0xff] %vm967, %v2013
    %2023 = vst.msk [vmem:[#allocation4 + $0x40] sm:$0xf] %vm976, %v2014
    %v2024 = vld [vmem:[#allocation4] ss:$2 sm:$0xff]
    %v2025 = vld [vmem:[%s979] ss:$2 sm:$0xff]
    %v2026 = vld [vmem:[%s981] ss:$2 sm:$0xff]
    %v2027 = vld [vmem:[%s983] ss:$2 sm:$0xff]
    %v2028 = vld [vmem:[%s985] ss:$2 sm:$0x3]
    %2034 = vrot.lane.b32.xlu0 %v2024, 64
    %v2035 = vpop.permute.xlu0 %2034
    %2036 = vrot.lane.b32.xlu0 %v2025, 64
    %v2037 = vpop.permute.xlu0 %2036
    %2038 = vrot.lane.b32.xlu0 %v2026, 64
    %v2039 = vpop.permute.xlu0 %2038
    %2040 = vrot.lane.b32.xlu0 %v2027, 64
    %v2041 = vpop.permute.xlu0 %2040
    %2042 = vrot.lane.b32.xlu0 %v2028, 64
    %v2043 = vpop.permute.xlu0 %2042
    %2049 = vst.msk [vmem:[#allocation5 + $0x28] sm:$0xff] %vm1703, %v2035
    %2050 = vst.msk [vmem:[#allocation5 + $0x30] sm:$0xff] %vm1703, %v2037
    %2051 = vst.msk [vmem:[#allocation5 + $0x38] sm:$0xff] %vm1703, %v2039
    %2052 = vst.msk [vmem:[#allocation5 + $0x40] sm:$0xff] %vm1703, %v2041
    %2053 = vst.msk [vmem:[#allocation5 + $0x48] sm:$0x3] %vm1708, %v2043
    %v2054 = vld [vmem:[#allocation5] sm:$0xff]
    %v2055 = vld [vmem:[#allocation5 + $0x8] sm:$0xff]
    %v2056 = vld [vmem:[#allocation5 + $0x10] sm:$0xff]
    %v2057 = vld [vmem:[#allocation5 + $0x18] sm:$0xff]
    %v2058 = vld [vmem:[#allocation5 + $0x20] sm:$0xff]
    %v2059 = vld [vmem:[#allocation5 + $0x28] sm:$0xff]
    %v2060 = vld [vmem:[#allocation5 + $0x30] sm:$0xff]
    %v2061 = vld [vmem:[#allocation5 + $0x38] sm:$0xff]
    %v2062 = vld [vmem:[#allocation5 + $0x40] sm:$0xff]
    %v2063 = vld [vmem:[#allocation5 + $0x48] sm:$0xff]
    %v2064 = vpack.c.bf16 %v2055, %v2054
    %v2065 = vpack.c.bf16 %v2057, %v2056
    %v2066 = vpack.c.bf16 %v2059, %v2058
    %v2067 = vpack.c.bf16 %v2061, %v2060
    %v2068 = vpack.c.bf16 %v2063, %v2062
    %v2081 = vunpack.c.l.b16 %v605
    %v2082 = vunpack.c.h.b16 %v605
    %v2083 = vunpack.c.l.b16 %v606
    %v2084 = vunpack.c.h.b16 %v606
    %v2085 = vunpack.c.l.b16 %v607
    %v2086 = vunpack.c.h.b16 %v607
    %v2087 = vunpack.c.l.b16 %v608
    %v2088 = vunpack.c.h.b16 %v608
    %v2089 = vunpack.c.l.b16 %v609
    %v2090 = vunpack.c.h.b16 %v609
    %v2091 = vunpack.c.l.b16 %v610
    %v2092 = vunpack.c.h.b16 %v610
    %v2093 = vunpack.c.l.b16 %v611
    %v2094 = vunpack.c.h.b16 %v611
    %v2095 = vunpack.c.l.b16 %v612
    %v2096 = vunpack.c.h.b16 %v612
    %v2097 = vunpack.c.l.b16 %v613
    %v2098 = vunpack.c.h.b16 %v613
    %v2099 = vunpack.c.l.b16 %v614
    %v2100 = vunpack.c.h.b16 %v614
    %v2101 = vunpack.c.l.b16 %v615
    %v2102 = vunpack.c.h.b16 %v615
    %v2103 = vunpack.c.l.b16 %v616
    %v2104 = vunpack.c.h.b16 %v616
    %v2105 = vpack.c.b16 %v2083, %v2081
    %v2106 = vpack.c.b16 %v2084, %v2082
    %v2107 = vpack.c.b16 %v2087, %v2085
    %v2108 = vpack.c.b16 %v2088, %v2086
    %v2109 = vpack.c.b16 %v2091, %v2089
    %v2110 = vpack.c.b16 %v2092, %v2090
    %v2111 = vpack.c.b16 %v2095, %v2093
    %v2112 = vpack.c.b16 %v2096, %v2094
    %v2113 = vpack.c.b16 %v2099, %v2097
    %v2114 = vpack.c.b16 %v2100, %v2098
    %v2115 = vpack.c.b16 %v2103, %v2101
    %v2116 = vpack.c.b16 %v2104, %v2102
    %v2130 = vsel %vm618, %v2064, 0
    %v2133 = vsel %vm618, %v2065, 0
    %v2136 = vsel %vm618, %v2066, 0
    %v2139 = vsel %vm618, %v2067, 0
    %v2142 = vsel %vm618, %v2068, 0
    %2144 = vmatprep.subr.bf16.mxu0 0
    %2145 = vmatpush1.bf16.msra.mxu0 0
    %2146 = vmatprep.subr.bf16.mxu0 0
    %2147 = vmatpush1.bf16.msra.mxu0 0
    %2148 = vmatprep.subr.bf16.mxu0 %v2116
    %2149 = vmatpush1.bf16.msra.mxu0 %v2115
    %2150 = vmatprep.subr.bf16.mxu0 %v2114
    %2151 = vmatpush1.bf16.msra.mxu0 %v2113
    %2152 = vmatprep.subr.bf16.mxu0 %v2112
    %2153 = vmatpush1.bf16.msra.mxu0 %v2111
    %2154 = vmatprep.subr.bf16.mxu0 %v2110
    %2155 = vmatpush1.bf16.msra.mxu0 %v2109
    %2156 = vmatprep.subr.bf16.mxu0 %v2108
    %2157 = vmatpush1.bf16.msra.mxu0 %v2107
    %2158 = vmatprep.subr.bf16.mxu0 %v2106
    %2159 = vmatpush1.bf16.msra.mxu0 %v2105
    %2160 = vmatprep.subr.bf16.mxu0 0
    %2161 = vmatpush2.bf16.msra.mxu0 0
    %2162 = vmatprep.subr.bf16.mxu0 0
    %2163 = vmatpush2.bf16.msra.mxu0 0
    %2164 = vmatprep.subr.bf16.mxu0 0
    %2165 = vmatpush2.bf16.msra.mxu0 0
    %2166 = vmatprep.subr.bf16.mxu0 0
    %2167 = vmatpush2.bf16.msra.mxu0 0
    %2168 = vmatprep.subr.bf16.mxu0 0
    %2169 = vmatpush2.bf16.msra.mxu0 0
    %2170 = vmatprep.subr.bf16.mxu0 0
    %2171 = vmatpush2.bf16.msra.mxu0 0
    %2172 = vmatprep.subr.bf16.mxu0 0
    %2173 = vmatpush2.bf16.msra.mxu0 0
    %2174 = vmatprep.subr.bf16.mxu0 0
    %2175 = vmatpush2.bf16.msra.mxu0 0
    %2176 = vmatprep.mubr.bf16.mxu0 0
    %2177 = vmatmul.mubr.bf16.gmra.mxu0 %v2130
    %v2178 = vpop.f32.mrf.mxu0
    %v2179 = vadd.f32 0.0, %v2178
    %v2180 = vpop.f32.mrf.mxu0
    %v2181 = vadd.f32 0.0, %v2180
    %v2182 = vpop.f32.mrf.mxu0
    %v2183 = vadd.f32 0.0, %v2182
    %v2184 = vpop.f32.mrf.mxu0
    %v2185 = vadd.f32 0.0, %v2184
    %2186 = vmatprep.mubr.bf16.mxu0 0
    %2187 = vmatmul.mubr.bf16.gmra.mxu0 %v2133
    %v2188 = vpop.f32.mrf.mxu0
    %v2189 = vadd.f32 0.0, %v2188
    %v2190 = vpop.f32.mrf.mxu0
    %v2191 = vadd.f32 0.0, %v2190
    %v2192 = vpop.f32.mrf.mxu0
    %v2193 = vadd.f32 0.0, %v2192
    %v2194 = vpop.f32.mrf.mxu0
    %v2195 = vadd.f32 0.0, %v2194
    %2196 = vmatprep.mubr.bf16.mxu0 0
    %2197 = vmatmul.mubr.bf16.gmra.mxu0 %v2136
    %v2198 = vpop.f32.mrf.mxu0
    %v2199 = vadd.f32 0.0, %v2198
    %v2200 = vpop.f32.mrf.mxu0
    %v2201 = vadd.f32 0.0, %v2200
    %v2202 = vpop.f32.mrf.mxu0
    %v2203 = vadd.f32 0.0, %v2202
    %v2204 = vpop.f32.mrf.mxu0
    %v2205 = vadd.f32 0.0, %v2204
    %2206 = vmatprep.mubr.bf16.mxu0 0
    %2207 = vmatmul.mubr.bf16.gmra.mxu0 %v2139
    %v2208 = vpop.f32.mrf.mxu0
    %v2209 = vadd.f32 0.0, %v2208
    %v2210 = vpop.f32.mrf.mxu0
    %v2211 = vadd.f32 0.0, %v2210
    %v2212 = vpop.f32.mrf.mxu0
    %v2213 = vadd.f32 0.0, %v2212
    %v2214 = vpop.f32.mrf.mxu0
    %v2215 = vadd.f32 0.0, %v2214
    %2216 = vmatprep.mubr.bf16.mxu0 0
    %2217 = vmatmul.mubr.bf16.gmra.mxu0 %v2142
    %v2218 = vpop.f32.mrf.mxu0
    %v2219 = vadd.f32 0.0, %v2218
    %v2220 = vpop.f32.mrf.mxu0
    %v2221 = vadd.f32 0.0, %v2220
    %v2222 = vpop.f32.mrf.mxu0
    %v2223 = vadd.f32 0.0, %v2222
    %v2224 = vpop.f32.mrf.mxu0
    %v2225 = vadd.f32 0.0, %v2224
    %2226 = vdwg.mxu0
    %v2237 = vrot.slane %v2179, 1
    %v2238 = vrot.slane %v2183, 1
    %v2239 = vsel %vm931, %v2237, %v2238
    %v2240 = vrot.slane %v2189, 1
    %v2241 = vsel %vm931, %v2238, %v2240
    %v2242 = vrot.slane %v2193, 1
    %v2243 = vsel %vm931, %v2240, %v2242
    %v2244 = vrot.slane %v2199, 1
    %v2245 = vsel %vm931, %v2242, %v2244
    %v2246 = vrot.slane %v2203, 1
    %v2247 = vrot.slane %v2209, 1
    %v2248 = vsel %vm931, %v2246, %v2247
    %v2249 = vrot.slane %v2213, 1
    %v2250 = vsel %vm931, %v2247, %v2249
    %v2251 = vrot.slane %v2219, 1
    %v2252 = vsel %vm931, %v2249, %v2251
    %v2253 = vrot.slane %v2223, 1
    %v2254 = vsel %vm931, %v2251, %v2253
    %2255 = vrot.lane.b32.xlu0 %v2239, 64
    %v2256 = vpop.permute.xlu0 %2255
    %2257 = vrot.lane.b32.xlu0 %v2241, 64
    %v2258 = vpop.permute.xlu0 %2257
    %2259 = vrot.lane.b32.xlu0 %v2243, 64
    %v2260 = vpop.permute.xlu0 %2259
    %2261 = vrot.lane.b32.xlu0 %v2245, 64
    %v2262 = vpop.permute.xlu0 %2261
    %2263 = vrot.lane.b32.xlu0 %v2248, 64
    %v2264 = vpop.permute.xlu0 %2263
    %2265 = vrot.lane.b32.xlu0 %v2250, 64
    %v2266 = vpop.permute.xlu0 %2265
    %2267 = vrot.lane.b32.xlu0 %v2252, 64
    %v2268 = vpop.permute.xlu0 %2267
    %2269 = vrot.lane.b32.xlu0 %v2254, 64
    %v2270 = vpop.permute.xlu0 %2269
    %v2279 = vadd.f32 %v2179, %v2256
    %v2280 = vadd.f32 %v2183, %v2258
    %v2281 = vadd.f32 %v2189, %v2260
    %v2282 = vadd.f32 %v2193, %v2262
    %v2283 = vadd.f32 %v2203, %v2264
    %v2284 = vadd.f32 %v2209, %v2266
    %v2285 = vadd.f32 %v2213, %v2268
    %v2286 = vadd.f32 %v2219, %v2270
    %vm2297 = vcmask 1045504
    %v2298 = vrot.slane %v2181, 2
    %v2299 = vrot.slane %v2185, 2
    %v2300 = vsel %vm2297, %v2298, %v2299
    %v2301 = vrot.slane %v2191, 2
    %v2302 = vsel %vm2297, %v2299, %v2301
    %v2303 = vrot.slane %v2195, 2
    %v2304 = vsel %vm2297, %v2301, %v2303
    %v2305 = vrot.slane %v2201, 2
    %v2306 = vsel %vm2297, %v2303, %v2305
    %v2307 = vrot.slane %v2205, 2
    %v2308 = vrot.slane %v2211, 2
    %v2309 = vsel %vm2297, %v2307, %v2308
    %v2310 = vrot.slane %v2215, 2
    %v2311 = vsel %vm2297, %v2308, %v2310
    %v2312 = vrot.slane %v2221, 2
    %v2313 = vsel %vm2297, %v2310, %v2312
    %v2314 = vrot.slane %v2225, 2
    %v2315 = vsel %vm2297, %v2312, %v2314
    %v2324 = vadd.f32 %v2279, %v2300
    %v2325 = vadd.f32 %v2280, %v2302
    %v2326 = vadd.f32 %v2281, %v2304
    %v2327 = vadd.f32 %v2282, %v2306
    %v2328 = vadd.f32 %v2283, %v2309
    %v2329 = vadd.f32 %v2284, %v2311
    %v2330 = vadd.f32 %v2285, %v2313
    %v2331 = vadd.f32 %v2286, %v2315
    %v2333 = vlaneseq
    %v2334 = vshrl.u32 %v2333, 7
    %v2335 = vsub.s32 0, %v2334
    %v2336 = vrot.slane %v617, %v2335
    %v2338 = vadd.f32 %v2324, %v2336
    %v2339 = vadd.f32 %v2325, %v2336
    %v2340 = vadd.f32 %v2326, %v2336
    %v2341 = vadd.f32 %v2327, %v2336
    %v2342 = vadd.f32 %v2328, %v2336
    %v2343 = vadd.f32 %v2329, %v2336
    %v2344 = vadd.f32 %v2330, %v2336
    %v2345 = vadd.f32 %v2331, %v2336
    %v2346 = vmax.f32 %v2338, 0.0
    %v2347 = vmax.f32 %v2339, 0.0
    %v2348 = vmax.f32 %v2340, 0.0
    %v2349 = vmax.f32 %v2341, 0.0
    %v2350 = vmax.f32 %v2342, 0.0
    %v2351 = vmax.f32 %v2343, 0.0
    %v2352 = vmax.f32 %v2344, 0.0
    %v2353 = vmax.f32 %v2345, 0.0
    %v2354 = vmax.f32 %v2346, %v2350
    %v2355 = vmax.f32 %v2347, %v2351
    %v2356 = vmax.f32 %v2348, %v2352
    %v2357 = vmax.f32 %v2349, %v2353
    %v2362 = vrot.slane %v2354, 1
    %v2363 = vrot.slane %v2355, 1
    %v2364 = vsel %vm931, %v2362, %v2363
    %v2365 = vrot.slane %v2356, 1
    %v2366 = vsel %vm931, %v2363, %v2365
    %v2367 = vrot.slane %v2357, 1
    %v2368 = vsel %vm931, %v2365, %v2367
    %v2373 = vmax.f32 %v2354, %v2364
    %v2374 = vmax.f32 %v2355, %v2366
    %v2375 = vmax.f32 %v2356, %v2368
    %v2376 = vmax.f32 %v2357, %v2367
    %vm2377 = vcmask 523264
    %2378 = vst.msk [vmem:[#allocation6] sm:$0xff] %vm2377, %v2373
    %2379 = vst.msk [vmem:[#allocation6 + $0x8] sm:$0xff] %vm2377, %v2374
    %2380 = vst.msk [vmem:[#allocation6 + $0x10] sm:$0xff] %vm2377, %v2375
    %vm2381 = vcmask 522240
    %2382 = vst.msk [vmem:[#allocation6 + $0x18] sm:$0x7f] %vm2381, %v2376
    %v2383 = vld [vmem:[#allocation6] ss:$2 sm:$0xff]
    %s2384 = scalar_lea.vmem [#allocation6], 16
    %v2385 = vld [vmem:[%s2384] ss:$2 sm:$0xff]
    %vm2386 = vcmask 516096
    %2387 = vst.msk [vmem:[#allocation7] sm:$0x1] %vm2386, %v2383
    %v2390 = vunpack.c.l.s4 1983009808
    %v2391 = vunpack.c.0.s8 %v2390
    %v2392 = vlaneseq
    %v2393 = vshrl.u32 %v2392, 7
    %v2394 = vsub.s32 %v2391, %v2393
    %v2395 = vrot.slane %v2383, %v2394
    %v2396 = vrot.slane %v2395, 7
    %v2397 = vrot.slane %v2396, 2
    %2398 = vrot.lane.b32.xlu0 %v2397, 64
    %v2399 = vpop.permute.xlu0 %2398
    %vm2401 = vcmask 1040896
    %2402 = vst.msk [vmem:[#allocation7] sm:$0x1] %vm2401, %v2399
    %v2403 = vcombine.high %v2395, %v2395
    %2405 = vst.msk [vmem:[#allocation7 + $0x2] sm:$0x1] %vm2386, %v2403
    %v2406 = vrot.slane %v2403, 7
    %v2407 = vrot.slane %v2406, 2
    %2408 = vrot.lane.b32.xlu0 %v2407, 64
    %v2409 = vpop.permute.xlu0 %2408
    %2411 = vst.msk [vmem:[#allocation7 + $0x2] sm:$0x1] %vm2401, %v2409
    %v2412 = vcombine.high %v2383, %v2383
    %v2414 = vunpack.c.l.s4 1983009808
    %v2415 = vunpack.c.0.s8 %v2414
    %v2416 = vlaneseq
    %v2417 = vshrl.u32 %v2416, 7
    %v2418 = vsub.s32 %v2415, %v2417
    %v2419 = vrot.slane %v2412, %v2418
    %2421 = vst.msk [vmem:[#allocation7 + $0x4] sm:$0x1] %vm2386, %v2419
    %v2422 = vrot.slane %v2419, 7
    %v2423 = vrot.slane %v2422, 2
    %2424 = vrot.lane.b32.xlu0 %v2423, 64
    %v2425 = vpop.permute.xlu0 %2424
    %2427 = vst.msk [vmem:[#allocation7 + $0x4] sm:$0x1] %vm2401, %v2425
    %v2428 = vcombine.high %v2419, %v2419
    %2430 = vst.msk [vmem:[#allocation7 + $0x6] sm:$0x1] %vm2386, %v2428
    %v2431 = vrot.slane %v2428, 7
    %v2432 = vrot.slane %v2431, 2
    %2433 = vrot.lane.b32.xlu0 %v2432, 64
    %v2434 = vpop.permute.xlu0 %2433
    %2436 = vst.msk [vmem:[#allocation7 + $0x6] sm:$0x1] %vm2401, %v2434
    %2437 = vst.msk [vmem:[#allocation7 + $0x8] sm:$0x1] %vm2386, %v2385
    %v2440 = vunpack.c.l.s4 1983009808
    %v2441 = vunpack.c.0.s8 %v2440
    %v2442 = vlaneseq
    %v2443 = vshrl.u32 %v2442, 7
    %v2444 = vsub.s32 %v2441, %v2443
    %v2445 = vrot.slane %v2385, %v2444
    %v2446 = vrot.slane %v2445, 7
    %v2447 = vrot.slane %v2446, 2
    %2448 = vrot.lane.b32.xlu0 %v2447, 64
    %v2449 = vpop.permute.xlu0 %2448
    %2451 = vst.msk [vmem:[#allocation7 + $0x8] sm:$0x1] %vm2401, %v2449
    %v2452 = vcombine.high %v2445, %v2445
    %2454 = vst.msk [vmem:[#allocation7 + $0xa] sm:$0x1] %vm2386, %v2452
    %v2455 = vrot.slane %v2452, 7
    %v2456 = vrot.slane %v2455, 2
    %2457 = vrot.lane.b32.xlu0 %v2456, 64
    %v2458 = vpop.permute.xlu0 %2457
    %2460 = vst.msk [vmem:[#allocation7 + $0xa] sm:$0x1] %vm2401, %v2458
    %v2461 = vcombine.high %v2385, %v2385
    %v2463 = vunpack.c.l.s4 1983009808
    %v2464 = vunpack.c.0.s8 %v2463
    %v2465 = vlaneseq
    %v2466 = vshrl.u32 %v2465, 7
    %v2467 = vsub.s32 %v2464, %v2466
    %v2468 = vrot.slane %v2461, %v2467
    %2470 = vst.msk [vmem:[#allocation7 + $0xc] sm:$0x1] %vm2386, %v2468
    %v2471 = vrot.slane %v2468, 7
    %v2472 = vrot.slane %v2471, 2
    %2473 = vrot.lane.b32.xlu0 %v2472, 64
    %v2474 = vpop.permute.xlu0 %2473
    %2476 = vst.msk [vmem:[#allocation7 + $0xc] sm:$0x1] %vm2401, %v2474
    %v2477 = vcombine.high %v2468, %v2468
    %2479 = vst.msk [vmem:[#allocation7 + $0xe] sm:$0x1] %vm2386, %v2477
    %v2480 = vrot.slane %v2477, 7
    %v2481 = vrot.slane %v2480, 2
    %2482 = vrot.lane.b32.xlu0 %v2481, 64
    %v2483 = vpop.permute.xlu0 %2482
    %2485 = vst.msk [vmem:[#allocation7 + $0xe] sm:$0x1] %vm2401, %v2483
    %s2486 = scalar_lea.vmem %s0, 288
    %v2487 = vld [vmem:[%s2486] sm:$0xf]
    %v2488 = vld [vmem:[%s2486 + $0x4] sm:$0xf]
    %v2489 = vld [vmem:[%s2486 + $0x8] sm:$0xf]
    %v2490 = vld [vmem:[%s2486 + $0xc] sm:$0xf]
    %v2491 = vld [vmem:[%s2486 + $0x10] sm:$0xf]
    %v2492 = vld [vmem:[%s2486 + $0x14] sm:$0xf]
    %v2493 = vld [vmem:[%s2486 + $0x18] sm:$0xf]
    %v2494 = vld [vmem:[%s2486 + $0x1c] sm:$0xf]
    %v2495 = vld [vmem:[%s2486 + $0x20] sm:$0xf]
    %v2496 = vld [vmem:[%s2486 + $0x24] sm:$0xf]
    %v2497 = vld [vmem:[%s2486 + $0x28] sm:$0xf]
    %v2498 = vld [vmem:[%s2486 + $0x2c] sm:$0xf]
    %v2499 = vld [vmem:[%s2486 + $0x30] sm:$0xf]
    %v2500 = vld [vmem:[%s2486 + $0x34] sm:$0xf]
    %v2501 = vld [vmem:[%s2486 + $0x38] sm:$0xf]
    %v2502 = vld [vmem:[%s2486 + $0x3c] sm:$0xf]
    %v2503 = vld [vmem:[%s2486 + $0x40] sm:$0xf]
    %v2504 = vld [vmem:[%s2486 + $0x44] sm:$0x3]
    %v2523 = vunpack.c.l.b16 %v2487
    %v2524 = vunpack.c.l.b16 %v2488
    %v2525 = vunpack.c.l.b16 %v2489
    %v2526 = vunpack.c.l.b16 %v2490
    %v2527 = vunpack.c.l.b16 %v2491
    %v2528 = vunpack.c.l.b16 %v2492
    %v2529 = vunpack.c.l.b16 %v2493
    %v2530 = vunpack.c.l.b16 %v2494
    %v2531 = vunpack.c.l.b16 %v2495
    %v2532 = vunpack.c.l.b16 %v2496
    %v2533 = vunpack.c.l.b16 %v2497
    %v2534 = vunpack.c.l.b16 %v2498
    %v2535 = vunpack.c.l.b16 %v2499
    %v2536 = vunpack.c.l.b16 %v2500
    %v2537 = vunpack.c.l.b16 %v2501
    %v2538 = vunpack.c.l.b16 %v2502
    %v2539 = vunpack.c.l.b16 %v2503
    %v2540 = vunpack.c.l.b16 %v2504
    %v2541 = vpack.c.b16 %v2524, %v2523
    %v2542 = vpack.c.b16 %v2526, %v2525
    %v2543 = vpack.c.b16 %v2528, %v2527
    %v2544 = vpack.c.b16 %v2530, %v2529
    %v2545 = vpack.c.b16 %v2532, %v2531
    %v2546 = vpack.c.b16 %v2534, %v2533
    %v2547 = vpack.c.b16 %v2536, %v2535
    %v2548 = vpack.c.b16 %v2538, %v2537
    %v2549 = vpack.c.b16 %v2540, %v2539
    %v2551 = vsel %vm719, %v2541, 0
    %v2554 = vsel %vm719, %v2542, 0
    %v2557 = vsel %vm719, %v2543, 0
    %v2560 = vsel %vm719, %v2544, 0
    %v2563 = vsel %vm719, %v2545, 0
    %v2566 = vsel %vm719, %v2546, 0
    %v2569 = vsel %vm719, %v2547, 0
    %v2572 = vsel %vm719, %v2548, 0
    %v2575 = vsel %vm719, %v2549, 0
    %2577 = vmatprep.subr.bf16.mxu0 0
    %2578 = vmatpush1.bf16.msra.mxu0 0
    %2579 = vmatprep.subr.bf16.mxu0 0
    %2580 = vmatpush1.bf16.msra.mxu0 0
    %2581 = vmatprep.subr.bf16.mxu0 0
    %2582 = vmatpush1.bf16.msra.mxu0 0
    %2583 = vmatprep.subr.bf16.mxu0 0
    %2584 = vmatpush1.bf16.msra.mxu0 0
    %2585 = vmatprep.subr.bf16.mxu0 0
    %2586 = vmatpush1.bf16.msra.mxu0 %v749
    %2587 = vmatprep.subr.bf16.mxu0 0
    %2588 = vmatpush1.bf16.msra.mxu0 %v714
    %2589 = vmatprep.subr.bf16.mxu0 0
    %2590 = vmatpush1.bf16.msra.mxu0 %v713
    %2591 = vmatprep.subr.bf16.mxu0 0
    %2592 = vmatpush1.bf16.msra.mxu0 %v712
    %2593 = vmatprep.subr.bf16.mxu0 0
    %2594 = vmatpush2.bf16.msra.mxu0 0
    %2595 = vmatprep.subr.bf16.mxu0 0
    %2596 = vmatpush2.bf16.msra.mxu0 0
    %2597 = vmatprep.subr.bf16.mxu0 0
    %2598 = vmatpush2.bf16.msra.mxu0 0
    %2599 = vmatprep.subr.bf16.mxu0 0
    %2600 = vmatpush2.bf16.msra.mxu0 0
    %2601 = vmatprep.subr.bf16.mxu0 0
    %2602 = vmatpush2.bf16.msra.mxu0 0
    %2603 = vmatprep.subr.bf16.mxu0 0
    %2604 = vmatpush2.bf16.msra.mxu0 0
    %2605 = vmatprep.subr.bf16.mxu0 0
    %2606 = vmatpush2.bf16.msra.mxu0 0
    %2607 = vmatprep.subr.bf16.mxu0 0
    %2608 = vmatpush2.bf16.msra.mxu0 0
    %2609 = vmatprep.mubr.bf16.mxu0 0
    %2610 = vmatmul.mubr.bf16.gmra.mxu0 %v2551
    %v2611 = vpop.f32.mrf.mxu0
    %v2612 = vadd.f32 %v651, %v2611
    %v2613 = vpop.f32.mrf.mxu0
    %v2614 = vpop.f32.mrf.mxu0
    %v2615 = vadd.f32 %v651, %v2614
    %v2616 = vpop.f32.mrf.mxu0
    %2617 = vmatprep.mubr.bf16.mxu0 0
    %2618 = vmatmul.mubr.bf16.gmra.mxu0 %v2554
    %v2619 = vpop.f32.mrf.mxu0
    %v2620 = vadd.f32 %v651, %v2619
    %v2621 = vpop.f32.mrf.mxu0
    %v2622 = vpop.f32.mrf.mxu0
    %v2623 = vadd.f32 %v651, %v2622
    %v2624 = vpop.f32.mrf.mxu0
    %2625 = vmatprep.mubr.bf16.mxu0 0
    %2626 = vmatmul.mubr.bf16.gmra.mxu0 %v2557
    %v2627 = vpop.f32.mrf.mxu0
    %v2628 = vadd.f32 %v651, %v2627
    %v2629 = vpop.f32.mrf.mxu0
    %v2630 = vpop.f32.mrf.mxu0
    %v2631 = vadd.f32 %v651, %v2630
    %v2632 = vpop.f32.mrf.mxu0
    %2633 = vmatprep.mubr.bf16.mxu0 0
    %2634 = vmatmul.mubr.bf16.gmra.mxu0 %v2560
    %v2635 = vpop.f32.mrf.mxu0
    %v2636 = vadd.f32 %v651, %v2635
    %v2637 = vpop.f32.mrf.mxu0
    %v2638 = vpop.f32.mrf.mxu0
    %v2639 = vadd.f32 %v651, %v2638
    %v2640 = vpop.f32.mrf.mxu0
    %2641 = vmatprep.mubr.bf16.mxu0 0
    %2642 = vmatmul.mubr.bf16.gmra.mxu0 %v2563
    %v2643 = vpop.f32.mrf.mxu0
    %v2644 = vadd.f32 %v651, %v2643
    %v2645 = vpop.f32.mrf.mxu0
    %v2646 = vpop.f32.mrf.mxu0
    %v2647 = vadd.f32 %v651, %v2646
    %v2648 = vpop.f32.mrf.mxu0
    %2649 = vmatprep.mubr.bf16.mxu0 0
    %2650 = vmatmul.mubr.bf16.gmra.mxu0 %v2566
    %v2651 = vpop.f32.mrf.mxu0
    %v2652 = vadd.f32 %v651, %v2651
    %v2653 = vpop.f32.mrf.mxu0
    %v2654 = vpop.f32.mrf.mxu0
    %v2655 = vadd.f32 %v651, %v2654
    %v2656 = vpop.f32.mrf.mxu0
    %2657 = vmatprep.mubr.bf16.mxu0 0
    %2658 = vmatmul.mubr.bf16.gmra.mxu0 %v2569
    %v2659 = vpop.f32.mrf.mxu0
    %v2660 = vadd.f32 %v651, %v2659
    %v2661 = vpop.f32.mrf.mxu0
    %v2662 = vpop.f32.mrf.mxu0
    %v2663 = vadd.f32 %v651, %v2662
    %v2664 = vpop.f32.mrf.mxu0
    %2665 = vmatprep.mubr.bf16.mxu0 0
    %2666 = vmatmul.mubr.bf16.gmra.mxu0 %v2572
    %v2667 = vpop.f32.mrf.mxu0
    %v2668 = vadd.f32 %v651, %v2667
    %v2669 = vpop.f32.mrf.mxu0
    %v2670 = vpop.f32.mrf.mxu0
    %v2671 = vadd.f32 %v651, %v2670
    %v2672 = vpop.f32.mrf.mxu0
    %2673 = vmatprep.mubr.bf16.mxu0 0
    %2674 = vmatmul.mubr.bf16.gmra.mxu0 %v2575
    %v2675 = vpop.f32.mrf.mxu0
    %v2676 = vadd.f32 %v651, %v2675
    %v2677 = vpop.f32.mrf.mxu0
    %v2678 = vpop.f32.mrf.mxu0
    %v2679 = vadd.f32 %v651, %v2678
    %v2680 = vpop.f32.mrf.mxu0
    %2681 = vdwg.mxu0
    %v2682 = vmax.f32 %v2612, 0.0
    %v2683 = vmax.f32 %v2615, 0.0
    %v2684 = vmax.f32 %v2620, 0.0
    %v2685 = vmax.f32 %v2623, 0.0
    %v2686 = vmax.f32 %v2628, 0.0
    %v2687 = vmax.f32 %v2631, 0.0
    %v2688 = vmax.f32 %v2636, 0.0
    %v2689 = vmax.f32 %v2639, 0.0
    %v2690 = vmax.f32 %v2644, 0.0
    %v2691 = vmax.f32 %v2647, 0.0
    %v2692 = vmax.f32 %v2652, 0.0
    %v2693 = vmax.f32 %v2655, 0.0
    %v2694 = vmax.f32 %v2660, 0.0
    %v2695 = vmax.f32 %v2663, 0.0
    %v2696 = vmax.f32 %v2668, 0.0
    %v2697 = vmax.f32 %v2671, 0.0
    %v2698 = vmax.f32 %v2676, 0.0
    %v2699 = vmax.f32 %v2679, 0.0
    %v2710 = vrot.slane %v2690, 6
    %v2711 = vrot.slane %v2691, 6
    %v2712 = vsel %vm884, %v2710, %v2711
    %v2713 = vrot.slane %v2692, 6
    %v2714 = vsel %vm884, %v2711, %v2713
    %v2715 = vrot.slane %v2693, 6
    %v2716 = vsel %vm884, %v2713, %v2715
    %v2717 = vrot.slane %v2694, 6
    %v2718 = vsel %vm884, %v2715, %v2717
    %v2719 = vrot.slane %v2695, 6
    %v2720 = vsel %vm884, %v2717, %v2719
    %v2721 = vrot.slane %v2696, 6
    %v2722 = vsel %vm884, %v2719, %v2721
    %v2723 = vrot.slane %v2697, 6
    %v2724 = vsel %vm884, %v2721, %v2723
    %v2725 = vrot.slane %v2698, 6
    %v2726 = vsel %vm884, %v2723, %v2725
    %v2727 = vrot.slane %v2699, 6
    %v2728 = vsel %vm884, %v2725, %v2727
    %v2738 = vmax.f32 %v2682, %v2712
    %v2739 = vmax.f32 %v2683, %v2714
    %v2740 = vmax.f32 %v2684, %v2716
    %v2741 = vmax.f32 %v2685, %v2718
    %v2742 = vmax.f32 %v2686, %v2720
    %v2743 = vmax.f32 %v2687, %v2722
    %v2744 = vmax.f32 %v2688, %v2724
    %v2745 = vmax.f32 %v2689, %v2726
    %v2746 = vmax.f32 %v2690, %v2728
    %v2756 = vrot.slane %v2738, 1
    %v2757 = vrot.slane %v2739, 1
    %v2758 = vsel %vm931, %v2756, %v2757
    %v2759 = vrot.slane %v2740, 1
    %v2760 = vsel %vm931, %v2757, %v2759
    %v2761 = vrot.slane %v2741, 1
    %v2762 = vsel %vm931, %v2759, %v2761
    %v2763 = vrot.slane %v2742, 1
    %v2764 = vsel %vm931, %v2761, %v2763
    %v2765 = vrot.slane %v2743, 1
    %v2766 = vsel %vm931, %v2763, %v2765
    %v2767 = vrot.slane %v2744, 1
    %v2768 = vsel %vm931, %v2765, %v2767
    %v2769 = vrot.slane %v2745, 1
    %v2770 = vsel %vm931, %v2767, %v2769
    %v2771 = vrot.slane %v2746, 1
    %v2772 = vsel %vm931, %v2769, %v2771
    %v2782 = vmax.f32 %v2738, %v2758
    %v2783 = vmax.f32 %v2739, %v2760
    %v2784 = vmax.f32 %v2740, %v2762
    %v2785 = vmax.f32 %v2741, %v2764
    %v2786 = vmax.f32 %v2742, %v2766
    %v2787 = vmax.f32 %v2743, %v2768
    %v2788 = vmax.f32 %v2744, %v2770
    %v2789 = vmax.f32 %v2745, %v2772
    %v2790 = vmax.f32 %v2746, %v2771
    %2791 = vst.msk [vmem:[#allocation4] sm:$0xff] %vm967, %v2782
    %2792 = vst.msk [vmem:[#allocation4 + $0x8] sm:$0xff] %vm967, %v2783
    %2793 = vst.msk [vmem:[#allocation4 + $0x10] sm:$0xff] %vm967, %v2784
    %2794 = vst.msk [vmem:[#allocation4 + $0x18] sm:$0xff] %vm967, %v2785
    %2795 = vst.msk [vmem:[#allocation4 + $0x20] sm:$0xff] %vm967, %v2786
    %2796 = vst.msk [vmem:[#allocation4 + $0x28] sm:$0xff] %vm967, %v2787
    %2797 = vst.msk [vmem:[#allocation4 + $0x30] sm:$0xff] %vm967, %v2788
    %2798 = vst.msk [vmem:[#allocation4 + $0x38] sm:$0xff] %vm967, %v2789
    %2799 = vst.msk [vmem:[#allocation4 + $0x40] sm:$0xf] %vm976, %v2790
    %v2800 = vld [vmem:[#allocation4] ss:$2 sm:$0xff]
    %v2801 = vld [vmem:[%s979] ss:$2 sm:$0xff]
    %v2802 = vld [vmem:[%s981] ss:$2 sm:$0xff]
    %v2803 = vld [vmem:[%s983] ss:$2 sm:$0xff]
    %v2804 = vld [vmem:[%s985] ss:$2 sm:$0x3]
    %2805 = vst.msk [vmem:[#allocation5] sm:$0xff] %vm967, %v2800
    %2806 = vst.msk [vmem:[#allocation5 + $0x8] sm:$0xff] %vm967, %v2801
    %2807 = vst.msk [vmem:[#allocation5 + $0x10] sm:$0xff] %vm967, %v2802
    %2808 = vst.msk [vmem:[#allocation5 + $0x18] sm:$0xff] %vm967, %v2803
    %2809 = vst.msk [vmem:[#allocation5 + $0x20] sm:$0x3] %vm991, %v2804
    %s2810 = scalar_lea.vmem %s0, 360
    %v2811 = vld [vmem:[%s2810] sm:$0xf]
    %v2812 = vld [vmem:[%s2810 + $0x4] sm:$0xf]
    %v2813 = vld [vmem:[%s2810 + $0x8] sm:$0xf]
    %v2814 = vld [vmem:[%s2810 + $0xc] sm:$0xf]
    %v2815 = vld [vmem:[%s2810 + $0x10] sm:$0xf]
    %v2816 = vld [vmem:[%s2810 + $0x14] sm:$0xf]
    %v2817 = vld [vmem:[%s2810 + $0x18] sm:$0xf]
    %v2818 = vld [vmem:[%s2810 + $0x1c] sm:$0xf]
    %v2819 = vld [vmem:[%s2810 + $0x20] sm:$0xf]
    %v2820 = vld [vmem:[%s2810 + $0x24] sm:$0xf]
    %v2821 = vld [vmem:[%s2810 + $0x28] sm:$0xf]
    %v2822 = vld [vmem:[%s2810 + $0x2c] sm:$0xf]
    %v2823 = vld [vmem:[%s2810 + $0x30] sm:$0xf]
    %v2824 = vld [vmem:[%s2810 + $0x34] sm:$0xf]
    %v2825 = vld [vmem:[%s2810 + $0x38] sm:$0xf]
    %v2826 = vld [vmem:[%s2810 + $0x3c] sm:$0xf]
    %v2827 = vld [vmem:[%s2810 + $0x40] sm:$0xf]
    %v2828 = vld [vmem:[%s2810 + $0x44] sm:$0x3]
    %v2847 = vunpack.c.l.b16 %v2811
    %v2848 = vunpack.c.l.b16 %v2812
    %v2849 = vunpack.c.l.b16 %v2813
    %v2850 = vunpack.c.l.b16 %v2814
    %v2851 = vunpack.c.l.b16 %v2815
    %v2852 = vunpack.c.l.b16 %v2816
    %v2853 = vunpack.c.l.b16 %v2817
    %v2854 = vunpack.c.l.b16 %v2818
    %v2855 = vunpack.c.l.b16 %v2819
    %v2856 = vunpack.c.l.b16 %v2820
    %v2857 = vunpack.c.l.b16 %v2821
    %v2858 = vunpack.c.l.b16 %v2822
    %v2859 = vunpack.c.l.b16 %v2823
    %v2860 = vunpack.c.l.b16 %v2824
    %v2861 = vunpack.c.l.b16 %v2825
    %v2862 = vunpack.c.l.b16 %v2826
    %v2863 = vunpack.c.l.b16 %v2827
    %v2864 = vunpack.c.l.b16 %v2828
    %v2865 = vpack.c.b16 %v2848, %v2847
    %v2866 = vpack.c.b16 %v2850, %v2849
    %v2867 = vpack.c.b16 %v2852, %v2851
    %v2868 = vpack.c.b16 %v2854, %v2853
    %v2869 = vpack.c.b16 %v2856, %v2855
    %v2870 = vpack.c.b16 %v2858, %v2857
    %v2871 = vpack.c.b16 %v2860, %v2859
    %v2872 = vpack.c.b16 %v2862, %v2861
    %v2873 = vpack.c.b16 %v2864, %v2863
    %v2875 = vsel %vm719, %v2865, 0
    %v2878 = vsel %vm719, %v2866, 0
    %v2881 = vsel %vm719, %v2867, 0
    %v2884 = vsel %vm719, %v2868, 0
    %v2887 = vsel %vm719, %v2869, 0
    %v2890 = vsel %vm719, %v2870, 0
    %v2893 = vsel %vm719, %v2871, 0
    %v2896 = vsel %vm719, %v2872, 0
    %v2899 = vsel %vm719, %v2873, 0
    %2901 = vmatprep.subr.bf16.mxu0 0
    %2902 = vmatpush1.bf16.msra.mxu0 0
    %2903 = vmatprep.subr.bf16.mxu0 0
    %2904 = vmatpush1.bf16.msra.mxu0 0
    %2905 = vmatprep.subr.bf16.mxu0 0
    %2906 = vmatpush1.bf16.msra.mxu0 0
    %2907 = vmatprep.subr.bf16.mxu0 0
    %2908 = vmatpush1.bf16.msra.mxu0 0
    %2909 = vmatprep.subr.bf16.mxu0 0
    %2910 = vmatpush1.bf16.msra.mxu0 %v749
    %2911 = vmatprep.subr.bf16.mxu0 0
    %2912 = vmatpush1.bf16.msra.mxu0 %v714
    %2913 = vmatprep.subr.bf16.mxu0 0
    %2914 = vmatpush1.bf16.msra.mxu0 %v713
    %2915 = vmatprep.subr.bf16.mxu0 0
    %2916 = vmatpush1.bf16.msra.mxu0 %v712
    %2917 = vmatprep.subr.bf16.mxu0 0
    %2918 = vmatpush2.bf16.msra.mxu0 0
    %2919 = vmatprep.subr.bf16.mxu0 0
    %2920 = vmatpush2.bf16.msra.mxu0 0
    %2921 = vmatprep.subr.bf16.mxu0 0
    %2922 = vmatpush2.bf16.msra.mxu0 0
    %2923 = vmatprep.subr.bf16.mxu0 0
    %2924 = vmatpush2.bf16.msra.mxu0 0
    %2925 = vmatprep.subr.bf16.mxu0 0
    %2926 = vmatpush2.bf16.msra.mxu0 0
    %2927 = vmatprep.subr.bf16.mxu0 0
    %2928 = vmatpush2.bf16.msra.mxu0 0
    %2929 = vmatprep.subr.bf16.mxu0 0
    %2930 = vmatpush2.bf16.msra.mxu0 0
    %2931 = vmatprep.subr.bf16.mxu0 0
    %2932 = vmatpush2.bf16.msra.mxu0 0
    %2933 = vmatprep.mubr.bf16.mxu0 0
    %2934 = vmatmul.mubr.bf16.gmra.mxu0 %v2875
    %v2935 = vpop.f32.mrf.mxu0
    %v2936 = vadd.f32 %v651, %v2935
    %v2937 = vpop.f32.mrf.mxu0
    %v2938 = vpop.f32.mrf.mxu0
    %v2939 = vadd.f32 %v651, %v2938
    %v2940 = vpop.f32.mrf.mxu0
    %2941 = vmatprep.mubr.bf16.mxu0 0
    %2942 = vmatmul.mubr.bf16.gmra.mxu0 %v2878
    %v2943 = vpop.f32.mrf.mxu0
    %v2944 = vadd.f32 %v651, %v2943
    %v2945 = vpop.f32.mrf.mxu0
    %v2946 = vpop.f32.mrf.mxu0
    %v2947 = vadd.f32 %v651, %v2946
    %v2948 = vpop.f32.mrf.mxu0
    %2949 = vmatprep.mubr.bf16.mxu0 0
    %2950 = vmatmul.mubr.bf16.gmra.mxu0 %v2881
    %v2951 = vpop.f32.mrf.mxu0
    %v2952 = vadd.f32 %v651, %v2951
    %v2953 = vpop.f32.mrf.mxu0
    %v2954 = vpop.f32.mrf.mxu0
    %v2955 = vadd.f32 %v651, %v2954
    %v2956 = vpop.f32.mrf.mxu0
    %2957 = vmatprep.mubr.bf16.mxu0 0
    %2958 = vmatmul.mubr.bf16.gmra.mxu0 %v2884
    %v2959 = vpop.f32.mrf.mxu0
    %v2960 = vadd.f32 %v651, %v2959
    %v2961 = vpop.f32.mrf.mxu0
    %v2962 = vpop.f32.mrf.mxu0
    %v2963 = vadd.f32 %v651, %v2962
    %v2964 = vpop.f32.mrf.mxu0
    %2965 = vmatprep.mubr.bf16.mxu0 0
    %2966 = vmatmul.mubr.bf16.gmra.mxu0 %v2887
    %v2967 = vpop.f32.mrf.mxu0
    %v2968 = vadd.f32 %v651, %v2967
    %v2969 = vpop.f32.mrf.mxu0
    %v2970 = vpop.f32.mrf.mxu0
    %v2971 = vadd.f32 %v651, %v2970
    %v2972 = vpop.f32.mrf.mxu0
    %2973 = vmatprep.mubr.bf16.mxu0 0
    %2974 = vmatmul.mubr.bf16.gmra.mxu0 %v2890
    %v2975 = vpop.f32.mrf.mxu0
    %v2976 = vadd.f32 %v651, %v2975
    %v2977 = vpop.f32.mrf.mxu0
    %v2978 = vpop.f32.mrf.mxu0
    %v2979 = vadd.f32 %v651, %v2978
    %v2980 = vpop.f32.mrf.mxu0
    %2981 = vmatprep.mubr.bf16.mxu0 0
    %2982 = vmatmul.mubr.bf16.gmra.mxu0 %v2893
    %v2983 = vpop.f32.mrf.mxu0
    %v2984 = vadd.f32 %v651, %v2983
    %v2985 = vpop.f32.mrf.mxu0
    %v2986 = vpop.f32.mrf.mxu0
    %v2987 = vadd.f32 %v651, %v2986
    %v2988 = vpop.f32.mrf.mxu0
    %2989 = vmatprep.mubr.bf16.mxu0 0
    %2990 = vmatmul.mubr.bf16.gmra.mxu0 %v2896
    %v2991 = vpop.f32.mrf.mxu0
    %v2992 = vadd.f32 %v651, %v2991
    %v2993 = vpop.f32.mrf.mxu0
    %v2994 = vpop.f32.mrf.mxu0
    %v2995 = vadd.f32 %v651, %v2994
    %v2996 = vpop.f32.mrf.mxu0
    %2997 = vmatprep.mubr.bf16.mxu0 0
    %2998 = vmatmul.mubr.bf16.gmra.mxu0 %v2899
    %v2999 = vpop.f32.mrf.mxu0
    %v3000 = vadd.f32 %v651, %v2999
    %v3001 = vpop.f32.mrf.mxu0
    %v3002 = vpop.f32.mrf.mxu0
    %v3003 = vadd.f32 %v651, %v3002
    %v3004 = vpop.f32.mrf.mxu0
    %3005 = vdwg.mxu0
    %v3006 = vmax.f32 %v2936, 0.0
    %v3007 = vmax.f32 %v2939, 0.0
    %v3008 = vmax.f32 %v2944, 0.0
    %v3009 = vmax.f32 %v2947, 0.0
    %v3010 = vmax.f32 %v2952, 0.0
    %v3011 = vmax.f32 %v2955, 0.0
    %v3012 = vmax.f32 %v2960, 0.0
    %v3013 = vmax.f32 %v2963, 0.0
    %v3014 = vmax.f32 %v2968, 0.0
    %v3015 = vmax.f32 %v2971, 0.0
    %v3016 = vmax.f32 %v2976, 0.0
    %v3017 = vmax.f32 %v2979, 0.0
    %v3018 = vmax.f32 %v2984, 0.0
    %v3019 = vmax.f32 %v2987, 0.0
    %v3020 = vmax.f32 %v2992, 0.0
    %v3021 = vmax.f32 %v2995, 0.0
    %v3022 = vmax.f32 %v3000, 0.0
    %v3023 = vmax.f32 %v3003, 0.0
    %v3034 = vrot.slane %v3014, 6
    %v3035 = vrot.slane %v3015, 6
    %v3036 = vsel %vm884, %v3034, %v3035
    %v3037 = vrot.slane %v3016, 6
    %v3038 = vsel %vm884, %v3035, %v3037
    %v3039 = vrot.slane %v3017, 6
    %v3040 = vsel %vm884, %v3037, %v3039
    %v3041 = vrot.slane %v3018, 6
    %v3042 = vsel %vm884, %v3039, %v3041
    %v3043 = vrot.slane %v3019, 6
    %v3044 = vsel %vm884, %v3041, %v3043
    %v3045 = vrot.slane %v3020, 6
    %v3046 = vsel %vm884, %v3043, %v3045
    %v3047 = vrot.slane %v3021, 6
    %v3048 = vsel %vm884, %v3045, %v3047
    %v3049 = vrot.slane %v3022, 6
    %v3050 = vsel %vm884, %v3047, %v3049
    %v3051 = vrot.slane %v3023, 6
    %v3052 = vsel %vm884, %v3049, %v3051
    %v3062 = vmax.f32 %v3006, %v3036
    %v3063 = vmax.f32 %v3007, %v3038
    %v3064 = vmax.f32 %v3008, %v3040
    %v3065 = vmax.f32 %v3009, %v3042
    %v3066 = vmax.f32 %v3010, %v3044
    %v3067 = vmax.f32 %v3011, %v3046
    %v3068 = vmax.f32 %v3012, %v3048
    %v3069 = vmax.f32 %v3013, %v3050
    %v3070 = vmax.f32 %v3014, %v3052
    %v3080 = vrot.slane %v3062, 1
    %v3081 = vrot.slane %v3063, 1
    %v3082 = vsel %vm931, %v3080, %v3081
    %v3083 = vrot.slane %v3064, 1
    %v3084 = vsel %vm931, %v3081, %v3083
    %v3085 = vrot.slane %v3065, 1
    %v3086 = vsel %vm931, %v3083, %v3085
    %v3087 = vrot.slane %v3066, 1
    %v3088 = vsel %vm931, %v3085, %v3087
    %v3089 = vrot.slane %v3067, 1
    %v3090 = vsel %vm931, %v3087, %v3089
    %v3091 = vrot.slane %v3068, 1
    %v3092 = vsel %vm931, %v3089, %v3091
    %v3093 = vrot.slane %v3069, 1
    %v3094 = vsel %vm931, %v3091, %v3093
    %v3095 = vrot.slane %v3070, 1
    %v3096 = vsel %vm931, %v3093, %v3095
    %v3106 = vmax.f32 %v3062, %v3082
    %v3107 = vmax.f32 %v3063, %v3084
    %v3108 = vmax.f32 %v3064, %v3086
    %v3109 = vmax.f32 %v3065, %v3088
    %v3110 = vmax.f32 %v3066, %v3090
    %v3111 = vmax.f32 %v3067, %v3092
    %v3112 = vmax.f32 %v3068, %v3094
    %v3113 = vmax.f32 %v3069, %v3096
    %v3114 = vmax.f32 %v3070, %v3095
    %3115 = vst.msk [vmem:[#allocation4] sm:$0xff] %vm967, %v3106
    %3116 = vst.msk [vmem:[#allocation4 + $0x8] sm:$0xff] %vm967, %v3107
    %3117 = vst.msk [vmem:[#allocation4 + $0x10] sm:$0xff] %vm967, %v3108
    %3118 = vst.msk [vmem:[#allocation4 + $0x18] sm:$0xff] %vm967, %v3109
    %3119 = vst.msk [vmem:[#allocation4 + $0x20] sm:$0xff] %vm967, %v3110
    %3120 = vst.msk [vmem:[#allocation4 + $0x28] sm:$0xff] %vm967, %v3111
    %3121 = vst.msk [vmem:[#allocation4 + $0x30] sm:$0xff] %vm967, %v3112
    %3122 = vst.msk [vmem:[#allocation4 + $0x38] sm:$0xff] %vm967, %v3113
    %3123 = vst.msk [vmem:[#allocation4 + $0x40] sm:$0xf] %vm976, %v3114
    %v3124 = vld [vmem:[#allocation4] ss:$2 sm:$0xff]
    %v3125 = vld [vmem:[%s979] ss:$2 sm:$0xff]
    %v3126 = vld [vmem:[%s981] ss:$2 sm:$0xff]
    %v3127 = vld [vmem:[%s983] ss:$2 sm:$0xff]
    %v3128 = vld [vmem:[%s985] ss:$2 sm:$0x3]
    %3129 = vst.msk [vmem:[#allocation5 + $0x28] sm:$0xff] %vm967, %v3124
    %3130 = vst.msk [vmem:[#allocation5 + $0x30] sm:$0xff] %vm967, %v3125
    %3131 = vst.msk [vmem:[#allocation5 + $0x38] sm:$0xff] %vm967, %v3126
    %3132 = vst.msk [vmem:[#allocation5 + $0x40] sm:$0xff] %vm967, %v3127
    %3133 = vst.msk [vmem:[#allocation5 + $0x48] sm:$0x3] %vm991, %v3128
    %3139 = vrot.lane.b32.xlu0 %v3124, 32
    %v3140 = vpop.permute.xlu0 %3139
    %3141 = vrot.lane.b32.xlu0 %v3125, 32
    %v3142 = vpop.permute.xlu0 %3141
    %3143 = vrot.lane.b32.xlu0 %v3126, 32
    %v3144 = vpop.permute.xlu0 %3143
    %3145 = vrot.lane.b32.xlu0 %v3127, 32
    %v3146 = vpop.permute.xlu0 %3145
    %3147 = vrot.lane.b32.xlu0 %v3128, 32
    %v3148 = vpop.permute.xlu0 %3147
    %3154 = vst.msk [vmem:[#allocation5] sm:$0xff] %vm1337, %v3140
    %3155 = vst.msk [vmem:[#allocation5 + $0x8] sm:$0xff] %vm1337, %v3142
    %3156 = vst.msk [vmem:[#allocation5 + $0x10] sm:$0xff] %vm1337, %v3144
    %3157 = vst.msk [vmem:[#allocation5 + $0x18] sm:$0xff] %vm1337, %v3146
    %3158 = vst.msk [vmem:[#allocation5 + $0x20] sm:$0x3] %vm1342, %v3148
    %s3159 = scalar_lea.vmem %s0, 432
    %v3160 = vld [vmem:[%s3159] sm:$0xf]
    %v3161 = vld [vmem:[%s3159 + $0x4] sm:$0xf]
    %v3162 = vld [vmem:[%s3159 + $0x8] sm:$0xf]
    %v3163 = vld [vmem:[%s3159 + $0xc] sm:$0xf]
    %v3164 = vld [vmem:[%s3159 + $0x10] sm:$0xf]
    %v3165 = vld [vmem:[%s3159 + $0x14] sm:$0xf]
    %v3166 = vld [vmem:[%s3159 + $0x18] sm:$0xf]
    %v3167 = vld [vmem:[%s3159 + $0x1c] sm:$0xf]
    %v3168 = vld [vmem:[%s3159 + $0x20] sm:$0xf]
    %v3169 = vld [vmem:[%s3159 + $0x24] sm:$0xf]
    %v3170 = vld [vmem:[%s3159 + $0x28] sm:$0xf]
    %v3171 = vld [vmem:[%s3159 + $0x2c] sm:$0xf]
    %v3172 = vld [vmem:[%s3159 + $0x30] sm:$0xf]
    %v3173 = vld [vmem:[%s3159 + $0x34] sm:$0xf]
    %v3174 = vld [vmem:[%s3159 + $0x38] sm:$0xf]
    %v3175 = vld [vmem:[%s3159 + $0x3c] sm:$0xf]
    %v3176 = vld [vmem:[%s3159 + $0x40] sm:$0xf]
    %v3177 = vld [vmem:[%s3159 + $0x44] sm:$0x3]
    %v3196 = vunpack.c.l.b16 %v3160
    %v3197 = vunpack.c.l.b16 %v3161
    %v3198 = vunpack.c.l.b16 %v3162
    %v3199 = vunpack.c.l.b16 %v3163
    %v3200 = vunpack.c.l.b16 %v3164
    %v3201 = vunpack.c.l.b16 %v3165
    %v3202 = vunpack.c.l.b16 %v3166
    %v3203 = vunpack.c.l.b16 %v3167
    %v3204 = vunpack.c.l.b16 %v3168
    %v3205 = vunpack.c.l.b16 %v3169
    %v3206 = vunpack.c.l.b16 %v3170
    %v3207 = vunpack.c.l.b16 %v3171
    %v3208 = vunpack.c.l.b16 %v3172
    %v3209 = vunpack.c.l.b16 %v3173
    %v3210 = vunpack.c.l.b16 %v3174
    %v3211 = vunpack.c.l.b16 %v3175
    %v3212 = vunpack.c.l.b16 %v3176
    %v3213 = vunpack.c.l.b16 %v3177
    %v3214 = vpack.c.b16 %v3197, %v3196
    %v3215 = vpack.c.b16 %v3199, %v3198
    %v3216 = vpack.c.b16 %v3201, %v3200
    %v3217 = vpack.c.b16 %v3203, %v3202
    %v3218 = vpack.c.b16 %v3205, %v3204
    %v3219 = vpack.c.b16 %v3207, %v3206
    %v3220 = vpack.c.b16 %v3209, %v3208
    %v3221 = vpack.c.b16 %v3211, %v3210
    %v3222 = vpack.c.b16 %v3213, %v3212
    %v3224 = vsel %vm719, %v3214, 0
    %v3227 = vsel %vm719, %v3215, 0
    %v3230 = vsel %vm719, %v3216, 0
    %v3233 = vsel %vm719, %v3217, 0
    %v3236 = vsel %vm719, %v3218, 0
    %v3239 = vsel %vm719, %v3219, 0
    %v3242 = vsel %vm719, %v3220, 0
    %v3245 = vsel %vm719, %v3221, 0
    %v3248 = vsel %vm719, %v3222, 0
    %3250 = vmatprep.subr.bf16.mxu0 0
    %3251 = vmatpush1.bf16.msra.mxu0 0
    %3252 = vmatprep.subr.bf16.mxu0 0
    %3253 = vmatpush1.bf16.msra.mxu0 0
    %3254 = vmatprep.subr.bf16.mxu0 0
    %3255 = vmatpush1.bf16.msra.mxu0 0
    %3256 = vmatprep.subr.bf16.mxu0 0
    %3257 = vmatpush1.bf16.msra.mxu0 0
    %3258 = vmatprep.subr.bf16.mxu0 0
    %3259 = vmatpush1.bf16.msra.mxu0 %v749
    %3260 = vmatprep.subr.bf16.mxu0 0
    %3261 = vmatpush1.bf16.msra.mxu0 %v714
    %3262 = vmatprep.subr.bf16.mxu0 0
    %3263 = vmatpush1.bf16.msra.mxu0 %v713
    %3264 = vmatprep.subr.bf16.mxu0 0
    %3265 = vmatpush1.bf16.msra.mxu0 %v712
    %3266 = vmatprep.subr.bf16.mxu0 0
    %3267 = vmatpush2.bf16.msra.mxu0 0
    %3268 = vmatprep.subr.bf16.mxu0 0
    %3269 = vmatpush2.bf16.msra.mxu0 0
    %3270 = vmatprep.subr.bf16.mxu0 0
    %3271 = vmatpush2.bf16.msra.mxu0 0
    %3272 = vmatprep.subr.bf16.mxu0 0
    %3273 = vmatpush2.bf16.msra.mxu0 0
    %3274 = vmatprep.subr.bf16.mxu0 0
    %3275 = vmatpush2.bf16.msra.mxu0 0
    %3276 = vmatprep.subr.bf16.mxu0 0
    %3277 = vmatpush2.bf16.msra.mxu0 0
    %3278 = vmatprep.subr.bf16.mxu0 0
    %3279 = vmatpush2.bf16.msra.mxu0 0
    %3280 = vmatprep.subr.bf16.mxu0 0
    %3281 = vmatpush2.bf16.msra.mxu0 0
    %3282 = vmatprep.mubr.bf16.mxu0 0
    %3283 = vmatmul.mubr.bf16.gmra.mxu0 %v3224
    %v3284 = vpop.f32.mrf.mxu0
    %v3285 = vadd.f32 %v651, %v3284
    %v3286 = vpop.f32.mrf.mxu0
    %v3287 = vpop.f32.mrf.mxu0
    %v3288 = vadd.f32 %v651, %v3287
    %v3289 = vpop.f32.mrf.mxu0
    %3290 = vmatprep.mubr.bf16.mxu0 0
    %3291 = vmatmul.mubr.bf16.gmra.mxu0 %v3227
    %v3292 = vpop.f32.mrf.mxu0
    %v3293 = vadd.f32 %v651, %v3292
    %v3294 = vpop.f32.mrf.mxu0
    %v3295 = vpop.f32.mrf.mxu0
    %v3296 = vadd.f32 %v651, %v3295
    %v3297 = vpop.f32.mrf.mxu0
    %3298 = vmatprep.mubr.bf16.mxu0 0
    %3299 = vmatmul.mubr.bf16.gmra.mxu0 %v3230
    %v3300 = vpop.f32.mrf.mxu0
    %v3301 = vadd.f32 %v651, %v3300
    %v3302 = vpop.f32.mrf.mxu0
    %v3303 = vpop.f32.mrf.mxu0
    %v3304 = vadd.f32 %v651, %v3303
    %v3305 = vpop.f32.mrf.mxu0
    %3306 = vmatprep.mubr.bf16.mxu0 0
    %3307 = vmatmul.mubr.bf16.gmra.mxu0 %v3233
    %v3308 = vpop.f32.mrf.mxu0
    %v3309 = vadd.f32 %v651, %v3308
    %v3310 = vpop.f32.mrf.mxu0
    %v3311 = vpop.f32.mrf.mxu0
    %v3312 = vadd.f32 %v651, %v3311
    %v3313 = vpop.f32.mrf.mxu0
    %3314 = vmatprep.mubr.bf16.mxu0 0
    %3315 = vmatmul.mubr.bf16.gmra.mxu0 %v3236
    %v3316 = vpop.f32.mrf.mxu0
    %v3317 = vadd.f32 %v651, %v3316
    %v3318 = vpop.f32.mrf.mxu0
    %v3319 = vpop.f32.mrf.mxu0
    %v3320 = vadd.f32 %v651, %v3319
    %v3321 = vpop.f32.mrf.mxu0
    %3322 = vmatprep.mubr.bf16.mxu0 0
    %3323 = vmatmul.mubr.bf16.gmra.mxu0 %v3239
    %v3324 = vpop.f32.mrf.mxu0
    %v3325 = vadd.f32 %v651, %v3324
    %v3326 = vpop.f32.mrf.mxu0
    %v3327 = vpop.f32.mrf.mxu0
    %v3328 = vadd.f32 %v651, %v3327
    %v3329 = vpop.f32.mrf.mxu0
    %3330 = vmatprep.mubr.bf16.mxu0 0
    %3331 = vmatmul.mubr.bf16.gmra.mxu0 %v3242
    %v3332 = vpop.f32.mrf.mxu0
    %v3333 = vadd.f32 %v651, %v3332
    %v3334 = vpop.f32.mrf.mxu0
    %v3335 = vpop.f32.mrf.mxu0
    %v3336 = vadd.f32 %v651, %v3335
    %v3337 = vpop.f32.mrf.mxu0
    %3338 = vmatprep.mubr.bf16.mxu0 0
    %3339 = vmatmul.mubr.bf16.gmra.mxu0 %v3245
    %v3340 = vpop.f32.mrf.mxu0
    %v3341 = vadd.f32 %v651, %v3340
    %v3342 = vpop.f32.mrf.mxu0
    %v3343 = vpop.f32.mrf.mxu0
    %v3344 = vadd.f32 %v651, %v3343
    %v3345 = vpop.f32.mrf.mxu0
    %3346 = vmatprep.mubr.bf16.mxu0 0
    %3347 = vmatmul.mubr.bf16.gmra.mxu0 %v3248
    %v3348 = vpop.f32.mrf.mxu0
    %v3349 = vadd.f32 %v651, %v3348
    %v3350 = vpop.f32.mrf.mxu0
    %v3351 = vpop.f32.mrf.mxu0
    %v3352 = vadd.f32 %v651, %v3351
    %v3353 = vpop.f32.mrf.mxu0
    %3354 = vdwg.mxu0
    %v3355 = vmax.f32 %v3285, 0.0
    %v3356 = vmax.f32 %v3288, 0.0
    %v3357 = vmax.f32 %v3293, 0.0
    %v3358 = vmax.f32 %v3296, 0.0
    %v3359 = vmax.f32 %v3301, 0.0
    %v3360 = vmax.f32 %v3304, 0.0
    %v3361 = vmax.f32 %v3309, 0.0
    %v3362 = vmax.f32 %v3312, 0.0
    %v3363 = vmax.f32 %v3317, 0.0
    %v3364 = vmax.f32 %v3320, 0.0
    %v3365 = vmax.f32 %v3325, 0.0
    %v3366 = vmax.f32 %v3328, 0.0
    %v3367 = vmax.f32 %v3333, 0.0
    %v3368 = vmax.f32 %v3336, 0.0
    %v3369 = vmax.f32 %v3341, 0.0
    %v3370 = vmax.f32 %v3344, 0.0
    %v3371 = vmax.f32 %v3349, 0.0
    %v3372 = vmax.f32 %v3352, 0.0
    %v3383 = vrot.slane %v3363, 6
    %v3384 = vrot.slane %v3364, 6
    %v3385 = vsel %vm884, %v3383, %v3384
    %v3386 = vrot.slane %v3365, 6
    %v3387 = vsel %vm884, %v3384, %v3386
    %v3388 = vrot.slane %v3366, 6
    %v3389 = vsel %vm884, %v3386, %v3388
    %v3390 = vrot.slane %v3367, 6
    %v3391 = vsel %vm884, %v3388, %v3390
    %v3392 = vrot.slane %v3368, 6
    %v3393 = vsel %vm884, %v3390, %v3392
    %v3394 = vrot.slane %v3369, 6
    %v3395 = vsel %vm884, %v3392, %v3394
    %v3396 = vrot.slane %v3370, 6
    %v3397 = vsel %vm884, %v3394, %v3396
    %v3398 = vrot.slane %v3371, 6
    %v3399 = vsel %vm884, %v3396, %v3398
    %v3400 = vrot.slane %v3372, 6
    %v3401 = vsel %vm884, %v3398, %v3400
    %v3411 = vmax.f32 %v3355, %v3385
    %v3412 = vmax.f32 %v3356, %v3387
    %v3413 = vmax.f32 %v3357, %v3389
    %v3414 = vmax.f32 %v3358, %v3391
    %v3415 = vmax.f32 %v3359, %v3393
    %v3416 = vmax.f32 %v3360, %v3395
    %v3417 = vmax.f32 %v3361, %v3397
    %v3418 = vmax.f32 %v3362, %v3399
    %v3419 = vmax.f32 %v3363, %v3401
    %v3429 = vrot.slane %v3411, 1
    %v3430 = vrot.slane %v3412, 1
    %v3431 = vsel %vm931, %v3429, %v3430
    %v3432 = vrot.slane %v3413, 1
    %v3433 = vsel %vm931, %v3430, %v3432
    %v3434 = vrot.slane %v3414, 1
    %v3435 = vsel %vm931, %v3432, %v3434
    %v3436 = vrot.slane %v3415, 1
    %v3437 = vsel %vm931, %v3434, %v3436
    %v3438 = vrot.slane %v3416, 1
    %v3439 = vsel %vm931, %v3436, %v3438
    %v3440 = vrot.slane %v3417, 1
    %v3441 = vsel %vm931, %v3438, %v3440
    %v3442 = vrot.slane %v3418, 1
    %v3443 = vsel %vm931, %v3440, %v3442
    %v3444 = vrot.slane %v3419, 1
    %v3445 = vsel %vm931, %v3442, %v3444
    %v3455 = vmax.f32 %v3411, %v3431
    %v3456 = vmax.f32 %v3412, %v3433
    %v3457 = vmax.f32 %v3413, %v3435
    %v3458 = vmax.f32 %v3414, %v3437
    %v3459 = vmax.f32 %v3415, %v3439
    %v3460 = vmax.f32 %v3416, %v3441
    %v3461 = vmax.f32 %v3417, %v3443
    %v3462 = vmax.f32 %v3418, %v3445
    %v3463 = vmax.f32 %v3419, %v3444
    %3464 = vst.msk [vmem:[#allocation4] sm:$0xff] %vm967, %v3455
    %3465 = vst.msk [vmem:[#allocation4 + $0x8] sm:$0xff] %vm967, %v3456
    %3466 = vst.msk [vmem:[#allocation4 + $0x10] sm:$0xff] %vm967, %v3457
    %3467 = vst.msk [vmem:[#allocation4 + $0x18] sm:$0xff] %vm967, %v3458
    %3468 = vst.msk [vmem:[#allocation4 + $0x20] sm:$0xff] %vm967, %v3459
    %3469 = vst.msk [vmem:[#allocation4 + $0x28] sm:$0xff] %vm967, %v3460
    %3470 = vst.msk [vmem:[#allocation4 + $0x30] sm:$0xff] %vm967, %v3461
    %3471 = vst.msk [vmem:[#allocation4 + $0x38] sm:$0xff] %vm967, %v3462
    %3472 = vst.msk [vmem:[#allocation4 + $0x40] sm:$0xf] %vm976, %v3463
    %v3473 = vld [vmem:[#allocation4] ss:$2 sm:$0xff]
    %v3474 = vld [vmem:[%s979] ss:$2 sm:$0xff]
    %v3475 = vld [vmem:[%s981] ss:$2 sm:$0xff]
    %v3476 = vld [vmem:[%s983] ss:$2 sm:$0xff]
    %v3477 = vld [vmem:[%s985] ss:$2 sm:$0x3]
    %3483 = vrot.lane.b32.xlu0 %v3473, 32
    %v3484 = vpop.permute.xlu0 %3483
    %3485 = vrot.lane.b32.xlu0 %v3474, 32
    %v3486 = vpop.permute.xlu0 %3485
    %3487 = vrot.lane.b32.xlu0 %v3475, 32
    %v3488 = vpop.permute.xlu0 %3487
    %3489 = vrot.lane.b32.xlu0 %v3476, 32
    %v3490 = vpop.permute.xlu0 %3489
    %3491 = vrot.lane.b32.xlu0 %v3477, 32
    %v3492 = vpop.permute.xlu0 %3491
    %3498 = vst.msk [vmem:[#allocation5 + $0x28] sm:$0xff] %vm1337, %v3484
    %3499 = vst.msk [vmem:[#allocation5 + $0x30] sm:$0xff] %vm1337, %v3486
    %3500 = vst.msk [vmem:[#allocation5 + $0x38] sm:$0xff] %vm1337, %v3488
    %3501 = vst.msk [vmem:[#allocation5 + $0x40] sm:$0xff] %vm1337, %v3490
    %3502 = vst.msk [vmem:[#allocation5 + $0x48] sm:$0x3] %vm1342, %v3492
    %3503 = vrot.lane.b32.xlu0 %v3473, 64
    %v3504 = vpop.permute.xlu0 %3503
    %3505 = vrot.lane.b32.xlu0 %v3474, 64
    %v3506 = vpop.permute.xlu0 %3505
    %3507 = vrot.lane.b32.xlu0 %v3475, 64
    %v3508 = vpop.permute.xlu0 %3507
    %3509 = vrot.lane.b32.xlu0 %v3476, 64
    %v3510 = vpop.permute.xlu0 %3509
    %3511 = vrot.lane.b32.xlu0 %v3477, 64
    %v3512 = vpop.permute.xlu0 %3511
    %3518 = vst.msk [vmem:[#allocation5] sm:$0xff] %vm1703, %v3504
    %3519 = vst.msk [vmem:[#allocation5 + $0x8] sm:$0xff] %vm1703, %v3506
    %3520 = vst.msk [vmem:[#allocation5 + $0x10] sm:$0xff] %vm1703, %v3508
    %3521 = vst.msk [vmem:[#allocation5 + $0x18] sm:$0xff] %vm1703, %v3510
    %3522 = vst.msk [vmem:[#allocation5 + $0x20] sm:$0x3] %vm1708, %v3512
    %s3523 = scalar_lea.vmem %s0, 504
    %v3524 = vld [vmem:[%s3523] sm:$0xf]
    %v3525 = vld [vmem:[%s3523 + $0x4] sm:$0xf]
    %v3526 = vld [vmem:[%s3523 + $0x8] sm:$0xf]
    %v3527 = vld [vmem:[%s3523 + $0xc] sm:$0xf]
    %v3528 = vld [vmem:[%s3523 + $0x10] sm:$0xf]
    %v3529 = vld [vmem:[%s3523 + $0x14] sm:$0xf]
    %v3530 = vld [vmem:[%s3523 + $0x18] sm:$0xf]
    %v3531 = vld [vmem:[%s3523 + $0x1c] sm:$0xf]
    %v3532 = vld [vmem:[%s3523 + $0x20] sm:$0xf]
    %v3533 = vld [vmem:[%s3523 + $0x24] sm:$0xf]
    %v3534 = vld [vmem:[%s3523 + $0x28] sm:$0xf]
    %v3535 = vld [vmem:[%s3523 + $0x2c] sm:$0xf]
    %v3536 = vld [vmem:[%s3523 + $0x30] sm:$0xf]
    %v3537 = vld [vmem:[%s3523 + $0x34] sm:$0xf]
    %v3538 = vld [vmem:[%s3523 + $0x38] sm:$0xf]
    %v3539 = vld [vmem:[%s3523 + $0x3c] sm:$0xf]
    %v3540 = vld [vmem:[%s3523 + $0x40] sm:$0xf]
    %v3541 = vld [vmem:[%s3523 + $0x44] sm:$0x3]
    %v3560 = vunpack.c.l.b16 %v3524
    %v3561 = vunpack.c.l.b16 %v3525
    %v3562 = vunpack.c.l.b16 %v3526
    %v3563 = vunpack.c.l.b16 %v3527
    %v3564 = vunpack.c.l.b16 %v3528
    %v3565 = vunpack.c.l.b16 %v3529
    %v3566 = vunpack.c.l.b16 %v3530
    %v3567 = vunpack.c.l.b16 %v3531
    %v3568 = vunpack.c.l.b16 %v3532
    %v3569 = vunpack.c.l.b16 %v3533
    %v3570 = vunpack.c.l.b16 %v3534
    %v3571 = vunpack.c.l.b16 %v3535
    %v3572 = vunpack.c.l.b16 %v3536
    %v3573 = vunpack.c.l.b16 %v3537
    %v3574 = vunpack.c.l.b16 %v3538
    %v3575 = vunpack.c.l.b16 %v3539
    %v3576 = vunpack.c.l.b16 %v3540
    %v3577 = vunpack.c.l.b16 %v3541
    %v3578 = vpack.c.b16 %v3561, %v3560
    %v3579 = vpack.c.b16 %v3563, %v3562
    %v3580 = vpack.c.b16 %v3565, %v3564
    %v3581 = vpack.c.b16 %v3567, %v3566
    %v3582 = vpack.c.b16 %v3569, %v3568
    %v3583 = vpack.c.b16 %v3571, %v3570
    %v3584 = vpack.c.b16 %v3573, %v3572
    %v3585 = vpack.c.b16 %v3575, %v3574
    %v3586 = vpack.c.b16 %v3577, %v3576
    %v3588 = vsel %vm719, %v3578, 0
    %v3591 = vsel %vm719, %v3579, 0
    %v3594 = vsel %vm719, %v3580, 0
    %v3597 = vsel %vm719, %v3581, 0
    %v3600 = vsel %vm719, %v3582, 0
    %v3603 = vsel %vm719, %v3583, 0
    %v3606 = vsel %vm719, %v3584, 0
    %v3609 = vsel %vm719, %v3585, 0
    %v3612 = vsel %vm719, %v3586, 0
    %3614 = vmatprep.subr.bf16.mxu0 0
    %3615 = vmatpush1.bf16.msra.mxu0 0
    %3616 = vmatprep.subr.bf16.mxu0 0
    %3617 = vmatpush1.bf16.msra.mxu0 0
    %3618 = vmatprep.subr.bf16.mxu0 0
    %3619 = vmatpush1.bf16.msra.mxu0 0
    %3620 = vmatprep.subr.bf16.mxu0 0
    %3621 = vmatpush1.bf16.msra.mxu0 0
    %3622 = vmatprep.subr.bf16.mxu0 0
    %3623 = vmatpush1.bf16.msra.mxu0 %v749
    %3624 = vmatprep.subr.bf16.mxu0 0
    %3625 = vmatpush1.bf16.msra.mxu0 %v714
    %3626 = vmatprep.subr.bf16.mxu0 0
    %3627 = vmatpush1.bf16.msra.mxu0 %v713
    %3628 = vmatprep.subr.bf16.mxu0 0
    %3629 = vmatpush1.bf16.msra.mxu0 %v712
    %3630 = vmatprep.subr.bf16.mxu0 0
    %3631 = vmatpush2.bf16.msra.mxu0 0
    %3632 = vmatprep.subr.bf16.mxu0 0
    %3633 = vmatpush2.bf16.msra.mxu0 0
    %3634 = vmatprep.subr.bf16.mxu0 0
    %3635 = vmatpush2.bf16.msra.mxu0 0
    %3636 = vmatprep.subr.bf16.mxu0 0
    %3637 = vmatpush2.bf16.msra.mxu0 0
    %3638 = vmatprep.subr.bf16.mxu0 0
    %3639 = vmatpush2.bf16.msra.mxu0 0
    %3640 = vmatprep.subr.bf16.mxu0 0
    %3641 = vmatpush2.bf16.msra.mxu0 0
    %3642 = vmatprep.subr.bf16.mxu0 0
    %3643 = vmatpush2.bf16.msra.mxu0 0
    %3644 = vmatprep.subr.bf16.mxu0 0
    %3645 = vmatpush2.bf16.msra.mxu0 0
    %3646 = vmatprep.mubr.bf16.mxu0 0
    %3647 = vmatmul.mubr.bf16.gmra.mxu0 %v3588
    %v3648 = vpop.f32.mrf.mxu0
    %v3649 = vadd.f32 %v651, %v3648
    %v3650 = vpop.f32.mrf.mxu0
    %v3651 = vpop.f32.mrf.mxu0
    %v3652 = vadd.f32 %v651, %v3651
    %v3653 = vpop.f32.mrf.mxu0
    %3654 = vmatprep.mubr.bf16.mxu0 0
    %3655 = vmatmul.mubr.bf16.gmra.mxu0 %v3591
    %v3656 = vpop.f32.mrf.mxu0
    %v3657 = vadd.f32 %v651, %v3656
    %v3658 = vpop.f32.mrf.mxu0
    %v3659 = vpop.f32.mrf.mxu0
    %v3660 = vadd.f32 %v651, %v3659
    %v3661 = vpop.f32.mrf.mxu0
    %3662 = vmatprep.mubr.bf16.mxu0 0
    %3663 = vmatmul.mubr.bf16.gmra.mxu0 %v3594
    %v3664 = vpop.f32.mrf.mxu0
    %v3665 = vadd.f32 %v651, %v3664
    %v3666 = vpop.f32.mrf.mxu0
    %v3667 = vpop.f32.mrf.mxu0
    %v3668 = vadd.f32 %v651, %v3667
    %v3669 = vpop.f32.mrf.mxu0
    %3670 = vmatprep.mubr.bf16.mxu0 0
    %3671 = vmatmul.mubr.bf16.gmra.mxu0 %v3597
    %v3672 = vpop.f32.mrf.mxu0
    %v3673 = vadd.f32 %v651, %v3672
    %v3674 = vpop.f32.mrf.mxu0
    %v3675 = vpop.f32.mrf.mxu0
    %v3676 = vadd.f32 %v651, %v3675
    %v3677 = vpop.f32.mrf.mxu0
    %3678 = vmatprep.mubr.bf16.mxu0 0
    %3679 = vmatmul.mubr.bf16.gmra.mxu0 %v3600
    %v3680 = vpop.f32.mrf.mxu0
    %v3681 = vadd.f32 %v651, %v3680
    %v3682 = vpop.f32.mrf.mxu0
    %v3683 = vpop.f32.mrf.mxu0
    %v3684 = vadd.f32 %v651, %v3683
    %v3685 = vpop.f32.mrf.mxu0
    %3686 = vmatprep.mubr.bf16.mxu0 0
    %3687 = vmatmul.mubr.bf16.gmra.mxu0 %v3603
    %v3688 = vpop.f32.mrf.mxu0
    %v3689 = vadd.f32 %v651, %v3688
    %v3690 = vpop.f32.mrf.mxu0
    %v3691 = vpop.f32.mrf.mxu0
    %v3692 = vadd.f32 %v651, %v3691
    %v3693 = vpop.f32.mrf.mxu0
    %3694 = vmatprep.mubr.bf16.mxu0 0
    %3695 = vmatmul.mubr.bf16.gmra.mxu0 %v3606
    %v3696 = vpop.f32.mrf.mxu0
    %v3697 = vadd.f32 %v651, %v3696
    %v3698 = vpop.f32.mrf.mxu0
    %v3699 = vpop.f32.mrf.mxu0
    %v3700 = vadd.f32 %v651, %v3699
    %v3701 = vpop.f32.mrf.mxu0
    %3702 = vmatprep.mubr.bf16.mxu0 0
    %3703 = vmatmul.mubr.bf16.gmra.mxu0 %v3609
    %v3704 = vpop.f32.mrf.mxu0
    %v3705 = vadd.f32 %v651, %v3704
    %v3706 = vpop.f32.mrf.mxu0
    %v3707 = vpop.f32.mrf.mxu0
    %v3708 = vadd.f32 %v651, %v3707
    %v3709 = vpop.f32.mrf.mxu0
    %3710 = vmatprep.mubr.bf16.mxu0 0
    %3711 = vmatmul.mubr.bf16.gmra.mxu0 %v3612
    %v3712 = vpop.f32.mrf.mxu0
    %v3713 = vadd.f32 %v651, %v3712
    %v3714 = vpop.f32.mrf.mxu0
    %v3715 = vpop.f32.mrf.mxu0
    %v3716 = vadd.f32 %v651, %v3715
    %v3717 = vpop.f32.mrf.mxu0
    %3718 = vdwg.mxu0
    %v3719 = vmax.f32 %v3649, 0.0
    %v3720 = vmax.f32 %v3652, 0.0
    %v3721 = vmax.f32 %v3657, 0.0
    %v3722 = vmax.f32 %v3660, 0.0
    %v3723 = vmax.f32 %v3665, 0.0
    %v3724 = vmax.f32 %v3668, 0.0
    %v3725 = vmax.f32 %v3673, 0.0
    %v3726 = vmax.f32 %v3676, 0.0
    %v3727 = vmax.f32 %v3681, 0.0
    %v3728 = vmax.f32 %v3684, 0.0
    %v3729 = vmax.f32 %v3689, 0.0
    %v3730 = vmax.f32 %v3692, 0.0
    %v3731 = vmax.f32 %v3697, 0.0
    %v3732 = vmax.f32 %v3700, 0.0
    %v3733 = vmax.f32 %v3705, 0.0
    %v3734 = vmax.f32 %v3708, 0.0
    %v3735 = vmax.f32 %v3713, 0.0
    %v3736 = vmax.f32 %v3716, 0.0
    %v3747 = vrot.slane %v3727, 6
    %v3748 = vrot.slane %v3728, 6
    %v3749 = vsel %vm884, %v3747, %v3748
    %v3750 = vrot.slane %v3729, 6
    %v3751 = vsel %vm884, %v3748, %v3750
    %v3752 = vrot.slane %v3730, 6
    %v3753 = vsel %vm884, %v3750, %v3752
    %v3754 = vrot.slane %v3731, 6
    %v3755 = vsel %vm884, %v3752, %v3754
    %v3756 = vrot.slane %v3732, 6
    %v3757 = vsel %vm884, %v3754, %v3756
    %v3758 = vrot.slane %v3733, 6
    %v3759 = vsel %vm884, %v3756, %v3758
    %v3760 = vrot.slane %v3734, 6
    %v3761 = vsel %vm884, %v3758, %v3760
    %v3762 = vrot.slane %v3735, 6
    %v3763 = vsel %vm884, %v3760, %v3762
    %v3764 = vrot.slane %v3736, 6
    %v3765 = vsel %vm884, %v3762, %v3764
    %v3775 = vmax.f32 %v3719, %v3749
    %v3776 = vmax.f32 %v3720, %v3751
    %v3777 = vmax.f32 %v3721, %v3753
    %v3778 = vmax.f32 %v3722, %v3755
    %v3779 = vmax.f32 %v3723, %v3757
    %v3780 = vmax.f32 %v3724, %v3759
    %v3781 = vmax.f32 %v3725, %v3761
    %v3782 = vmax.f32 %v3726, %v3763
    %v3783 = vmax.f32 %v3727, %v3765
    %v3793 = vrot.slane %v3775, 1
    %v3794 = vrot.slane %v3776, 1
    %v3795 = vsel %vm931, %v3793, %v3794
    %v3796 = vrot.slane %v3777, 1
    %v3797 = vsel %vm931, %v3794, %v3796
    %v3798 = vrot.slane %v3778, 1
    %v3799 = vsel %vm931, %v3796, %v3798
    %v3800 = vrot.slane %v3779, 1
    %v3801 = vsel %vm931, %v3798, %v3800
    %v3802 = vrot.slane %v3780, 1
    %v3803 = vsel %vm931, %v3800, %v3802
    %v3804 = vrot.slane %v3781, 1
    %v3805 = vsel %vm931, %v3802, %v3804
    %v3806 = vrot.slane %v3782, 1
    %v3807 = vsel %vm931, %v3804, %v3806
    %v3808 = vrot.slane %v3783, 1
    %v3809 = vsel %vm931, %v3806, %v3808
    %v3819 = vmax.f32 %v3775, %v3795
    %v3820 = vmax.f32 %v3776, %v3797
    %v3821 = vmax.f32 %v3777, %v3799
    %v3822 = vmax.f32 %v3778, %v3801
    %v3823 = vmax.f32 %v3779, %v3803
    %v3824 = vmax.f32 %v3780, %v3805
    %v3825 = vmax.f32 %v3781, %v3807
    %v3826 = vmax.f32 %v3782, %v3809
    %v3827 = vmax.f32 %v3783, %v3808
    %3828 = vst.msk [vmem:[#allocation4] sm:$0xff] %vm967, %v3819
    %3829 = vst.msk [vmem:[#allocation4 + $0x8] sm:$0xff] %vm967, %v3820
    %3830 = vst.msk [vmem:[#allocation4 + $0x10] sm:$0xff] %vm967, %v3821
    %3831 = vst.msk [vmem:[#allocation4 + $0x18] sm:$0xff] %vm967, %v3822
    %3832 = vst.msk [vmem:[#allocation4 + $0x20] sm:$0xff] %vm967, %v3823
    %3833 = vst.msk [vmem:[#allocation4 + $0x28] sm:$0xff] %vm967, %v3824
    %3834 = vst.msk [vmem:[#allocation4 + $0x30] sm:$0xff] %vm967, %v3825
    %3835 = vst.msk [vmem:[#allocation4 + $0x38] sm:$0xff] %vm967, %v3826
    %3836 = vst.msk [vmem:[#allocation4 + $0x40] sm:$0xf] %vm976, %v3827
    %v3837 = vld [vmem:[#allocation4] ss:$2 sm:$0xff]
    %v3838 = vld [vmem:[%s979] ss:$2 sm:$0xff]
    %v3839 = vld [vmem:[%s981] ss:$2 sm:$0xff]
    %v3840 = vld [vmem:[%s983] ss:$2 sm:$0xff]
    %v3841 = vld [vmem:[%s985] ss:$2 sm:$0x3]
    %3847 = vrot.lane.b32.xlu0 %v3837, 64
    %v3848 = vpop.permute.xlu0 %3847
    %3849 = vrot.lane.b32.xlu0 %v3838, 64
    %v3850 = vpop.permute.xlu0 %3849
    %3851 = vrot.lane.b32.xlu0 %v3839, 64
    %v3852 = vpop.permute.xlu0 %3851
    %3853 = vrot.lane.b32.xlu0 %v3840, 64
    %v3854 = vpop.permute.xlu0 %3853
    %3855 = vrot.lane.b32.xlu0 %v3841, 64
    %v3856 = vpop.permute.xlu0 %3855
    %3862 = vst.msk [vmem:[#allocation5 + $0x28] sm:$0xff] %vm1703, %v3848
    %3863 = vst.msk [vmem:[#allocation5 + $0x30] sm:$0xff] %vm1703, %v3850
    %3864 = vst.msk [vmem:[#allocation5 + $0x38] sm:$0xff] %vm1703, %v3852
    %3865 = vst.msk [vmem:[#allocation5 + $0x40] sm:$0xff] %vm1703, %v3854
    %3866 = vst.msk [vmem:[#allocation5 + $0x48] sm:$0x3] %vm1708, %v3856
    %v3867 = vld [vmem:[#allocation5] sm:$0xff]
    %v3868 = vld [vmem:[#allocation5 + $0x8] sm:$0xff]
    %v3869 = vld [vmem:[#allocation5 + $0x10] sm:$0xff]
    %v3870 = vld [vmem:[#allocation5 + $0x18] sm:$0xff]
    %v3871 = vld [vmem:[#allocation5 + $0x20] sm:$0xff]
    %v3872 = vld [vmem:[#allocation5 + $0x28] sm:$0xff]
    %v3873 = vld [vmem:[#allocation5 + $0x30] sm:$0xff]
    %v3874 = vld [vmem:[#allocation5 + $0x38] sm:$0xff]
    %v3875 = vld [vmem:[#allocation5 + $0x40] sm:$0xff]
    %v3876 = vld [vmem:[#allocation5 + $0x48] sm:$0xff]
    %v3877 = vpack.c.bf16 %v3868, %v3867
    %v3878 = vpack.c.bf16 %v3870, %v3869
    %v3879 = vpack.c.bf16 %v3872, %v3871
    %v3880 = vpack.c.bf16 %v3874, %v3873
    %v3881 = vpack.c.bf16 %v3876, %v3875
    %v3883 = vsel %vm618, %v3877, 0
    %v3886 = vsel %vm618, %v3878, 0
    %v3889 = vsel %vm618, %v3879, 0
    %v3892 = vsel %vm618, %v3880, 0
    %v3895 = vsel %vm618, %v3881, 0
    %3897 = vmatprep.subr.bf16.mxu0 0
    %3898 = vmatpush1.bf16.msra.mxu0 0
    %3899 = vmatprep.subr.bf16.mxu0 0
    %3900 = vmatpush1.bf16.msra.mxu0 0
    %3901 = vmatprep.subr.bf16.mxu0 %v2116
    %3902 = vmatpush1.bf16.msra.mxu0 %v2115
    %3903 = vmatprep.subr.bf16.mxu0 %v2114
    %3904 = vmatpush1.bf16.msra.mxu0 %v2113
    %3905 = vmatprep.subr.bf16.mxu0 %v2112
    %3906 = vmatpush1.bf16.msra.mxu0 %v2111
    %3907 = vmatprep.subr.bf16.mxu0 %v2110
    %3908 = vmatpush1.bf16.msra.mxu0 %v2109
    %3909 = vmatprep.subr.bf16.mxu0 %v2108
    %3910 = vmatpush1.bf16.msra.mxu0 %v2107
    %3911 = vmatprep.subr.bf16.mxu0 %v2106
    %3912 = vmatpush1.bf16.msra.mxu0 %v2105
    %3913 = vmatprep.subr.bf16.mxu0 0
    %3914 = vmatpush2.bf16.msra.mxu0 0
    %3915 = vmatprep.subr.bf16.mxu0 0
    %3916 = vmatpush2.bf16.msra.mxu0 0
    %3917 = vmatprep.subr.bf16.mxu0 0
    %3918 = vmatpush2.bf16.msra.mxu0 0
    %3919 = vmatprep.subr.bf16.mxu0 0
    %3920 = vmatpush2.bf16.msra.mxu0 0
    %3921 = vmatprep.subr.bf16.mxu0 0
    %3922 = vmatpush2.bf16.msra.mxu0 0
    %3923 = vmatprep.subr.bf16.mxu0 0
    %3924 = vmatpush2.bf16.msra.mxu0 0
    %3925 = vmatprep.subr.bf16.mxu0 0
    %3926 = vmatpush2.bf16.msra.mxu0 0
    %3927 = vmatprep.subr.bf16.mxu0 0
    %3928 = vmatpush2.bf16.msra.mxu0 0
    %3929 = vmatprep.mubr.bf16.mxu0 0
    %3930 = vmatmul.mubr.bf16.gmra.mxu0 %v3883
    %v3931 = vpop.f32.mrf.mxu0
    %v3932 = vadd.f32 0.0, %v3931
    %v3933 = vpop.f32.mrf.mxu0
    %v3934 = vadd.f32 0.0, %v3933
    %v3935 = vpop.f32.mrf.mxu0
    %v3936 = vadd.f32 0.0, %v3935
    %v3937 = vpop.f32.mrf.mxu0
    %v3938 = vadd.f32 0.0, %v3937
    %3939 = vmatprep.mubr.bf16.mxu0 0
    %3940 = vmatmul.mubr.bf16.gmra.mxu0 %v3886
    %v3941 = vpop.f32.mrf.mxu0
    %v3942 = vadd.f32 0.0, %v3941
    %v3943 = vpop.f32.mrf.mxu0
    %v3944 = vadd.f32 0.0, %v3943
    %v3945 = vpop.f32.mrf.mxu0
    %v3946 = vadd.f32 0.0, %v3945
    %v3947 = vpop.f32.mrf.mxu0
    %v3948 = vadd.f32 0.0, %v3947
    %3949 = vmatprep.mubr.bf16.mxu0 0
    %3950 = vmatmul.mubr.bf16.gmra.mxu0 %v3889
    %v3951 = vpop.f32.mrf.mxu0
    %v3952 = vadd.f32 0.0, %v3951
    %v3953 = vpop.f32.mrf.mxu0
    %v3954 = vadd.f32 0.0, %v3953
    %v3955 = vpop.f32.mrf.mxu0
    %v3956 = vadd.f32 0.0, %v3955
    %v3957 = vpop.f32.mrf.mxu0
    %v3958 = vadd.f32 0.0, %v3957
    %3959 = vmatprep.mubr.bf16.mxu0 0
    %3960 = vmatmul.mubr.bf16.gmra.mxu0 %v3892
    %v3961 = vpop.f32.mrf.mxu0
    %v3962 = vadd.f32 0.0, %v3961
    %v3963 = vpop.f32.mrf.mxu0
    %v3964 = vadd.f32 0.0, %v3963
    %v3965 = vpop.f32.mrf.mxu0
    %v3966 = vadd.f32 0.0, %v3965
    %v3967 = vpop.f32.mrf.mxu0
    %v3968 = vadd.f32 0.0, %v3967
    %3969 = vmatprep.mubr.bf16.mxu0 0
    %3970 = vmatmul.mubr.bf16.gmra.mxu0 %v3895
    %v3971 = vpop.f32.mrf.mxu0
    %v3972 = vadd.f32 0.0, %v3971
    %v3973 = vpop.f32.mrf.mxu0
    %v3974 = vadd.f32 0.0, %v3973
    %v3975 = vpop.f32.mrf.mxu0
    %v3976 = vadd.f32 0.0, %v3975
    %v3977 = vpop.f32.mrf.mxu0
    %v3978 = vadd.f32 0.0, %v3977
    %3979 = vdwg.mxu0
    %v3990 = vrot.slane %v3932, 1
    %v3991 = vrot.slane %v3936, 1
    %v3992 = vsel %vm931, %v3990, %v3991
    %v3993 = vrot.slane %v3942, 1
    %v3994 = vsel %vm931, %v3991, %v3993
    %v3995 = vrot.slane %v3946, 1
    %v3996 = vsel %vm931, %v3993, %v3995
    %v3997 = vrot.slane %v3952, 1
    %v3998 = vsel %vm931, %v3995, %v3997
    %v3999 = vrot.slane %v3956, 1
    %v4000 = vrot.slane %v3962, 1
    %v4001 = vsel %vm931, %v3999, %v4000
    %v4002 = vrot.slane %v3966, 1
    %v4003 = vsel %vm931, %v4000, %v4002
    %v4004 = vrot.slane %v3972, 1
    %v4005 = vsel %vm931, %v4002, %v4004
    %v4006 = vrot.slane %v3976, 1
    %v4007 = vsel %vm931, %v4004, %v4006
    %4008 = vrot.lane.b32.xlu0 %v3992, 64
    %v4009 = vpop.permute.xlu0 %4008
    %4010 = vrot.lane.b32.xlu0 %v3994, 64
    %v4011 = vpop.permute.xlu0 %4010
    %4012 = vrot.lane.b32.xlu0 %v3996, 64
    %v4013 = vpop.permute.xlu0 %4012
    %4014 = vrot.lane.b32.xlu0 %v3998, 64
    %v4015 = vpop.permute.xlu0 %4014
    %4016 = vrot.lane.b32.xlu0 %v4001, 64
    %v4017 = vpop.permute.xlu0 %4016
    %4018 = vrot.lane.b32.xlu0 %v4003, 64
    %v4019 = vpop.permute.xlu0 %4018
    %4020 = vrot.lane.b32.xlu0 %v4005, 64
    %v4021 = vpop.permute.xlu0 %4020
    %4022 = vrot.lane.b32.xlu0 %v4007, 64
    %v4023 = vpop.permute.xlu0 %4022
    %v4032 = vadd.f32 %v3932, %v4009
    %v4033 = vadd.f32 %v3936, %v4011
    %v4034 = vadd.f32 %v3942, %v4013
    %v4035 = vadd.f32 %v3946, %v4015
    %v4036 = vadd.f32 %v3956, %v4017
    %v4037 = vadd.f32 %v3962, %v4019
    %v4038 = vadd.f32 %v3966, %v4021
    %v4039 = vadd.f32 %v3972, %v4023
    %v4050 = vrot.slane %v3934, 2
    %v4051 = vrot.slane %v3938, 2
    %v4052 = vsel %vm2297, %v4050, %v4051
    %v4053 = vrot.slane %v3944, 2
    %v4054 = vsel %vm2297, %v4051, %v4053
    %v4055 = vrot.slane %v3948, 2
    %v4056 = vsel %vm2297, %v4053, %v4055
    %v4057 = vrot.slane %v3954, 2
    %v4058 = vsel %vm2297, %v4055, %v4057
    %v4059 = vrot.slane %v3958, 2
    %v4060 = vrot.slane %v3964, 2
    %v4061 = vsel %vm2297, %v4059, %v4060
    %v4062 = vrot.slane %v3968, 2
    %v4063 = vsel %vm2297, %v4060, %v4062
    %v4064 = vrot.slane %v3974, 2
    %v4065 = vsel %vm2297, %v4062, %v4064
    %v4066 = vrot.slane %v3978, 2
    %v4067 = vsel %vm2297, %v4064, %v4066
    %v4076 = vadd.f32 %v4032, %v4052
    %v4077 = vadd.f32 %v4033, %v4054
    %v4078 = vadd.f32 %v4034, %v4056
    %v4079 = vadd.f32 %v4035, %v4058
    %v4080 = vadd.f32 %v4036, %v4061
    %v4081 = vadd.f32 %v4037, %v4063
    %v4082 = vadd.f32 %v4038, %v4065
    %v4083 = vadd.f32 %v4039, %v4067
    %v4084 = vadd.f32 %v4076, %v2336
    %v4085 = vadd.f32 %v4077, %v2336
    %v4086 = vadd.f32 %v4078, %v2336
    %v4087 = vadd.f32 %v4079, %v2336
    %v4088 = vadd.f32 %v4080, %v2336
    %v4089 = vadd.f32 %v4081, %v2336
    %v4090 = vadd.f32 %v4082, %v2336
    %v4091 = vadd.f32 %v4083, %v2336
    %v4092 = vmax.f32 %v4084, 0.0
    %v4093 = vmax.f32 %v4085, 0.0
    %v4094 = vmax.f32 %v4086, 0.0
    %v4095 = vmax.f32 %v4087, 0.0
    %v4096 = vmax.f32 %v4088, 0.0
    %v4097 = vmax.f32 %v4089, 0.0
    %v4098 = vmax.f32 %v4090, 0.0
    %v4099 = vmax.f32 %v4091, 0.0
    %v4100 = vmax.f32 %v4092, %v4096
    %v4101 = vmax.f32 %v4093, %v4097
    %v4102 = vmax.f32 %v4094, %v4098
    %v4103 = vmax.f32 %v4095, %v4099
    %v4108 = vrot.slane %v4100, 1
    %v4109 = vrot.slane %v4101, 1
    %v4110 = vsel %vm931, %v4108, %v4109
    %v4111 = vrot.slane %v4102, 1
    %v4112 = vsel %vm931, %v4109, %v4111
    %v4113 = vrot.slane %v4103, 1
    %v4114 = vsel %vm931, %v4111, %v4113
    %v4119 = vmax.f32 %v4100, %v4110
    %v4120 = vmax.f32 %v4101, %v4112
    %v4121 = vmax.f32 %v4102, %v4114
    %v4122 = vmax.f32 %v4103, %v4113
    %4123 = vst.msk [vmem:[#allocation6] sm:$0xff] %vm2377, %v4119
    %4124 = vst.msk [vmem:[#allocation6 + $0x8] sm:$0xff] %vm2377, %v4120
    %4125 = vst.msk [vmem:[#allocation6 + $0x10] sm:$0xff] %vm2377, %v4121
    %4126 = vst.msk [vmem:[#allocation6 + $0x18] sm:$0x7f] %vm2381, %v4122
    %v4127 = vld [vmem:[#allocation6] ss:$2 sm:$0xff]
    %v4128 = vld [vmem:[%s2384] ss:$2 sm:$0xff]
    %4129 = vst.msk [vmem:[#allocation7 + $0x1] sm:$0x1] %vm2386, %v4127
    %v4132 = vunpack.c.l.s4 1983009808
    %v4133 = vunpack.c.0.s8 %v4132
    %v4134 = vlaneseq
    %v4135 = vshrl.u32 %v4134, 7
    %v4136 = vsub.s32 %v4133, %v4135
    %v4137 = vrot.slane %v4127, %v4136
    %v4138 = vrot.slane %v4137, 7
    %v4139 = vrot.slane %v4138, 2
    %4140 = vrot.lane.b32.xlu0 %v4139, 64
    %v4141 = vpop.permute.xlu0 %4140
    %4143 = vst.msk [vmem:[#allocation7 + $0x1] sm:$0x1] %vm2401, %v4141
    %v4144 = vcombine.high %v4137, %v4137
    %4146 = vst.msk [vmem:[#allocation7 + $0x3] sm:$0x1] %vm2386, %v4144
    %v4147 = vrot.slane %v4144, 7
    %v4148 = vrot.slane %v4147, 2
    %4149 = vrot.lane.b32.xlu0 %v4148, 64
    %v4150 = vpop.permute.xlu0 %4149
    %4152 = vst.msk [vmem:[#allocation7 + $0x3] sm:$0x1] %vm2401, %v4150
    %v4153 = vcombine.high %v4127, %v4127
    %v4155 = vunpack.c.l.s4 1983009808
    %v4156 = vunpack.c.0.s8 %v4155
    %v4157 = vlaneseq
    %v4158 = vshrl.u32 %v4157, 7
    %v4159 = vsub.s32 %v4156, %v4158
    %v4160 = vrot.slane %v4153, %v4159
    %4162 = vst.msk [vmem:[#allocation7 + $0x5] sm:$0x1] %vm2386, %v4160
    %v4163 = vrot.slane %v4160, 7
    %v4164 = vrot.slane %v4163, 2
    %4165 = vrot.lane.b32.xlu0 %v4164, 64
    %v4166 = vpop.permute.xlu0 %4165
    %4168 = vst.msk [vmem:[#allocation7 + $0x5] sm:$0x1] %vm2401, %v4166
    %v4169 = vcombine.high %v4160, %v4160
    %4171 = vst.msk [vmem:[#allocation7 + $0x7] sm:$0x1] %vm2386, %v4169
    %v4172 = vrot.slane %v4169, 7
    %v4173 = vrot.slane %v4172, 2
    %4174 = vrot.lane.b32.xlu0 %v4173, 64
    %v4175 = vpop.permute.xlu0 %4174
    %4177 = vst.msk [vmem:[#allocation7 + $0x7] sm:$0x1] %vm2401, %v4175
    %4178 = vst.msk [vmem:[#allocation7 + $0x9] sm:$0x1] %vm2386, %v4128
    %v4181 = vunpack.c.l.s4 1983009808
    %v4182 = vunpack.c.0.s8 %v4181
    %v4183 = vlaneseq
    %v4184 = vshrl.u32 %v4183, 7
    %v4185 = vsub.s32 %v4182, %v4184
    %v4186 = vrot.slane %v4128, %v4185
    %v4187 = vrot.slane %v4186, 7
    %v4188 = vrot.slane %v4187, 2
    %4189 = vrot.lane.b32.xlu0 %v4188, 64
    %v4190 = vpop.permute.xlu0 %4189
    %4192 = vst.msk [vmem:[#allocation7 + $0x9] sm:$0x1] %vm2401, %v4190
    %v4193 = vcombine.high %v4186, %v4186
    %4195 = vst.msk [vmem:[#allocation7 + $0xb] sm:$0x1] %vm2386, %v4193
    %v4196 = vrot.slane %v4193, 7
    %v4197 = vrot.slane %v4196, 2
    %4198 = vrot.lane.b32.xlu0 %v4197, 64
    %v4199 = vpop.permute.xlu0 %4198
    %4201 = vst.msk [vmem:[#allocation7 + $0xb] sm:$0x1] %vm2401, %v4199
    %v4202 = vcombine.high %v4128, %v4128
    %v4204 = vunpack.c.l.s4 1983009808
    %v4205 = vunpack.c.0.s8 %v4204
    %v4206 = vlaneseq
    %v4207 = vshrl.u32 %v4206, 7
    %v4208 = vsub.s32 %v4205, %v4207
    %v4209 = vrot.slane %v4202, %v4208
    %4211 = vst.msk [vmem:[#allocation7 + $0xd] sm:$0x1] %vm2386, %v4209
    %v4212 = vrot.slane %v4209, 7
    %v4213 = vrot.slane %v4212, 2
    %4214 = vrot.lane.b32.xlu0 %v4213, 64
    %v4215 = vpop.permute.xlu0 %4214
    %4217 = vst.msk [vmem:[#allocation7 + $0xd] sm:$0x1] %vm2401, %v4215
    %v4218 = vcombine.high %v4209, %v4209
    %4220 = vst.msk [vmem:[#allocation7 + $0xf] sm:$0x1] %vm2386, %v4218
    %v4221 = vrot.slane %v4218, 7
    %v4222 = vrot.slane %v4221, 2
    %4223 = vrot.lane.b32.xlu0 %v4222, 64
    %v4224 = vpop.permute.xlu0 %4223
    %4226 = vst.msk [vmem:[#allocation7 + $0xf] sm:$0x1] %vm2401, %v4224
    %s4227 = smul.u32 4, 128
    %s4228 = smul.u32 %s4227, 4
    %s4229 = sshll.u32 %s4228, 4
    %4230 = dma.done [#allocation3], %s4229
    %v4231 = vld [vmem:[#allocation7] sm:$0xff]
    %v4232 = vld [vmem:[#allocation7 + $0x8] sm:$0xff]
    %v4235 = vcombine.high %v4231, %v4231
    %v4237 = vunpack.c.l.s4 1983009808
    %v4238 = vunpack.c.0.s8 %v4237
    %v4239 = vlaneseq
    %v4240 = vshrl.u32 %v4239, 7
    %v4241 = vsub.s32 %v4238, %v4240
    %v4242 = vrot.slane %v4231, %v4241
    %v4244 = vunpack.c.l.s4 1983009808
    %v4245 = vunpack.c.0.s8 %v4244
    %v4246 = vlaneseq
    %v4247 = vshrl.u32 %v4246, 7
    %v4248 = vsub.s32 %v4245, %v4247
    %v4249 = vrot.slane %v4235, %v4248
    %v4250 = vcombine.high %v4242, %v4242
    %v4251 = vcombine.high %v4249, %v4249
    %v4252 = vcombine.high %v4232, %v4232
    %v4254 = vunpack.c.l.s4 1983009808
    %v4255 = vunpack.c.0.s8 %v4254
    %v4256 = vlaneseq
    %v4257 = vshrl.u32 %v4256, 7
    %v4258 = vsub.s32 %v4255, %v4257
    %v4259 = vrot.slane %v4232, %v4258
    %v4261 = vunpack.c.l.s4 1983009808
    %v4262 = vunpack.c.0.s8 %v4261
    %v4263 = vlaneseq
    %v4264 = vshrl.u32 %v4263, 7
    %v4265 = vsub.s32 %v4262, %v4264
    %v4266 = vrot.slane %v4252, %v4265
    %v4267 = vcombine.high %v4259, %v4259
    %v4268 = vcombine.high %v4266, %v4266
    %v4277 = vpack.c.bf16 %v4242, %v4242
    %v4278 = vpack.c.bf16 %v4250, %v4250
    %v4279 = vpack.c.bf16 %v4249, %v4249
    %v4280 = vpack.c.bf16 %v4251, %v4251
    %v4281 = vpack.c.bf16 %v4259, %v4259
    %v4282 = vpack.c.bf16 %v4267, %v4267
    %v4283 = vpack.c.bf16 %v4266, %v4266
    %v4284 = vpack.c.bf16 %v4268, %v4268
    %v4285 = vld [vmem:[#allocation2] sm:$0xff]
    %v4286 = vld [vmem:[#allocation2 + $0x8] sm:$0xff]
    %v4287 = vld [vmem:[#allocation2 + $0x10] sm:$0xff]
    %v4288 = vld [vmem:[#allocation2 + $0x18] sm:$0xff]
    %v4289 = vld [vmem:[#allocation2 + $0x20] sm:$0xff]
    %v4290 = vld [vmem:[#allocation2 + $0x28] sm:$0xff]
    %v4291 = vld [vmem:[#allocation2 + $0x30] sm:$0xff]
    %v4292 = vld [vmem:[#allocation2 + $0x38] sm:$0xff]
    %v4293 = vld [vmem:[#allocation2 + $0x40] sm:$0xff]
    %v4294 = vld [vmem:[#allocation2 + $0x48] sm:$0xff]
    %v4295 = vld [vmem:[#allocation2 + $0x50] sm:$0xff]
    %v4296 = vld [vmem:[#allocation2 + $0x58] sm:$0xff]
    %v4297 = vld [vmem:[#allocation2 + $0x60] sm:$0xff]
    %v4298 = vld [vmem:[#allocation2 + $0x68] sm:$0xff]
    %v4299 = vld [vmem:[#allocation2 + $0x70] sm:$0xff]
    %v4300 = vld [vmem:[#allocation2 + $0x78] sm:$0xff]
    %v4301 = vld [vmem:[#allocation2 + $0x80] sm:$0xff]
    %v4302 = vld [vmem:[#allocation2 + $0x88] sm:$0xff]
    %v4303 = vld [vmem:[#allocation2 + $0x90] sm:$0xff]
    %v4304 = vld [vmem:[#allocation2 + $0x98] sm:$0xff]
    %v4305 = vld [vmem:[#allocation2 + $0xa0] sm:$0xff]
    %v4306 = vld [vmem:[#allocation2 + $0xa8] sm:$0xff]
    %v4307 = vld [vmem:[#allocation2 + $0xb0] sm:$0xff]
    %v4308 = vld [vmem:[#allocation2 + $0xb8] sm:$0xff]
    %v4309 = vld [vmem:[#allocation2 + $0xc0] sm:$0xff]
    %v4310 = vld [vmem:[#allocation2 + $0xc8] sm:$0xff]
    %v4311 = vld [vmem:[#allocation2 + $0xd0] sm:$0xff]
    %v4312 = vld [vmem:[#allocation2 + $0xd8] sm:$0xff]
    %v4313 = vld [vmem:[#allocation2 + $0xe0] sm:$0xff]
    %v4314 = vld [vmem:[#allocation2 + $0xe8] sm:$0xff]
    %v4315 = vld [vmem:[#allocation2 + $0xf0] sm:$0xff]
    %v4316 = vld [vmem:[#allocation2 + $0xf8] sm:$0xff]
    %v4317 = vld [vmem:[#allocation2 + $0x100] sm:$0xff]
    %v4318 = vld [vmem:[#allocation2 + $0x108] sm:$0xff]
    %v4319 = vld [vmem:[#allocation2 + $0x110] sm:$0xff]
    %v4320 = vld [vmem:[#allocation2 + $0x118] sm:$0xff]
    %v4321 = vld [vmem:[#allocation2 + $0x120] sm:$0xff]
    %v4322 = vld [vmem:[#allocation2 + $0x128] sm:$0xff]
    %v4323 = vld [vmem:[#allocation2 + $0x130] sm:$0xff]
    %v4324 = vld [vmem:[#allocation2 + $0x138] sm:$0xff]
    %v4325 = vld [vmem:[#allocation2 + $0x140] sm:$0xff]
    %v4326 = vld [vmem:[#allocation2 + $0x148] sm:$0xff]
    %v4327 = vld [vmem:[#allocation2 + $0x150] sm:$0xff]
    %v4328 = vld [vmem:[#allocation2 + $0x158] sm:$0xff]
    %v4329 = vld [vmem:[#allocation2 + $0x160] sm:$0xff]
    %v4330 = vld [vmem:[#allocation2 + $0x168] sm:$0xff]
    %v4331 = vld [vmem:[#allocation2 + $0x170] sm:$0xff]
    %v4332 = vld [vmem:[#allocation2 + $0x178] sm:$0xff]
    %v4333 = vld [vmem:[#allocation2 + $0x180] sm:$0xff]
    %v4334 = vld [vmem:[#allocation2 + $0x188] sm:$0xff]
    %v4335 = vld [vmem:[#allocation2 + $0x190] sm:$0xff]
    %v4336 = vld [vmem:[#allocation2 + $0x198] sm:$0xff]
    %v4337 = vld [vmem:[#allocation2 + $0x1a0] sm:$0xff]
    %v4338 = vld [vmem:[#allocation2 + $0x1a8] sm:$0xff]
    %v4339 = vld [vmem:[#allocation2 + $0x1b0] sm:$0xff]
    %v4340 = vld [vmem:[#allocation2 + $0x1b8] sm:$0xff]
    %v4341 = vld [vmem:[#allocation2 + $0x1c0] sm:$0xff]
    %v4342 = vld [vmem:[#allocation2 + $0x1c8] sm:$0xff]
    %v4343 = vld [vmem:[#allocation2 + $0x1d0] sm:$0xff]
    %v4344 = vld [vmem:[#allocation2 + $0x1d8] sm:$0xff]
    %v4345 = vld [vmem:[#allocation2 + $0x1e0] sm:$0xff]
    %v4346 = vld [vmem:[#allocation2 + $0x1e8] sm:$0xff]
    %v4347 = vld [vmem:[#allocation2 + $0x1f0] sm:$0xff]
    %v4348 = vld [vmem:[#allocation2 + $0x1f8] sm:$0xff]
    %v4349 = vld [vmem:[#allocation2 + $0x200] sm:$0xff]
    %v4350 = vld [vmem:[#allocation2 + $0x208] sm:$0xff]
    %v4351 = vld [vmem:[#allocation2 + $0x210] sm:$0xff]
    %v4352 = vld [vmem:[#allocation2 + $0x218] sm:$0xff]
    %v4353 = vld [vmem:[#allocation2 + $0x220] sm:$0xff]
    %v4354 = vld [vmem:[#allocation2 + $0x228] sm:$0xff]
    %v4355 = vld [vmem:[#allocation2 + $0x230] sm:$0xff]
    %v4356 = vld [vmem:[#allocation2 + $0x238] sm:$0xff]
    %v4357 = vld [vmem:[#allocation2 + $0x240] sm:$0xff]
    %v4358 = vld [vmem:[#allocation2 + $0x248] sm:$0xff]
    %v4359 = vld [vmem:[#allocation2 + $0x250] sm:$0xff]
    %v4360 = vld [vmem:[#allocation2 + $0x258] sm:$0xff]
    %v4361 = vld [vmem:[#allocation2 + $0x260] sm:$0xff]
    %v4362 = vld [vmem:[#allocation2 + $0x268] sm:$0xff]
    %v4363 = vld [vmem:[#allocation2 + $0x270] sm:$0xff]
    %v4364 = vld [vmem:[#allocation2 + $0x278] sm:$0xff]
    %v4365 = vld [vmem:[#allocation2 + $0x280] sm:$0xff]
    %v4366 = vld [vmem:[#allocation2 + $0x288] sm:$0xff]
    %v4367 = vld [vmem:[#allocation2 + $0x290] sm:$0xff]
    %v4368 = vld [vmem:[#allocation2 + $0x298] sm:$0xff]
    %v4369 = vld [vmem:[#allocation2 + $0x2a0] sm:$0xff]
    %v4370 = vld [vmem:[#allocation2 + $0x2a8] sm:$0xff]
    %v4371 = vld [vmem:[#allocation2 + $0x2b0] sm:$0xff]
    %v4372 = vld [vmem:[#allocation2 + $0x2b8] sm:$0xff]
    %v4373 = vld [vmem:[#allocation2 + $0x2c0] sm:$0xff]
    %v4374 = vld [vmem:[#allocation2 + $0x2c8] sm:$0xff]
    %v4375 = vld [vmem:[#allocation2 + $0x2d0] sm:$0xff]
    %v4376 = vld [vmem:[#allocation2 + $0x2d8] sm:$0xff]
    %v4377 = vld [vmem:[#allocation2 + $0x2e0] sm:$0xff]
    %v4378 = vld [vmem:[#allocation2 + $0x2e8] sm:$0xff]
    %v4379 = vld [vmem:[#allocation2 + $0x2f0] sm:$0xff]
    %v4380 = vld [vmem:[#allocation2 + $0x2f8] sm:$0xff]
    %v4381 = vld [vmem:[#allocation2 + $0x300] sm:$0xff]
    %v4382 = vld [vmem:[#allocation2 + $0x308] sm:$0xff]
    %v4383 = vld [vmem:[#allocation2 + $0x310] sm:$0xff]
    %v4384 = vld [vmem:[#allocation2 + $0x318] sm:$0xff]
    %v4385 = vld [vmem:[#allocation2 + $0x320] sm:$0xff]
    %v4386 = vld [vmem:[#allocation2 + $0x328] sm:$0xff]
    %v4387 = vld [vmem:[#allocation2 + $0x330] sm:$0xff]
    %v4388 = vld [vmem:[#allocation2 + $0x338] sm:$0xff]
    %v4389 = vld [vmem:[#allocation2 + $0x340] sm:$0xff]
    %v4390 = vld [vmem:[#allocation2 + $0x348] sm:$0xff]
    %v4391 = vld [vmem:[#allocation2 + $0x350] sm:$0xff]
    %v4392 = vld [vmem:[#allocation2 + $0x358] sm:$0xff]
    %v4393 = vld [vmem:[#allocation2 + $0x360] sm:$0xff]
    %v4394 = vld [vmem:[#allocation2 + $0x368] sm:$0xff]
    %v4395 = vld [vmem:[#allocation2 + $0x370] sm:$0xff]
    %v4396 = vld [vmem:[#allocation2 + $0x378] sm:$0xff]
    %v4397 = vld [vmem:[#allocation2 + $0x380] sm:$0xff]
    %v4398 = vld [vmem:[#allocation2 + $0x388] sm:$0xff]
    %v4399 = vld [vmem:[#allocation2 + $0x390] sm:$0xff]
    %v4400 = vld [vmem:[#allocation2 + $0x398] sm:$0xff]
    %v4401 = vld [vmem:[#allocation2 + $0x3a0] sm:$0xff]
    %v4402 = vld [vmem:[#allocation2 + $0x3a8] sm:$0xff]
    %v4403 = vld [vmem:[#allocation2 + $0x3b0] sm:$0xff]
    %v4404 = vld [vmem:[#allocation2 + $0x3b8] sm:$0xff]
    %v4405 = vld [vmem:[#allocation2 + $0x3c0] sm:$0xff]
    %v4406 = vld [vmem:[#allocation2 + $0x3c8] sm:$0xff]
    %v4407 = vld [vmem:[#allocation2 + $0x3d0] sm:$0xff]
    %v4408 = vld [vmem:[#allocation2 + $0x3d8] sm:$0xff]
    %v4409 = vld [vmem:[#allocation2 + $0x3e0] sm:$0xff]
    %v4410 = vld [vmem:[#allocation2 + $0x3e8] sm:$0xff]
    %v4411 = vld [vmem:[#allocation2 + $0x3f0] sm:$0xff]
    %v4412 = vld [vmem:[#allocation2 + $0x3f8] sm:$0xff]
    %v4413 = vld [vmem:[#allocation2 + $0x400] sm:$0xff]
    %v4414 = vld [vmem:[#allocation2 + $0x408] sm:$0xff]
    %v4415 = vld [vmem:[#allocation2 + $0x410] sm:$0xff]
    %v4416 = vld [vmem:[#allocation2 + $0x418] sm:$0xff]
    %v4417 = vld [vmem:[#allocation2 + $0x420] sm:$0xff]
    %v4418 = vld [vmem:[#allocation2 + $0x428] sm:$0xff]
    %v4419 = vld [vmem:[#allocation2 + $0x430] sm:$0xff]
    %v4420 = vld [vmem:[#allocation2 + $0x438] sm:$0xff]
    %v4421 = vld [vmem:[#allocation2 + $0x440] sm:$0xff]
    %v4422 = vld [vmem:[#allocation2 + $0x448] sm:$0xff]
    %v4423 = vld [vmem:[#allocation2 + $0x450] sm:$0xff]
    %v4424 = vld [vmem:[#allocation2 + $0x458] sm:$0xff]
    %v4425 = vld [vmem:[#allocation2 + $0x460] sm:$0xff]
    %v4426 = vld [vmem:[#allocation2 + $0x468] sm:$0xff]
    %v4427 = vld [vmem:[#allocation2 + $0x470] sm:$0xff]
    %v4428 = vld [vmem:[#allocation2 + $0x478] sm:$0xff]
    %v4429 = vld [vmem:[#allocation2 + $0x480] sm:$0xff]
    %v4430 = vld [vmem:[#allocation2 + $0x488] sm:$0xff]
    %v4431 = vld [vmem:[#allocation2 + $0x490] sm:$0xff]
    %v4432 = vld [vmem:[#allocation2 + $0x498] sm:$0xff]
    %v4433 = vld [vmem:[#allocation2 + $0x4a0] sm:$0xff]
    %v4434 = vld [vmem:[#allocation2 + $0x4a8] sm:$0xff]
    %v4435 = vld [vmem:[#allocation2 + $0x4b0] sm:$0xff]
    %v4436 = vld [vmem:[#allocation2 + $0x4b8] sm:$0xff]
    %v4437 = vld [vmem:[#allocation2 + $0x4c0] sm:$0xff]
    %v4438 = vld [vmem:[#allocation2 + $0x4c8] sm:$0xff]
    %v4439 = vld [vmem:[#allocation2 + $0x4d0] sm:$0xff]
    %v4440 = vld [vmem:[#allocation2 + $0x4d8] sm:$0xff]
    %v4441 = vld [vmem:[#allocation2 + $0x4e0] sm:$0xff]
    %v4442 = vld [vmem:[#allocation2 + $0x4e8] sm:$0xff]
    %v4443 = vld [vmem:[#allocation2 + $0x4f0] sm:$0xff]
    %v4444 = vld [vmem:[#allocation2 + $0x4f8] sm:$0xff]
    %v4445 = vld [vmem:[#allocation2 + $0x500] sm:$0xff]
    %v4446 = vld [vmem:[#allocation2 + $0x508] sm:$0xff]
    %v4447 = vld [vmem:[#allocation2 + $0x510] sm:$0xff]
    %v4448 = vld [vmem:[#allocation2 + $0x518] sm:$0xff]
    %v4449 = vld [vmem:[#allocation2 + $0x520] sm:$0xff]
    %v4450 = vld [vmem:[#allocation2 + $0x528] sm:$0xff]
    %v4451 = vld [vmem:[#allocation2 + $0x530] sm:$0xff]
    %v4452 = vld [vmem:[#allocation2 + $0x538] sm:$0xff]
    %v4453 = vld [vmem:[#allocation2 + $0x540] sm:$0xff]
    %v4454 = vld [vmem:[#allocation2 + $0x548] sm:$0xff]
    %v4455 = vld [vmem:[#allocation2 + $0x550] sm:$0xff]
    %v4456 = vld [vmem:[#allocation2 + $0x558] sm:$0xff]
    %v4457 = vld [vmem:[#allocation2 + $0x560] sm:$0xff]
    %v4458 = vld [vmem:[#allocation2 + $0x568] sm:$0xff]
    %v4459 = vld [vmem:[#allocation2 + $0x570] sm:$0xff]
    %v4460 = vld [vmem:[#allocation2 + $0x578] sm:$0xff]
    %v4461 = vld [vmem:[#allocation2 + $0x580] sm:$0xff]
    %v4462 = vld [vmem:[#allocation2 + $0x588] sm:$0xff]
    %v4463 = vld [vmem:[#allocation2 + $0x590] sm:$0xff]
    %v4464 = vld [vmem:[#allocation2 + $0x598] sm:$0xff]
    %v4465 = vld [vmem:[#allocation2 + $0x5a0] sm:$0xff]
    %v4466 = vld [vmem:[#allocation2 + $0x5a8] sm:$0xff]
    %v4467 = vld [vmem:[#allocation2 + $0x5b0] sm:$0xff]
    %v4468 = vld [vmem:[#allocation2 + $0x5b8] sm:$0xff]
    %v4469 = vld [vmem:[#allocation2 + $0x5c0] sm:$0xff]
    %v4470 = vld [vmem:[#allocation2 + $0x5c8] sm:$0xff]
    %v4471 = vld [vmem:[#allocation2 + $0x5d0] sm:$0xff]
    %v4472 = vld [vmem:[#allocation2 + $0x5d8] sm:$0xff]
    %v4473 = vld [vmem:[#allocation2 + $0x5e0] sm:$0xff]
    %v4474 = vld [vmem:[#allocation2 + $0x5e8] sm:$0xff]
    %v4475 = vld [vmem:[#allocation2 + $0x5f0] sm:$0xff]
    %v4476 = vld [vmem:[#allocation2 + $0x5f8] sm:$0xff]
    %v4477 = vld [vmem:[#allocation2 + $0x600] sm:$0xff]
    %v4478 = vld [vmem:[#allocation2 + $0x608] sm:$0xff]
    %v4479 = vld [vmem:[#allocation2 + $0x610] sm:$0xff]
    %v4480 = vld [vmem:[#allocation2 + $0x618] sm:$0xff]
    %v4481 = vld [vmem:[#allocation2 + $0x620] sm:$0xff]
    %v4482 = vld [vmem:[#allocation2 + $0x628] sm:$0xff]
    %v4483 = vld [vmem:[#allocation2 + $0x630] sm:$0xff]
    %v4484 = vld [vmem:[#allocation2 + $0x638] sm:$0xff]
    %v4485 = vld [vmem:[#allocation2 + $0x640] sm:$0xff]
    %v4486 = vld [vmem:[#allocation2 + $0x648] sm:$0xff]
    %v4487 = vld [vmem:[#allocation2 + $0x650] sm:$0xff]
    %v4488 = vld [vmem:[#allocation2 + $0x658] sm:$0xff]
    %v4489 = vld [vmem:[#allocation2 + $0x660] sm:$0xff]
    %v4490 = vld [vmem:[#allocation2 + $0x668] sm:$0xff]
    %v4491 = vld [vmem:[#allocation2 + $0x670] sm:$0xff]
    %v4492 = vld [vmem:[#allocation2 + $0x678] sm:$0xff]
    %v4493 = vld [vmem:[#allocation2 + $0x680] sm:$0xff]
    %v4494 = vld [vmem:[#allocation2 + $0x688] sm:$0xff]
    %v4495 = vld [vmem:[#allocation2 + $0x690] sm:$0xff]
    %v4496 = vld [vmem:[#allocation2 + $0x698] sm:$0xff]
    %v4497 = vld [vmem:[#allocation2 + $0x6a0] sm:$0xff]
    %v4498 = vld [vmem:[#allocation2 + $0x6a8] sm:$0xff]
    %v4499 = vld [vmem:[#allocation2 + $0x6b0] sm:$0xff]
    %v4500 = vld [vmem:[#allocation2 + $0x6b8] sm:$0xff]
    %v4501 = vld [vmem:[#allocation2 + $0x6c0] sm:$0xff]
    %v4502 = vld [vmem:[#allocation2 + $0x6c8] sm:$0xff]
    %v4503 = vld [vmem:[#allocation2 + $0x6d0] sm:$0xff]
    %v4504 = vld [vmem:[#allocation2 + $0x6d8] sm:$0xff]
    %v4505 = vld [vmem:[#allocation2 + $0x6e0] sm:$0xff]
    %v4506 = vld [vmem:[#allocation2 + $0x6e8] sm:$0xff]
    %v4507 = vld [vmem:[#allocation2 + $0x6f0] sm:$0xff]
    %v4508 = vld [vmem:[#allocation2 + $0x6f8] sm:$0xff]
    %v4509 = vld [vmem:[#allocation2 + $0x700] sm:$0xff]
    %v4510 = vld [vmem:[#allocation2 + $0x708] sm:$0xff]
    %v4511 = vld [vmem:[#allocation2 + $0x710] sm:$0xff]
    %v4512 = vld [vmem:[#allocation2 + $0x718] sm:$0xff]
    %v4513 = vld [vmem:[#allocation2 + $0x720] sm:$0xff]
    %v4514 = vld [vmem:[#allocation2 + $0x728] sm:$0xff]
    %v4515 = vld [vmem:[#allocation2 + $0x730] sm:$0xff]
    %v4516 = vld [vmem:[#allocation2 + $0x738] sm:$0xff]
    %v4517 = vld [vmem:[#allocation2 + $0x740] sm:$0xff]
    %v4518 = vld [vmem:[#allocation2 + $0x748] sm:$0xff]
    %v4519 = vld [vmem:[#allocation2 + $0x750] sm:$0xff]
    %v4520 = vld [vmem:[#allocation2 + $0x758] sm:$0xff]
    %v4521 = vld [vmem:[#allocation2 + $0x760] sm:$0xff]
    %v4522 = vld [vmem:[#allocation2 + $0x768] sm:$0xff]
    %v4523 = vld [vmem:[#allocation2 + $0x770] sm:$0xff]
    %v4524 = vld [vmem:[#allocation2 + $0x778] sm:$0xff]
    %v4525 = vld [vmem:[#allocation2 + $0x780] sm:$0xff]
    %v4526 = vld [vmem:[#allocation2 + $0x788] sm:$0xff]
    %v4527 = vld [vmem:[#allocation2 + $0x790] sm:$0xff]
    %v4528 = vld [vmem:[#allocation2 + $0x798] sm:$0xff]
    %v4529 = vld [vmem:[#allocation2 + $0x7a0] sm:$0xff]
    %v4530 = vld [vmem:[#allocation2 + $0x7a8] sm:$0xff]
    %v4531 = vld [vmem:[#allocation2 + $0x7b0] sm:$0xff]
    %v4532 = vld [vmem:[#allocation2 + $0x7b8] sm:$0xff]
    %v4533 = vld [vmem:[#allocation2 + $0x7c0] sm:$0xff]
    %v4534 = vld [vmem:[#allocation2 + $0x7c8] sm:$0xff]
    %v4535 = vld [vmem:[#allocation2 + $0x7d0] sm:$0xff]
    %v4536 = vld [vmem:[#allocation2 + $0x7d8] sm:$0xff]
    %v4537 = vld [vmem:[#allocation2 + $0x7e0] sm:$0xff]
    %v4538 = vld [vmem:[#allocation2 + $0x7e8] sm:$0xff]
    %v4539 = vld [vmem:[#allocation2 + $0x7f0] sm:$0xff]
    %v4540 = vld [vmem:[#allocation2 + $0x7f8] sm:$0xff]
    %v4541 = vld [vmem:[%s7] sm:$0xf]
    %v4543 = vlaneseq
    %v4544 = vshrl.u32 %v4543, 7
    %v4545 = vsub.s32 0, %v4544
    %v4546 = vrot.slane %v4541, %v4545
    %v4547 = vlaneseq
    %v4548 = vshrl.u32 %v4547, 7
    %v4549 = vsub.s32 1, %v4548
    %v4550 = vrot.slane %v4541, %v4549
    %v4551 = vlaneseq
    %v4552 = vshrl.u32 %v4551, 7
    %v4553 = vsub.s32 2, %v4552
    %v4554 = vrot.slane %v4541, %v4553
    %v4555 = vlaneseq
    %v4556 = vshrl.u32 %v4555, 7
    %v4557 = vsub.s32 3, %v4556
    %v4558 = vrot.slane %v4541, %v4557
    %v4819 = vunpack.c.l.b16 %v4285
    %v4820 = vunpack.c.h.b16 %v4285
    %v4821 = vunpack.c.l.b16 %v4286
    %v4822 = vunpack.c.h.b16 %v4286
    %v4823 = vunpack.c.l.b16 %v4287
    %v4824 = vunpack.c.h.b16 %v4287
    %v4825 = vunpack.c.l.b16 %v4288
    %v4826 = vunpack.c.h.b16 %v4288
    %v4827 = vunpack.c.l.b16 %v4289
    %v4828 = vunpack.c.h.b16 %v4289
    %v4829 = vunpack.c.l.b16 %v4290
    %v4830 = vunpack.c.h.b16 %v4290
    %v4831 = vunpack.c.l.b16 %v4291
    %v4832 = vunpack.c.h.b16 %v4291
    %v4833 = vunpack.c.l.b16 %v4292
    %v4834 = vunpack.c.h.b16 %v4292
    %v4835 = vunpack.c.l.b16 %v4293
    %v4836 = vunpack.c.h.b16 %v4293
    %v4837 = vunpack.c.l.b16 %v4294
    %v4838 = vunpack.c.h.b16 %v4294
    %v4839 = vunpack.c.l.b16 %v4295
    %v4840 = vunpack.c.h.b16 %v4295
    %v4841 = vunpack.c.l.b16 %v4296
    %v4842 = vunpack.c.h.b16 %v4296
    %v4843 = vunpack.c.l.b16 %v4297
    %v4844 = vunpack.c.h.b16 %v4297
    %v4845 = vunpack.c.l.b16 %v4298
    %v4846 = vunpack.c.h.b16 %v4298
    %v4847 = vunpack.c.l.b16 %v4299
    %v4848 = vunpack.c.h.b16 %v4299
    %v4849 = vunpack.c.l.b16 %v4300
    %v4850 = vunpack.c.h.b16 %v4300
    %v4851 = vunpack.c.l.b16 %v4301
    %v4852 = vunpack.c.h.b16 %v4301
    %v4853 = vunpack.c.l.b16 %v4302
    %v4854 = vunpack.c.h.b16 %v4302
    %v4855 = vunpack.c.l.b16 %v4303
    %v4856 = vunpack.c.h.b16 %v4303
    %v4857 = vunpack.c.l.b16 %v4304
    %v4858 = vunpack.c.h.b16 %v4304
    %v4859 = vunpack.c.l.b16 %v4305
    %v4860 = vunpack.c.h.b16 %v4305
    %v4861 = vunpack.c.l.b16 %v4306
    %v4862 = vunpack.c.h.b16 %v4306
    %v4863 = vunpack.c.l.b16 %v4307
    %v4864 = vunpack.c.h.b16 %v4307
    %v4865 = vunpack.c.l.b16 %v4308
    %v4866 = vunpack.c.h.b16 %v4308
    %v4867 = vunpack.c.l.b16 %v4309
    %v4868 = vunpack.c.h.b16 %v4309
    %v4869 = vunpack.c.l.b16 %v4310
    %v4870 = vunpack.c.h.b16 %v4310
    %v4871 = vunpack.c.l.b16 %v4311
    %v4872 = vunpack.c.h.b16 %v4311
    %v4873 = vunpack.c.l.b16 %v4312
    %v4874 = vunpack.c.h.b16 %v4312
    %v4875 = vunpack.c.l.b16 %v4313
    %v4876 = vunpack.c.h.b16 %v4313
    %v4877 = vunpack.c.l.b16 %v4314
    %v4878 = vunpack.c.h.b16 %v4314
    %v4879 = vunpack.c.l.b16 %v4315
    %v4880 = vunpack.c.h.b16 %v4315
    %v4881 = vunpack.c.l.b16 %v4316
    %v4882 = vunpack.c.h.b16 %v4316
    %v4883 = vunpack.c.l.b16 %v4317
    %v4884 = vunpack.c.h.b16 %v4317
    %v4885 = vunpack.c.l.b16 %v4318
    %v4886 = vunpack.c.h.b16 %v4318
    %v4887 = vunpack.c.l.b16 %v4319
    %v4888 = vunpack.c.h.b16 %v4319
    %v4889 = vunpack.c.l.b16 %v4320
    %v4890 = vunpack.c.h.b16 %v4320
    %v4891 = vunpack.c.l.b16 %v4321
    %v4892 = vunpack.c.h.b16 %v4321
    %v4893 = vunpack.c.l.b16 %v4322
    %v4894 = vunpack.c.h.b16 %v4322
    %v4895 = vunpack.c.l.b16 %v4323
    %v4896 = vunpack.c.h.b16 %v4323
    %v4897 = vunpack.c.l.b16 %v4324
    %v4898 = vunpack.c.h.b16 %v4324
    %v4899 = vunpack.c.l.b16 %v4325
    %v4900 = vunpack.c.h.b16 %v4325
    %v4901 = vunpack.c.l.b16 %v4326
    %v4902 = vunpack.c.h.b16 %v4326
    %v4903 = vunpack.c.l.b16 %v4327
    %v4904 = vunpack.c.h.b16 %v4327
    %v4905 = vunpack.c.l.b16 %v4328
    %v4906 = vunpack.c.h.b16 %v4328
    %v4907 = vunpack.c.l.b16 %v4329
    %v4908 = vunpack.c.h.b16 %v4329
    %v4909 = vunpack.c.l.b16 %v4330
    %v4910 = vunpack.c.h.b16 %v4330
    %v4911 = vunpack.c.l.b16 %v4331
    %v4912 = vunpack.c.h.b16 %v4331
    %v4913 = vunpack.c.l.b16 %v4332
    %v4914 = vunpack.c.h.b16 %v4332
    %v4915 = vunpack.c.l.b16 %v4333
    %v4916 = vunpack.c.h.b16 %v4333
    %v4917 = vunpack.c.l.b16 %v4334
    %v4918 = vunpack.c.h.b16 %v4334
    %v4919 = vunpack.c.l.b16 %v4335
    %v4920 = vunpack.c.h.b16 %v4335
    %v4921 = vunpack.c.l.b16 %v4336
    %v4922 = vunpack.c.h.b16 %v4336
    %v4923 = vunpack.c.l.b16 %v4337
    %v4924 = vunpack.c.h.b16 %v4337
    %v4925 = vunpack.c.l.b16 %v4338
    %v4926 = vunpack.c.h.b16 %v4338
    %v4927 = vunpack.c.l.b16 %v4339
    %v4928 = vunpack.c.h.b16 %v4339
    %v4929 = vunpack.c.l.b16 %v4340
    %v4930 = vunpack.c.h.b16 %v4340
    %v4931 = vunpack.c.l.b16 %v4341
    %v4932 = vunpack.c.h.b16 %v4341
    %v4933 = vunpack.c.l.b16 %v4342
    %v4934 = vunpack.c.h.b16 %v4342
    %v4935 = vunpack.c.l.b16 %v4343
    %v4936 = vunpack.c.h.b16 %v4343
    %v4937 = vunpack.c.l.b16 %v4344
    %v4938 = vunpack.c.h.b16 %v4344
    %v4939 = vunpack.c.l.b16 %v4345
    %v4940 = vunpack.c.h.b16 %v4345
    %v4941 = vunpack.c.l.b16 %v4346
    %v4942 = vunpack.c.h.b16 %v4346
    %v4943 = vunpack.c.l.b16 %v4347
    %v4944 = vunpack.c.h.b16 %v4347
    %v4945 = vunpack.c.l.b16 %v4348
    %v4946 = vunpack.c.h.b16 %v4348
    %v4947 = vunpack.c.l.b16 %v4349
    %v4948 = vunpack.c.h.b16 %v4349
    %v4949 = vunpack.c.l.b16 %v4350
    %v4950 = vunpack.c.h.b16 %v4350
    %v4951 = vunpack.c.l.b16 %v4351
    %v4952 = vunpack.c.h.b16 %v4351
    %v4953 = vunpack.c.l.b16 %v4352
    %v4954 = vunpack.c.h.b16 %v4352
    %v4955 = vunpack.c.l.b16 %v4353
    %v4956 = vunpack.c.h.b16 %v4353
    %v4957 = vunpack.c.l.b16 %v4354
    %v4958 = vunpack.c.h.b16 %v4354
    %v4959 = vunpack.c.l.b16 %v4355
    %v4960 = vunpack.c.h.b16 %v4355
    %v4961 = vunpack.c.l.b16 %v4356
    %v4962 = vunpack.c.h.b16 %v4356
    %v4963 = vunpack.c.l.b16 %v4357
    %v4964 = vunpack.c.h.b16 %v4357
    %v4965 = vunpack.c.l.b16 %v4358
    %v4966 = vunpack.c.h.b16 %v4358
    %v4967 = vunpack.c.l.b16 %v4359
    %v4968 = vunpack.c.h.b16 %v4359
    %v4969 = vunpack.c.l.b16 %v4360
    %v4970 = vunpack.c.h.b16 %v4360
    %v4971 = vunpack.c.l.b16 %v4361
    %v4972 = vunpack.c.h.b16 %v4361
    %v4973 = vunpack.c.l.b16 %v4362
    %v4974 = vunpack.c.h.b16 %v4362
    %v4975 = vunpack.c.l.b16 %v4363
    %v4976 = vunpack.c.h.b16 %v4363
    %v4977 = vunpack.c.l.b16 %v4364
    %v4978 = vunpack.c.h.b16 %v4364
    %v4979 = vunpack.c.l.b16 %v4365
    %v4980 = vunpack.c.h.b16 %v4365
    %v4981 = vunpack.c.l.b16 %v4366
    %v4982 = vunpack.c.h.b16 %v4366
    %v4983 = vunpack.c.l.b16 %v4367
    %v4984 = vunpack.c.h.b16 %v4367
    %v4985 = vunpack.c.l.b16 %v4368
    %v4986 = vunpack.c.h.b16 %v4368
    %v4987 = vunpack.c.l.b16 %v4369
    %v4988 = vunpack.c.h.b16 %v4369
    %v4989 = vunpack.c.l.b16 %v4370
    %v4990 = vunpack.c.h.b16 %v4370
    %v4991 = vunpack.c.l.b16 %v4371
    %v4992 = vunpack.c.h.b16 %v4371
    %v4993 = vunpack.c.l.b16 %v4372
    %v4994 = vunpack.c.h.b16 %v4372
    %v4995 = vunpack.c.l.b16 %v4373
    %v4996 = vunpack.c.h.b16 %v4373
    %v4997 = vunpack.c.l.b16 %v4374
    %v4998 = vunpack.c.h.b16 %v4374
    %v4999 = vunpack.c.l.b16 %v4375
    %v5000 = vunpack.c.h.b16 %v4375
    %v5001 = vunpack.c.l.b16 %v4376
    %v5002 = vunpack.c.h.b16 %v4376
    %v5003 = vunpack.c.l.b16 %v4377
    %v5004 = vunpack.c.h.b16 %v4377
    %v5005 = vunpack.c.l.b16 %v4378
    %v5006 = vunpack.c.h.b16 %v4378
    %v5007 = vunpack.c.l.b16 %v4379
    %v5008 = vunpack.c.h.b16 %v4379
    %v5009 = vunpack.c.l.b16 %v4380
    %v5010 = vunpack.c.h.b16 %v4380
    %v5011 = vunpack.c.l.b16 %v4381
    %v5012 = vunpack.c.h.b16 %v4381
    %v5013 = vunpack.c.l.b16 %v4382
    %v5014 = vunpack.c.h.b16 %v4382
    %v5015 = vunpack.c.l.b16 %v4383
    %v5016 = vunpack.c.h.b16 %v4383
    %v5017 = vunpack.c.l.b16 %v4384
    %v5018 = vunpack.c.h.b16 %v4384
    %v5019 = vunpack.c.l.b16 %v4385
    %v5020 = vunpack.c.h.b16 %v4385
    %v5021 = vunpack.c.l.b16 %v4386
    %v5022 = vunpack.c.h.b16 %v4386
    %v5023 = vunpack.c.l.b16 %v4387
    %v5024 = vunpack.c.h.b16 %v4387
    %v5025 = vunpack.c.l.b16 %v4388
    %v5026 = vunpack.c.h.b16 %v4388
    %v5027 = vunpack.c.l.b16 %v4389
    %v5028 = vunpack.c.h.b16 %v4389
    %v5029 = vunpack.c.l.b16 %v4390
    %v5030 = vunpack.c.h.b16 %v4390
    %v5031 = vunpack.c.l.b16 %v4391
    %v5032 = vunpack.c.h.b16 %v4391
    %v5033 = vunpack.c.l.b16 %v4392
    %v5034 = vunpack.c.h.b16 %v4392
    %v5035 = vunpack.c.l.b16 %v4393
    %v5036 = vunpack.c.h.b16 %v4393
    %v5037 = vunpack.c.l.b16 %v4394
    %v5038 = vunpack.c.h.b16 %v4394
    %v5039 = vunpack.c.l.b16 %v4395
    %v5040 = vunpack.c.h.b16 %v4395
    %v5041 = vunpack.c.l.b16 %v4396
    %v5042 = vunpack.c.h.b16 %v4396
    %v5043 = vunpack.c.l.b16 %v4397
    %v5044 = vunpack.c.h.b16 %v4397
    %v5045 = vunpack.c.l.b16 %v4398
    %v5046 = vunpack.c.h.b16 %v4398
    %v5047 = vunpack.c.l.b16 %v4399
    %v5048 = vunpack.c.h.b16 %v4399
    %v5049 = vunpack.c.l.b16 %v4400
    %v5050 = vunpack.c.h.b16 %v4400
    %v5051 = vunpack.c.l.b16 %v4401
    %v5052 = vunpack.c.h.b16 %v4401
    %v5053 = vunpack.c.l.b16 %v4402
    %v5054 = vunpack.c.h.b16 %v4402
    %v5055 = vunpack.c.l.b16 %v4403
    %v5056 = vunpack.c.h.b16 %v4403
    %v5057 = vunpack.c.l.b16 %v4404
    %v5058 = vunpack.c.h.b16 %v4404
    %v5059 = vunpack.c.l.b16 %v4405
    %v5060 = vunpack.c.h.b16 %v4405
    %v5061 = vunpack.c.l.b16 %v4406
    %v5062 = vunpack.c.h.b16 %v4406
    %v5063 = vunpack.c.l.b16 %v4407
    %v5064 = vunpack.c.h.b16 %v4407
    %v5065 = vunpack.c.l.b16 %v4408
    %v5066 = vunpack.c.h.b16 %v4408
    %v5067 = vunpack.c.l.b16 %v4409
    %v5068 = vunpack.c.h.b16 %v4409
    %v5069 = vunpack.c.l.b16 %v4410
    %v5070 = vunpack.c.h.b16 %v4410
    %v5071 = vunpack.c.l.b16 %v4411
    %v5072 = vunpack.c.h.b16 %v4411
    %v5073 = vunpack.c.l.b16 %v4412
    %v5074 = vunpack.c.h.b16 %v4412
    %v5075 = vunpack.c.l.b16 %v4413
    %v5076 = vunpack.c.h.b16 %v4413
    %v5077 = vunpack.c.l.b16 %v4414
    %v5078 = vunpack.c.h.b16 %v4414
    %v5079 = vunpack.c.l.b16 %v4415
    %v5080 = vunpack.c.h.b16 %v4415
    %v5081 = vunpack.c.l.b16 %v4416
    %v5082 = vunpack.c.h.b16 %v4416
    %v5083 = vunpack.c.l.b16 %v4417
    %v5084 = vunpack.c.h.b16 %v4417
    %v5085 = vunpack.c.l.b16 %v4418
    %v5086 = vunpack.c.h.b16 %v4418
    %v5087 = vunpack.c.l.b16 %v4419
    %v5088 = vunpack.c.h.b16 %v4419
    %v5089 = vunpack.c.l.b16 %v4420
    %v5090 = vunpack.c.h.b16 %v4420
    %v5091 = vunpack.c.l.b16 %v4421
    %v5092 = vunpack.c.h.b16 %v4421
    %v5093 = vunpack.c.l.b16 %v4422
    %v5094 = vunpack.c.h.b16 %v4422
    %v5095 = vunpack.c.l.b16 %v4423
    %v5096 = vunpack.c.h.b16 %v4423
    %v5097 = vunpack.c.l.b16 %v4424
    %v5098 = vunpack.c.h.b16 %v4424
    %v5099 = vunpack.c.l.b16 %v4425
    %v5100 = vunpack.c.h.b16 %v4425
    %v5101 = vunpack.c.l.b16 %v4426
    %v5102 = vunpack.c.h.b16 %v4426
    %v5103 = vunpack.c.l.b16 %v4427
    %v5104 = vunpack.c.h.b16 %v4427
    %v5105 = vunpack.c.l.b16 %v4428
    %v5106 = vunpack.c.h.b16 %v4428
    %v5107 = vunpack.c.l.b16 %v4429
    %v5108 = vunpack.c.h.b16 %v4429
    %v5109 = vunpack.c.l.b16 %v4430
    %v5110 = vunpack.c.h.b16 %v4430
    %v5111 = vunpack.c.l.b16 %v4431
    %v5112 = vunpack.c.h.b16 %v4431
    %v5113 = vunpack.c.l.b16 %v4432
    %v5114 = vunpack.c.h.b16 %v4432
    %v5115 = vunpack.c.l.b16 %v4433
    %v5116 = vunpack.c.h.b16 %v4433
    %v5117 = vunpack.c.l.b16 %v4434
    %v5118 = vunpack.c.h.b16 %v4434
    %v5119 = vunpack.c.l.b16 %v4435
    %v5120 = vunpack.c.h.b16 %v4435
    %v5121 = vunpack.c.l.b16 %v4436
    %v5122 = vunpack.c.h.b16 %v4436
    %v5123 = vunpack.c.l.b16 %v4437
    %v5124 = vunpack.c.h.b16 %v4437
    %v5125 = vunpack.c.l.b16 %v4438
    %v5126 = vunpack.c.h.b16 %v4438
    %v5127 = vunpack.c.l.b16 %v4439
    %v5128 = vunpack.c.h.b16 %v4439
    %v5129 = vunpack.c.l.b16 %v4440
    %v5130 = vunpack.c.h.b16 %v4440
    %v5131 = vunpack.c.l.b16 %v4441
    %v5132 = vunpack.c.h.b16 %v4441
    %v5133 = vunpack.c.l.b16 %v4442
    %v5134 = vunpack.c.h.b16 %v4442
    %v5135 = vunpack.c.l.b16 %v4443
    %v5136 = vunpack.c.h.b16 %v4443
    %v5137 = vunpack.c.l.b16 %v4444
    %v5138 = vunpack.c.h.b16 %v4444
    %v5139 = vunpack.c.l.b16 %v4445
    %v5140 = vunpack.c.h.b16 %v4445
    %v5141 = vunpack.c.l.b16 %v4446
    %v5142 = vunpack.c.h.b16 %v4446
    %v5143 = vunpack.c.l.b16 %v4447
    %v5144 = vunpack.c.h.b16 %v4447
    %v5145 = vunpack.c.l.b16 %v4448
    %v5146 = vunpack.c.h.b16 %v4448
    %v5147 = vunpack.c.l.b16 %v4449
    %v5148 = vunpack.c.h.b16 %v4449
    %v5149 = vunpack.c.l.b16 %v4450
    %v5150 = vunpack.c.h.b16 %v4450
    %v5151 = vunpack.c.l.b16 %v4451
    %v5152 = vunpack.c.h.b16 %v4451
    %v5153 = vunpack.c.l.b16 %v4452
    %v5154 = vunpack.c.h.b16 %v4452
    %v5155 = vunpack.c.l.b16 %v4453
    %v5156 = vunpack.c.h.b16 %v4453
    %v5157 = vunpack.c.l.b16 %v4454
    %v5158 = vunpack.c.h.b16 %v4454
    %v5159 = vunpack.c.l.b16 %v4455
    %v5160 = vunpack.c.h.b16 %v4455
    %v5161 = vunpack.c.l.b16 %v4456
    %v5162 = vunpack.c.h.b16 %v4456
    %v5163 = vunpack.c.l.b16 %v4457
    %v5164 = vunpack.c.h.b16 %v4457
    %v5165 = vunpack.c.l.b16 %v4458
    %v5166 = vunpack.c.h.b16 %v4458
    %v5167 = vunpack.c.l.b16 %v4459
    %v5168 = vunpack.c.h.b16 %v4459
    %v5169 = vunpack.c.l.b16 %v4460
    %v5170 = vunpack.c.h.b16 %v4460
    %v5171 = vunpack.c.l.b16 %v4461
    %v5172 = vunpack.c.h.b16 %v4461
    %v5173 = vunpack.c.l.b16 %v4462
    %v5174 = vunpack.c.h.b16 %v4462
    %v5175 = vunpack.c.l.b16 %v4463
    %v5176 = vunpack.c.h.b16 %v4463
    %v5177 = vunpack.c.l.b16 %v4464
    %v5178 = vunpack.c.h.b16 %v4464
    %v5179 = vunpack.c.l.b16 %v4465
    %v5180 = vunpack.c.h.b16 %v4465
    %v5181 = vunpack.c.l.b16 %v4466
    %v5182 = vunpack.c.h.b16 %v4466
    %v5183 = vunpack.c.l.b16 %v4467
    %v5184 = vunpack.c.h.b16 %v4467
    %v5185 = vunpack.c.l.b16 %v4468
    %v5186 = vunpack.c.h.b16 %v4468
    %v5187 = vunpack.c.l.b16 %v4469
    %v5188 = vunpack.c.h.b16 %v4469
    %v5189 = vunpack.c.l.b16 %v4470
    %v5190 = vunpack.c.h.b16 %v4470
    %v5191 = vunpack.c.l.b16 %v4471
    %v5192 = vunpack.c.h.b16 %v4471
    %v5193 = vunpack.c.l.b16 %v4472
    %v5194 = vunpack.c.h.b16 %v4472
    %v5195 = vunpack.c.l.b16 %v4473
    %v5196 = vunpack.c.h.b16 %v4473
    %v5197 = vunpack.c.l.b16 %v4474
    %v5198 = vunpack.c.h.b16 %v4474
    %v5199 = vunpack.c.l.b16 %v4475
    %v5200 = vunpack.c.h.b16 %v4475
    %v5201 = vunpack.c.l.b16 %v4476
    %v5202 = vunpack.c.h.b16 %v4476
    %v5203 = vunpack.c.l.b16 %v4477
    %v5204 = vunpack.c.h.b16 %v4477
    %v5205 = vunpack.c.l.b16 %v4478
    %v5206 = vunpack.c.h.b16 %v4478
    %v5207 = vunpack.c.l.b16 %v4479
    %v5208 = vunpack.c.h.b16 %v4479
    %v5209 = vunpack.c.l.b16 %v4480
    %v5210 = vunpack.c.h.b16 %v4480
    %v5211 = vunpack.c.l.b16 %v4481
    %v5212 = vunpack.c.h.b16 %v4481
    %v5213 = vunpack.c.l.b16 %v4482
    %v5214 = vunpack.c.h.b16 %v4482
    %v5215 = vunpack.c.l.b16 %v4483
    %v5216 = vunpack.c.h.b16 %v4483
    %v5217 = vunpack.c.l.b16 %v4484
    %v5218 = vunpack.c.h.b16 %v4484
    %v5219 = vunpack.c.l.b16 %v4485
    %v5220 = vunpack.c.h.b16 %v4485
    %v5221 = vunpack.c.l.b16 %v4486
    %v5222 = vunpack.c.h.b16 %v4486
    %v5223 = vunpack.c.l.b16 %v4487
    %v5224 = vunpack.c.h.b16 %v4487
    %v5225 = vunpack.c.l.b16 %v4488
    %v5226 = vunpack.c.h.b16 %v4488
    %v5227 = vunpack.c.l.b16 %v4489
    %v5228 = vunpack.c.h.b16 %v4489
    %v5229 = vunpack.c.l.b16 %v4490
    %v5230 = vunpack.c.h.b16 %v4490
    %v5231 = vunpack.c.l.b16 %v4491
    %v5232 = vunpack.c.h.b16 %v4491
    %v5233 = vunpack.c.l.b16 %v4492
    %v5234 = vunpack.c.h.b16 %v4492
    %v5235 = vunpack.c.l.b16 %v4493
    %v5236 = vunpack.c.h.b16 %v4493
    %v5237 = vunpack.c.l.b16 %v4494
    %v5238 = vunpack.c.h.b16 %v4494
    %v5239 = vunpack.c.l.b16 %v4495
    %v5240 = vunpack.c.h.b16 %v4495
    %v5241 = vunpack.c.l.b16 %v4496
    %v5242 = vunpack.c.h.b16 %v4496
    %v5243 = vunpack.c.l.b16 %v4497
    %v5244 = vunpack.c.h.b16 %v4497
    %v5245 = vunpack.c.l.b16 %v4498
    %v5246 = vunpack.c.h.b16 %v4498
    %v5247 = vunpack.c.l.b16 %v4499
    %v5248 = vunpack.c.h.b16 %v4499
    %v5249 = vunpack.c.l.b16 %v4500
    %v5250 = vunpack.c.h.b16 %v4500
    %v5251 = vunpack.c.l.b16 %v4501
    %v5252 = vunpack.c.h.b16 %v4501
    %v5253 = vunpack.c.l.b16 %v4502
    %v5254 = vunpack.c.h.b16 %v4502
    %v5255 = vunpack.c.l.b16 %v4503
    %v5256 = vunpack.c.h.b16 %v4503
    %v5257 = vunpack.c.l.b16 %v4504
    %v5258 = vunpack.c.h.b16 %v4504
    %v5259 = vunpack.c.l.b16 %v4505
    %v5260 = vunpack.c.h.b16 %v4505
    %v5261 = vunpack.c.l.b16 %v4506
    %v5262 = vunpack.c.h.b16 %v4506
    %v5263 = vunpack.c.l.b16 %v4507
    %v5264 = vunpack.c.h.b16 %v4507
    %v5265 = vunpack.c.l.b16 %v4508
    %v5266 = vunpack.c.h.b16 %v4508
    %v5267 = vunpack.c.l.b16 %v4509
    %v5268 = vunpack.c.h.b16 %v4509
    %v5269 = vunpack.c.l.b16 %v4510
    %v5270 = vunpack.c.h.b16 %v4510
    %v5271 = vunpack.c.l.b16 %v4511
    %v5272 = vunpack.c.h.b16 %v4511
    %v5273 = vunpack.c.l.b16 %v4512
    %v5274 = vunpack.c.h.b16 %v4512
    %v5275 = vunpack.c.l.b16 %v4513
    %v5276 = vunpack.c.h.b16 %v4513
    %v5277 = vunpack.c.l.b16 %v4514
    %v5278 = vunpack.c.h.b16 %v4514
    %v5279 = vunpack.c.l.b16 %v4515
    %v5280 = vunpack.c.h.b16 %v4515
    %v5281 = vunpack.c.l.b16 %v4516
    %v5282 = vunpack.c.h.b16 %v4516
    %v5283 = vunpack.c.l.b16 %v4517
    %v5284 = vunpack.c.h.b16 %v4517
    %v5285 = vunpack.c.l.b16 %v4518
    %v5286 = vunpack.c.h.b16 %v4518
    %v5287 = vunpack.c.l.b16 %v4519
    %v5288 = vunpack.c.h.b16 %v4519
    %v5289 = vunpack.c.l.b16 %v4520
    %v5290 = vunpack.c.h.b16 %v4520
    %v5291 = vunpack.c.l.b16 %v4521
    %v5292 = vunpack.c.h.b16 %v4521
    %v5293 = vunpack.c.l.b16 %v4522
    %v5294 = vunpack.c.h.b16 %v4522
    %v5295 = vunpack.c.l.b16 %v4523
    %v5296 = vunpack.c.h.b16 %v4523
    %v5297 = vunpack.c.l.b16 %v4524
    %v5298 = vunpack.c.h.b16 %v4524
    %v5299 = vunpack.c.l.b16 %v4525
    %v5300 = vunpack.c.h.b16 %v4525
    %v5301 = vunpack.c.l.b16 %v4526
    %v5302 = vunpack.c.h.b16 %v4526
    %v5303 = vunpack.c.l.b16 %v4527
    %v5304 = vunpack.c.h.b16 %v4527
    %v5305 = vunpack.c.l.b16 %v4528
    %v5306 = vunpack.c.h.b16 %v4528
    %v5307 = vunpack.c.l.b16 %v4529
    %v5308 = vunpack.c.h.b16 %v4529
    %v5309 = vunpack.c.l.b16 %v4530
    %v5310 = vunpack.c.h.b16 %v4530
    %v5311 = vunpack.c.l.b16 %v4531
    %v5312 = vunpack.c.h.b16 %v4531
    %v5313 = vunpack.c.l.b16 %v4532
    %v5314 = vunpack.c.h.b16 %v4532
    %v5315 = vunpack.c.l.b16 %v4533
    %v5316 = vunpack.c.h.b16 %v4533
    %v5317 = vunpack.c.l.b16 %v4534
    %v5318 = vunpack.c.h.b16 %v4534
    %v5319 = vunpack.c.l.b16 %v4535
    %v5320 = vunpack.c.h.b16 %v4535
    %v5321 = vunpack.c.l.b16 %v4536
    %v5322 = vunpack.c.h.b16 %v4536
    %v5323 = vunpack.c.l.b16 %v4537
    %v5324 = vunpack.c.h.b16 %v4537
    %v5325 = vunpack.c.l.b16 %v4538
    %v5326 = vunpack.c.h.b16 %v4538
    %v5327 = vunpack.c.l.b16 %v4539
    %v5328 = vunpack.c.h.b16 %v4539
    %v5329 = vunpack.c.l.b16 %v4540
    %v5330 = vunpack.c.h.b16 %v4540
    %v5331 = vpack.c.b16 %v4823, %v4819
    %v5332 = vpack.c.b16 %v4824, %v4820
    %v5333 = vpack.c.b16 %v4825, %v4821
    %v5334 = vpack.c.b16 %v4826, %v4822
    %v5335 = vpack.c.b16 %v4831, %v4827
    %v5336 = vpack.c.b16 %v4832, %v4828
    %v5337 = vpack.c.b16 %v4833, %v4829
    %v5338 = vpack.c.b16 %v4834, %v4830
    %v5339 = vpack.c.b16 %v4839, %v4835
    %v5340 = vpack.c.b16 %v4840, %v4836
    %v5341 = vpack.c.b16 %v4841, %v4837
    %v5342 = vpack.c.b16 %v4842, %v4838
    %v5343 = vpack.c.b16 %v4847, %v4843
    %v5344 = vpack.c.b16 %v4848, %v4844
    %v5345 = vpack.c.b16 %v4849, %v4845
    %v5346 = vpack.c.b16 %v4850, %v4846
    %v5347 = vpack.c.b16 %v4855, %v4851
    %v5348 = vpack.c.b16 %v4856, %v4852
    %v5349 = vpack.c.b16 %v4857, %v4853
    %v5350 = vpack.c.b16 %v4858, %v4854
    %v5351 = vpack.c.b16 %v4863, %v4859
    %v5352 = vpack.c.b16 %v4864, %v4860
    %v5353 = vpack.c.b16 %v4865, %v4861
    %v5354 = vpack.c.b16 %v4866, %v4862
    %v5355 = vpack.c.b16 %v4871, %v4867
    %v5356 = vpack.c.b16 %v4872, %v4868
    %v5357 = vpack.c.b16 %v4873, %v4869
    %v5358 = vpack.c.b16 %v4874, %v4870
    %v5359 = vpack.c.b16 %v4879, %v4875
    %v5360 = vpack.c.b16 %v4880, %v4876
    %v5361 = vpack.c.b16 %v4881, %v4877
    %v5362 = vpack.c.b16 %v4882, %v4878
    %v5363 = vpack.c.b16 %v4887, %v4883
    %v5364 = vpack.c.b16 %v4888, %v4884
    %v5365 = vpack.c.b16 %v4889, %v4885
    %v5366 = vpack.c.b16 %v4890, %v4886
    %v5367 = vpack.c.b16 %v4895, %v4891
    %v5368 = vpack.c.b16 %v4896, %v4892
    %v5369 = vpack.c.b16 %v4897, %v4893
    %v5370 = vpack.c.b16 %v4898, %v4894
    %v5371 = vpack.c.b16 %v4903, %v4899
    %v5372 = vpack.c.b16 %v4904, %v4900
    %v5373 = vpack.c.b16 %v4905, %v4901
    %v5374 = vpack.c.b16 %v4906, %v4902
    %v5375 = vpack.c.b16 %v4911, %v4907
    %v5376 = vpack.c.b16 %v4912, %v4908
    %v5377 = vpack.c.b16 %v4913, %v4909
    %v5378 = vpack.c.b16 %v4914, %v4910
    %v5379 = vpack.c.b16 %v4919, %v4915
    %v5380 = vpack.c.b16 %v4920, %v4916
    %v5381 = vpack.c.b16 %v4921, %v4917
    %v5382 = vpack.c.b16 %v4922, %v4918
    %v5383 = vpack.c.b16 %v4927, %v4923
    %v5384 = vpack.c.b16 %v4928, %v4924
    %v5385 = vpack.c.b16 %v4929, %v4925
    %v5386 = vpack.c.b16 %v4930, %v4926
    %v5387 = vpack.c.b16 %v4935, %v4931
    %v5388 = vpack.c.b16 %v4936, %v4932
    %v5389 = vpack.c.b16 %v4937, %v4933
    %v5390 = vpack.c.b16 %v4938, %v4934
    %v5391 = vpack.c.b16 %v4943, %v4939
    %v5392 = vpack.c.b16 %v4944, %v4940
    %v5393 = vpack.c.b16 %v4945, %v4941
    %v5394 = vpack.c.b16 %v4946, %v4942
    %v5395 = vpack.c.b16 %v4951, %v4947
    %v5396 = vpack.c.b16 %v4952, %v4948
    %v5397 = vpack.c.b16 %v4953, %v4949
    %v5398 = vpack.c.b16 %v4954, %v4950
    %v5399 = vpack.c.b16 %v4959, %v4955
    %v5400 = vpack.c.b16 %v4960, %v4956
    %v5401 = vpack.c.b16 %v4961, %v4957
    %v5402 = vpack.c.b16 %v4962, %v4958
    %v5403 = vpack.c.b16 %v4967, %v4963
    %v5404 = vpack.c.b16 %v4968, %v4964
    %v5405 = vpack.c.b16 %v4969, %v4965
    %v5406 = vpack.c.b16 %v4970, %v4966
    %v5407 = vpack.c.b16 %v4975, %v4971
    %v5408 = vpack.c.b16 %v4976, %v4972
    %v5409 = vpack.c.b16 %v4977, %v4973
    %v5410 = vpack.c.b16 %v4978, %v4974
    %v5411 = vpack.c.b16 %v4983, %v4979
    %v5412 = vpack.c.b16 %v4984, %v4980
    %v5413 = vpack.c.b16 %v4985, %v4981
    %v5414 = vpack.c.b16 %v4986, %v4982
    %v5415 = vpack.c.b16 %v4991, %v4987
    %v5416 = vpack.c.b16 %v4992, %v4988
    %v5417 = vpack.c.b16 %v4993, %v4989
    %v5418 = vpack.c.b16 %v4994, %v4990
    %v5419 = vpack.c.b16 %v4999, %v4995
    %v5420 = vpack.c.b16 %v5000, %v4996
    %v5421 = vpack.c.b16 %v5001, %v4997
    %v5422 = vpack.c.b16 %v5002, %v4998
    %v5423 = vpack.c.b16 %v5007, %v5003
    %v5424 = vpack.c.b16 %v5008, %v5004
    %v5425 = vpack.c.b16 %v5009, %v5005
    %v5426 = vpack.c.b16 %v5010, %v5006
    %v5427 = vpack.c.b16 %v5015, %v5011
    %v5428 = vpack.c.b16 %v5016, %v5012
    %v5429 = vpack.c.b16 %v5017, %v5013
    %v5430 = vpack.c.b16 %v5018, %v5014
    %v5431 = vpack.c.b16 %v5023, %v5019
    %v5432 = vpack.c.b16 %v5024, %v5020
    %v5433 = vpack.c.b16 %v5025, %v5021
    %v5434 = vpack.c.b16 %v5026, %v5022
    %v5435 = vpack.c.b16 %v5031, %v5027
    %v5436 = vpack.c.b16 %v5032, %v5028
    %v5437 = vpack.c.b16 %v5033, %v5029
    %v5438 = vpack.c.b16 %v5034, %v5030
    %v5439 = vpack.c.b16 %v5039, %v5035
    %v5440 = vpack.c.b16 %v5040, %v5036
    %v5441 = vpack.c.b16 %v5041, %v5037
    %v5442 = vpack.c.b16 %v5042, %v5038
    %v5443 = vpack.c.b16 %v5047, %v5043
    %v5444 = vpack.c.b16 %v5048, %v5044
    %v5445 = vpack.c.b16 %v5049, %v5045
    %v5446 = vpack.c.b16 %v5050, %v5046
    %v5447 = vpack.c.b16 %v5055, %v5051
    %v5448 = vpack.c.b16 %v5056, %v5052
    %v5449 = vpack.c.b16 %v5057, %v5053
    %v5450 = vpack.c.b16 %v5058, %v5054
    %v5451 = vpack.c.b16 %v5063, %v5059
    %v5452 = vpack.c.b16 %v5064, %v5060
    %v5453 = vpack.c.b16 %v5065, %v5061
    %v5454 = vpack.c.b16 %v5066, %v5062
    %v5455 = vpack.c.b16 %v5071, %v5067
    %v5456 = vpack.c.b16 %v5072, %v5068
    %v5457 = vpack.c.b16 %v5073, %v5069
    %v5458 = vpack.c.b16 %v5074, %v5070
    %v5459 = vpack.c.b16 %v5079, %v5075
    %v5460 = vpack.c.b16 %v5080, %v5076
    %v5461 = vpack.c.b16 %v5081, %v5077
    %v5462 = vpack.c.b16 %v5082, %v5078
    %v5463 = vpack.c.b16 %v5087, %v5083
    %v5464 = vpack.c.b16 %v5088, %v5084
    %v5465 = vpack.c.b16 %v5089, %v5085
    %v5466 = vpack.c.b16 %v5090, %v5086
    %v5467 = vpack.c.b16 %v5095, %v5091
    %v5468 = vpack.c.b16 %v5096, %v5092
    %v5469 = vpack.c.b16 %v5097, %v5093
    %v5470 = vpack.c.b16 %v5098, %v5094
    %v5471 = vpack.c.b16 %v5103, %v5099
    %v5472 = vpack.c.b16 %v5104, %v5100
    %v5473 = vpack.c.b16 %v5105, %v5101
    %v5474 = vpack.c.b16 %v5106, %v5102
    %v5475 = vpack.c.b16 %v5111, %v5107
    %v5476 = vpack.c.b16 %v5112, %v5108
    %v5477 = vpack.c.b16 %v5113, %v5109
    %v5478 = vpack.c.b16 %v5114, %v5110
    %v5479 = vpack.c.b16 %v5119, %v5115
    %v5480 = vpack.c.b16 %v5120, %v5116
    %v5481 = vpack.c.b16 %v5121, %v5117
    %v5482 = vpack.c.b16 %v5122, %v5118
    %v5483 = vpack.c.b16 %v5127, %v5123
    %v5484 = vpack.c.b16 %v5128, %v5124
    %v5485 = vpack.c.b16 %v5129, %v5125
    %v5486 = vpack.c.b16 %v5130, %v5126
    %v5487 = vpack.c.b16 %v5135, %v5131
    %v5488 = vpack.c.b16 %v5136, %v5132
    %v5489 = vpack.c.b16 %v5137, %v5133
    %v5490 = vpack.c.b16 %v5138, %v5134
    %v5491 = vpack.c.b16 %v5143, %v5139
    %v5492 = vpack.c.b16 %v5144, %v5140
    %v5493 = vpack.c.b16 %v5145, %v5141
    %v5494 = vpack.c.b16 %v5146, %v5142
    %v5495 = vpack.c.b16 %v5151, %v5147
    %v5496 = vpack.c.b16 %v5152, %v5148
    %v5497 = vpack.c.b16 %v5153, %v5149
    %v5498 = vpack.c.b16 %v5154, %v5150
    %v5499 = vpack.c.b16 %v5159, %v5155
    %v5500 = vpack.c.b16 %v5160, %v5156
    %v5501 = vpack.c.b16 %v5161, %v5157
    %v5502 = vpack.c.b16 %v5162, %v5158
    %v5503 = vpack.c.b16 %v5167, %v5163
    %v5504 = vpack.c.b16 %v5168, %v5164
    %v5505 = vpack.c.b16 %v5169, %v5165
    %v5506 = vpack.c.b16 %v5170, %v5166
    %v5507 = vpack.c.b16 %v5175, %v5171
    %v5508 = vpack.c.b16 %v5176, %v5172
    %v5509 = vpack.c.b16 %v5177, %v5173
    %v5510 = vpack.c.b16 %v5178, %v5174
    %v5511 = vpack.c.b16 %v5183, %v5179
    %v5512 = vpack.c.b16 %v5184, %v5180
    %v5513 = vpack.c.b16 %v5185, %v5181
    %v5514 = vpack.c.b16 %v5186, %v5182
    %v5515 = vpack.c.b16 %v5191, %v5187
    %v5516 = vpack.c.b16 %v5192, %v5188
    %v5517 = vpack.c.b16 %v5193, %v5189
    %v5518 = vpack.c.b16 %v5194, %v5190
    %v5519 = vpack.c.b16 %v5199, %v5195
    %v5520 = vpack.c.b16 %v5200, %v5196
    %v5521 = vpack.c.b16 %v5201, %v5197
    %v5522 = vpack.c.b16 %v5202, %v5198
    %v5523 = vpack.c.b16 %v5207, %v5203
    %v5524 = vpack.c.b16 %v5208, %v5204
    %v5525 = vpack.c.b16 %v5209, %v5205
    %v5526 = vpack.c.b16 %v5210, %v5206
    %v5527 = vpack.c.b16 %v5215, %v5211
    %v5528 = vpack.c.b16 %v5216, %v5212
    %v5529 = vpack.c.b16 %v5217, %v5213
    %v5530 = vpack.c.b16 %v5218, %v5214
    %v5531 = vpack.c.b16 %v5223, %v5219
    %v5532 = vpack.c.b16 %v5224, %v5220
    %v5533 = vpack.c.b16 %v5225, %v5221
    %v5534 = vpack.c.b16 %v5226, %v5222
    %v5535 = vpack.c.b16 %v5231, %v5227
    %v5536 = vpack.c.b16 %v5232, %v5228
    %v5537 = vpack.c.b16 %v5233, %v5229
    %v5538 = vpack.c.b16 %v5234, %v5230
    %v5539 = vpack.c.b16 %v5239, %v5235
    %v5540 = vpack.c.b16 %v5240, %v5236
    %v5541 = vpack.c.b16 %v5241, %v5237
    %v5542 = vpack.c.b16 %v5242, %v5238
    %v5543 = vpack.c.b16 %v5247, %v5243
    %v5544 = vpack.c.b16 %v5248, %v5244
    %v5545 = vpack.c.b16 %v5249, %v5245
    %v5546 = vpack.c.b16 %v5250, %v5246
    %v5547 = vpack.c.b16 %v5255, %v5251
    %v5548 = vpack.c.b16 %v5256, %v5252
    %v5549 = vpack.c.b16 %v5257, %v5253
    %v5550 = vpack.c.b16 %v5258, %v5254
    %v5551 = vpack.c.b16 %v5263, %v5259
    %v5552 = vpack.c.b16 %v5264, %v5260
    %v5553 = vpack.c.b16 %v5265, %v5261
    %v5554 = vpack.c.b16 %v5266, %v5262
    %v5555 = vpack.c.b16 %v5271, %v5267
    %v5556 = vpack.c.b16 %v5272, %v5268
    %v5557 = vpack.c.b16 %v5273, %v5269
    %v5558 = vpack.c.b16 %v5274, %v5270
    %v5559 = vpack.c.b16 %v5279, %v5275
    %v5560 = vpack.c.b16 %v5280, %v5276
    %v5561 = vpack.c.b16 %v5281, %v5277
    %v5562 = vpack.c.b16 %v5282, %v5278
    %v5563 = vpack.c.b16 %v5287, %v5283
    %v5564 = vpack.c.b16 %v5288, %v5284
    %v5565 = vpack.c.b16 %v5289, %v5285
    %v5566 = vpack.c.b16 %v5290, %v5286
    %v5567 = vpack.c.b16 %v5295, %v5291
    %v5568 = vpack.c.b16 %v5296, %v5292
    %v5569 = vpack.c.b16 %v5297, %v5293
    %v5570 = vpack.c.b16 %v5298, %v5294
    %v5571 = vpack.c.b16 %v5303, %v5299
    %v5572 = vpack.c.b16 %v5304, %v5300
    %v5573 = vpack.c.b16 %v5305, %v5301
    %v5574 = vpack.c.b16 %v5306, %v5302
    %v5575 = vpack.c.b16 %v5311, %v5307
    %v5576 = vpack.c.b16 %v5312, %v5308
    %v5577 = vpack.c.b16 %v5313, %v5309
    %v5578 = vpack.c.b16 %v5314, %v5310
    %v5579 = vpack.c.b16 %v5319, %v5315
    %v5580 = vpack.c.b16 %v5320, %v5316
    %v5581 = vpack.c.b16 %v5321, %v5317
    %v5582 = vpack.c.b16 %v5322, %v5318
    %v5583 = vpack.c.b16 %v5327, %v5323
    %v5584 = vpack.c.b16 %v5328, %v5324
    %v5585 = vpack.c.b16 %v5329, %v5325
    %v5586 = vpack.c.b16 %v5330, %v5326
    %5843 = vmatprep.subr.bf16.mxu0 %v5360
    %5844 = vmatpush1.bf16.msra.mxu0 %v5359
    %5845 = vmatprep.subr.bf16.mxu0 %v5356
    %5846 = vmatpush1.bf16.msra.mxu0 %v5355
    %5847 = vmatprep.subr.bf16.mxu0 %v5352
    %5848 = vmatpush1.bf16.msra.mxu0 %v5351
    %5849 = vmatprep.subr.bf16.mxu0 %v5348
    %5850 = vmatpush1.bf16.msra.mxu0 %v5347
    %5851 = vmatprep.subr.bf16.mxu0 %v5344
    %5852 = vmatpush1.bf16.msra.mxu0 %v5343
    %5853 = vmatprep.subr.bf16.mxu0 %v5340
    %5854 = vmatpush1.bf16.msra.mxu0 %v5339
    %5855 = vmatprep.subr.bf16.mxu0 %v5336
    %5856 = vmatpush1.bf16.msra.mxu0 %v5335
    %5857 = vmatprep.subr.bf16.mxu0 %v5332
    %5858 = vmatpush1.bf16.msra.mxu0 %v5331
    %5859 = vmatprep.subr.bf16.mxu0 %v5392
    %5860 = vmatpush2.bf16.msra.mxu0 %v5391
    %5861 = vmatprep.subr.bf16.mxu0 %v5388
    %5862 = vmatpush2.bf16.msra.mxu0 %v5387
    %5863 = vmatprep.subr.bf16.mxu0 %v5384
    %5864 = vmatpush2.bf16.msra.mxu0 %v5383
    %5865 = vmatprep.subr.bf16.mxu0 %v5380
    %5866 = vmatpush2.bf16.msra.mxu0 %v5379
    %5867 = vmatprep.subr.bf16.mxu0 %v5376
    %5868 = vmatpush2.bf16.msra.mxu0 %v5375
    %5869 = vmatprep.subr.bf16.mxu0 %v5372
    %5870 = vmatpush2.bf16.msra.mxu0 %v5371
    %5871 = vmatprep.subr.bf16.mxu0 %v5368
    %5872 = vmatpush2.bf16.msra.mxu0 %v5367
    %5873 = vmatprep.subr.bf16.mxu0 %v5364
    %5874 = vmatpush2.bf16.msra.mxu0 %v5363
    %5875 = vmatprep.mubr.bf16.mxu0 %v4278
    %5876 = vmatmul.mubr.bf16.gmra.mxu0 %v4277
    %v5877 = vpop.f32.mrf.mxu0
    %v5878 = vadd.f32 %v4546, %v5877
    %v5879 = vpop.f32.mrf.mxu0
    %v5880 = vadd.f32 %v4550, %v5879
    %v5881 = vpop.f32.mrf.mxu0
    %v5882 = vpop.f32.mrf.mxu0
    %5883 = vdwg.mxu0
    %5884 = vmatprep.subr.bf16.mxu0 %v5424
    %5885 = vmatpush1.bf16.msra.mxu0 %v5423
    %5886 = vmatprep.subr.bf16.mxu0 %v5420
    %5887 = vmatpush1.bf16.msra.mxu0 %v5419
    %5888 = vmatprep.subr.bf16.mxu0 %v5416
    %5889 = vmatpush1.bf16.msra.mxu0 %v5415
    %5890 = vmatprep.subr.bf16.mxu0 %v5412
    %5891 = vmatpush1.bf16.msra.mxu0 %v5411
    %5892 = vmatprep.subr.bf16.mxu0 %v5408
    %5893 = vmatpush1.bf16.msra.mxu0 %v5407
    %5894 = vmatprep.subr.bf16.mxu0 %v5404
    %5895 = vmatpush1.bf16.msra.mxu0 %v5403
    %5896 = vmatprep.subr.bf16.mxu0 %v5400
    %5897 = vmatpush1.bf16.msra.mxu0 %v5399
    %5898 = vmatprep.subr.bf16.mxu0 %v5396
    %5899 = vmatpush1.bf16.msra.mxu0 %v5395
    %5900 = vmatprep.subr.bf16.mxu0 %v5456
    %5901 = vmatpush2.bf16.msra.mxu0 %v5455
    %5902 = vmatprep.subr.bf16.mxu0 %v5452
    %5903 = vmatpush2.bf16.msra.mxu0 %v5451
    %5904 = vmatprep.subr.bf16.mxu0 %v5448
    %5905 = vmatpush2.bf16.msra.mxu0 %v5447
    %5906 = vmatprep.subr.bf16.mxu0 %v5444
    %5907 = vmatpush2.bf16.msra.mxu0 %v5443
    %5908 = vmatprep.subr.bf16.mxu0 %v5440
    %5909 = vmatpush2.bf16.msra.mxu0 %v5439
    %5910 = vmatprep.subr.bf16.mxu0 %v5436
    %5911 = vmatpush2.bf16.msra.mxu0 %v5435
    %5912 = vmatprep.subr.bf16.mxu0 %v5432
    %5913 = vmatpush2.bf16.msra.mxu0 %v5431
    %5914 = vmatprep.subr.bf16.mxu0 %v5428
    %5915 = vmatpush2.bf16.msra.mxu0 %v5427
    %5916 = vmatprep.mubr.bf16.mxu0 %v4280
    %5917 = vmatmul.mubr.bf16.gmra.mxu0 %v4279
    %v5918 = vpop.f32.mrf.mxu0
    %v5919 = vadd.f32 %v5878, %v5918
    %v5920 = vpop.f32.mrf.mxu0
    %v5921 = vadd.f32 %v5880, %v5920
    %v5922 = vpop.f32.mrf.mxu0
    %v5923 = vpop.f32.mrf.mxu0
    %5924 = vdwg.mxu0
    %5925 = vmatprep.subr.bf16.mxu0 %v5488
    %5926 = vmatpush1.bf16.msra.mxu0 %v5487
    %5927 = vmatprep.subr.bf16.mxu0 %v5484
    %5928 = vmatpush1.bf16.msra.mxu0 %v5483
    %5929 = vmatprep.subr.bf16.mxu0 %v5480
    %5930 = vmatpush1.bf16.msra.mxu0 %v5479
    %5931 = vmatprep.subr.bf16.mxu0 %v5476
    %5932 = vmatpush1.bf16.msra.mxu0 %v5475
    %5933 = vmatprep.subr.bf16.mxu0 %v5472
    %5934 = vmatpush1.bf16.msra.mxu0 %v5471
    %5935 = vmatprep.subr.bf16.mxu0 %v5468
    %5936 = vmatpush1.bf16.msra.mxu0 %v5467
    %5937 = vmatprep.subr.bf16.mxu0 %v5464
    %5938 = vmatpush1.bf16.msra.mxu0 %v5463
    %5939 = vmatprep.subr.bf16.mxu0 %v5460
    %5940 = vmatpush1.bf16.msra.mxu0 %v5459
    %5941 = vmatprep.subr.bf16.mxu0 %v5520
    %5942 = vmatpush2.bf16.msra.mxu0 %v5519
    %5943 = vmatprep.subr.bf16.mxu0 %v5516
    %5944 = vmatpush2.bf16.msra.mxu0 %v5515
    %5945 = vmatprep.subr.bf16.mxu0 %v5512
    %5946 = vmatpush2.bf16.msra.mxu0 %v5511
    %5947 = vmatprep.subr.bf16.mxu0 %v5508
    %5948 = vmatpush2.bf16.msra.mxu0 %v5507
    %5949 = vmatprep.subr.bf16.mxu0 %v5504
    %5950 = vmatpush2.bf16.msra.mxu0 %v5503
    %5951 = vmatprep.subr.bf16.mxu0 %v5500
    %5952 = vmatpush2.bf16.msra.mxu0 %v5499
    %5953 = vmatprep.subr.bf16.mxu0 %v5496
    %5954 = vmatpush2.bf16.msra.mxu0 %v5495
    %5955 = vmatprep.subr.bf16.mxu0 %v5492
    %5956 = vmatpush2.bf16.msra.mxu0 %v5491
    %5957 = vmatprep.mubr.bf16.mxu0 %v4282
    %5958 = vmatmul.mubr.bf16.gmra.mxu0 %v4281
    %v5959 = vpop.f32.mrf.mxu0
    %v5960 = vadd.f32 %v5919, %v5959
    %v5961 = vpop.f32.mrf.mxu0
    %v5962 = vadd.f32 %v5921, %v5961
    %v5963 = vpop.f32.mrf.mxu0
    %v5964 = vpop.f32.mrf.mxu0
    %5965 = vdwg.mxu0
    %5966 = vmatprep.subr.bf16.mxu0 %v5552
    %5967 = vmatpush1.bf16.msra.mxu0 %v5551
    %5968 = vmatprep.subr.bf16.mxu0 %v5548
    %5969 = vmatpush1.bf16.msra.mxu0 %v5547
    %5970 = vmatprep.subr.bf16.mxu0 %v5544
    %5971 = vmatpush1.bf16.msra.mxu0 %v5543
    %5972 = vmatprep.subr.bf16.mxu0 %v5540
    %5973 = vmatpush1.bf16.msra.mxu0 %v5539
    %5974 = vmatprep.subr.bf16.mxu0 %v5536
    %5975 = vmatpush1.bf16.msra.mxu0 %v5535
    %5976 = vmatprep.subr.bf16.mxu0 %v5532
    %5977 = vmatpush1.bf16.msra.mxu0 %v5531
    %5978 = vmatprep.subr.bf16.mxu0 %v5528
    %5979 = vmatpush1.bf16.msra.mxu0 %v5527
    %5980 = vmatprep.subr.bf16.mxu0 %v5524
    %5981 = vmatpush1.bf16.msra.mxu0 %v5523
    %5982 = vmatprep.subr.bf16.mxu0 %v5584
    %5983 = vmatpush2.bf16.msra.mxu0 %v5583
    %5984 = vmatprep.subr.bf16.mxu0 %v5580
    %5985 = vmatpush2.bf16.msra.mxu0 %v5579
    %5986 = vmatprep.subr.bf16.mxu0 %v5576
    %5987 = vmatpush2.bf16.msra.mxu0 %v5575
    %5988 = vmatprep.subr.bf16.mxu0 %v5572
    %5989 = vmatpush2.bf16.msra.mxu0 %v5571
    %5990 = vmatprep.subr.bf16.mxu0 %v5568
    %5991 = vmatpush2.bf16.msra.mxu0 %v5567
    %5992 = vmatprep.subr.bf16.mxu0 %v5564
    %5993 = vmatpush2.bf16.msra.mxu0 %v5563
    %5994 = vmatprep.subr.bf16.mxu0 %v5560
    %5995 = vmatpush2.bf16.msra.mxu0 %v5559
    %5996 = vmatprep.subr.bf16.mxu0 %v5556
    %5997 = vmatpush2.bf16.msra.mxu0 %v5555
    %5998 = vmatprep.mubr.bf16.mxu0 %v4284
    %5999 = vmatmul.mubr.bf16.gmra.mxu0 %v4283
    %v6000 = vpop.f32.mrf.mxu0
    %v6001 = vadd.f32 %v5960, %v6000
    %v6002 = vpop.f32.mrf.mxu0
    %v6003 = vadd.f32 %v5962, %v6002
    %v6004 = vpop.f32.mrf.mxu0
    %v6005 = vpop.f32.mrf.mxu0
    %6006 = vdwg.mxu0
    %6007 = vmatprep.subr.bf16.mxu0 %v5362
    %6008 = vmatpush1.bf16.msra.mxu0 %v5361
    %6009 = vmatprep.subr.bf16.mxu0 %v5358
    %6010 = vmatpush1.bf16.msra.mxu0 %v5357
    %6011 = vmatprep.subr.bf16.mxu0 %v5354
    %6012 = vmatpush1.bf16.msra.mxu0 %v5353
    %6013 = vmatprep.subr.bf16.mxu0 %v5350
    %6014 = vmatpush1.bf16.msra.mxu0 %v5349
    %6015 = vmatprep.subr.bf16.mxu0 %v5346
    %6016 = vmatpush1.bf16.msra.mxu0 %v5345
    %6017 = vmatprep.subr.bf16.mxu0 %v5342
    %6018 = vmatpush1.bf16.msra.mxu0 %v5341
    %6019 = vmatprep.subr.bf16.mxu0 %v5338
    %6020 = vmatpush1.bf16.msra.mxu0 %v5337
    %6021 = vmatprep.subr.bf16.mxu0 %v5334
    %6022 = vmatpush1.bf16.msra.mxu0 %v5333
    %6023 = vmatprep.subr.bf16.mxu0 %v5394
    %6024 = vmatpush2.bf16.msra.mxu0 %v5393
    %6025 = vmatprep.subr.bf16.mxu0 %v5390
    %6026 = vmatpush2.bf16.msra.mxu0 %v5389
    %6027 = vmatprep.subr.bf16.mxu0 %v5386
    %6028 = vmatpush2.bf16.msra.mxu0 %v5385
    %6029 = vmatprep.subr.bf16.mxu0 %v5382
    %6030 = vmatpush2.bf16.msra.mxu0 %v5381
    %6031 = vmatprep.subr.bf16.mxu0 %v5378
    %6032 = vmatpush2.bf16.msra.mxu0 %v5377
    %6033 = vmatprep.subr.bf16.mxu0 %v5374
    %6034 = vmatpush2.bf16.msra.mxu0 %v5373
    %6035 = vmatprep.subr.bf16.mxu0 %v5370
    %6036 = vmatpush2.bf16.msra.mxu0 %v5369
    %6037 = vmatprep.subr.bf16.mxu0 %v5366
    %6038 = vmatpush2.bf16.msra.mxu0 %v5365
    %6039 = vmatprep.mubr.bf16.mxu0 %v4278
    %6040 = vmatmul.mubr.bf16.gmra.mxu0 %v4277
    %v6041 = vpop.f32.mrf.mxu0
    %v6042 = vadd.f32 %v4554, %v6041
    %v6043 = vpop.f32.mrf.mxu0
    %v6044 = vadd.f32 %v4558, %v6043
    %v6045 = vpop.f32.mrf.mxu0
    %v6046 = vpop.f32.mrf.mxu0
    %6047 = vdwg.mxu0
    %6048 = vmatprep.subr.bf16.mxu0 %v5426
    %6049 = vmatpush1.bf16.msra.mxu0 %v5425
    %6050 = vmatprep.subr.bf16.mxu0 %v5422
    %6051 = vmatpush1.bf16.msra.mxu0 %v5421
    %6052 = vmatprep.subr.bf16.mxu0 %v5418
    %6053 = vmatpush1.bf16.msra.mxu0 %v5417
    %6054 = vmatprep.subr.bf16.mxu0 %v5414
    %6055 = vmatpush1.bf16.msra.mxu0 %v5413
    %6056 = vmatprep.subr.bf16.mxu0 %v5410
    %6057 = vmatpush1.bf16.msra.mxu0 %v5409
    %6058 = vmatprep.subr.bf16.mxu0 %v5406
    %6059 = vmatpush1.bf16.msra.mxu0 %v5405
    %6060 = vmatprep.subr.bf16.mxu0 %v5402
    %6061 = vmatpush1.bf16.msra.mxu0 %v5401
    %6062 = vmatprep.subr.bf16.mxu0 %v5398
    %6063 = vmatpush1.bf16.msra.mxu0 %v5397
    %6064 = vmatprep.subr.bf16.mxu0 %v5458
    %6065 = vmatpush2.bf16.msra.mxu0 %v5457
    %6066 = vmatprep.subr.bf16.mxu0 %v5454
    %6067 = vmatpush2.bf16.msra.mxu0 %v5453
    %6068 = vmatprep.subr.bf16.mxu0 %v5450
    %6069 = vmatpush2.bf16.msra.mxu0 %v5449
    %6070 = vmatprep.subr.bf16.mxu0 %v5446
    %6071 = vmatpush2.bf16.msra.mxu0 %v5445
    %6072 = vmatprep.subr.bf16.mxu0 %v5442
    %6073 = vmatpush2.bf16.msra.mxu0 %v5441
    %6074 = vmatprep.subr.bf16.mxu0 %v5438
    %6075 = vmatpush2.bf16.msra.mxu0 %v5437
    %6076 = vmatprep.subr.bf16.mxu0 %v5434
    %6077 = vmatpush2.bf16.msra.mxu0 %v5433
    %6078 = vmatprep.subr.bf16.mxu0 %v5430
    %6079 = vmatpush2.bf16.msra.mxu0 %v5429
    %6080 = vmatprep.mubr.bf16.mxu0 %v4280
    %6081 = vmatmul.mubr.bf16.gmra.mxu0 %v4279
    %v6082 = vpop.f32.mrf.mxu0
    %v6083 = vadd.f32 %v6042, %v6082
    %v6084 = vpop.f32.mrf.mxu0
    %v6085 = vadd.f32 %v6044, %v6084
    %v6086 = vpop.f32.mrf.mxu0
    %v6087 = vpop.f32.mrf.mxu0
    %6088 = vdwg.mxu0
    %6089 = vmatprep.subr.bf16.mxu0 %v5490
    %6090 = vmatpush1.bf16.msra.mxu0 %v5489
    %6091 = vmatprep.subr.bf16.mxu0 %v5486
    %6092 = vmatpush1.bf16.msra.mxu0 %v5485
    %6093 = vmatprep.subr.bf16.mxu0 %v5482
    %6094 = vmatpush1.bf16.msra.mxu0 %v5481
    %6095 = vmatprep.subr.bf16.mxu0 %v5478
    %6096 = vmatpush1.bf16.msra.mxu0 %v5477
    %6097 = vmatprep.subr.bf16.mxu0 %v5474
    %6098 = vmatpush1.bf16.msra.mxu0 %v5473
    %6099 = vmatprep.subr.bf16.mxu0 %v5470
    %6100 = vmatpush1.bf16.msra.mxu0 %v5469
    %6101 = vmatprep.subr.bf16.mxu0 %v5466
    %6102 = vmatpush1.bf16.msra.mxu0 %v5465
    %6103 = vmatprep.subr.bf16.mxu0 %v5462
    %6104 = vmatpush1.bf16.msra.mxu0 %v5461
    %6105 = vmatprep.subr.bf16.mxu0 %v5522
    %6106 = vmatpush2.bf16.msra.mxu0 %v5521
    %6107 = vmatprep.subr.bf16.mxu0 %v5518
    %6108 = vmatpush2.bf16.msra.mxu0 %v5517
    %6109 = vmatprep.subr.bf16.mxu0 %v5514
    %6110 = vmatpush2.bf16.msra.mxu0 %v5513
    %6111 = vmatprep.subr.bf16.mxu0 %v5510
    %6112 = vmatpush2.bf16.msra.mxu0 %v5509
    %6113 = vmatprep.subr.bf16.mxu0 %v5506
    %6114 = vmatpush2.bf16.msra.mxu0 %v5505
    %6115 = vmatprep.subr.bf16.mxu0 %v5502
    %6116 = vmatpush2.bf16.msra.mxu0 %v5501
    %6117 = vmatprep.subr.bf16.mxu0 %v5498
    %6118 = vmatpush2.bf16.msra.mxu0 %v5497
    %6119 = vmatprep.subr.bf16.mxu0 %v5494
    %6120 = vmatpush2.bf16.msra.mxu0 %v5493
    %6121 = vmatprep.mubr.bf16.mxu0 %v4282
    %6122 = vmatmul.mubr.bf16.gmra.mxu0 %v4281
    %v6123 = vpop.f32.mrf.mxu0
    %v6124 = vadd.f32 %v6083, %v6123
    %v6125 = vpop.f32.mrf.mxu0
    %v6126 = vadd.f32 %v6085, %v6125
    %v6127 = vpop.f32.mrf.mxu0
    %v6128 = vpop.f32.mrf.mxu0
    %6129 = vdwg.mxu0
    %6130 = vmatprep.subr.bf16.mxu0 %v5554
    %6131 = vmatpush1.bf16.msra.mxu0 %v5553
    %6132 = vmatprep.subr.bf16.mxu0 %v5550
    %6133 = vmatpush1.bf16.msra.mxu0 %v5549
    %6134 = vmatprep.subr.bf16.mxu0 %v5546
    %6135 = vmatpush1.bf16.msra.mxu0 %v5545
    %6136 = vmatprep.subr.bf16.mxu0 %v5542
    %6137 = vmatpush1.bf16.msra.mxu0 %v5541
    %6138 = vmatprep.subr.bf16.mxu0 %v5538
    %6139 = vmatpush1.bf16.msra.mxu0 %v5537
    %6140 = vmatprep.subr.bf16.mxu0 %v5534
    %6141 = vmatpush1.bf16.msra.mxu0 %v5533
    %6142 = vmatprep.subr.bf16.mxu0 %v5530
    %6143 = vmatpush1.bf16.msra.mxu0 %v5529
    %6144 = vmatprep.subr.bf16.mxu0 %v5526
    %6145 = vmatpush1.bf16.msra.mxu0 %v5525
    %6146 = vmatprep.subr.bf16.mxu0 %v5586
    %6147 = vmatpush2.bf16.msra.mxu0 %v5585
    %6148 = vmatprep.subr.bf16.mxu0 %v5582
    %6149 = vmatpush2.bf16.msra.mxu0 %v5581
    %6150 = vmatprep.subr.bf16.mxu0 %v5578
    %6151 = vmatpush2.bf16.msra.mxu0 %v5577
    %6152 = vmatprep.subr.bf16.mxu0 %v5574
    %6153 = vmatpush2.bf16.msra.mxu0 %v5573
    %6154 = vmatprep.subr.bf16.mxu0 %v5570
    %6155 = vmatpush2.bf16.msra.mxu0 %v5569
    %6156 = vmatprep.subr.bf16.mxu0 %v5566
    %6157 = vmatpush2.bf16.msra.mxu0 %v5565
    %6158 = vmatprep.subr.bf16.mxu0 %v5562
    %6159 = vmatpush2.bf16.msra.mxu0 %v5561
    %6160 = vmatprep.subr.bf16.mxu0 %v5558
    %6161 = vmatpush2.bf16.msra.mxu0 %v5557
    %6162 = vmatprep.mubr.bf16.mxu0 %v4284
    %6163 = vmatmul.mubr.bf16.gmra.mxu0 %v4283
    %v6164 = vpop.f32.mrf.mxu0
    %v6165 = vadd.f32 %v6124, %v6164
    %v6166 = vpop.f32.mrf.mxu0
    %v6167 = vadd.f32 %v6126, %v6166
    %v6168 = vpop.f32.mrf.mxu0
    %v6169 = vpop.f32.mrf.mxu0
    %6170 = vdwg.mxu0
    %v6171 = vmax.f32 %v6001, 0.0
    %v6172 = vmax.f32 %v6003, 0.0
    %v6173 = vmax.f32 %v6165, 0.0
    %v6174 = vmax.f32 %v6167, 0.0
    %v6175 = vpack.c.bf16 %v6171, %v6171
    %v6176 = vpack.c.bf16 %v6172, %v6172
    %v6177 = vpack.c.bf16 %v6173, %v6173
    %v6178 = vpack.c.bf16 %v6174, %v6174
    %v6179 = vld [vmem:[%s8] sm:$0xf]
    %v6180 = vld [vmem:[%s8 + $0x4] sm:$0xf]
    %v6181 = vld [vmem:[%s8 + $0x8] sm:$0xf]
    %v6182 = vld [vmem:[%s8 + $0xc] sm:$0xf]
    %v6183 = vld [vmem:[%s8 + $0x10] sm:$0xf]
    %v6184 = vld [vmem:[%s8 + $0x14] sm:$0xf]
    %v6185 = vld [vmem:[%s8 + $0x18] sm:$0xf]
    %v6186 = vld [vmem:[%s8 + $0x1c] sm:$0xf]
    %v6187 = vld [vmem:[%s8 + $0x20] sm:$0xf]
    %v6188 = vld [vmem:[%s8 + $0x24] sm:$0xf]
    %v6189 = vld [vmem:[%s8 + $0x28] sm:$0xf]
    %v6190 = vld [vmem:[%s8 + $0x2c] sm:$0xf]
    %v6191 = vld [vmem:[%s8 + $0x30] sm:$0xf]
    %v6192 = vld [vmem:[%s8 + $0x34] sm:$0xf]
    %v6193 = vld [vmem:[%s8 + $0x38] sm:$0xf]
    %v6194 = vld [vmem:[%s8 + $0x3c] sm:$0xf]
    %v6195 = vld [vmem:[%s8 + $0x40] sm:$0xf]
    %v6196 = vld [vmem:[%s8 + $0x44] sm:$0xf]
    %v6197 = vld [vmem:[%s8 + $0x48] sm:$0xf]
    %v6198 = vld [vmem:[%s8 + $0x4c] sm:$0xf]
    %v6199 = vld [vmem:[%s8 + $0x50] sm:$0xf]
    %v6200 = vld [vmem:[%s8 + $0x54] sm:$0xf]
    %v6201 = vld [vmem:[%s8 + $0x58] sm:$0xf]
    %v6202 = vld [vmem:[%s8 + $0x5c] sm:$0xf]
    %v6203 = vld [vmem:[%s8 + $0x60] sm:$0xf]
    %v6204 = vld [vmem:[%s8 + $0x64] sm:$0xf]
    %v6205 = vld [vmem:[%s8 + $0x68] sm:$0xf]
    %v6206 = vld [vmem:[%s8 + $0x6c] sm:$0xf]
    %v6207 = vld [vmem:[%s8 + $0x70] sm:$0xf]
    %v6208 = vld [vmem:[%s8 + $0x74] sm:$0xf]
    %v6209 = vld [vmem:[%s8 + $0x78] sm:$0xf]
    %v6210 = vld [vmem:[%s8 + $0x7c] sm:$0xf]
    %v6211 = vld [vmem:[%s8 + $0x80] sm:$0xf]
    %v6212 = vld [vmem:[%s8 + $0x84] sm:$0xf]
    %v6213 = vld [vmem:[%s8 + $0x88] sm:$0xf]
    %v6214 = vld [vmem:[%s8 + $0x8c] sm:$0xf]
    %v6215 = vld [vmem:[%s8 + $0x90] sm:$0xf]
    %v6216 = vld [vmem:[%s8 + $0x94] sm:$0xf]
    %v6217 = vld [vmem:[%s8 + $0x98] sm:$0xf]
    %v6218 = vld [vmem:[%s8 + $0x9c] sm:$0xf]
    %v6219 = vld [vmem:[%s8 + $0xa0] sm:$0xf]
    %v6220 = vld [vmem:[%s8 + $0xa4] sm:$0xf]
    %v6221 = vld [vmem:[%s8 + $0xa8] sm:$0xf]
    %v6222 = vld [vmem:[%s8 + $0xac] sm:$0xf]
    %v6223 = vld [vmem:[%s8 + $0xb0] sm:$0xf]
    %v6224 = vld [vmem:[%s8 + $0xb4] sm:$0xf]
    %v6225 = vld [vmem:[%s8 + $0xb8] sm:$0xf]
    %v6226 = vld [vmem:[%s8 + $0xbc] sm:$0xf]
    %v6227 = vld [vmem:[%s8 + $0xc0] sm:$0xf]
    %v6228 = vld [vmem:[%s8 + $0xc4] sm:$0xf]
    %v6229 = vld [vmem:[%s8 + $0xc8] sm:$0xf]
    %v6230 = vld [vmem:[%s8 + $0xcc] sm:$0xf]
    %v6231 = vld [vmem:[%s8 + $0xd0] sm:$0xf]
    %v6232 = vld [vmem:[%s8 + $0xd4] sm:$0xf]
    %v6233 = vld [vmem:[%s8 + $0xd8] sm:$0xf]
    %v6234 = vld [vmem:[%s8 + $0xdc] sm:$0xf]
    %v6235 = vld [vmem:[%s8 + $0xe0] sm:$0xf]
    %v6236 = vld [vmem:[%s8 + $0xe4] sm:$0xf]
    %v6237 = vld [vmem:[%s8 + $0xe8] sm:$0xf]
    %v6238 = vld [vmem:[%s8 + $0xec] sm:$0xf]
    %v6239 = vld [vmem:[%s8 + $0xf0] sm:$0xf]
    %v6240 = vld [vmem:[%s8 + $0xf4] sm:$0xf]
    %v6241 = vld [vmem:[%s8 + $0xf8] sm:$0xf]
    %v6242 = vld [vmem:[%s8 + $0xfc] sm:$0xf]
    %v6243 = vld [vmem:[%s9] sm:$0x1]
    %v6245 = vlaneseq
    %v6246 = vshrl.u32 %v6245, 7
    %v6247 = vsub.s32 0, %v6246
    %v6248 = vrot.slane %v6243, %v6247
    %v6314 = vunpack.c.l.b16 %v6179
    %v6315 = vunpack.c.l.b16 %v6180
    %v6316 = vunpack.c.l.b16 %v6181
    %v6317 = vunpack.c.l.b16 %v6182
    %v6318 = vunpack.c.l.b16 %v6183
    %v6319 = vunpack.c.l.b16 %v6184
    %v6320 = vunpack.c.l.b16 %v6185
    %v6321 = vunpack.c.l.b16 %v6186
    %v6322 = vunpack.c.l.b16 %v6187
    %v6323 = vunpack.c.l.b16 %v6188
    %v6324 = vunpack.c.l.b16 %v6189
    %v6325 = vunpack.c.l.b16 %v6190
    %v6326 = vunpack.c.l.b16 %v6191
    %v6327 = vunpack.c.l.b16 %v6192
    %v6328 = vunpack.c.l.b16 %v6193
    %v6329 = vunpack.c.l.b16 %v6194
    %v6330 = vunpack.c.l.b16 %v6195
    %v6331 = vunpack.c.l.b16 %v6196
    %v6332 = vunpack.c.l.b16 %v6197
    %v6333 = vunpack.c.l.b16 %v6198
    %v6334 = vunpack.c.l.b16 %v6199
    %v6335 = vunpack.c.l.b16 %v6200
    %v6336 = vunpack.c.l.b16 %v6201
    %v6337 = vunpack.c.l.b16 %v6202
    %v6338 = vunpack.c.l.b16 %v6203
    %v6339 = vunpack.c.l.b16 %v6204
    %v6340 = vunpack.c.l.b16 %v6205
    %v6341 = vunpack.c.l.b16 %v6206
    %v6342 = vunpack.c.l.b16 %v6207
    %v6343 = vunpack.c.l.b16 %v6208
    %v6344 = vunpack.c.l.b16 %v6209
    %v6345 = vunpack.c.l.b16 %v6210
    %v6346 = vunpack.c.l.b16 %v6211
    %v6347 = vunpack.c.l.b16 %v6212
    %v6348 = vunpack.c.l.b16 %v6213
    %v6349 = vunpack.c.l.b16 %v6214
    %v6350 = vunpack.c.l.b16 %v6215
    %v6351 = vunpack.c.l.b16 %v6216
    %v6352 = vunpack.c.l.b16 %v6217
    %v6353 = vunpack.c.l.b16 %v6218
    %v6354 = vunpack.c.l.b16 %v6219
    %v6355 = vunpack.c.l.b16 %v6220
    %v6356 = vunpack.c.l.b16 %v6221
    %v6357 = vunpack.c.l.b16 %v6222
    %v6358 = vunpack.c.l.b16 %v6223
    %v6359 = vunpack.c.l.b16 %v6224
    %v6360 = vunpack.c.l.b16 %v6225
    %v6361 = vunpack.c.l.b16 %v6226
    %v6362 = vunpack.c.l.b16 %v6227
    %v6363 = vunpack.c.l.b16 %v6228
    %v6364 = vunpack.c.l.b16 %v6229
    %v6365 = vunpack.c.l.b16 %v6230
    %v6366 = vunpack.c.l.b16 %v6231
    %v6367 = vunpack.c.l.b16 %v6232
    %v6368 = vunpack.c.l.b16 %v6233
    %v6369 = vunpack.c.l.b16 %v6234
    %v6370 = vunpack.c.l.b16 %v6235
    %v6371 = vunpack.c.l.b16 %v6236
    %v6372 = vunpack.c.l.b16 %v6237
    %v6373 = vunpack.c.l.b16 %v6238
    %v6374 = vunpack.c.l.b16 %v6239
    %v6375 = vunpack.c.l.b16 %v6240
    %v6376 = vunpack.c.l.b16 %v6241
    %v6377 = vunpack.c.l.b16 %v6242
    %v6378 = vpack.c.b16 %v6315, %v6314
    %v6379 = vpack.c.b16 %v6317, %v6316
    %v6380 = vpack.c.b16 %v6319, %v6318
    %v6381 = vpack.c.b16 %v6321, %v6320
    %v6382 = vpack.c.b16 %v6323, %v6322
    %v6383 = vpack.c.b16 %v6325, %v6324
    %v6384 = vpack.c.b16 %v6327, %v6326
    %v6385 = vpack.c.b16 %v6329, %v6328
    %v6386 = vpack.c.b16 %v6331, %v6330
    %v6387 = vpack.c.b16 %v6333, %v6332
    %v6388 = vpack.c.b16 %v6335, %v6334
    %v6389 = vpack.c.b16 %v6337, %v6336
    %v6390 = vpack.c.b16 %v6339, %v6338
    %v6391 = vpack.c.b16 %v6341, %v6340
    %v6392 = vpack.c.b16 %v6343, %v6342
    %v6393 = vpack.c.b16 %v6345, %v6344
    %v6394 = vpack.c.b16 %v6347, %v6346
    %v6395 = vpack.c.b16 %v6349, %v6348
    %v6396 = vpack.c.b16 %v6351, %v6350
    %v6397 = vpack.c.b16 %v6353, %v6352
    %v6398 = vpack.c.b16 %v6355, %v6354
    %v6399 = vpack.c.b16 %v6357, %v6356
    %v6400 = vpack.c.b16 %v6359, %v6358
    %v6401 = vpack.c.b16 %v6361, %v6360
    %v6402 = vpack.c.b16 %v6363, %v6362
    %v6403 = vpack.c.b16 %v6365, %v6364
    %v6404 = vpack.c.b16 %v6367, %v6366
    %v6405 = vpack.c.b16 %v6369, %v6368
    %v6406 = vpack.c.b16 %v6371, %v6370
    %v6407 = vpack.c.b16 %v6373, %v6372
    %v6408 = vpack.c.b16 %v6375, %v6374
    %v6409 = vpack.c.b16 %v6377, %v6376
    %6442 = vmatprep.subr.bf16.mxu0 0
    %6443 = vmatpush1.bf16.msra.mxu0 %v6385
    %6444 = vmatprep.subr.bf16.mxu0 0
    %6445 = vmatpush1.bf16.msra.mxu0 %v6384
    %6446 = vmatprep.subr.bf16.mxu0 0
    %6447 = vmatpush1.bf16.msra.mxu0 %v6383
    %6448 = vmatprep.subr.bf16.mxu0 0
    %6449 = vmatpush1.bf16.msra.mxu0 %v6382
    %6450 = vmatprep.subr.bf16.mxu0 0
    %6451 = vmatpush1.bf16.msra.mxu0 %v6381
    %6452 = vmatprep.subr.bf16.mxu0 0
    %6453 = vmatpush1.bf16.msra.mxu0 %v6380
    %6454 = vmatprep.subr.bf16.mxu0 0
    %6455 = vmatpush1.bf16.msra.mxu0 %v6379
    %6456 = vmatprep.subr.bf16.mxu0 0
    %6457 = vmatpush1.bf16.msra.mxu0 %v6378
    %6458 = vmatprep.subr.bf16.mxu0 0
    %6459 = vmatpush2.bf16.msra.mxu0 %v6393
    %6460 = vmatprep.subr.bf16.mxu0 0
    %6461 = vmatpush2.bf16.msra.mxu0 %v6392
    %6462 = vmatprep.subr.bf16.mxu0 0
    %6463 = vmatpush2.bf16.msra.mxu0 %v6391
    %6464 = vmatprep.subr.bf16.mxu0 0
    %6465 = vmatpush2.bf16.msra.mxu0 %v6390
    %6466 = vmatprep.subr.bf16.mxu0 0
    %6467 = vmatpush2.bf16.msra.mxu0 %v6389
    %6468 = vmatprep.subr.bf16.mxu0 0
    %6469 = vmatpush2.bf16.msra.mxu0 %v6388
    %6470 = vmatprep.subr.bf16.mxu0 0
    %6471 = vmatpush2.bf16.msra.mxu0 %v6387
    %6472 = vmatprep.subr.bf16.mxu0 0
    %6473 = vmatpush2.bf16.msra.mxu0 %v6386
    %6474 = vmatprep.mubr.bf16.mxu0 %v6176
    %6475 = vmatmul.mubr.bf16.gmra.mxu0 %v6175
    %v6476 = vpop.f32.mrf.mxu0
    %v6477 = vadd.f32 %v6248, %v6476
    %v6478 = vpop.f32.mrf.mxu0
    %v6479 = vpop.f32.mrf.mxu0
    %v6480 = vpop.f32.mrf.mxu0
    %6481 = vdwg.mxu0
    %6482 = vmatprep.subr.bf16.mxu0 0
    %6483 = vmatpush1.bf16.msra.mxu0 %v6401
    %6484 = vmatprep.subr.bf16.mxu0 0
    %6485 = vmatpush1.bf16.msra.mxu0 %v6400
    %6486 = vmatprep.subr.bf16.mxu0 0
    %6487 = vmatpush1.bf16.msra.mxu0 %v6399
    %6488 = vmatprep.subr.bf16.mxu0 0
    %6489 = vmatpush1.bf16.msra.mxu0 %v6398
    %6490 = vmatprep.subr.bf16.mxu0 0
    %6491 = vmatpush1.bf16.msra.mxu0 %v6397
    %6492 = vmatprep.subr.bf16.mxu0 0
    %6493 = vmatpush1.bf16.msra.mxu0 %v6396
    %6494 = vmatprep.subr.bf16.mxu0 0
    %6495 = vmatpush1.bf16.msra.mxu0 %v6395
    %6496 = vmatprep.subr.bf16.mxu0 0
    %6497 = vmatpush1.bf16.msra.mxu0 %v6394
    %6498 = vmatprep.subr.bf16.mxu0 0
    %6499 = vmatpush2.bf16.msra.mxu0 %v6409
    %6500 = vmatprep.subr.bf16.mxu0 0
    %6501 = vmatpush2.bf16.msra.mxu0 %v6408
    %6502 = vmatprep.subr.bf16.mxu0 0
    %6503 = vmatpush2.bf16.msra.mxu0 %v6407
    %6504 = vmatprep.subr.bf16.mxu0 0
    %6505 = vmatpush2.bf16.msra.mxu0 %v6406
    %6506 = vmatprep.subr.bf16.mxu0 0
    %6507 = vmatpush2.bf16.msra.mxu0 %v6405
    %6508 = vmatprep.subr.bf16.mxu0 0
    %6509 = vmatpush2.bf16.msra.mxu0 %v6404
    %6510 = vmatprep.subr.bf16.mxu0 0
    %6511 = vmatpush2.bf16.msra.mxu0 %v6403
    %6512 = vmatprep.subr.bf16.mxu0 0
    %6513 = vmatpush2.bf16.msra.mxu0 %v6402
    %6514 = vmatprep.mubr.bf16.mxu0 %v6178
    %6515 = vmatmul.mubr.bf16.gmra.mxu0 %v6177
    %v6516 = vpop.f32.mrf.mxu0
    %v6517 = vadd.f32 %v6477, %v6516
    %v6518 = vpop.f32.mrf.mxu0
    %v6519 = vpop.f32.mrf.mxu0
    %v6520 = vpop.f32.mrf.mxu0
    %6521 = vdwg.mxu0
    %v6522 = vmax.f32 %v6517, 0.0
    %v6523 = vpack.c.bf16 %v6522, %v6522
    %v6524 = vld [vmem:[%s10] sm:$0xf]
    %v6525 = vld [vmem:[%s10 + $0x4] sm:$0xf]
    %v6526 = vld [vmem:[%s10 + $0x8] sm:$0xf]
    %v6527 = vld [vmem:[%s10 + $0xc] sm:$0xf]
    %v6528 = vld [vmem:[%s10 + $0x10] sm:$0xf]
    %v6529 = vld [vmem:[%s10 + $0x14] sm:$0xf]
    %v6530 = vld [vmem:[%s10 + $0x18] sm:$0xf]
    %v6531 = vld [vmem:[%s10 + $0x1c] sm:$0xf]
    %v6532 = vld [vmem:[%s10 + $0x20] sm:$0xf]
    %v6533 = vld [vmem:[%s10 + $0x24] sm:$0xf]
    %v6534 = vld [vmem:[%s10 + $0x28] sm:$0xf]
    %v6535 = vld [vmem:[%s10 + $0x2c] sm:$0xf]
    %v6536 = vld [vmem:[%s10 + $0x30] sm:$0xf]
    %v6537 = vld [vmem:[%s10 + $0x34] sm:$0xf]
    %v6538 = vld [vmem:[%s10 + $0x38] sm:$0xf]
    %v6539 = vld [vmem:[%s10 + $0x3c] sm:$0xf]
    %v6540 = vld [vmem:[%s12] sm:$0x1]
    %v6542 = vlaneseq
    %v6543 = vshrl.u32 %v6542, 7
    %v6544 = vsub.s32 0, %v6543
    %v6545 = vrot.slane %v6540, %v6544
    %v6563 = vunpack.c.l.b16 %v6524
    %v6564 = vunpack.c.l.b16 %v6525
    %v6565 = vunpack.c.l.b16 %v6526
    %v6566 = vunpack.c.l.b16 %v6527
    %v6567 = vunpack.c.l.b16 %v6528
    %v6568 = vunpack.c.l.b16 %v6529
    %v6569 = vunpack.c.l.b16 %v6530
    %v6570 = vunpack.c.l.b16 %v6531
    %v6571 = vunpack.c.l.b16 %v6532
    %v6572 = vunpack.c.l.b16 %v6533
    %v6573 = vunpack.c.l.b16 %v6534
    %v6574 = vunpack.c.l.b16 %v6535
    %v6575 = vunpack.c.l.b16 %v6536
    %v6576 = vunpack.c.l.b16 %v6537
    %v6577 = vunpack.c.l.b16 %v6538
    %v6578 = vunpack.c.l.b16 %v6539
    %v6579 = vpack.c.b16 %v6564, %v6563
    %v6580 = vpack.c.b16 %v6566, %v6565
    %v6581 = vpack.c.b16 %v6568, %v6567
    %v6582 = vpack.c.b16 %v6570, %v6569
    %v6583 = vpack.c.b16 %v6572, %v6571
    %v6584 = vpack.c.b16 %v6574, %v6573
    %v6585 = vpack.c.b16 %v6576, %v6575
    %v6586 = vpack.c.b16 %v6578, %v6577
    %6595 = vmatprep.subr.bf16.mxu0 0
    %6596 = vmatpush1.bf16.msra.mxu0 %v6586
    %6597 = vmatprep.subr.bf16.mxu0 0
    %6598 = vmatpush1.bf16.msra.mxu0 %v6585
    %6599 = vmatprep.subr.bf16.mxu0 0
    %6600 = vmatpush1.bf16.msra.mxu0 %v6584
    %6601 = vmatprep.subr.bf16.mxu0 0
    %6602 = vmatpush1.bf16.msra.mxu0 %v6583
    %6603 = vmatprep.subr.bf16.mxu0 0
    %6604 = vmatpush1.bf16.msra.mxu0 %v6582
    %6605 = vmatprep.subr.bf16.mxu0 0
    %6606 = vmatpush1.bf16.msra.mxu0 %v6581
    %6607 = vmatprep.subr.bf16.mxu0 0
    %6608 = vmatpush1.bf16.msra.mxu0 %v6580
    %6609 = vmatprep.subr.bf16.mxu0 0
    %6610 = vmatpush1.bf16.msra.mxu0 %v6579
    %6611 = vmatprep.subr.bf16.mxu0 0
    %6612 = vmatpush2.bf16.msra.mxu0 0
    %6613 = vmatprep.subr.bf16.mxu0 0
    %6614 = vmatpush2.bf16.msra.mxu0 0
    %6615 = vmatprep.subr.bf16.mxu0 0
    %6616 = vmatpush2.bf16.msra.mxu0 0
    %6617 = vmatprep.subr.bf16.mxu0 0
    %6618 = vmatpush2.bf16.msra.mxu0 0
    %6619 = vmatprep.subr.bf16.mxu0 0
    %6620 = vmatpush2.bf16.msra.mxu0 0
    %6621 = vmatprep.subr.bf16.mxu0 0
    %6622 = vmatpush2.bf16.msra.mxu0 0
    %6623 = vmatprep.subr.bf16.mxu0 0
    %6624 = vmatpush2.bf16.msra.mxu0 0
    %6625 = vmatprep.subr.bf16.mxu0 0
    %6626 = vmatpush2.bf16.msra.mxu0 0
    %6627 = vmatprep.mubr.bf16.mxu0 0
    %6628 = vmatmul.mubr.bf16.gmra.mxu0 %v6523
    %v6629 = vpop.f32.mrf.mxu0
    %v6630 = vadd.f32 %v6545, %v6629
    %v6631 = vpop.f32.mrf.mxu0
    %v6632 = vpop.f32.mrf.mxu0
    %v6633 = vpop.f32.mrf.mxu0
    %6634 = vdwg.mxu0
    %v6635 = vld [vmem:[%s1] sm:$0x3]
    %v6636 = vld [vmem:[%s11] sm:$0x1]
    %6638 = vset.pattern.permute.xlu0 0
    %6639 = vperm.xlu0 %6638, %v6635
    %v6640 = vpop.permute.xlu0 %6639
    %v6642 = vlaneseq
    %v6643 = vshrl.u32 %v6642, 7
    %v6644 = vsub.s32 0, %v6643
    %v6645 = vrot.slane %v6636, %v6644
    %v6646 = vmul.f32 %v6640, %v6645
    %v6647 = vadd.f32 %v6630, %v6646
    %v6648 = vld [vmem:[%s11 + $0x1] sm:$0x1]
    %6649 = vset.pattern.permute.xlu0 1
    %6650 = vperm.xlu0 %6649, %v6635
    %v6651 = vpop.permute.xlu0 %6650
    %v6653 = vlaneseq
    %v6654 = vshrl.u32 %v6653, 7
    %v6655 = vsub.s32 0, %v6654
    %v6656 = vrot.slane %v6648, %v6655
    %v6657 = vmul.f32 %v6651, %v6656
    %v6658 = vadd.f32 %v6647, %v6657
    %vm6659 = vcmask 58368
    %6660 = vst.msk [vmem:[#allocation8] sm:$0x3] %vm6659, %v6658
    // Predicated region
    $region84: #{lowres_cnn3d_forward.1} parent=1 // pred_check
      _
    $region85: #{lowres_cnn3d_forward.1} parent=1 // pred_check_branch
      %6662 = sbr.rel (0) target = $region87
    $region86: #{lowres_cnn3d_forward.1} parent=1 // pred_region
      %s6664 = ssub.s32 32, 32
      %6665 = vsyncadd [#allocation9], %s6664
      %s6667 = sshll.u32 [#allocation8], 4
      %s6668 = int_to_ptr.vmem [resolvable:$true] %s6667
      %6670 = dma.vmem_to_hbm [thread:$0]  %s6668, 32, %s13, [#allocation9]
    $region87: #{lowres_cnn3d_forward.1} parent=1 // pred_fallthru
      _
    // Predicated region
    $region88: #{lowres_cnn3d_forward.1} parent=1 // pred_check
      _
    $region89: #{lowres_cnn3d_forward.1} parent=1 // pred_check_branch
      %6672 = sbr.rel (0) target = $region91
    $region90: #{lowres_cnn3d_forward.1} parent=1 // pred_region
      %6673 = dma.done [#allocation9], 32
    $region91: #{lowres_cnn3d_forward.1} parent=1 // pred_fallthru
      _
    %6674 = vsyncpa [#allocation9], 1
  %6675 = vsyncmov [#allocation3]
  %s6676 = vpop.sfrf %6675
  %p6677 = scmp.eq.s32.totalorder %s6676, 0
  %p6678 = pneg %p6677
  %6680 = shalt.err (%p6678)

</llo_original>
